<compile_context>
chip_gen: v7x
topology: tpu7x:2x2x1
jax: 0.10.0
libtpu: 0.0.40
codegen_flags: <defaults>
</compile_context>

<pallas_src>
import jax
import jax.numpy as jnp
from jax.experimental import pallas as pl
from jax.experimental.pallas import tpu as pltpu


# ----------------------------------------------------------------------------
# Pallas kernels
# ----------------------------------------------------------------------------
def _conv_bn_relu_pool_kernel(p_ref, w_ref, b_ref, o_ref):
    """Fused conv-as-matmul + folded-BN shift + ReLU + 2x2 max-pool.

    p_ref: (4, K, bm)  im2col columns grouped by pooling corner (bf16)
    w_ref: (OC, K)     conv weights with BN scale folded in (bf16)
    b_ref: (OC, 1)     folded conv-bias / BN shift (f32)
    o_ref: (OC, bm)    pooled activations (bf16), lane-dense along bm
    """
    w = w_ref[...]
    m = jnp.dot(w, p_ref[0], preferred_element_type=jnp.float32)
    for c in range(1, 4):
        m = jnp.maximum(m, jnp.dot(w, p_ref[c],
                                   preferred_element_type=jnp.float32))
    # NOTE: taking the 4-corner max *before* bias + ReLU is only valid because
    # the folded bias/BN shift is per-channel (identical across the pooled
    # corners) and bias-add / ReLU are monotonic.  A per-position scale or
    # bias would break this commutation.
    o_ref[...] = jnp.maximum(m + b_ref[...], 0.0).astype(o_ref.dtype)


def _fc3_kernel(x_ref, w1_ref, b1_ref, w2_ref, b2_ref, w3_ref, b3_ref, o_ref):
    """fc1+ReLU -> fc2+ReLU -> fc3, fully fused; everything stays in VMEM.

    Transposed orientation: x_ref is (400, bn) so batch is the lane dim.
    """
    h = jnp.dot(w1_ref[...], x_ref[...], preferred_element_type=jnp.float32)
    h = jnp.maximum(h + b1_ref[...], 0.0)
    # TODO(synk): dropout1 (p=0.2) is identity in eval mode.
    h = jnp.dot(w2_ref[...], h.astype(w2_ref.dtype),
                preferred_element_type=jnp.float32)
    h = jnp.maximum(h + b2_ref[...], 0.0)
    # TODO(synk): dropout2 (p=0.2) is identity in eval mode.
    o = jnp.dot(w3_ref[...], h.astype(w3_ref.dtype),
                preferred_element_type=jnp.float32)
    o_ref[...] = o + b3_ref[...]


# ----------------------------------------------------------------------------
# pallas_call wrappers
# ----------------------------------------------------------------------------
_VMEM_LIMIT = 40 * 1024 * 1024   # > 16/32 MiB defaults, < v7x's 64 MiB physical
_SMALL_M = 512                   # below this, one full-extent block (demo path)


def _pick_tile(m, cap):
    """Lane-dim tile.

    Tiny M -> one full-extent block (always a legal block shape).  Otherwise a
    128-multiple tile of ~M/2 (so the grid has >= 2 steps and both v7x
    TensorCores get work), capped per stage so the double-buffered block stays
    comfortably inside scoped VMEM on every generation.
    """
    if m <= _SMALL_M:
        return m
    half = -(-m // 2)
    half = -(-half // 128) * 128
    return min(cap, half)


def conv_bn_relu_pool(patches, w, b, *, tile_cap):
    """(4, K, M) corner-grouped patch columns -> (OC, M) pooled activations."""
    _, k_dim, m_dim = patches.shape
    oc = w.shape[0]
    bm = _pick_tile(m_dim, tile_cap)
    return pl.pallas_call(
        _conv_bn_relu_pool_kernel,
        out_shape=jax.ShapeDtypeStruct((oc, m_dim), jnp.bfloat16),
        grid=(pl.cdiv(m_dim, bm),),
        in_specs=[
            pl.BlockSpec((4, k_dim, bm), lambda i: (0, 0, i)),
            pl.BlockSpec((oc, k_dim), lambda i: (0, 0)),
            pl.BlockSpec((oc, 1), lambda i: (0, 0)),
        ],
        out_specs=pl.BlockSpec((oc, bm), lambda i: (0, i)),
        compiler_params=pltpu.CompilerParams(
            dimension_semantics=("parallel",),
            # Allow XLA to fuse the im2col slice/stack producer into this
            # call's input pipeline instead of materializing (4, K, M) in HBM.
            allow_input_fusion=[True, False, False],
            vmem_limit_bytes=_VMEM_LIMIT),
    )(patches, w, b)


def fc_stack(x_t, p, *, tile_cap):
    """(400, N) flattened features -> (10, N) logits, one fused pallas_call."""
    f_in, n = x_t.shape
    bn = _pick_tile(n, tile_cap)
    full = lambda i: (0, 0)
    return pl.pallas_call(
        _fc3_kernel,
        out_shape=jax.ShapeDtypeStruct((10, n), jnp.float32),
        grid=(pl.cdiv(n, bn),),
        in_specs=[
            pl.BlockSpec((f_in, bn), lambda i: (0, i)),
            pl.BlockSpec((120, 400), full), pl.BlockSpec((120, 1), full),
            pl.BlockSpec((84, 120), full), pl.BlockSpec((84, 1), full),
            pl.BlockSpec((10, 84), full), pl.BlockSpec((10, 1), full),
        ],
        out_specs=pl.BlockSpec((10, bn), lambda i: (0, i)),
        compiler_params=pltpu.CompilerParams(
            dimension_semantics=("parallel",),
            vmem_limit_bytes=_VMEM_LIMIT),
    )(x_t, p["fc1_w"], p["fc1_b"], p["fc2_w"], p["fc2_b"],
      p["fc3_w"], p["fc3_b"])


# ----------------------------------------------------------------------------
# Trace-time glue: corner-grouped im2col, parameter folding
# ----------------------------------------------------------------------------
def _corner_patches(x_chwn, k, p_out):
    """Corner-grouped im2col for a k x k stride-1 conv followed by 2x2/2 pool.

    x_chwn: (C, H, W, N) channel-major input (already zero-padded as needed),
            with batch N as the minor dim.
    Returns (4, k*k*C, p_out*p_out*N).  Column order is (ph, pw, n) so the
    conv kernel's pooled output reshapes for free to (OC, p, p, N); K-dim
    order is (ki, kj, c), matching the prepared weight matrices.

    TODO(synk): patch extraction still runs as XLA ops outside the kernel;
    allow_input_fusion on the consuming pallas_call asks XLA to fuse this
    producer into the input pipeline.  Fully in-kernel extraction from a
    resident VMEM tile would remove the dependency on that fusion.
    """
    c_dim = x_chwn.shape[0]
    n_dim = x_chwn.shape[3]
    m = p_out * p_out * n_dim
    span = 2 * p_out - 1
    corners = []
    for a in (0, 1):
        for b in (0, 1):
            taps = []
            for ki in range(k):
                for kj in range(k):
                    taps.append(x_chwn[:,
                                       a + ki:a + ki + span:2,
                                       b + kj:b + kj + span:2,
                                       :])
            t = jnp.stack(taps, axis=0)              # (k*k, C, p, p, N)
            corners.append(t.reshape(k * k * c_dim, m))
    return jnp.stack(corners, axis=0)                # (4, k*k*C, M)


def init_raw_params(key):
    ks = jax.random.split(key, 12)
    p = {}
    p["conv1_w"] = 0.1 * jax.random.normal(ks[0], (6, 1, 5, 5), jnp.float32)
    p["conv1_b"] = 0.1 * jax.random.normal(ks[1], (6,), jnp.float32)
    p["bn1_g"] = 1.0 + 0.1 * jax.random.normal(ks[2], (6,), jnp.float32)
    p["bn1_b"] = 0.1 * jax.random.normal(ks[3], (6,), jnp.float32)
    p["bn1_m"] = 0.1 * jax.random.normal(ks[4], (6,), jnp.float32)
    p["bn1_v"] = jnp.abs(1.0 + 0.1 * jax.random.normal(ks[5], (6,), jnp.float32))
    p["conv2_w"] = 0.1 * jax.random.normal(ks[6], (16, 6, 5, 5), jnp.float32)
    p["conv2_b"] = 0.1 * jax.random.normal(ks[7], (16,), jnp.float32)
    p["bn2_g"] = 1.0 + 0.1 * jax.random.normal(ks[8], (16,), jnp.float32)
    p["bn2_b"] = 0.1 * jax.random.normal(ks[9], (16,), jnp.float32)
    p["bn2_m"] = 0.1 * jax.random.normal(ks[10], (16,), jnp.float32)
    p["bn2_v"] = jnp.abs(1.0 + 0.1 * jax.random.normal(ks[11], (16,), jnp.float32))
    kf = jax.random.split(jax.random.fold_in(key, 1), 6)
    p["fc1_w"] = 0.05 * jax.random.normal(kf[0], (120, 400), jnp.float32)  # (out, in)
    p["fc1_b"] = 0.05 * jax.random.normal(kf[1], (120,), jnp.float32)
    p["fc2_w"] = 0.05 * jax.random.normal(kf[2], (84, 120), jnp.float32)
    p["fc2_b"] = 0.05 * jax.random.normal(kf[3], (84,), jnp.float32)
    p["fc3_w"] = 0.05 * jax.random.normal(kf[4], (10, 84), jnp.float32)
    p["fc3_b"] = 0.05 * jax.random.normal(kf[5], (10,), jnp.float32)
    return p


def prepare_params(raw, eps=1e-5):
    """Fold eval-mode BN into conv weights/bias, pad channels, cast to bf16.

    Runs once, outside the jitted forward.  Conv weights end up (OC, ki*kj*IC)
    with BN scale folded in; FC weights stay (out, in) so the transposed FC
    kernel uses them directly.
    """
    s1 = raw["bn1_g"] / jnp.sqrt(raw["bn1_v"] + eps)               # (6,)
    w1 = jnp.transpose(raw["conv1_w"], (0, 2, 3, 1)).reshape(6, 25)
    w1 = w1 * s1[:, None]
    b1 = (raw["conv1_b"] - raw["bn1_m"]) * s1 + raw["bn1_b"]
    w1 = jnp.pad(w1, ((0, 2), (0, 0)))                             # OC 6 -> 8
    b1 = jnp.pad(b1, (0, 2))[:, None]                              # (8, 1)

    s2 = raw["bn2_g"] / jnp.sqrt(raw["bn2_v"] + eps)               # (16,)
    w2 = jnp.transpose(raw["conv2_w"], (0, 2, 3, 1))               # (16,5,5,6)
    w2 = jnp.pad(w2, ((0, 0), (0, 0), (0, 0), (0, 2)))             # IC 6 -> 8
    w2 = w2.reshape(16, 200) * s2[:, None]
    b2 = ((raw["conv2_b"] - raw["bn2_m"]) * s2 + raw["bn2_b"])[:, None]

    bf = jnp.bfloat16
    f32 = jnp.float32
    return {
        "w1": w1.astype(bf), "b1": b1.astype(f32),
        "w2": w2.astype(bf), "b2": b2.astype(f32),
        "fc1_w": raw["fc1_w"].astype(bf), "fc1_b": raw["fc1_b"][:, None].astype(f32),
        "fc2_w": raw["fc2_w"].astype(bf), "fc2_b": raw["fc2_b"][:, None].astype(f32),
        "fc3_w": raw["fc3_w"].astype(bf), "fc3_b": raw["fc3_b"][:, None].astype(f32),
    }


# ----------------------------------------------------------------------------
# Forward pass (3 pallas_calls)
# ----------------------------------------------------------------------------
def lenet5_forward(params, x_nchw):
    n = x_nchw.shape[0]

    # Channel-major (C, H, W, N) activations throughout: the lane axis of
    # every kernel is (pooled-spatial, batch), so stores are lane-dense and
    # the stage-to-stage / conv->fc reshapes are free (no XLA transposes).
    # Cast to bf16 BEFORE patch extraction so any materialized patch buffer
    # is half-width.
    x = jnp.transpose(x_nchw.astype(jnp.bfloat16), (1, 2, 3, 0))  # (1,28,28,N)
    x = jnp.pad(x, ((0, 0), (2, 2), (2, 2), (0, 0)))              # (1,32,32,N)

    # conv1 (pad=2) + bn1 + relu + 2x2 pool, fused.
    p1 = _corner_patches(x, 5, 14)                            # (4, 25, 196N)
    h1 = conv_bn_relu_pool(p1, params["w1"], params["b1"], tile_cap=8192)
    h1 = h1.reshape(8, 14, 14, n)                             # free; ch 6,7 = 0

    # conv2 (no pad) + bn2 + relu + 2x2 pool, fused.
    p2 = _corner_patches(h1, 5, 5)                            # (4, 200, 25N)
    h2 = conv_bn_relu_pool(p2, params["w2"], params["b2"], tile_cap=4096)

    # (16, 25N) with columns (ph, pw, n) -> (400, N): same feature order as
    # PyTorch's x.view(-1, 16*5*5) (c, h, w).  Pure reshape, no transpose.
    x_t = h2.reshape(400, n)
    logits_t = fc_stack(x_t, params, tile_cap=8192)           # (10, N), f32
    return logits_t.T                                         # (N, 10)


if __name__ == "__main__":
    key = jax.random.PRNGKey(0)
    k_param, k_x = jax.random.split(key)
    raw = init_raw_params(k_param)
    params = prepare_params(raw)   # BN folding / layout prep done once

    # LeNet-5 geometry (fc1 expects 16*5*5) forces 28x28 single-channel input.
    x = jax.random.normal(k_x, (2, 1, 28, 28), jnp.float32)

    out = jax.jit(lenet5_forward)(params, x)
    out = jax.block_until_ready(out)
    assert out.shape == (2, 10), out.shape
    print("KERNEL_OK")
</pallas_src>

<mosaic_0001>
module attributes {stable_mosaic.version = 11 : i64} {
  func.func @_conv_bn_relu_pool_kernel(%arg0: i32, %arg1: memref<4x25x392xbf16, #tpu.memory_space<vmem>>, %arg2: memref<8x25xbf16, #tpu.memory_space<vmem>>, %arg3: memref<8x1xf32, #tpu.memory_space<vmem>>, %arg4: memref<8x392xbf16, #tpu.memory_space<vmem>>) attributes {dimension_semantics = [#tpu.dimension_semantics<parallel>], iteration_bounds = array<i64: 1>, scalar_prefetch = 0 : i64, scratch_operands = 0 : i64, tpu.core_type = #tpu.core_type<tc>, window_params = [{transform_indices = @transform_0, window_bounds = array<i64: 4, 25, 392>}, {pipeline_mode = #tpu.pipeline_mode<synchronous>, transform_indices = @transform_1, window_bounds = array<i64: 8, 25>}, {pipeline_mode = #tpu.pipeline_mode<synchronous>, transform_indices = @transform_2, window_bounds = array<i64: 8, 1>}, {transform_indices = @transform_3, window_bounds = array<i64: 8, 392>}]} {
    %c0 = arith.constant 0 : index
    %c0_0 = arith.constant 0 : index
    %0 = vector.load %arg2[%c0, %c0_0] : memref<8x25xbf16, #tpu.memory_space<vmem>>, vector<8x25xbf16>
    %c0_1 = arith.constant 0 : index
    %c0_2 = arith.constant 0 : index
    %c0_3 = arith.constant 0 : index
    %1 = vector.load %arg1[%c0_1, %c0_2, %c0_3] : memref<4x25x392xbf16, #tpu.memory_space<vmem>>, vector<1x25x392xbf16>
    %2 = vector.shape_cast %1 : vector<1x25x392xbf16> to vector<25x392xbf16>
    %cst = arith.constant dense<0.000000e+00> : vector<8x392xf32>
    %3 = tpu.matmul %0, %2, %cst {dimension_numbers = #tpu.dot_dimension_numbers<[1], [0], [0], [1], [0, 0, 1, 1], [], []>} : vector<8x25xbf16>, vector<25x392xbf16>, vector<8x392xf32> -> vector<8x392xf32>
    %c1 = arith.constant 1 : index
    %c0_4 = arith.constant 0 : index
    %c0_5 = arith.constant 0 : index
    %4 = vector.load %arg1[%c1, %c0_4, %c0_5] : memref<4x25x392xbf16, #tpu.memory_space<vmem>>, vector<1x25x392xbf16>
    %5 = vector.shape_cast %4 : vector<1x25x392xbf16> to vector<25x392xbf16>
    %cst_6 = arith.constant dense<0.000000e+00> : vector<8x392xf32>
    %6 = tpu.matmul %0, %5, %cst_6 {dimension_numbers = #tpu.dot_dimension_numbers<[1], [0], [0], [1], [0, 0, 1, 1], [], []>} : vector<8x25xbf16>, vector<25x392xbf16>, vector<8x392xf32> -> vector<8x392xf32>
    %7 = arith.maximumf %3, %6 : vector<8x392xf32>
    %c2 = arith.constant 2 : index
    %c0_7 = arith.constant 0 : index
    %c0_8 = arith.constant 0 : index
    %8 = vector.load %arg1[%c2, %c0_7, %c0_8] : memref<4x25x392xbf16, #tpu.memory_space<vmem>>, vector<1x25x392xbf16>
    %9 = vector.shape_cast %8 : vector<1x25x392xbf16> to vector<25x392xbf16>
    %cst_9 = arith.constant dense<0.000000e+00> : vector<8x392xf32>
    %10 = tpu.matmul %0, %9, %cst_9 {dimension_numbers = #tpu.dot_dimension_numbers<[1], [0], [0], [1], [0, 0, 1, 1], [], []>} : vector<8x25xbf16>, vector<25x392xbf16>, vector<8x392xf32> -> vector<8x392xf32>
    %11 = arith.maximumf %7, %10 : vector<8x392xf32>
    %c3 = arith.constant 3 : index
    %c0_10 = arith.constant 0 : index
    %c0_11 = arith.constant 0 : index
    %12 = vector.load %arg1[%c3, %c0_10, %c0_11] : memref<4x25x392xbf16, #tpu.memory_space<vmem>>, vector<1x25x392xbf16>
    %13 = vector.shape_cast %12 : vector<1x25x392xbf16> to vector<25x392xbf16>
    %cst_12 = arith.constant dense<0.000000e+00> : vector<8x392xf32>
    %14 = tpu.matmul %0, %13, %cst_12 {dimension_numbers = #tpu.dot_dimension_numbers<[1], [0], [0], [1], [0, 0, 1, 1], [], []>} : vector<8x25xbf16>, vector<25x392xbf16>, vector<8x392xf32> -> vector<8x392xf32>
    %15 = arith.maximumf %11, %14 : vector<8x392xf32>
    %c0_13 = arith.constant 0 : index
    %c0_14 = arith.constant 0 : index
    %16 = vector.load %arg3[%c0_13, %c0_14] : memref<8x1xf32, #tpu.memory_space<vmem>>, vector<8x1xf32>
    %17 = vector.broadcast %16 : vector<8x1xf32> to vector<8x392xf32>
    %18 = arith.addf %15, %17 : vector<8x392xf32>
    %cst_15 = arith.constant 0.000000e+00 : f32
    %19 = vector.broadcast %cst_15 : f32 to vector<8x392xf32>
    %20 = arith.maximumf %18, %19 : vector<8x392xf32>
    %21 = arith.truncf %20 : vector<8x392xf32> to vector<8x392xbf16>
    %c0_16 = arith.constant 0 : index
    %c0_17 = arith.constant 0 : index
    %22 = vector.load %arg4[%c0_16, %c0_17] : memref<8x392xbf16, #tpu.memory_space<vmem>>, vector<8x392xbf16>
    tpu.vector_store %arg4[%c0_16, %c0_17], %21 {strides = array<i32>} : memref<8x392xbf16, #tpu.memory_space<vmem>>, vector<8x392xbf16>,
    return
  }
  func.func @transform_0(%arg0: i32) -> (i32, i32, i32) {
    %c0_i32 = arith.constant 0 : i32
    %c0_i32_0 = arith.constant 0 : i32
    %c0_i32_1 = arith.constant 0 : i32
    return %c0_i32, %c0_i32_0, %arg0 : i32, i32, i32
  }
  func.func @transform_1(%arg0: i32) -> (i32, i32) {
    %c0_i32 = arith.constant 0 : i32
    %c0_i32_0 = arith.constant 0 : i32
    %c0_i32_1 = arith.constant 0 : i32
    return %c0_i32, %c0_i32_0 : i32, i32
  }
  func.func @transform_2(%arg0: i32) -> (i32, i32) {
    %c0_i32 = arith.constant 0 : i32
    %c0_i32_0 = arith.constant 0 : i32
    %c0_i32_1 = arith.constant 0 : i32
    return %c0_i32, %c0_i32_0 : i32, i32
  }
  func.func @transform_3(%arg0: i32) -> (i32, i32) {
    %c0_i32 = arith.constant 0 : i32
    %c0_i32_0 = arith.constant 0 : i32
    return %c0_i32, %arg0 : i32, i32
  }
}

module attributes {stable_mosaic.version = 11 : i64} {
  func.func @_conv_bn_relu_pool_kernel(%arg0: i32, %arg1: memref<4x200x50xbf16, #tpu.memory_space<vmem>>, %arg2: memref<16x200xbf16, #tpu.memory_space<vmem>>, %arg3: memref<16x1xf32, #tpu.memory_space<vmem>>, %arg4: memref<16x50xbf16, #tpu.memory_space<vmem>>) attributes {dimension_semantics = [#tpu.dimension_semantics<parallel>], iteration_bounds = array<i64: 1>, scalar_prefetch = 0 : i64, scratch_operands = 0 : i64, tpu.core_type = #tpu.core_type<tc>, window_params = [{transform_indices = @transform_0, window_bounds = array<i64: 4, 200, 50>}, {pipeline_mode = #tpu.pipeline_mode<synchronous>, transform_indices = @transform_1, window_bounds = array<i64: 16, 200>}, {pipeline_mode = #tpu.pipeline_mode<synchronous>, transform_indices = @transform_2, window_bounds = array<i64: 16, 1>}, {transform_indices = @transform_3, window_bounds = array<i64: 16, 50>}]} {
    %c0 = arith.constant 0 : index
    %c0_0 = arith.constant 0 : index
    %0 = vector.load %arg2[%c0, %c0_0] : memref<16x200xbf16, #tpu.memory_space<vmem>>, vector<16x200xbf16>
    %c0_1 = arith.constant 0 : index
    %c0_2 = arith.constant 0 : index
    %c0_3 = arith.constant 0 : index
    %1 = vector.load %arg1[%c0_1, %c0_2, %c0_3] : memref<4x200x50xbf16, #tpu.memory_space<vmem>>, vector<1x200x50xbf16>
    %2 = vector.shape_cast %1 : vector<1x200x50xbf16> to vector<200x50xbf16>
    %cst = arith.constant dense<0.000000e+00> : vector<16x50xf32>
    %3 = tpu.matmul %0, %2, %cst {dimension_numbers = #tpu.dot_dimension_numbers<[1], [0], [0], [1], [0, 0, 1, 1], [], []>} : vector<16x200xbf16>, vector<200x50xbf16>, vector<16x50xf32> -> vector<16x50xf32>
    %c1 = arith.constant 1 : index
    %c0_4 = arith.constant 0 : index
    %c0_5 = arith.constant 0 : index
    %4 = vector.load %arg1[%c1, %c0_4, %c0_5] : memref<4x200x50xbf16, #tpu.memory_space<vmem>>, vector<1x200x50xbf16>
    %5 = vector.shape_cast %4 : vector<1x200x50xbf16> to vector<200x50xbf16>
    %cst_6 = arith.constant dense<0.000000e+00> : vector<16x50xf32>
    %6 = tpu.matmul %0, %5, %cst_6 {dimension_numbers = #tpu.dot_dimension_numbers<[1], [0], [0], [1], [0, 0, 1, 1], [], []>} : vector<16x200xbf16>, vector<200x50xbf16>, vector<16x50xf32> -> vector<16x50xf32>
    %7 = arith.maximumf %3, %6 : vector<16x50xf32>
    %c2 = arith.constant 2 : index
    %c0_7 = arith.constant 0 : index
    %c0_8 = arith.constant 0 : index
    %8 = vector.load %arg1[%c2, %c0_7, %c0_8] : memref<4x200x50xbf16, #tpu.memory_space<vmem>>, vector<1x200x50xbf16>
    %9 = vector.shape_cast %8 : vector<1x200x50xbf16> to vector<200x50xbf16>
    %cst_9 = arith.constant dense<0.000000e+00> : vector<16x50xf32>
    %10 = tpu.matmul %0, %9, %cst_9 {dimension_numbers = #tpu.dot_dimension_numbers<[1], [0], [0], [1], [0, 0, 1, 1], [], []>} : vector<16x200xbf16>, vector<200x50xbf16>, vector<16x50xf32> -> vector<16x50xf32>
    %11 = arith.maximumf %7, %10 : vector<16x50xf32>
    %c3 = arith.constant 3 : index
    %c0_10 = arith.constant 0 : index
    %c0_11 = arith.constant 0 : index
    %12 = vector.load %arg1[%c3, %c0_10, %c0_11] : memref<4x200x50xbf16, #tpu.memory_space<vmem>>, vector<1x200x50xbf16>
    %13 = vector.shape_cast %12 : vector<1x200x50xbf16> to vector<200x50xbf16>
    %cst_12 = arith.constant dense<0.000000e+00> : vector<16x50xf32>
    %14 = tpu.matmul %0, %13, %cst_12 {dimension_numbers = #tpu.dot_dimension_numbers<[1], [0], [0], [1], [0, 0, 1, 1], [], []>} : vector<16x200xbf16>, vector<200x50xbf16>, vector<16x50xf32> -> vector<16x50xf32>
    %15 = arith.maximumf %11, %14 : vector<16x50xf32>
    %c0_13 = arith.constant 0 : index
    %c0_14 = arith.constant 0 : index
    %16 = vector.load %arg3[%c0_13, %c0_14] : memref<16x1xf32, #tpu.memory_space<vmem>>, vector<16x1xf32>
    %17 = vector.broadcast %16 : vector<16x1xf32> to vector<16x50xf32>
    %18 = arith.addf %15, %17 : vector<16x50xf32>
    %cst_15 = arith.constant 0.000000e+00 : f32
    %19 = vector.broadcast %cst_15 : f32 to vector<16x50xf32>
    %20 = arith.maximumf %18, %19 : vector<16x50xf32>
    %21 = arith.truncf %20 : vector<16x50xf32> to vector<16x50xbf16>
    %c0_16 = arith.constant 0 : index
    %c0_17 = arith.constant 0 : index
    %22 = vector.load %arg4[%c0_16, %c0_17] : memref<16x50xbf16, #tpu.memory_space<vmem>>, vector<16x50xbf16>
    tpu.vector_store %arg4[%c0_16, %c0_17], %21 {strides = array<i32>} : memref<16x50xbf16, #tpu.memory_space<vmem>>, vector<16x50xbf16>,
    return
  }
  func.func @transform_0(%arg0: i32) -> (i32, i32, i32) {
    %c0_i32 = arith.constant 0 : i32
    %c0_i32_0 = arith.constant 0 : i32
    %c0_i32_1 = arith.constant 0 : i32
    return %c0_i32, %c0_i32_0, %arg0 : i32, i32, i32
  }
  func.func @transform_1(%arg0: i32) -> (i32, i32) {
    %c0_i32 = arith.constant 0 : i32
    %c0_i32_0 = arith.constant 0 : i32
    %c0_i32_1 = arith.constant 0 : i32
    return %c0_i32, %c0_i32_0 : i32, i32
  }
  func.func @transform_2(%arg0: i32) -> (i32, i32) {
    %c0_i32 = arith.constant 0 : i32
    %c0_i32_0 = arith.constant 0 : i32
    %c0_i32_1 = arith.constant 0 : i32
    return %c0_i32, %c0_i32_0 : i32, i32
  }
  func.func @transform_3(%arg0: i32) -> (i32, i32) {
    %c0_i32 = arith.constant 0 : i32
    %c0_i32_0 = arith.constant 0 : i32
    return %c0_i32, %arg0 : i32, i32
  }
}

module attributes {stable_mosaic.version = 11 : i64} {
  func.func @_fc3_kernel(%arg0: i32, %arg1: memref<400x2xbf16, #tpu.memory_space<vmem>>, %arg2: memref<120x400xbf16, #tpu.memory_space<vmem>>, %arg3: memref<120x1xf32, #tpu.memory_space<vmem>>, %arg4: memref<84x120xbf16, #tpu.memory_space<vmem>>, %arg5: memref<84x1xf32, #tpu.memory_space<vmem>>, %arg6: memref<10x84xbf16, #tpu.memory_space<vmem>>, %arg7: memref<10x1xf32, #tpu.memory_space<vmem>>, %arg8: memref<10x2xf32, #tpu.memory_space<vmem>>) attributes {dimension_semantics = [#tpu.dimension_semantics<parallel>], iteration_bounds = array<i64: 1>, scalar_prefetch = 0 : i64, scratch_operands = 0 : i64, tpu.core_type = #tpu.core_type<tc>, window_params = [{transform_indices = @transform_0, window_bounds = array<i64: 400, 2>}, {pipeline_mode = #tpu.pipeline_mode<synchronous>, transform_indices = @transform_1, window_bounds = array<i64: 120, 400>}, {pipeline_mode = #tpu.pipeline_mode<synchronous>, transform_indices = @transform_2, window_bounds = array<i64: 120, 1>}, {pipeline_mode = #tpu.pipeline_mode<synchronous>, transform_indices = @transform_3, window_bounds = array<i64: 84, 120>}, {pipeline_mode = #tpu.pipeline_mode<synchronous>, transform_indices = @transform_4, window_bounds = array<i64: 84, 1>}, {pipeline_mode = #tpu.pipeline_mode<synchronous>, transform_indices = @transform_5, window_bounds = array<i64: 10, 84>}, {pipeline_mode = #tpu.pipeline_mode<synchronous>, transform_indices = @transform_6, window_bounds = array<i64: 10, 1>}, {transform_indices = @transform_7, window_bounds = array<i64: 10, 2>}]} {
    %c0 = arith.constant 0 : index
    %c0_0 = arith.constant 0 : index
    %0 = vector.load %arg2[%c0, %c0_0] : memref<120x400xbf16, #tpu.memory_space<vmem>>, vector<120x400xbf16>
    %c0_1 = arith.constant 0 : index
    %c0_2 = arith.constant 0 : index
    %1 = vector.load %arg1[%c0_1, %c0_2] : memref<400x2xbf16, #tpu.memory_space<vmem>>, vector<400x2xbf16>
    %cst = arith.constant dense<0.000000e+00> : vector<120x2xf32>
    %2 = tpu.matmul %0, %1, %cst {dimension_numbers = #tpu.dot_dimension_numbers<[1], [0], [0], [1], [0, 0, 1, 1], [], []>} : vector<120x400xbf16>, vector<400x2xbf16>, vector<120x2xf32> -> vector<120x2xf32>
    %c0_3 = arith.constant 0 : index
    %c0_4 = arith.constant 0 : index
    %3 = vector.load %arg3[%c0_3, %c0_4] : memref<120x1xf32, #tpu.memory_space<vmem>>, vector<120x1xf32>
    %4 = vector.broadcast %3 : vector<120x1xf32> to vector<120x2xf32>
    %5 = arith.addf %2, %4 : vector<120x2xf32>
    %cst_5 = arith.constant 0.000000e+00 : f32
    %6 = vector.broadcast %cst_5 : f32 to vector<120x2xf32>
    %7 = arith.maximumf %5, %6 : vector<120x2xf32>
    %c0_6 = arith.constant 0 : index
    %c0_7 = arith.constant 0 : index
    %8 = vector.load %arg4[%c0_6, %c0_7] : memref<84x120xbf16, #tpu.memory_space<vmem>>, vector<84x120xbf16>
    %9 = arith.truncf %7 : vector<120x2xf32> to vector<120x2xbf16>
    %cst_8 = arith.constant dense<0.000000e+00> : vector<84x2xf32>
    %10 = tpu.matmul %8, %9, %cst_8 {dimension_numbers = #tpu.dot_dimension_numbers<[1], [0], [0], [1], [0, 0, 1, 1], [], []>} : vector<84x120xbf16>, vector<120x2xbf16>, vector<84x2xf32> -> vector<84x2xf32>
    %c0_9 = arith.constant 0 : index
    %c0_10 = arith.constant 0 : index
    %11 = vector.load %arg5[%c0_9, %c0_10] : memref<84x1xf32, #tpu.memory_space<vmem>>, vector<84x1xf32>
    %12 = vector.broadcast %11 : vector<84x1xf32> to vector<84x2xf32>
    %13 = arith.addf %10, %12 : vector<84x2xf32>
    %cst_11 = arith.constant 0.000000e+00 : f32
    %14 = vector.broadcast %cst_11 : f32 to vector<84x2xf32>
    %15 = arith.maximumf %13, %14 : vector<84x2xf32>
    %c0_12 = arith.constant 0 : index
    %c0_13 = arith.constant 0 : index
    %16 = vector.load %arg6[%c0_12, %c0_13] : memref<10x84xbf16, #tpu.memory_space<vmem>>, vector<10x84xbf16>
    %17 = arith.truncf %15 : vector<84x2xf32> to vector<84x2xbf16>
    %cst_14 = arith.constant dense<0.000000e+00> : vector<10x2xf32>
    %18 = tpu.matmul %16, %17, %cst_14 {dimension_numbers = #tpu.dot_dimension_numbers<[1], [0], [0], [1], [0, 0, 1, 1], [], []>} : vector<10x84xbf16>, vector<84x2xbf16>, vector<10x2xf32> -> vector<10x2xf32>
    %c0_15 = arith.constant 0 : index
    %c0_16 = arith.constant 0 : index
    %19 = vector.load %arg7[%c0_15, %c0_16] : memref<10x1xf32, #tpu.memory_space<vmem>>, vector<10x1xf32>
    %20 = vector.broadcast %19 : vector<10x1xf32> to vector<10x2xf32>
    %21 = arith.addf %18, %20 : vector<10x2xf32>
    %c0_17 = arith.constant 0 : index
    %c0_18 = arith.constant 0 : index
    %22 = vector.load %arg8[%c0_17, %c0_18] : memref<10x2xf32, #tpu.memory_space<vmem>>, vector<10x2xf32>
    tpu.vector_store %arg8[%c0_17, %c0_18], %21 {strides = array<i32>} : memref<10x2xf32, #tpu.memory_space<vmem>>, vector<10x2xf32>,
    return
  }
  func.func @transform_0(%arg0: i32) -> (i32, i32) {
    %c0_i32 = arith.constant 0 : i32
    %c0_i32_0 = arith.constant 0 : i32
    return %c0_i32, %arg0 : i32, i32
  }
  func.func @transform_1(%arg0: i32) -> (i32, i32) {
    %c0_i32 = arith.constant 0 : i32
    %c0_i32_0 = arith.constant 0 : i32
    %c0_i32_1 = arith.constant 0 : i32
    return %c0_i32, %c0_i32_0 : i32, i32
  }
  func.func @transform_2(%arg0: i32) -> (i32, i32) {
    %c0_i32 = arith.constant 0 : i32
    %c0_i32_0 = arith.constant 0 : i32
    %c0_i32_1 = arith.constant 0 : i32
    return %c0_i32, %c0_i32_0 : i32, i32
  }
  func.func @transform_3(%arg0: i32) -> (i32, i32) {
    %c0_i32 = arith.constant 0 : i32
    %c0_i32_0 = arith.constant 0 : i32
    %c0_i32_1 = arith.constant 0 : i32
    return %c0_i32, %c0_i32_0 : i32, i32
  }
  func.func @transform_4(%arg0: i32) -> (i32, i32) {
    %c0_i32 = arith.constant 0 : i32
    %c0_i32_0 = arith.constant 0 : i32
    %c0_i32_1 = arith.constant 0 : i32
    return %c0_i32, %c0_i32_0 : i32, i32
  }
  func.func @transform_5(%arg0: i32) -> (i32, i32) {
    %c0_i32 = arith.constant 0 : i32
    %c0_i32_0 = arith.constant 0 : i32
    %c0_i32_1 = arith.constant 0 : i32
    return %c0_i32, %c0_i32_0 : i32, i32
  }
  func.func @transform_6(%arg0: i32) -> (i32, i32) {
    %c0_i32 = arith.constant 0 : i32
    %c0_i32_0 = arith.constant 0 : i32
    %c0_i32_1 = arith.constant 0 : i32
    return %c0_i32, %c0_i32_0 : i32, i32
  }
  func.func @transform_7(%arg0: i32) -> (i32, i32) {
    %c0_i32 = arith.constant 0 : i32
    %c0_i32_0 = arith.constant 0 : i32
    return %c0_i32, %arg0 : i32, i32
  }
}

</mosaic_0001>

<llo_original>
// kernel: lenet5_forward.7
$region0: #{lenet5_forward.7}
  #allocation0 [shape = 'u32[]', space=smem, size = 0x4, offset = 0x4, fixed_abs, tag = 'smem constant byte address 0x4 - core index']
  #allocation1 [shape = 'u32[144,128]{1,0:T(1,128)}', space=vmem, size = 0x12000, scoped, tag = 'internal scratch']
  #allocation2 [shape = 'u32[2048]{0}', space=vmem, size = 0x2000, scoped, tag = 'scoped memory for lenet5_forward.7']
  #allocation3 [shape = 'u32[2048]{0}', space=vmem, size = 0x2000, scoped, tag = 'scoped memory for lenet5_forward.7']
  #allocation4 [shape = 'u32[2048]{0}', space=vmem, size = 0x2000, scoped, tag = 'scoped memory for lenet5_forward.7']
  #allocation5 [shape = 'u32[2048]{0}', space=vmem, size = 0x2000, scoped, tag = 'scoped memory for lenet5_forward.7']
  #allocation6 [shape = 'u32[2048]{0}', space=vmem, size = 0x2000, scoped, tag = 'scoped memory for lenet5_forward.7']
  #allocation7 [shape = 'u32[2048]{0}', space=vmem, size = 0x2000, scoped, tag = 'scoped memory for lenet5_forward.7']
  #allocation8 [shape = 'u32[2048]{0}', space=vmem, size = 0x2000, scoped, tag = 'scoped memory for lenet5_forward.7']
  #allocation9 [shape = 'u32[2048]{0}', space=vmem, size = 0x2000, scoped, tag = 'scoped memory for lenet5_forward.7']
  #allocation10 [shape = 'u32[2048]{0}', space=vmem, size = 0x2000, scoped, tag = 'scoped memory for lenet5_forward.7']
  #allocation11 [shape = 'u32[2048]{0}', space=vmem, size = 0x2000, scoped, tag = 'scoped memory for lenet5_forward.7']
  #allocation12 [shape = 'u32[2048]{0}', space=vmem, size = 0x2000, scoped, tag = 'scoped memory for lenet5_forward.7']
  #allocation13 [shape = 'u32[2048]{0}', space=vmem, size = 0x2000, scoped, tag = 'scoped memory for lenet5_forward.7']
  #allocation14 [shape = 'u32[2048]{0}', space=vmem, size = 0x2000, scoped, tag = 'scoped memory for lenet5_forward.7']
  #allocation15 [shape = 'u32[2048]{0}', space=vmem, size = 0x2000, scoped, tag = 'scoped memory for lenet5_forward.7']
  #allocation16 [shape = 'u32[2048]{0}', space=vmem, size = 0x2000, scoped, tag = 'scoped memory for lenet5_forward.7']
  #allocation17 [shape = 'u32[2048]{0}', space=vmem, size = 0x2000, scoped, tag = 'scoped memory for lenet5_forward.7']
  #allocation18 [shape = 'u32[2048]{0}', space=vmem, size = 0x2000, scoped, tag = 'scoped memory for lenet5_forward.7']
  #allocation19 [shape = 'u32[2048]{0}', space=vmem, size = 0x2000, scoped, tag = 'scoped memory for lenet5_forward.7']
  #allocation20 [shape = 'u32[2048]{0}', space=vmem, size = 0x2000, scoped, tag = 'scoped memory for lenet5_forward.7']
  #allocation21 [shape = 'u32[2048]{0}', space=vmem, size = 0x2000, scoped, tag = 'scoped memory for lenet5_forward.7']
  %s0 = inlined_call_operand.vmem [shape: bf16[8,25], index: 0, kind: input, shape index: {}]
  %s1 = inlined_call_operand.vmem [shape: f32[8,1], index: 1, kind: input, shape index: {}]
  %s2 = inlined_call_operand.vmem [shape: bf16[1,25,392], index: 2, kind: input, shape index: {}]
  %s3 = inlined_call_operand.<no memory space> [shape: bf16[], index: 3, kind: input, shape index: {}]
  %s4 = inlined_call_operand.vmem [shape: bf16[1,25,392], index: 4, kind: input, shape index: {}]
  %s5 = inlined_call_operand.vmem [shape: bf16[1,25,392], index: 5, kind: input, shape index: {}]
  %s6 = inlined_call_operand.vmem [shape: bf16[1,25,392], index: 6, kind: input, shape index: {}]
  %s7 = inlined_call_operand.vmem [shape: bf16[8,392], index: 7, kind: output, shape index: {}]
  %s8 = sld [smem:[#allocation0]]
  $region34: #{lenet5_forward.7} parent=0
    _
  %s10 = ssub.s32 1, %s8
  %s11 = scalar_select 0, %s10, %s8
  %v12 = vstv %s3
  %v13 = vunpack.i.l.bf16 %v12
  %v15 = vunpack.i.h.bf16 %v12
  %v17 = vstv %s3
  %v18 = vunpack.i.l.bf16 %v17
  %v20 = vunpack.i.h.bf16 %v17
  %v22 = vstv %s3
  %v23 = vunpack.i.l.bf16 %v22
  %v25 = vunpack.i.h.bf16 %v22
  %v27 = vstv %s3
  %v28 = vunpack.i.l.bf16 %v27
  %v30 = vunpack.i.h.bf16 %v27
  $region1: #{lenet5_forward.7} parent=0
    #allocation22 [shape = 'u8[131072]{0}', space=vmem, size = 0x20000, dematerialized = true, scoped, tag = 'FusionAdapter Buffer %fusion.9 = bf16[4,25,392]{2,1,0:T(8,128)(2,1)} fusion(%param_2.109, %param_3.105, %param_4.8, %param_5.7, %param_6.5), kind=kLoop, calls=%fused_computation.109.clone, metadata={op_name="jit(lenet5_forward)/concatenate" stack_frame_id=13}']
    // Predicated region
    $region2: #{lenet5_forward.7} parent=1 // pred_check
      _
    $region3: #{lenet5_forward.7} parent=1 // pred_check_branch
      %33 = sbr.rel (0) target = $region5
    $region4: #{lenet5_forward.7} parent=1 // pred_region
      %s35 = ssub.s32 1, 0
      %s36 = smul.u32 64, %s35
      %s37 = smul.u32 %s36, 4
      %s38 = smul.u32 %s37, 4
      %p39 = scmp.lt.s32.totalorder 0, 0
      %s40 = scalar_select %p39, 0, 0
      %s41 = smul.addr %s40, 16
      %s42 = smul.addr %s41, 4
      %s43 = scalar_lea.vmem %s2, %s42
      %s45 = ssub.s32 1, 0
      %s46 = smul.u32 64, %s45
      %s47 = smul.u32 %s46, 4
      %s48 = smul.u32 %s47, 4
    $region5: #{lenet5_forward.7} parent=1 // pred_fallthru
      _
    // Predicated region
    $region6: #{lenet5_forward.7} parent=1 // pred_check
      _
    $region7: #{lenet5_forward.7} parent=1 // pred_check_branch
      %50 = sbr.rel (0) target = $region9
    $region8: #{lenet5_forward.7} parent=1 // pred_region
      %s52 = ssub.s32 1, 0
      %s53 = smul.u32 64, %s52
      %s54 = smul.u32 %s53, 4
      %s55 = smul.u32 %s54, 4
      %p56 = scmp.lt.s32.totalorder 0, 0
      %s57 = scalar_select %p56, 0, 0
      %s58 = smul.addr %s57, 16
      %s59 = smul.addr %s58, 4
      %s60 = scalar_lea.vmem %s4, %s59
      %s62 = ssub.s32 1, 0
      %s63 = smul.u32 64, %s62
      %s64 = smul.u32 %s63, 4
      %s65 = smul.u32 %s64, 4
    $region9: #{lenet5_forward.7} parent=1 // pred_fallthru
      _
    // Predicated region
    $region10: #{lenet5_forward.7} parent=1 // pred_check
      _
    $region11: #{lenet5_forward.7} parent=1 // pred_check_branch
      %67 = sbr.rel (0) target = $region13
    $region12: #{lenet5_forward.7} parent=1 // pred_region
      %s69 = ssub.s32 1, 0
      %s70 = smul.u32 64, %s69
      %s71 = smul.u32 %s70, 4
      %s72 = smul.u32 %s71, 4
      %p73 = scmp.lt.s32.totalorder 0, 0
      %s74 = scalar_select %p73, 0, 0
      %s75 = smul.addr %s74, 16
      %s76 = smul.addr %s75, 4
      %s77 = scalar_lea.vmem %s5, %s76
      %s79 = ssub.s32 1, 0
      %s80 = smul.u32 64, %s79
      %s81 = smul.u32 %s80, 4
      %s82 = smul.u32 %s81, 4
    $region13: #{lenet5_forward.7} parent=1 // pred_fallthru
      _
    // Predicated region
    $region14: #{lenet5_forward.7} parent=1 // pred_check
      _
    $region15: #{lenet5_forward.7} parent=1 // pred_check_branch
      %84 = sbr.rel (0) target = $region17
    $region16: #{lenet5_forward.7} parent=1 // pred_region
      _
    $region17: #{lenet5_forward.7} parent=1 // pred_fallthru
      _
    // Predicated region
    $region18: #{lenet5_forward.7} parent=1 // pred_check
      _
    $region19: #{lenet5_forward.7} parent=1 // pred_check_branch
      %86 = sbr.rel (0) target = $region21
    $region20: #{lenet5_forward.7} parent=1 // pred_region
      _
    $region21: #{lenet5_forward.7} parent=1 // pred_fallthru
      _
    // Predicated region
    $region22: #{lenet5_forward.7} parent=1 // pred_check
      _
    $region23: #{lenet5_forward.7} parent=1 // pred_check_branch
      %88 = sbr.rel (0) target = $region25
    $region24: #{lenet5_forward.7} parent=1 // pred_region
      _
    $region25: #{lenet5_forward.7} parent=1 // pred_fallthru
      _
    %s90 = ssub.s32 1, 0
    %s91 = smul.u32 64, %s90
    %s92 = smul.u32 %s91, 4
    %s93 = smul.u32 %s92, 4
    %p94 = scmp.lt.s32.totalorder 0, 0
    %s95 = scalar_select %p94, 0, 0
    %s96 = smul.addr %s95, 16
    %s97 = smul.addr %s96, 4
    %s98 = scalar_lea.vmem %s2, %s97
    %s100 = ssub.s32 1, 0
    %s101 = smul.u32 64, %s100
    %s102 = smul.u32 %s101, 4
    %s103 = smul.u32 %s102, 4
    %p104 = scmp.lt.s32.totalorder 0, 0
    %s105 = scalar_select %p104, 0, 0
    %s106 = smul.addr %s105, 16
    %s107 = smul.addr %s106, 4
    %s108 = scalar_lea.vmem %s4, %s107
    %s110 = ssub.s32 1, 0
    %s111 = smul.u32 64, %s110
    %s112 = smul.u32 %s111, 4
    %s113 = smul.u32 %s112, 4
    %p114 = scmp.lt.s32.totalorder 0, 0
    %s115 = scalar_select %p114, 0, 0
    %s116 = smul.addr %s115, 16
    %s117 = smul.addr %s116, 4
    %s118 = scalar_lea.vmem %s5, %s117
    %s120 = ssub.s32 1, 0
    %s121 = smul.u32 64, %s120
    %s122 = smul.u32 %s121, 4
    %s123 = smul.u32 %s122, 4
    %p124 = scmp.lt.s32.totalorder 0, 0
    %s125 = scalar_select %p124, 0, 0
    %s126 = smul.addr %s125, 16
    %s127 = smul.addr %s126, 4
    %s128 = scalar_lea.vmem %s2, %s127
    %s130 = ssub.s32 1, 0
    %s131 = smul.u32 64, %s130
    %s132 = smul.u32 %s131, 4
    %s133 = smul.u32 %s132, 4
    %s135 = ssub.s32 1, 0
    %s136 = smul.u32 64, %s135
    %s137 = smul.u32 %s136, 4
    %s138 = smul.u32 %s137, 4
    %p139 = scmp.lt.s32.totalorder 0, 0
    %s140 = scalar_select %p139, 0, 0
    %s141 = smul.addr %s140, 16
    %s142 = smul.addr %s141, 4
    %s143 = scalar_lea.vmem %s4, %s142
    %s145 = ssub.s32 1, 0
    %s146 = smul.u32 64, %s145
    %s147 = smul.u32 %s146, 4
    %s148 = smul.u32 %s147, 4
    %s150 = ssub.s32 1, 0
    %s151 = smul.u32 64, %s150
    %s152 = smul.u32 %s151, 4
    %s153 = smul.u32 %s152, 4
    %p154 = scmp.lt.s32.totalorder 0, 0
    %s155 = scalar_select %p154, 0, 0
    %s156 = smul.addr %s155, 16
    %s157 = smul.addr %s156, 4
    %s158 = scalar_lea.vmem %s5, %s157
    %s160 = ssub.s32 1, 0
    %s161 = smul.u32 64, %s160
    %s162 = smul.u32 %s161, 4
    %s163 = smul.u32 %s162, 4
    %s164 = ssub.s32 0, 0
    %p165 = scmp.lt.s32.totalorder %s164, 0
    %s166 = scalar_select %p165, 0, 255
    %s167 = sshrl.u32 %s166, 1
    %s168 = sor.u32 %s166, %s167
    %s169 = sand.u32 %s168, 85
    %s170 = sshrl.u32 %s169, 1
    %s171 = sor.u32 %s169, %s170
    %s172 = sand.u32 51, %s171
    %s173 = sshrl.u32 %s172, 2
    %s174 = sor.u32 %s172, %s173
    %s175 = sand.u32 15, %s174
    %v176 = vld [vmem:[%s128] sm:%s175]
    %v177 = vunpack.c.l.bf16 %v176
    %v178 = vunpack.c.h.bf16 %v176
    %s179 = ssub.s32 0, 0
    %p180 = scmp.lt.s32.totalorder %s179, 0
    %s181 = scalar_select %p180, 0, 255
    %s182 = sshrl.u32 %s181, 1
    %s183 = sor.u32 %s181, %s182
    %s184 = sand.u32 %s183, 85
    %s185 = sshrl.u32 %s184, 1
    %s186 = sor.u32 %s184, %s185
    %s187 = sand.u32 51, %s186
    %s188 = sshrl.u32 %s187, 2
    %s189 = sor.u32 %s187, %s188
    %s190 = sand.u32 15, %s189
    %v191 = vld [vmem:[%s143] sm:%s190]
    %v192 = vunpack.c.l.bf16 %v191
    %v193 = vunpack.c.h.bf16 %v191
    %s194 = ssub.s32 0, 0
    %p195 = scmp.lt.s32.totalorder %s194, 0
    %s196 = scalar_select %p195, 0, 255
    %s197 = sshrl.u32 %s196, 1
    %s198 = sor.u32 %s196, %s197
    %s199 = sand.u32 %s198, 85
    %s200 = sshrl.u32 %s199, 1
    %s201 = sor.u32 %s199, %s200
    %s202 = sand.u32 51, %s201
    %s203 = sshrl.u32 %s202, 2
    %s204 = sor.u32 %s202, %s203
    %s205 = sand.u32 15, %s204
    %v206 = vld [vmem:[%s158] sm:%s205]
    %v207 = vunpack.c.l.bf16 %v206
    %v208 = vunpack.c.h.bf16 %v206
    %s210 = sor.u32 255, 127
    %s211 = sand.u32 %s210, 85
    %s212 = sshrl.u32 %s211, 1
    %s213 = sor.u32 %s211, %s212
    %s214 = sand.u32 51, %s213
    %s215 = sshrl.u32 %s214, 2
    %s216 = sor.u32 %s214, %s215
    %s217 = sand.u32 15, %s216
    %v218 = vld [vmem:[%s6] sm:%s217]
    %v219 = vunpack.c.l.bf16 %v218
    %v220 = vunpack.c.h.bf16 %v218
    %v221 = vlaneseq
    %v222 = vshrl.u32 %v221, 7
    %vm224 = vcmp.lt.s32.totalorder %v222, 25
    %v225 = vsel %vm224, %v219, %v28
    %v226 = vlaneseq
    %v227 = vand.u32 %v226, 127
    %vm229 = vcmp.lt.s32.totalorder %v227, 392
    %v230 = vsel %vm229, %v225, %v28
    %s231 = scalar_lea.vmem %s128, 4
    %s232 = ssub.s32 0, 0
    %p233 = scmp.lt.s32.totalorder %s232, 0
    %s234 = scalar_select %p233, 0, 255
    %s235 = sshrl.u32 %s234, 1
    %s236 = sor.u32 %s234, %s235
    %s237 = sand.u32 %s236, 85
    %s238 = sshrl.u32 %s237, 1
    %s239 = sor.u32 %s237, %s238
    %s240 = sand.u32 51, %s239
    %s241 = sshrl.u32 %s240, 2
    %s242 = sor.u32 %s240, %s241
    %s243 = sand.u32 15, %s242
    %v244 = vld [vmem:[%s231] sm:%s243]
    %v245 = vunpack.c.l.bf16 %v244
    %v246 = vunpack.c.h.bf16 %v244
    %s247 = scalar_lea.vmem %s143, 4
    %s248 = ssub.s32 0, 0
    %p249 = scmp.lt.s32.totalorder %s248, 0
    %s250 = scalar_select %p249, 0, 255
    %s251 = sshrl.u32 %s250, 1
    %s252 = sor.u32 %s250, %s251
    %s253 = sand.u32 %s252, 85
    %s254 = sshrl.u32 %s253, 1
    %s255 = sor.u32 %s253, %s254
    %s256 = sand.u32 51, %s255
    %s257 = sshrl.u32 %s256, 2
    %s258 = sor.u32 %s256, %s257
    %s259 = sand.u32 15, %s258
    %v260 = vld [vmem:[%s247] sm:%s259]
    %v261 = vunpack.c.l.bf16 %v260
    %v262 = vunpack.c.h.bf16 %v260
    %s263 = scalar_lea.vmem %s158, 4
    %s264 = ssub.s32 0, 0
    %p265 = scmp.lt.s32.totalorder %s264, 0
    %s266 = scalar_select %p265, 0, 255
    %s267 = sshrl.u32 %s266, 1
    %s268 = sor.u32 %s266, %s267
    %s269 = sand.u32 %s268, 85
    %s270 = sshrl.u32 %s269, 1
    %s271 = sor.u32 %s269, %s270
    %s272 = sand.u32 51, %s271
    %s273 = sshrl.u32 %s272, 2
    %s274 = sor.u32 %s272, %s273
    %s275 = sand.u32 15, %s274
    %v276 = vld [vmem:[%s263] sm:%s275]
    %v277 = vunpack.c.l.bf16 %v276
    %v278 = vunpack.c.h.bf16 %v276
    %s279 = scalar_lea.vmem %s6, 4
    %s281 = sor.u32 255, 127
    %s282 = sand.u32 %s281, 85
    %s283 = sshrl.u32 %s282, 1
    %s284 = sor.u32 %s282, %s283
    %s285 = sand.u32 51, %s284
    %s286 = sshrl.u32 %s285, 2
    %s287 = sor.u32 %s285, %s286
    %s288 = sand.u32 15, %s287
    %v289 = vld [vmem:[%s279] sm:%s288]
    %v290 = vunpack.c.l.bf16 %v289
    %v291 = vunpack.c.h.bf16 %v289
    %v292 = vlaneseq
    %v293 = vshrl.u32 %v292, 7
    %vm295 = vcmp.lt.s32.totalorder %v293, 25
    %v296 = vsel %vm295, %v290, %v28
    %v297 = vlaneseq
    %v298 = vand.u32 %v297, 127
    %v299 = vadd.s32 %v298, 128
    %vm300 = vcmp.lt.s32.totalorder %v299, 392
    %v301 = vsel %vm300, %v296, %v28
    %v302 = vpack.c.bf16 %v13, %v13
    %v304 = vpack.c.bf16 %v18, %v18
    %v306 = vpack.c.bf16 %v23, %v23
    %v308 = vpack.c.bf16 %v301, %v230
    %310 = xla_tuple %v308, %v306
    %311 = xla_tuple %310
    %v312 = vmax.bf16 %v308, %v306
    %313 = xla_tuple %v312
    %314 = xla_tuple %v312, %v304
    %315 = xla_tuple %314
    %v316 = vmax.bf16 %v312, %v304
    %317 = xla_tuple %v316
    %318 = xla_tuple %v316, %v302
    %319 = xla_tuple %318
    %v320 = vmax.bf16 %v316, %v302
    %321 = xla_tuple %v320
    %v322 = vunpack.c.l.bf16 %v320
    %v323 = vunpack.c.h.bf16 %v320
    %v324 = vpack.c.bf16 0.0, %v322
    %326 = vst [vmem:[#allocation22] sm:$0xf] %v324
    %s327 = scalar_lea.vmem [#allocation22], 4
    %v328 = vpack.c.bf16 0.0, %v323
    %330 = vst [vmem:[%s327] sm:$0xf] %v328
    %s331 = scalar_lea.vmem %s128, 8
    %s332 = ssub.s32 0, 0
    %p333 = scmp.lt.s32.totalorder %s332, 0
    %s334 = scalar_select %p333, 0, 255
    %s335 = sshrl.u32 %s334, 1
    %s336 = sor.u32 %s334, %s335
    %s337 = sand.u32 %s336, 85
    %s338 = sshrl.u32 %s337, 1
    %s339 = sor.u32 %s337, %s338
    %s340 = sand.u32 51, %s339
    %s341 = sshrl.u32 %s340, 2
    %s342 = sor.u32 %s340, %s341
    %s343 = sand.u32 15, %s342
    %v344 = vld [vmem:[%s331] sm:%s343]
    %v345 = vunpack.c.l.bf16 %v344
    %v346 = vunpack.c.h.bf16 %v344
    %s347 = scalar_lea.vmem %s143, 8
    %s348 = ssub.s32 0, 0
    %p349 = scmp.lt.s32.totalorder %s348, 0
    %s350 = scalar_select %p349, 0, 255
    %s351 = sshrl.u32 %s350, 1
    %s352 = sor.u32 %s350, %s351
    %s353 = sand.u32 %s352, 85
    %s354 = sshrl.u32 %s353, 1
    %s355 = sor.u32 %s353, %s354
    %s356 = sand.u32 51, %s355
    %s357 = sshrl.u32 %s356, 2
    %s358 = sor.u32 %s356, %s357
    %s359 = sand.u32 15, %s358
    %v360 = vld [vmem:[%s347] sm:%s359]
    %v361 = vunpack.c.l.bf16 %v360
    %v362 = vunpack.c.h.bf16 %v360
    %s363 = scalar_lea.vmem %s158, 8
    %s364 = ssub.s32 0, 0
    %p365 = scmp.lt.s32.totalorder %s364, 0
    %s366 = scalar_select %p365, 0, 255
    %s367 = sshrl.u32 %s366, 1
    %s368 = sor.u32 %s366, %s367
    %s369 = sand.u32 %s368, 85
    %s370 = sshrl.u32 %s369, 1
    %s371 = sor.u32 %s369, %s370
    %s372 = sand.u32 51, %s371
    %s373 = sshrl.u32 %s372, 2
    %s374 = sor.u32 %s372, %s373
    %s375 = sand.u32 15, %s374
    %v376 = vld [vmem:[%s363] sm:%s375]
    %v377 = vunpack.c.l.bf16 %v376
    %v378 = vunpack.c.h.bf16 %v376
    %s379 = scalar_lea.vmem %s6, 8
    %s381 = sor.u32 255, 127
    %s382 = sand.u32 %s381, 85
    %s383 = sshrl.u32 %s382, 1
    %s384 = sor.u32 %s382, %s383
    %s385 = sand.u32 51, %s384
    %s386 = sshrl.u32 %s385, 2
    %s387 = sor.u32 %s385, %s386
    %s388 = sand.u32 15, %s387
    %v389 = vld [vmem:[%s379] sm:%s388]
    %v390 = vunpack.c.l.bf16 %v389
    %v391 = vunpack.c.h.bf16 %v389
    %v392 = vlaneseq
    %v393 = vshrl.u32 %v392, 7
    %vm395 = vcmp.lt.s32.totalorder %v393, 25
    %v396 = vsel %vm395, %v390, %v28
    %v397 = vlaneseq
    %v398 = vand.u32 %v397, 127
    %v399 = vadd.s32 %v398, 256
    %vm400 = vcmp.lt.s32.totalorder %v399, 392
    %v401 = vsel %vm400, %v396, %v28
    %s402 = scalar_lea.vmem %s128, 12
    %s403 = ssub.s32 0, 0
    %p404 = scmp.lt.s32.totalorder %s403, 0
    %s405 = scalar_select %p404, 0, 255
    %s406 = sshrl.u32 %s405, 1
    %s407 = sor.u32 %s405, %s406
    %s408 = sand.u32 %s407, 85
    %s409 = sshrl.u32 %s408, 1
    %s410 = sor.u32 %s408, %s409
    %s411 = sand.u32 51, %s410
    %s412 = sshrl.u32 %s411, 2
    %s413 = sor.u32 %s411, %s412
    %s414 = sand.u32 15, %s413
    %v415 = vld [vmem:[%s402] sm:%s414]
    %v416 = vunpack.c.l.bf16 %v415
    %v417 = vunpack.c.h.bf16 %v415
    %s418 = scalar_lea.vmem %s143, 12
    %s419 = ssub.s32 0, 0
    %p420 = scmp.lt.s32.totalorder %s419, 0
    %s421 = scalar_select %p420, 0, 255
    %s422 = sshrl.u32 %s421, 1
    %s423 = sor.u32 %s421, %s422
    %s424 = sand.u32 %s423, 85
    %s425 = sshrl.u32 %s424, 1
    %s426 = sor.u32 %s424, %s425
    %s427 = sand.u32 51, %s426
    %s428 = sshrl.u32 %s427, 2
    %s429 = sor.u32 %s427, %s428
    %s430 = sand.u32 15, %s429
    %v431 = vld [vmem:[%s418] sm:%s430]
    %v432 = vunpack.c.l.bf16 %v431
    %v433 = vunpack.c.h.bf16 %v431
    %s434 = scalar_lea.vmem %s158, 12
    %s435 = ssub.s32 0, 0
    %p436 = scmp.lt.s32.totalorder %s435, 0
    %s437 = scalar_select %p436, 0, 255
    %s438 = sshrl.u32 %s437, 1
    %s439 = sor.u32 %s437, %s438
    %s440 = sand.u32 %s439, 85
    %s441 = sshrl.u32 %s440, 1
    %s442 = sor.u32 %s440, %s441
    %s443 = sand.u32 51, %s442
    %s444 = sshrl.u32 %s443, 2
    %s445 = sor.u32 %s443, %s444
    %s446 = sand.u32 15, %s445
    %v447 = vld [vmem:[%s434] sm:%s446]
    %v448 = vunpack.c.l.bf16 %v447
    %v449 = vunpack.c.h.bf16 %v447
    %s450 = scalar_lea.vmem %s6, 12
    %s452 = sor.u32 255, 127
    %s453 = sand.u32 %s452, 85
    %s454 = sshrl.u32 %s453, 1
    %s455 = sor.u32 %s453, %s454
    %s456 = sand.u32 51, %s455
    %s457 = sshrl.u32 %s456, 2
    %s458 = sor.u32 %s456, %s457
    %s459 = sand.u32 15, %s458
    %v460 = vld [vmem:[%s450] sm:%s459]
    %v461 = vunpack.c.l.bf16 %v460
    %v462 = vunpack.c.h.bf16 %v460
    %v463 = vlaneseq
    %v464 = vshrl.u32 %v463, 7
    %vm466 = vcmp.lt.s32.totalorder %v464, 25
    %v467 = vsel %vm466, %v461, %v28
    %v468 = vlaneseq
    %v469 = vand.u32 %v468, 127
    %v470 = vadd.s32 %v469, 384
    %vm471 = vcmp.lt.s32.totalorder %v470, 392
    %v472 = vsel %vm471, %v467, %v28
    %v473 = vpack.c.bf16 %v13, %v13
    %v475 = vpack.c.bf16 %v18, %v18
    %v477 = vpack.c.bf16 %v23, %v23
    %v479 = vpack.c.bf16 %v472, %v401
    %481 = xla_tuple %v479, %v477
    %482 = xla_tuple %481
    %v483 = vmax.bf16 %v479, %v477
    %484 = xla_tuple %v483
    %485 = xla_tuple %v483, %v475
    %486 = xla_tuple %485
    %v487 = vmax.bf16 %v483, %v475
    %488 = xla_tuple %v487
    %489 = xla_tuple %v487, %v473
    %490 = xla_tuple %489
    %v491 = vmax.bf16 %v487, %v473
    %492 = xla_tuple %v491
    %v493 = vunpack.c.l.bf16 %v491
    %v494 = vunpack.c.h.bf16 %v491
    %s495 = scalar_lea.vmem [#allocation22], 8
    %v496 = vpack.c.bf16 0.0, %v493
    %498 = vst [vmem:[%s495] sm:$0xf] %v496
    %s499 = scalar_lea.vmem [#allocation22], 12
    %v500 = vpack.c.bf16 0.0, %v494
    %502 = vst [vmem:[%s499] sm:$0xf] %v500
    %s503 = scalar_lea.vmem %s128, 16
    %s504 = ssub.s32 0, 0
    %p505 = scmp.lt.s32.totalorder %s504, 0
    %s506 = scalar_select %p505, 0, 255
    %s507 = sshrl.u32 %s506, 1
    %s508 = sor.u32 %s506, %s507
    %s509 = sand.u32 %s508, 85
    %s510 = sshrl.u32 %s509, 1
    %s511 = sor.u32 %s509, %s510
    %s512 = sand.u32 51, %s511
    %s513 = sshrl.u32 %s512, 2
    %s514 = sor.u32 %s512, %s513
    %s515 = sand.u32 15, %s514
    %v516 = vld [vmem:[%s503] sm:%s515]
    %v517 = vunpack.c.l.bf16 %v516
    %v518 = vunpack.c.h.bf16 %v516
    %s519 = scalar_lea.vmem %s143, 16
    %s520 = ssub.s32 0, 0
    %p521 = scmp.lt.s32.totalorder %s520, 0
    %s522 = scalar_select %p521, 0, 255
    %s523 = sshrl.u32 %s522, 1
    %s524 = sor.u32 %s522, %s523
    %s525 = sand.u32 %s524, 85
    %s526 = sshrl.u32 %s525, 1
    %s527 = sor.u32 %s525, %s526
    %s528 = sand.u32 51, %s527
    %s529 = sshrl.u32 %s528, 2
    %s530 = sor.u32 %s528, %s529
    %s531 = sand.u32 15, %s530
    %v532 = vld [vmem:[%s519] sm:%s531]
    %v533 = vunpack.c.l.bf16 %v532
    %v534 = vunpack.c.h.bf16 %v532
    %s535 = scalar_lea.vmem %s158, 16
    %s536 = ssub.s32 0, 0
    %p537 = scmp.lt.s32.totalorder %s536, 0
    %s538 = scalar_select %p537, 0, 255
    %s539 = sshrl.u32 %s538, 1
    %s540 = sor.u32 %s538, %s539
    %s541 = sand.u32 %s540, 85
    %s542 = sshrl.u32 %s541, 1
    %s543 = sor.u32 %s541, %s542
    %s544 = sand.u32 51, %s543
    %s545 = sshrl.u32 %s544, 2
    %s546 = sor.u32 %s544, %s545
    %s547 = sand.u32 15, %s546
    %v548 = vld [vmem:[%s535] sm:%s547]
    %v549 = vunpack.c.l.bf16 %v548
    %v550 = vunpack.c.h.bf16 %v548
    %s551 = scalar_lea.vmem %s6, 16
    %s553 = sor.u32 255, 127
    %s554 = sand.u32 %s553, 85
    %s555 = sshrl.u32 %s554, 1
    %s556 = sor.u32 %s554, %s555
    %s557 = sand.u32 51, %s556
    %s558 = sshrl.u32 %s557, 2
    %s559 = sor.u32 %s557, %s558
    %s560 = sand.u32 15, %s559
    %v561 = vld [vmem:[%s551] sm:%s560]
    %v562 = vunpack.c.l.bf16 %v561
    %v563 = vunpack.c.h.bf16 %v561
    %v564 = vlaneseq
    %v565 = vshrl.u32 %v564, 7
    %v566 = vadd.s32 %v565, 8
    %vm567 = vcmp.lt.s32.totalorder %v566, 25
    %v568 = vsel %vm567, %v562, %v28
    %v569 = vlaneseq
    %v570 = vand.u32 %v569, 127
    %vm572 = vcmp.lt.s32.totalorder %v570, 392
    %v573 = vsel %vm572, %v568, %v28
    %s574 = scalar_lea.vmem %s128, 20
    %s575 = ssub.s32 0, 0
    %p576 = scmp.lt.s32.totalorder %s575, 0
    %s577 = scalar_select %p576, 0, 255
    %s578 = sshrl.u32 %s577, 1
    %s579 = sor.u32 %s577, %s578
    %s580 = sand.u32 %s579, 85
    %s581 = sshrl.u32 %s580, 1
    %s582 = sor.u32 %s580, %s581
    %s583 = sand.u32 51, %s582
    %s584 = sshrl.u32 %s583, 2
    %s585 = sor.u32 %s583, %s584
    %s586 = sand.u32 15, %s585
    %v587 = vld [vmem:[%s574] sm:%s586]
    %v588 = vunpack.c.l.bf16 %v587
    %v589 = vunpack.c.h.bf16 %v587
    %s590 = scalar_lea.vmem %s143, 20
    %s591 = ssub.s32 0, 0
    %p592 = scmp.lt.s32.totalorder %s591, 0
    %s593 = scalar_select %p592, 0, 255
    %s594 = sshrl.u32 %s593, 1
    %s595 = sor.u32 %s593, %s594
    %s596 = sand.u32 %s595, 85
    %s597 = sshrl.u32 %s596, 1
    %s598 = sor.u32 %s596, %s597
    %s599 = sand.u32 51, %s598
    %s600 = sshrl.u32 %s599, 2
    %s601 = sor.u32 %s599, %s600
    %s602 = sand.u32 15, %s601
    %v603 = vld [vmem:[%s590] sm:%s602]
    %v604 = vunpack.c.l.bf16 %v603
    %v605 = vunpack.c.h.bf16 %v603
    %s606 = scalar_lea.vmem %s158, 20
    %s607 = ssub.s32 0, 0
    %p608 = scmp.lt.s32.totalorder %s607, 0
    %s609 = scalar_select %p608, 0, 255
    %s610 = sshrl.u32 %s609, 1
    %s611 = sor.u32 %s609, %s610
    %s612 = sand.u32 %s611, 85
    %s613 = sshrl.u32 %s612, 1
    %s614 = sor.u32 %s612, %s613
    %s615 = sand.u32 51, %s614
    %s616 = sshrl.u32 %s615, 2
    %s617 = sor.u32 %s615, %s616
    %s618 = sand.u32 15, %s617
    %v619 = vld [vmem:[%s606] sm:%s618]
    %v620 = vunpack.c.l.bf16 %v619
    %v621 = vunpack.c.h.bf16 %v619
    %s622 = scalar_lea.vmem %s6, 20
    %s624 = sor.u32 255, 127
    %s625 = sand.u32 %s624, 85
    %s626 = sshrl.u32 %s625, 1
    %s627 = sor.u32 %s625, %s626
    %s628 = sand.u32 51, %s627
    %s629 = sshrl.u32 %s628, 2
    %s630 = sor.u32 %s628, %s629
    %s631 = sand.u32 15, %s630
    %v632 = vld [vmem:[%s622] sm:%s631]
    %v633 = vunpack.c.l.bf16 %v632
    %v634 = vunpack.c.h.bf16 %v632
    %v635 = vlaneseq
    %v636 = vshrl.u32 %v635, 7
    %v637 = vadd.s32 %v636, 8
    %vm638 = vcmp.lt.s32.totalorder %v637, 25
    %v639 = vsel %vm638, %v633, %v28
    %v640 = vlaneseq
    %v641 = vand.u32 %v640, 127
    %v642 = vadd.s32 %v641, 128
    %vm643 = vcmp.lt.s32.totalorder %v642, 392
    %v644 = vsel %vm643, %v639, %v28
    %v645 = vpack.c.bf16 %v13, %v13
    %v647 = vpack.c.bf16 %v18, %v18
    %v649 = vpack.c.bf16 %v23, %v23
    %v651 = vpack.c.bf16 %v644, %v573
    %653 = xla_tuple %v651, %v649
    %654 = xla_tuple %653
    %v655 = vmax.bf16 %v651, %v649
    %656 = xla_tuple %v655
    %657 = xla_tuple %v655, %v647
    %658 = xla_tuple %657
    %v659 = vmax.bf16 %v655, %v647
    %660 = xla_tuple %v659
    %661 = xla_tuple %v659, %v645
    %662 = xla_tuple %661
    %v663 = vmax.bf16 %v659, %v645
    %664 = xla_tuple %v663
    %v665 = vunpack.c.l.bf16 %v663
    %v666 = vunpack.c.h.bf16 %v663
    %s667 = scalar_lea.vmem [#allocation22], 16
    %v668 = vpack.c.bf16 0.0, %v665
    %670 = vst [vmem:[%s667] sm:$0xf] %v668
    %s671 = scalar_lea.vmem [#allocation22], 20
    %v672 = vpack.c.bf16 0.0, %v666
    %674 = vst [vmem:[%s671] sm:$0xf] %v672
    %s675 = scalar_lea.vmem %s128, 24
    %s676 = ssub.s32 0, 0
    %p677 = scmp.lt.s32.totalorder %s676, 0
    %s678 = scalar_select %p677, 0, 255
    %s679 = sshrl.u32 %s678, 1
    %s680 = sor.u32 %s678, %s679
    %s681 = sand.u32 %s680, 85
    %s682 = sshrl.u32 %s681, 1
    %s683 = sor.u32 %s681, %s682
    %s684 = sand.u32 51, %s683
    %s685 = sshrl.u32 %s684, 2
    %s686 = sor.u32 %s684, %s685
    %s687 = sand.u32 15, %s686
    %v688 = vld [vmem:[%s675] sm:%s687]
    %v689 = vunpack.c.l.bf16 %v688
    %v690 = vunpack.c.h.bf16 %v688
    %s691 = scalar_lea.vmem %s143, 24
    %s692 = ssub.s32 0, 0
    %p693 = scmp.lt.s32.totalorder %s692, 0
    %s694 = scalar_select %p693, 0, 255
    %s695 = sshrl.u32 %s694, 1
    %s696 = sor.u32 %s694, %s695
    %s697 = sand.u32 %s696, 85
    %s698 = sshrl.u32 %s697, 1
    %s699 = sor.u32 %s697, %s698
    %s700 = sand.u32 51, %s699
    %s701 = sshrl.u32 %s700, 2
    %s702 = sor.u32 %s700, %s701
    %s703 = sand.u32 15, %s702
    %v704 = vld [vmem:[%s691] sm:%s703]
    %v705 = vunpack.c.l.bf16 %v704
    %v706 = vunpack.c.h.bf16 %v704
    %s707 = scalar_lea.vmem %s158, 24
    %s708 = ssub.s32 0, 0
    %p709 = scmp.lt.s32.totalorder %s708, 0
    %s710 = scalar_select %p709, 0, 255
    %s711 = sshrl.u32 %s710, 1
    %s712 = sor.u32 %s710, %s711
    %s713 = sand.u32 %s712, 85
    %s714 = sshrl.u32 %s713, 1
    %s715 = sor.u32 %s713, %s714
    %s716 = sand.u32 51, %s715
    %s717 = sshrl.u32 %s716, 2
    %s718 = sor.u32 %s716, %s717
    %s719 = sand.u32 15, %s718
    %v720 = vld [vmem:[%s707] sm:%s719]
    %v721 = vunpack.c.l.bf16 %v720
    %v722 = vunpack.c.h.bf16 %v720
    %s723 = scalar_lea.vmem %s6, 24
    %s725 = sor.u32 255, 127
    %s726 = sand.u32 %s725, 85
    %s727 = sshrl.u32 %s726, 1
    %s728 = sor.u32 %s726, %s727
    %s729 = sand.u32 51, %s728
    %s730 = sshrl.u32 %s729, 2
    %s731 = sor.u32 %s729, %s730
    %s732 = sand.u32 15, %s731
    %v733 = vld [vmem:[%s723] sm:%s732]
    %v734 = vunpack.c.l.bf16 %v733
    %v735 = vunpack.c.h.bf16 %v733
    %v736 = vlaneseq
    %v737 = vshrl.u32 %v736, 7
    %v738 = vadd.s32 %v737, 8
    %vm739 = vcmp.lt.s32.totalorder %v738, 25
    %v740 = vsel %vm739, %v734, %v28
    %v741 = vlaneseq
    %v742 = vand.u32 %v741, 127
    %v743 = vadd.s32 %v742, 256
    %vm744 = vcmp.lt.s32.totalorder %v743, 392
    %v745 = vsel %vm744, %v740, %v28
    %s746 = scalar_lea.vmem %s128, 28
    %s747 = ssub.s32 0, 0
    %p748 = scmp.lt.s32.totalorder %s747, 0
    %s749 = scalar_select %p748, 0, 255
    %s750 = sshrl.u32 %s749, 1
    %s751 = sor.u32 %s749, %s750
    %s752 = sand.u32 %s751, 85
    %s753 = sshrl.u32 %s752, 1
    %s754 = sor.u32 %s752, %s753
    %s755 = sand.u32 51, %s754
    %s756 = sshrl.u32 %s755, 2
    %s757 = sor.u32 %s755, %s756
    %s758 = sand.u32 15, %s757
    %v759 = vld [vmem:[%s746] sm:%s758]
    %v760 = vunpack.c.l.bf16 %v759
    %v761 = vunpack.c.h.bf16 %v759
    %s762 = scalar_lea.vmem %s143, 28
    %s763 = ssub.s32 0, 0
    %p764 = scmp.lt.s32.totalorder %s763, 0
    %s765 = scalar_select %p764, 0, 255
    %s766 = sshrl.u32 %s765, 1
    %s767 = sor.u32 %s765, %s766
    %s768 = sand.u32 %s767, 85
    %s769 = sshrl.u32 %s768, 1
    %s770 = sor.u32 %s768, %s769
    %s771 = sand.u32 51, %s770
    %s772 = sshrl.u32 %s771, 2
    %s773 = sor.u32 %s771, %s772
    %s774 = sand.u32 15, %s773
    %v775 = vld [vmem:[%s762] sm:%s774]
    %v776 = vunpack.c.l.bf16 %v775
    %v777 = vunpack.c.h.bf16 %v775
    %s778 = scalar_lea.vmem %s158, 28
    %s779 = ssub.s32 0, 0
    %p780 = scmp.lt.s32.totalorder %s779, 0
    %s781 = scalar_select %p780, 0, 255
    %s782 = sshrl.u32 %s781, 1
    %s783 = sor.u32 %s781, %s782
    %s784 = sand.u32 %s783, 85
    %s785 = sshrl.u32 %s784, 1
    %s786 = sor.u32 %s784, %s785
    %s787 = sand.u32 51, %s786
    %s788 = sshrl.u32 %s787, 2
    %s789 = sor.u32 %s787, %s788
    %s790 = sand.u32 15, %s789
    %v791 = vld [vmem:[%s778] sm:%s790]
    %v792 = vunpack.c.l.bf16 %v791
    %v793 = vunpack.c.h.bf16 %v791
    %s794 = scalar_lea.vmem %s6, 28
    %s796 = sor.u32 255, 127
    %s797 = sand.u32 %s796, 85
    %s798 = sshrl.u32 %s797, 1
    %s799 = sor.u32 %s797, %s798
    %s800 = sand.u32 51, %s799
    %s801 = sshrl.u32 %s800, 2
    %s802 = sor.u32 %s800, %s801
    %s803 = sand.u32 15, %s802
    %v804 = vld [vmem:[%s794] sm:%s803]
    %v805 = vunpack.c.l.bf16 %v804
    %v806 = vunpack.c.h.bf16 %v804
    %v807 = vlaneseq
    %v808 = vshrl.u32 %v807, 7
    %v809 = vadd.s32 %v808, 8
    %vm810 = vcmp.lt.s32.totalorder %v809, 25
    %v811 = vsel %vm810, %v805, %v28
    %v812 = vlaneseq
    %v813 = vand.u32 %v812, 127
    %v814 = vadd.s32 %v813, 384
    %vm815 = vcmp.lt.s32.totalorder %v814, 392
    %v816 = vsel %vm815, %v811, %v28
    %v817 = vpack.c.bf16 %v13, %v13
    %v819 = vpack.c.bf16 %v18, %v18
    %v821 = vpack.c.bf16 %v23, %v23
    %v823 = vpack.c.bf16 %v816, %v745
    %825 = xla_tuple %v823, %v821
    %826 = xla_tuple %825
    %v827 = vmax.bf16 %v823, %v821
    %828 = xla_tuple %v827
    %829 = xla_tuple %v827, %v819
    %830 = xla_tuple %829
    %v831 = vmax.bf16 %v827, %v819
    %832 = xla_tuple %v831
    %833 = xla_tuple %v831, %v817
    %834 = xla_tuple %833
    %v835 = vmax.bf16 %v831, %v817
    %836 = xla_tuple %v835
    %v837 = vunpack.c.l.bf16 %v835
    %v838 = vunpack.c.h.bf16 %v835
    %s839 = scalar_lea.vmem [#allocation22], 24
    %v840 = vpack.c.bf16 0.0, %v837
    %842 = vst [vmem:[%s839] sm:$0xf] %v840
    %s843 = scalar_lea.vmem [#allocation22], 28
    %v844 = vpack.c.bf16 0.0, %v838
    %846 = vst [vmem:[%s843] sm:$0xf] %v844
    %s847 = scalar_lea.vmem %s128, 32
    %s848 = ssub.s32 0, 0
    %p849 = scmp.lt.s32.totalorder %s848, 0
    %s850 = scalar_select %p849, 0, 255
    %s851 = sshrl.u32 %s850, 1
    %s852 = sor.u32 %s850, %s851
    %s853 = sand.u32 %s852, 85
    %s854 = sshrl.u32 %s853, 1
    %s855 = sor.u32 %s853, %s854
    %s856 = sand.u32 51, %s855
    %s857 = sshrl.u32 %s856, 2
    %s858 = sor.u32 %s856, %s857
    %s859 = sand.u32 15, %s858
    %v860 = vld [vmem:[%s847] sm:%s859]
    %v861 = vunpack.c.l.bf16 %v860
    %v862 = vunpack.c.h.bf16 %v860
    %s863 = scalar_lea.vmem %s143, 32
    %s864 = ssub.s32 0, 0
    %p865 = scmp.lt.s32.totalorder %s864, 0
    %s866 = scalar_select %p865, 0, 255
    %s867 = sshrl.u32 %s866, 1
    %s868 = sor.u32 %s866, %s867
    %s869 = sand.u32 %s868, 85
    %s870 = sshrl.u32 %s869, 1
    %s871 = sor.u32 %s869, %s870
    %s872 = sand.u32 51, %s871
    %s873 = sshrl.u32 %s872, 2
    %s874 = sor.u32 %s872, %s873
    %s875 = sand.u32 15, %s874
    %v876 = vld [vmem:[%s863] sm:%s875]
    %v877 = vunpack.c.l.bf16 %v876
    %v878 = vunpack.c.h.bf16 %v876
    %s879 = scalar_lea.vmem %s158, 32
    %s880 = ssub.s32 0, 0
    %p881 = scmp.lt.s32.totalorder %s880, 0
    %s882 = scalar_select %p881, 0, 255
    %s883 = sshrl.u32 %s882, 1
    %s884 = sor.u32 %s882, %s883
    %s885 = sand.u32 %s884, 85
    %s886 = sshrl.u32 %s885, 1
    %s887 = sor.u32 %s885, %s886
    %s888 = sand.u32 51, %s887
    %s889 = sshrl.u32 %s888, 2
    %s890 = sor.u32 %s888, %s889
    %s891 = sand.u32 15, %s890
    %v892 = vld [vmem:[%s879] sm:%s891]
    %v893 = vunpack.c.l.bf16 %v892
    %v894 = vunpack.c.h.bf16 %v892
    %s895 = scalar_lea.vmem %s6, 32
    %s897 = sor.u32 255, 127
    %s898 = sand.u32 %s897, 85
    %s899 = sshrl.u32 %s898, 1
    %s900 = sor.u32 %s898, %s899
    %s901 = sand.u32 51, %s900
    %s902 = sshrl.u32 %s901, 2
    %s903 = sor.u32 %s901, %s902
    %s904 = sand.u32 15, %s903
    %v905 = vld [vmem:[%s895] sm:%s904]
    %v906 = vunpack.c.l.bf16 %v905
    %v907 = vunpack.c.h.bf16 %v905
    %v908 = vlaneseq
    %v909 = vshrl.u32 %v908, 7
    %v910 = vadd.s32 %v909, 16
    %vm911 = vcmp.lt.s32.totalorder %v910, 25
    %v912 = vsel %vm911, %v906, %v28
    %v913 = vlaneseq
    %v914 = vand.u32 %v913, 127
    %vm916 = vcmp.lt.s32.totalorder %v914, 392
    %v917 = vsel %vm916, %v912, %v28
    %s918 = scalar_lea.vmem %s128, 36
    %s919 = ssub.s32 0, 0
    %p920 = scmp.lt.s32.totalorder %s919, 0
    %s921 = scalar_select %p920, 0, 255
    %s922 = sshrl.u32 %s921, 1
    %s923 = sor.u32 %s921, %s922
    %s924 = sand.u32 %s923, 85
    %s925 = sshrl.u32 %s924, 1
    %s926 = sor.u32 %s924, %s925
    %s927 = sand.u32 51, %s926
    %s928 = sshrl.u32 %s927, 2
    %s929 = sor.u32 %s927, %s928
    %s930 = sand.u32 15, %s929
    %v931 = vld [vmem:[%s918] sm:%s930]
    %v932 = vunpack.c.l.bf16 %v931
    %v933 = vunpack.c.h.bf16 %v931
    %s934 = scalar_lea.vmem %s143, 36
    %s935 = ssub.s32 0, 0
    %p936 = scmp.lt.s32.totalorder %s935, 0
    %s937 = scalar_select %p936, 0, 255
    %s938 = sshrl.u32 %s937, 1
    %s939 = sor.u32 %s937, %s938
    %s940 = sand.u32 %s939, 85
    %s941 = sshrl.u32 %s940, 1
    %s942 = sor.u32 %s940, %s941
    %s943 = sand.u32 51, %s942
    %s944 = sshrl.u32 %s943, 2
    %s945 = sor.u32 %s943, %s944
    %s946 = sand.u32 15, %s945
    %v947 = vld [vmem:[%s934] sm:%s946]
    %v948 = vunpack.c.l.bf16 %v947
    %v949 = vunpack.c.h.bf16 %v947
    %s950 = scalar_lea.vmem %s158, 36
    %s951 = ssub.s32 0, 0
    %p952 = scmp.lt.s32.totalorder %s951, 0
    %s953 = scalar_select %p952, 0, 255
    %s954 = sshrl.u32 %s953, 1
    %s955 = sor.u32 %s953, %s954
    %s956 = sand.u32 %s955, 85
    %s957 = sshrl.u32 %s956, 1
    %s958 = sor.u32 %s956, %s957
    %s959 = sand.u32 51, %s958
    %s960 = sshrl.u32 %s959, 2
    %s961 = sor.u32 %s959, %s960
    %s962 = sand.u32 15, %s961
    %v963 = vld [vmem:[%s950] sm:%s962]
    %v964 = vunpack.c.l.bf16 %v963
    %v965 = vunpack.c.h.bf16 %v963
    %s966 = scalar_lea.vmem %s6, 36
    %s968 = sor.u32 255, 127
    %s969 = sand.u32 %s968, 85
    %s970 = sshrl.u32 %s969, 1
    %s971 = sor.u32 %s969, %s970
    %s972 = sand.u32 51, %s971
    %s973 = sshrl.u32 %s972, 2
    %s974 = sor.u32 %s972, %s973
    %s975 = sand.u32 15, %s974
    %v976 = vld [vmem:[%s966] sm:%s975]
    %v977 = vunpack.c.l.bf16 %v976
    %v978 = vunpack.c.h.bf16 %v976
    %v979 = vlaneseq
    %v980 = vshrl.u32 %v979, 7
    %v981 = vadd.s32 %v980, 16
    %vm982 = vcmp.lt.s32.totalorder %v981, 25
    %v983 = vsel %vm982, %v977, %v28
    %v984 = vlaneseq
    %v985 = vand.u32 %v984, 127
    %v986 = vadd.s32 %v985, 128
    %vm987 = vcmp.lt.s32.totalorder %v986, 392
    %v988 = vsel %vm987, %v983, %v28
    %v989 = vpack.c.bf16 %v13, %v13
    %v991 = vpack.c.bf16 %v18, %v18
    %v993 = vpack.c.bf16 %v23, %v23
    %v995 = vpack.c.bf16 %v988, %v917
    %997 = xla_tuple %v995, %v993
    %998 = xla_tuple %997
    %v999 = vmax.bf16 %v995, %v993
    %1000 = xla_tuple %v999
    %1001 = xla_tuple %v999, %v991
    %1002 = xla_tuple %1001
    %v1003 = vmax.bf16 %v999, %v991
    %1004 = xla_tuple %v1003
    %1005 = xla_tuple %v1003, %v989
    %1006 = xla_tuple %1005
    %v1007 = vmax.bf16 %v1003, %v989
    %1008 = xla_tuple %v1007
    %v1009 = vunpack.c.l.bf16 %v1007
    %v1010 = vunpack.c.h.bf16 %v1007
    %s1011 = scalar_lea.vmem [#allocation22], 32
    %v1012 = vpack.c.bf16 0.0, %v1009
    %1014 = vst [vmem:[%s1011] sm:$0xf] %v1012
    %s1015 = scalar_lea.vmem [#allocation22], 36
    %v1016 = vpack.c.bf16 0.0, %v1010
    %1018 = vst [vmem:[%s1015] sm:$0xf] %v1016
    %s1019 = scalar_lea.vmem %s128, 40
    %s1020 = ssub.s32 0, 0
    %p1021 = scmp.lt.s32.totalorder %s1020, 0
    %s1022 = scalar_select %p1021, 0, 255
    %s1023 = sshrl.u32 %s1022, 1
    %s1024 = sor.u32 %s1022, %s1023
    %s1025 = sand.u32 %s1024, 85
    %s1026 = sshrl.u32 %s1025, 1
    %s1027 = sor.u32 %s1025, %s1026
    %s1028 = sand.u32 51, %s1027
    %s1029 = sshrl.u32 %s1028, 2
    %s1030 = sor.u32 %s1028, %s1029
    %s1031 = sand.u32 15, %s1030
    %v1032 = vld [vmem:[%s1019] sm:%s1031]
    %v1033 = vunpack.c.l.bf16 %v1032
    %v1034 = vunpack.c.h.bf16 %v1032
    %s1035 = scalar_lea.vmem %s143, 40
    %s1036 = ssub.s32 0, 0
    %p1037 = scmp.lt.s32.totalorder %s1036, 0
    %s1038 = scalar_select %p1037, 0, 255
    %s1039 = sshrl.u32 %s1038, 1
    %s1040 = sor.u32 %s1038, %s1039
    %s1041 = sand.u32 %s1040, 85
    %s1042 = sshrl.u32 %s1041, 1
    %s1043 = sor.u32 %s1041, %s1042
    %s1044 = sand.u32 51, %s1043
    %s1045 = sshrl.u32 %s1044, 2
    %s1046 = sor.u32 %s1044, %s1045
    %s1047 = sand.u32 15, %s1046
    %v1048 = vld [vmem:[%s1035] sm:%s1047]
    %v1049 = vunpack.c.l.bf16 %v1048
    %v1050 = vunpack.c.h.bf16 %v1048
    %s1051 = scalar_lea.vmem %s158, 40
    %s1052 = ssub.s32 0, 0
    %p1053 = scmp.lt.s32.totalorder %s1052, 0
    %s1054 = scalar_select %p1053, 0, 255
    %s1055 = sshrl.u32 %s1054, 1
    %s1056 = sor.u32 %s1054, %s1055
    %s1057 = sand.u32 %s1056, 85
    %s1058 = sshrl.u32 %s1057, 1
    %s1059 = sor.u32 %s1057, %s1058
    %s1060 = sand.u32 51, %s1059
    %s1061 = sshrl.u32 %s1060, 2
    %s1062 = sor.u32 %s1060, %s1061
    %s1063 = sand.u32 15, %s1062
    %v1064 = vld [vmem:[%s1051] sm:%s1063]
    %v1065 = vunpack.c.l.bf16 %v1064
    %v1066 = vunpack.c.h.bf16 %v1064
    %s1067 = scalar_lea.vmem %s6, 40
    %s1069 = sor.u32 255, 127
    %s1070 = sand.u32 %s1069, 85
    %s1071 = sshrl.u32 %s1070, 1
    %s1072 = sor.u32 %s1070, %s1071
    %s1073 = sand.u32 51, %s1072
    %s1074 = sshrl.u32 %s1073, 2
    %s1075 = sor.u32 %s1073, %s1074
    %s1076 = sand.u32 15, %s1075
    %v1077 = vld [vmem:[%s1067] sm:%s1076]
    %v1078 = vunpack.c.l.bf16 %v1077
    %v1079 = vunpack.c.h.bf16 %v1077
    %v1080 = vlaneseq
    %v1081 = vshrl.u32 %v1080, 7
    %v1082 = vadd.s32 %v1081, 16
    %vm1083 = vcmp.lt.s32.totalorder %v1082, 25
    %v1084 = vsel %vm1083, %v1078, %v28
    %v1085 = vlaneseq
    %v1086 = vand.u32 %v1085, 127
    %v1087 = vadd.s32 %v1086, 256
    %vm1088 = vcmp.lt.s32.totalorder %v1087, 392
    %v1089 = vsel %vm1088, %v1084, %v28
    %s1090 = scalar_lea.vmem %s128, 44
    %s1091 = ssub.s32 0, 0
    %p1092 = scmp.lt.s32.totalorder %s1091, 0
    %s1093 = scalar_select %p1092, 0, 255
    %s1094 = sshrl.u32 %s1093, 1
    %s1095 = sor.u32 %s1093, %s1094
    %s1096 = sand.u32 %s1095, 85
    %s1097 = sshrl.u32 %s1096, 1
    %s1098 = sor.u32 %s1096, %s1097
    %s1099 = sand.u32 51, %s1098
    %s1100 = sshrl.u32 %s1099, 2
    %s1101 = sor.u32 %s1099, %s1100
    %s1102 = sand.u32 15, %s1101
    %v1103 = vld [vmem:[%s1090] sm:%s1102]
    %v1104 = vunpack.c.l.bf16 %v1103
    %v1105 = vunpack.c.h.bf16 %v1103
    %s1106 = scalar_lea.vmem %s143, 44
    %s1107 = ssub.s32 0, 0
    %p1108 = scmp.lt.s32.totalorder %s1107, 0
    %s1109 = scalar_select %p1108, 0, 255
    %s1110 = sshrl.u32 %s1109, 1
    %s1111 = sor.u32 %s1109, %s1110
    %s1112 = sand.u32 %s1111, 85
    %s1113 = sshrl.u32 %s1112, 1
    %s1114 = sor.u32 %s1112, %s1113
    %s1115 = sand.u32 51, %s1114
    %s1116 = sshrl.u32 %s1115, 2
    %s1117 = sor.u32 %s1115, %s1116
    %s1118 = sand.u32 15, %s1117
    %v1119 = vld [vmem:[%s1106] sm:%s1118]
    %v1120 = vunpack.c.l.bf16 %v1119
    %v1121 = vunpack.c.h.bf16 %v1119
    %s1122 = scalar_lea.vmem %s158, 44
    %s1123 = ssub.s32 0, 0
    %p1124 = scmp.lt.s32.totalorder %s1123, 0
    %s1125 = scalar_select %p1124, 0, 255
    %s1126 = sshrl.u32 %s1125, 1
    %s1127 = sor.u32 %s1125, %s1126
    %s1128 = sand.u32 %s1127, 85
    %s1129 = sshrl.u32 %s1128, 1
    %s1130 = sor.u32 %s1128, %s1129
    %s1131 = sand.u32 51, %s1130
    %s1132 = sshrl.u32 %s1131, 2
    %s1133 = sor.u32 %s1131, %s1132
    %s1134 = sand.u32 15, %s1133
    %v1135 = vld [vmem:[%s1122] sm:%s1134]
    %v1136 = vunpack.c.l.bf16 %v1135
    %v1137 = vunpack.c.h.bf16 %v1135
    %s1138 = scalar_lea.vmem %s6, 44
    %s1140 = sor.u32 255, 127
    %s1141 = sand.u32 %s1140, 85
    %s1142 = sshrl.u32 %s1141, 1
    %s1143 = sor.u32 %s1141, %s1142
    %s1144 = sand.u32 51, %s1143
    %s1145 = sshrl.u32 %s1144, 2
    %s1146 = sor.u32 %s1144, %s1145
    %s1147 = sand.u32 15, %s1146
    %v1148 = vld [vmem:[%s1138] sm:%s1147]
    %v1149 = vunpack.c.l.bf16 %v1148
    %v1150 = vunpack.c.h.bf16 %v1148
    %v1151 = vlaneseq
    %v1152 = vshrl.u32 %v1151, 7
    %v1153 = vadd.s32 %v1152, 16
    %vm1154 = vcmp.lt.s32.totalorder %v1153, 25
    %v1155 = vsel %vm1154, %v1149, %v28
    %v1156 = vlaneseq
    %v1157 = vand.u32 %v1156, 127
    %v1158 = vadd.s32 %v1157, 384
    %vm1159 = vcmp.lt.s32.totalorder %v1158, 392
    %v1160 = vsel %vm1159, %v1155, %v28
    %v1161 = vpack.c.bf16 %v13, %v13
    %v1163 = vpack.c.bf16 %v18, %v18
    %v1165 = vpack.c.bf16 %v23, %v23
    %v1167 = vpack.c.bf16 %v1160, %v1089
    %1169 = xla_tuple %v1167, %v1165
    %1170 = xla_tuple %1169
    %v1171 = vmax.bf16 %v1167, %v1165
    %1172 = xla_tuple %v1171
    %1173 = xla_tuple %v1171, %v1163
    %1174 = xla_tuple %1173
    %v1175 = vmax.bf16 %v1171, %v1163
    %1176 = xla_tuple %v1175
    %1177 = xla_tuple %v1175, %v1161
    %1178 = xla_tuple %1177
    %v1179 = vmax.bf16 %v1175, %v1161
    %1180 = xla_tuple %v1179
    %v1181 = vunpack.c.l.bf16 %v1179
    %v1182 = vunpack.c.h.bf16 %v1179
    %s1183 = scalar_lea.vmem [#allocation22], 40
    %v1184 = vpack.c.bf16 0.0, %v1181
    %1186 = vst [vmem:[%s1183] sm:$0xf] %v1184
    %s1187 = scalar_lea.vmem [#allocation22], 44
    %v1188 = vpack.c.bf16 0.0, %v1182
    %1190 = vst [vmem:[%s1187] sm:$0xf] %v1188
    %s1191 = scalar_lea.vmem %s128, 48
    %s1192 = ssub.s32 0, 0
    %p1193 = scmp.lt.s32.totalorder %s1192, 0
    %s1194 = scalar_select %p1193, 0, 255
    %s1195 = sshrl.u32 %s1194, 1
    %s1196 = sor.u32 %s1194, %s1195
    %s1197 = sand.u32 %s1196, 85
    %s1198 = sshrl.u32 %s1197, 1
    %s1199 = sor.u32 %s1197, %s1198
    %s1200 = sand.u32 51, %s1199
    %s1201 = sshrl.u32 %s1200, 2
    %s1202 = sor.u32 %s1200, %s1201
    %s1203 = sand.u32 15, %s1202
    %v1204 = vld [vmem:[%s1191] sm:%s1203]
    %v1205 = vunpack.c.l.bf16 %v1204
    %v1206 = vunpack.c.h.bf16 %v1204
    %s1207 = scalar_lea.vmem %s143, 48
    %s1208 = ssub.s32 0, 0
    %p1209 = scmp.lt.s32.totalorder %s1208, 0
    %s1210 = scalar_select %p1209, 0, 255
    %s1211 = sshrl.u32 %s1210, 1
    %s1212 = sor.u32 %s1210, %s1211
    %s1213 = sand.u32 %s1212, 85
    %s1214 = sshrl.u32 %s1213, 1
    %s1215 = sor.u32 %s1213, %s1214
    %s1216 = sand.u32 51, %s1215
    %s1217 = sshrl.u32 %s1216, 2
    %s1218 = sor.u32 %s1216, %s1217
    %s1219 = sand.u32 15, %s1218
    %v1220 = vld [vmem:[%s1207] sm:%s1219]
    %v1221 = vunpack.c.l.bf16 %v1220
    %v1222 = vunpack.c.h.bf16 %v1220
    %s1223 = scalar_lea.vmem %s158, 48
    %s1224 = ssub.s32 0, 0
    %p1225 = scmp.lt.s32.totalorder %s1224, 0
    %s1226 = scalar_select %p1225, 0, 255
    %s1227 = sshrl.u32 %s1226, 1
    %s1228 = sor.u32 %s1226, %s1227
    %s1229 = sand.u32 %s1228, 85
    %s1230 = sshrl.u32 %s1229, 1
    %s1231 = sor.u32 %s1229, %s1230
    %s1232 = sand.u32 51, %s1231
    %s1233 = sshrl.u32 %s1232, 2
    %s1234 = sor.u32 %s1232, %s1233
    %s1235 = sand.u32 15, %s1234
    %v1236 = vld [vmem:[%s1223] sm:%s1235]
    %v1237 = vunpack.c.l.bf16 %v1236
    %v1238 = vunpack.c.h.bf16 %v1236
    %s1239 = scalar_lea.vmem %s6, 48
    %s1241 = sor.u32 255, 127
    %s1242 = sand.u32 %s1241, 85
    %s1243 = sshrl.u32 %s1242, 1
    %s1244 = sor.u32 %s1242, %s1243
    %s1245 = sand.u32 51, %s1244
    %s1246 = sshrl.u32 %s1245, 2
    %s1247 = sor.u32 %s1245, %s1246
    %s1248 = sand.u32 15, %s1247
    %v1249 = vld [vmem:[%s1239] sm:%s1248]
    %v1250 = vunpack.c.l.bf16 %v1249
    %v1251 = vunpack.c.h.bf16 %v1249
    %v1252 = vlaneseq
    %v1253 = vshrl.u32 %v1252, 7
    %v1254 = vadd.s32 %v1253, 24
    %vm1255 = vcmp.lt.s32.totalorder %v1254, 25
    %v1256 = vsel %vm1255, %v1250, %v28
    %v1257 = vlaneseq
    %v1258 = vand.u32 %v1257, 127
    %vm1260 = vcmp.lt.s32.totalorder %v1258, 392
    %v1261 = vsel %vm1260, %v1256, %v28
    %s1262 = scalar_lea.vmem %s128, 52
    %s1263 = ssub.s32 0, 0
    %p1264 = scmp.lt.s32.totalorder %s1263, 0
    %s1265 = scalar_select %p1264, 0, 255
    %s1266 = sshrl.u32 %s1265, 1
    %s1267 = sor.u32 %s1265, %s1266
    %s1268 = sand.u32 %s1267, 85
    %s1269 = sshrl.u32 %s1268, 1
    %s1270 = sor.u32 %s1268, %s1269
    %s1271 = sand.u32 51, %s1270
    %s1272 = sshrl.u32 %s1271, 2
    %s1273 = sor.u32 %s1271, %s1272
    %s1274 = sand.u32 15, %s1273
    %v1275 = vld [vmem:[%s1262] sm:%s1274]
    %v1276 = vunpack.c.l.bf16 %v1275
    %v1277 = vunpack.c.h.bf16 %v1275
    %s1278 = scalar_lea.vmem %s143, 52
    %s1279 = ssub.s32 0, 0
    %p1280 = scmp.lt.s32.totalorder %s1279, 0
    %s1281 = scalar_select %p1280, 0, 255
    %s1282 = sshrl.u32 %s1281, 1
    %s1283 = sor.u32 %s1281, %s1282
    %s1284 = sand.u32 %s1283, 85
    %s1285 = sshrl.u32 %s1284, 1
    %s1286 = sor.u32 %s1284, %s1285
    %s1287 = sand.u32 51, %s1286
    %s1288 = sshrl.u32 %s1287, 2
    %s1289 = sor.u32 %s1287, %s1288
    %s1290 = sand.u32 15, %s1289
    %v1291 = vld [vmem:[%s1278] sm:%s1290]
    %v1292 = vunpack.c.l.bf16 %v1291
    %v1293 = vunpack.c.h.bf16 %v1291
    %s1294 = scalar_lea.vmem %s158, 52
    %s1295 = ssub.s32 0, 0
    %p1296 = scmp.lt.s32.totalorder %s1295, 0
    %s1297 = scalar_select %p1296, 0, 255
    %s1298 = sshrl.u32 %s1297, 1
    %s1299 = sor.u32 %s1297, %s1298
    %s1300 = sand.u32 %s1299, 85
    %s1301 = sshrl.u32 %s1300, 1
    %s1302 = sor.u32 %s1300, %s1301
    %s1303 = sand.u32 51, %s1302
    %s1304 = sshrl.u32 %s1303, 2
    %s1305 = sor.u32 %s1303, %s1304
    %s1306 = sand.u32 15, %s1305
    %v1307 = vld [vmem:[%s1294] sm:%s1306]
    %v1308 = vunpack.c.l.bf16 %v1307
    %v1309 = vunpack.c.h.bf16 %v1307
    %s1310 = scalar_lea.vmem %s6, 52
    %s1312 = sor.u32 255, 127
    %s1313 = sand.u32 %s1312, 85
    %s1314 = sshrl.u32 %s1313, 1
    %s1315 = sor.u32 %s1313, %s1314
    %s1316 = sand.u32 51, %s1315
    %s1317 = sshrl.u32 %s1316, 2
    %s1318 = sor.u32 %s1316, %s1317
    %s1319 = sand.u32 15, %s1318
    %v1320 = vld [vmem:[%s1310] sm:%s1319]
    %v1321 = vunpack.c.l.bf16 %v1320
    %v1322 = vunpack.c.h.bf16 %v1320
    %v1323 = vlaneseq
    %v1324 = vshrl.u32 %v1323, 7
    %v1325 = vadd.s32 %v1324, 24
    %vm1326 = vcmp.lt.s32.totalorder %v1325, 25
    %v1327 = vsel %vm1326, %v1321, %v28
    %v1328 = vlaneseq
    %v1329 = vand.u32 %v1328, 127
    %v1330 = vadd.s32 %v1329, 128
    %vm1331 = vcmp.lt.s32.totalorder %v1330, 392
    %v1332 = vsel %vm1331, %v1327, %v28
    %v1333 = vpack.c.bf16 %v13, %v13
    %v1335 = vpack.c.bf16 %v18, %v18
    %v1337 = vpack.c.bf16 %v23, %v23
    %v1339 = vpack.c.bf16 %v1332, %v1261
    %1341 = xla_tuple %v1339, %v1337
    %1342 = xla_tuple %1341
    %v1343 = vmax.bf16 %v1339, %v1337
    %1344 = xla_tuple %v1343
    %1345 = xla_tuple %v1343, %v1335
    %1346 = xla_tuple %1345
    %v1347 = vmax.bf16 %v1343, %v1335
    %1348 = xla_tuple %v1347
    %1349 = xla_tuple %v1347, %v1333
    %1350 = xla_tuple %1349
    %v1351 = vmax.bf16 %v1347, %v1333
    %1352 = xla_tuple %v1351
    %v1353 = vunpack.c.l.bf16 %v1351
    %v1354 = vunpack.c.h.bf16 %v1351
    %s1355 = scalar_lea.vmem [#allocation22], 48
    %v1356 = vpack.c.bf16 0.0, %v1353
    %1358 = vst [vmem:[%s1355] sm:$0xf] %v1356
    %s1359 = scalar_lea.vmem [#allocation22], 52
    %v1360 = vpack.c.bf16 0.0, %v1354
    %1362 = vst [vmem:[%s1359] sm:$0xf] %v1360
    %s1363 = scalar_lea.vmem %s128, 56
    %s1364 = ssub.s32 0, 0
    %p1365 = scmp.lt.s32.totalorder %s1364, 0
    %s1366 = scalar_select %p1365, 0, 255
    %s1367 = sshrl.u32 %s1366, 1
    %s1368 = sor.u32 %s1366, %s1367
    %s1369 = sand.u32 %s1368, 85
    %s1370 = sshrl.u32 %s1369, 1
    %s1371 = sor.u32 %s1369, %s1370
    %s1372 = sand.u32 51, %s1371
    %s1373 = sshrl.u32 %s1372, 2
    %s1374 = sor.u32 %s1372, %s1373
    %s1375 = sand.u32 15, %s1374
    %v1376 = vld [vmem:[%s1363] sm:%s1375]
    %v1377 = vunpack.c.l.bf16 %v1376
    %v1378 = vunpack.c.h.bf16 %v1376
    %s1379 = scalar_lea.vmem %s143, 56
    %s1380 = ssub.s32 0, 0
    %p1381 = scmp.lt.s32.totalorder %s1380, 0
    %s1382 = scalar_select %p1381, 0, 255
    %s1383 = sshrl.u32 %s1382, 1
    %s1384 = sor.u32 %s1382, %s1383
    %s1385 = sand.u32 %s1384, 85
    %s1386 = sshrl.u32 %s1385, 1
    %s1387 = sor.u32 %s1385, %s1386
    %s1388 = sand.u32 51, %s1387
    %s1389 = sshrl.u32 %s1388, 2
    %s1390 = sor.u32 %s1388, %s1389
    %s1391 = sand.u32 15, %s1390
    %v1392 = vld [vmem:[%s1379] sm:%s1391]
    %v1393 = vunpack.c.l.bf16 %v1392
    %v1394 = vunpack.c.h.bf16 %v1392
    %s1395 = scalar_lea.vmem %s158, 56
    %s1396 = ssub.s32 0, 0
    %p1397 = scmp.lt.s32.totalorder %s1396, 0
    %s1398 = scalar_select %p1397, 0, 255
    %s1399 = sshrl.u32 %s1398, 1
    %s1400 = sor.u32 %s1398, %s1399
    %s1401 = sand.u32 %s1400, 85
    %s1402 = sshrl.u32 %s1401, 1
    %s1403 = sor.u32 %s1401, %s1402
    %s1404 = sand.u32 51, %s1403
    %s1405 = sshrl.u32 %s1404, 2
    %s1406 = sor.u32 %s1404, %s1405
    %s1407 = sand.u32 15, %s1406
    %v1408 = vld [vmem:[%s1395] sm:%s1407]
    %v1409 = vunpack.c.l.bf16 %v1408
    %v1410 = vunpack.c.h.bf16 %v1408
    %s1411 = scalar_lea.vmem %s6, 56
    %s1413 = sor.u32 255, 127
    %s1414 = sand.u32 %s1413, 85
    %s1415 = sshrl.u32 %s1414, 1
    %s1416 = sor.u32 %s1414, %s1415
    %s1417 = sand.u32 51, %s1416
    %s1418 = sshrl.u32 %s1417, 2
    %s1419 = sor.u32 %s1417, %s1418
    %s1420 = sand.u32 15, %s1419
    %v1421 = vld [vmem:[%s1411] sm:%s1420]
    %v1422 = vunpack.c.l.bf16 %v1421
    %v1423 = vunpack.c.h.bf16 %v1421
    %v1424 = vlaneseq
    %v1425 = vshrl.u32 %v1424, 7
    %v1426 = vadd.s32 %v1425, 24
    %vm1427 = vcmp.lt.s32.totalorder %v1426, 25
    %v1428 = vsel %vm1427, %v1422, %v28
    %v1429 = vlaneseq
    %v1430 = vand.u32 %v1429, 127
    %v1431 = vadd.s32 %v1430, 256
    %vm1432 = vcmp.lt.s32.totalorder %v1431, 392
    %v1433 = vsel %vm1432, %v1428, %v28
    %s1434 = scalar_lea.vmem %s128, 60
    %s1435 = ssub.s32 0, 0
    %p1436 = scmp.lt.s32.totalorder %s1435, 0
    %s1437 = scalar_select %p1436, 0, 255
    %s1438 = sshrl.u32 %s1437, 1
    %s1439 = sor.u32 %s1437, %s1438
    %s1440 = sand.u32 %s1439, 85
    %s1441 = sshrl.u32 %s1440, 1
    %s1442 = sor.u32 %s1440, %s1441
    %s1443 = sand.u32 51, %s1442
    %s1444 = sshrl.u32 %s1443, 2
    %s1445 = sor.u32 %s1443, %s1444
    %s1446 = sand.u32 15, %s1445
    %v1447 = vld [vmem:[%s1434] sm:%s1446]
    %v1448 = vunpack.c.l.bf16 %v1447
    %v1449 = vunpack.c.h.bf16 %v1447
    %s1450 = scalar_lea.vmem %s143, 60
    %s1451 = ssub.s32 0, 0
    %p1452 = scmp.lt.s32.totalorder %s1451, 0
    %s1453 = scalar_select %p1452, 0, 255
    %s1454 = sshrl.u32 %s1453, 1
    %s1455 = sor.u32 %s1453, %s1454
    %s1456 = sand.u32 %s1455, 85
    %s1457 = sshrl.u32 %s1456, 1
    %s1458 = sor.u32 %s1456, %s1457
    %s1459 = sand.u32 51, %s1458
    %s1460 = sshrl.u32 %s1459, 2
    %s1461 = sor.u32 %s1459, %s1460
    %s1462 = sand.u32 15, %s1461
    %v1463 = vld [vmem:[%s1450] sm:%s1462]
    %v1464 = vunpack.c.l.bf16 %v1463
    %v1465 = vunpack.c.h.bf16 %v1463
    %s1466 = scalar_lea.vmem %s158, 60
    %s1467 = ssub.s32 0, 0
    %p1468 = scmp.lt.s32.totalorder %s1467, 0
    %s1469 = scalar_select %p1468, 0, 255
    %s1470 = sshrl.u32 %s1469, 1
    %s1471 = sor.u32 %s1469, %s1470
    %s1472 = sand.u32 %s1471, 85
    %s1473 = sshrl.u32 %s1472, 1
    %s1474 = sor.u32 %s1472, %s1473
    %s1475 = sand.u32 51, %s1474
    %s1476 = sshrl.u32 %s1475, 2
    %s1477 = sor.u32 %s1475, %s1476
    %s1478 = sand.u32 15, %s1477
    %v1479 = vld [vmem:[%s1466] sm:%s1478]
    %v1480 = vunpack.c.l.bf16 %v1479
    %v1481 = vunpack.c.h.bf16 %v1479
    %s1482 = scalar_lea.vmem %s6, 60
    %s1484 = sor.u32 255, 127
    %s1485 = sand.u32 %s1484, 85
    %s1486 = sshrl.u32 %s1485, 1
    %s1487 = sor.u32 %s1485, %s1486
    %s1488 = sand.u32 51, %s1487
    %s1489 = sshrl.u32 %s1488, 2
    %s1490 = sor.u32 %s1488, %s1489
    %s1491 = sand.u32 15, %s1490
    %v1492 = vld [vmem:[%s1482] sm:%s1491]
    %v1493 = vunpack.c.l.bf16 %v1492
    %v1494 = vunpack.c.h.bf16 %v1492
    %v1495 = vlaneseq
    %v1496 = vshrl.u32 %v1495, 7
    %v1497 = vadd.s32 %v1496, 24
    %vm1498 = vcmp.lt.s32.totalorder %v1497, 25
    %v1499 = vsel %vm1498, %v1493, %v28
    %v1500 = vlaneseq
    %v1501 = vand.u32 %v1500, 127
    %v1502 = vadd.s32 %v1501, 384
    %vm1503 = vcmp.lt.s32.totalorder %v1502, 392
    %v1504 = vsel %vm1503, %v1499, %v28
    %v1505 = vpack.c.bf16 %v13, %v13
    %v1507 = vpack.c.bf16 %v18, %v18
    %v1509 = vpack.c.bf16 %v23, %v23
    %v1511 = vpack.c.bf16 %v1504, %v1433
    %1513 = xla_tuple %v1511, %v1509
    %1514 = xla_tuple %1513
    %v1515 = vmax.bf16 %v1511, %v1509
    %1516 = xla_tuple %v1515
    %1517 = xla_tuple %v1515, %v1507
    %1518 = xla_tuple %1517
    %v1519 = vmax.bf16 %v1515, %v1507
    %1520 = xla_tuple %v1519
    %1521 = xla_tuple %v1519, %v1505
    %1522 = xla_tuple %1521
    %v1523 = vmax.bf16 %v1519, %v1505
    %1524 = xla_tuple %v1523
    %v1525 = vunpack.c.l.bf16 %v1523
    %v1526 = vunpack.c.h.bf16 %v1523
    %s1527 = scalar_lea.vmem [#allocation22], 56
    %v1528 = vpack.c.bf16 0.0, %v1525
    %1530 = vst [vmem:[%s1527] sm:$0xf] %v1528
    %s1531 = scalar_lea.vmem [#allocation22], 60
    %v1532 = vpack.c.bf16 0.0, %v1526
    %1534 = vst [vmem:[%s1531] sm:$0xf] %v1532
    %v1535 = vlaneseq
    %v1536 = vshrl.u32 %v1535, 7
    %vm1538 = vcmp.lt.s32.totalorder %v1536, 25
    %v1539 = vsel %vm1538, %v207, %v23
    %v1540 = vlaneseq
    %v1541 = vand.u32 %v1540, 127
    %vm1543 = vcmp.lt.s32.totalorder %v1541, 392
    %v1544 = vsel %vm1543, %v1539, %v23
    %s1545 = scalar_lea.vmem %s128, 4
    %s1546 = scalar_lea.vmem %s143, 4
    %s1547 = scalar_lea.vmem %s158, 4
    %v1548 = vlaneseq
    %v1549 = vshrl.u32 %v1548, 7
    %vm1551 = vcmp.lt.s32.totalorder %v1549, 25
    %v1552 = vsel %vm1551, %v277, %v23
    %v1553 = vlaneseq
    %v1554 = vand.u32 %v1553, 127
    %v1555 = vadd.s32 %v1554, 128
    %vm1556 = vcmp.lt.s32.totalorder %v1555, 392
    %v1557 = vsel %vm1556, %v1552, %v23
    %v1558 = vpack.c.bf16 %v13, %v13
    %v1560 = vpack.c.bf16 %v18, %v18
    %v1562 = vpack.c.bf16 %v1557, %v1544
    %v1564 = vpack.c.bf16 %v28, %v28
    %1566 = xla_tuple %v1564, %v1562
    %1567 = xla_tuple %1566
    %v1568 = vmax.bf16 %v1564, %v1562
    %1569 = xla_tuple %v1568
    %1570 = xla_tuple %v1568, %v1560
    %1571 = xla_tuple %1570
    %v1572 = vmax.bf16 %v1568, %v1560
    %1573 = xla_tuple %v1572
    %1574 = xla_tuple %v1572, %v1558
    %1575 = xla_tuple %1574
    %v1576 = vmax.bf16 %v1572, %v1558
    %1577 = xla_tuple %v1576
    %v1578 = vunpack.c.l.bf16 %v1576
    %v1579 = vunpack.c.h.bf16 %v1576
    %s1580 = scalar_lea.vmem [#allocation22], 64
    %v1581 = vpack.c.bf16 0.0, %v1578
    %1583 = vst [vmem:[%s1580] sm:$0xf] %v1581
    %s1584 = scalar_lea.vmem [#allocation22], 68
    %v1585 = vpack.c.bf16 0.0, %v1579
    %1587 = vst [vmem:[%s1584] sm:$0xf] %v1585
    %s1588 = scalar_lea.vmem %s128, 8
    %s1589 = scalar_lea.vmem %s143, 8
    %s1590 = scalar_lea.vmem %s158, 8
    %v1591 = vlaneseq
    %v1592 = vshrl.u32 %v1591, 7
    %vm1594 = vcmp.lt.s32.totalorder %v1592, 25
    %v1595 = vsel %vm1594, %v377, %v23
    %v1596 = vlaneseq
    %v1597 = vand.u32 %v1596, 127
    %v1598 = vadd.s32 %v1597, 256
    %vm1599 = vcmp.lt.s32.totalorder %v1598, 392
    %v1600 = vsel %vm1599, %v1595, %v23
    %s1601 = scalar_lea.vmem %s128, 12
    %s1602 = scalar_lea.vmem %s143, 12
    %s1603 = scalar_lea.vmem %s158, 12
    %v1604 = vlaneseq
    %v1605 = vshrl.u32 %v1604, 7
    %vm1607 = vcmp.lt.s32.totalorder %v1605, 25
    %v1608 = vsel %vm1607, %v448, %v23
    %v1609 = vlaneseq
    %v1610 = vand.u32 %v1609, 127
    %v1611 = vadd.s32 %v1610, 384
    %vm1612 = vcmp.lt.s32.totalorder %v1611, 392
    %v1613 = vsel %vm1612, %v1608, %v23
    %v1614 = vpack.c.bf16 %v13, %v13
    %v1616 = vpack.c.bf16 %v18, %v18
    %v1618 = vpack.c.bf16 %v1613, %v1600
    %v1620 = vpack.c.bf16 %v28, %v28
    %1622 = xla_tuple %v1620, %v1618
    %1623 = xla_tuple %1622
    %v1624 = vmax.bf16 %v1620, %v1618
    %1625 = xla_tuple %v1624
    %1626 = xla_tuple %v1624, %v1616
    %1627 = xla_tuple %1626
    %v1628 = vmax.bf16 %v1624, %v1616
    %1629 = xla_tuple %v1628
    %1630 = xla_tuple %v1628, %v1614
    %1631 = xla_tuple %1630
    %v1632 = vmax.bf16 %v1628, %v1614
    %1633 = xla_tuple %v1632
    %v1634 = vunpack.c.l.bf16 %v1632
    %v1635 = vunpack.c.h.bf16 %v1632
    %s1636 = scalar_lea.vmem [#allocation22], 72
    %v1637 = vpack.c.bf16 0.0, %v1634
    %1639 = vst [vmem:[%s1636] sm:$0xf] %v1637
    %s1640 = scalar_lea.vmem [#allocation22], 76
    %v1641 = vpack.c.bf16 0.0, %v1635
    %1643 = vst [vmem:[%s1640] sm:$0xf] %v1641
    %s1644 = scalar_lea.vmem %s128, 16
    %s1645 = scalar_lea.vmem %s143, 16
    %s1646 = scalar_lea.vmem %s158, 16
    %v1647 = vlaneseq
    %v1648 = vshrl.u32 %v1647, 7
    %v1649 = vadd.s32 %v1648, 8
    %vm1650 = vcmp.lt.s32.totalorder %v1649, 25
    %v1651 = vsel %vm1650, %v549, %v23
    %v1652 = vlaneseq
    %v1653 = vand.u32 %v1652, 127
    %vm1655 = vcmp.lt.s32.totalorder %v1653, 392
    %v1656 = vsel %vm1655, %v1651, %v23
    %s1657 = scalar_lea.vmem %s128, 20
    %s1658 = scalar_lea.vmem %s143, 20
    %s1659 = scalar_lea.vmem %s158, 20
    %v1660 = vlaneseq
    %v1661 = vshrl.u32 %v1660, 7
    %v1662 = vadd.s32 %v1661, 8
    %vm1663 = vcmp.lt.s32.totalorder %v1662, 25
    %v1664 = vsel %vm1663, %v620, %v23
    %v1665 = vlaneseq
    %v1666 = vand.u32 %v1665, 127
    %v1667 = vadd.s32 %v1666, 128
    %vm1668 = vcmp.lt.s32.totalorder %v1667, 392
    %v1669 = vsel %vm1668, %v1664, %v23
    %v1670 = vpack.c.bf16 %v13, %v13
    %v1672 = vpack.c.bf16 %v18, %v18
    %v1674 = vpack.c.bf16 %v1669, %v1656
    %v1676 = vpack.c.bf16 %v28, %v28
    %1678 = xla_tuple %v1676, %v1674
    %1679 = xla_tuple %1678
    %v1680 = vmax.bf16 %v1676, %v1674
    %1681 = xla_tuple %v1680
    %1682 = xla_tuple %v1680, %v1672
    %1683 = xla_tuple %1682
    %v1684 = vmax.bf16 %v1680, %v1672
    %1685 = xla_tuple %v1684
    %1686 = xla_tuple %v1684, %v1670
    %1687 = xla_tuple %1686
    %v1688 = vmax.bf16 %v1684, %v1670
    %1689 = xla_tuple %v1688
    %v1690 = vunpack.c.l.bf16 %v1688
    %v1691 = vunpack.c.h.bf16 %v1688
    %s1692 = scalar_lea.vmem [#allocation22], 80
    %v1693 = vpack.c.bf16 0.0, %v1690
    %1695 = vst [vmem:[%s1692] sm:$0xf] %v1693
    %s1696 = scalar_lea.vmem [#allocation22], 84
    %v1697 = vpack.c.bf16 0.0, %v1691
    %1699 = vst [vmem:[%s1696] sm:$0xf] %v1697
    %s1700 = scalar_lea.vmem %s128, 24
    %s1701 = scalar_lea.vmem %s143, 24
    %s1702 = scalar_lea.vmem %s158, 24
    %v1703 = vlaneseq
    %v1704 = vshrl.u32 %v1703, 7
    %v1705 = vadd.s32 %v1704, 8
    %vm1706 = vcmp.lt.s32.totalorder %v1705, 25
    %v1707 = vsel %vm1706, %v721, %v23
    %v1708 = vlaneseq
    %v1709 = vand.u32 %v1708, 127
    %v1710 = vadd.s32 %v1709, 256
    %vm1711 = vcmp.lt.s32.totalorder %v1710, 392
    %v1712 = vsel %vm1711, %v1707, %v23
    %s1713 = scalar_lea.vmem %s128, 28
    %s1714 = scalar_lea.vmem %s143, 28
    %s1715 = scalar_lea.vmem %s158, 28
    %v1716 = vlaneseq
    %v1717 = vshrl.u32 %v1716, 7
    %v1718 = vadd.s32 %v1717, 8
    %vm1719 = vcmp.lt.s32.totalorder %v1718, 25
    %v1720 = vsel %vm1719, %v792, %v23
    %v1721 = vlaneseq
    %v1722 = vand.u32 %v1721, 127
    %v1723 = vadd.s32 %v1722, 384
    %vm1724 = vcmp.lt.s32.totalorder %v1723, 392
    %v1725 = vsel %vm1724, %v1720, %v23
    %v1726 = vpack.c.bf16 %v13, %v13
    %v1728 = vpack.c.bf16 %v18, %v18
    %v1730 = vpack.c.bf16 %v1725, %v1712
    %v1732 = vpack.c.bf16 %v28, %v28
    %1734 = xla_tuple %v1732, %v1730
    %1735 = xla_tuple %1734
    %v1736 = vmax.bf16 %v1732, %v1730
    %1737 = xla_tuple %v1736
    %1738 = xla_tuple %v1736, %v1728
    %1739 = xla_tuple %1738
    %v1740 = vmax.bf16 %v1736, %v1728
    %1741 = xla_tuple %v1740
    %1742 = xla_tuple %v1740, %v1726
    %1743 = xla_tuple %1742
    %v1744 = vmax.bf16 %v1740, %v1726
    %1745 = xla_tuple %v1744
    %v1746 = vunpack.c.l.bf16 %v1744
    %v1747 = vunpack.c.h.bf16 %v1744
    %s1748 = scalar_lea.vmem [#allocation22], 88
    %v1749 = vpack.c.bf16 0.0, %v1746
    %1751 = vst [vmem:[%s1748] sm:$0xf] %v1749
    %s1752 = scalar_lea.vmem [#allocation22], 92
    %v1753 = vpack.c.bf16 0.0, %v1747
    %1755 = vst [vmem:[%s1752] sm:$0xf] %v1753
    %s1756 = scalar_lea.vmem %s128, 32
    %s1757 = scalar_lea.vmem %s143, 32
    %s1758 = scalar_lea.vmem %s158, 32
    %v1759 = vlaneseq
    %v1760 = vshrl.u32 %v1759, 7
    %v1761 = vadd.s32 %v1760, 16
    %vm1762 = vcmp.lt.s32.totalorder %v1761, 25
    %v1763 = vsel %vm1762, %v893, %v23
    %v1764 = vlaneseq
    %v1765 = vand.u32 %v1764, 127
    %vm1767 = vcmp.lt.s32.totalorder %v1765, 392
    %v1768 = vsel %vm1767, %v1763, %v23
    %s1769 = scalar_lea.vmem %s128, 36
    %s1770 = scalar_lea.vmem %s143, 36
    %s1771 = scalar_lea.vmem %s158, 36
    %v1772 = vlaneseq
    %v1773 = vshrl.u32 %v1772, 7
    %v1774 = vadd.s32 %v1773, 16
    %vm1775 = vcmp.lt.s32.totalorder %v1774, 25
    %v1776 = vsel %vm1775, %v964, %v23
    %v1777 = vlaneseq
    %v1778 = vand.u32 %v1777, 127
    %v1779 = vadd.s32 %v1778, 128
    %vm1780 = vcmp.lt.s32.totalorder %v1779, 392
    %v1781 = vsel %vm1780, %v1776, %v23
    %v1782 = vpack.c.bf16 %v13, %v13
    %v1784 = vpack.c.bf16 %v18, %v18
    %v1786 = vpack.c.bf16 %v1781, %v1768
    %v1788 = vpack.c.bf16 %v28, %v28
    %1790 = xla_tuple %v1788, %v1786
    %1791 = xla_tuple %1790
    %v1792 = vmax.bf16 %v1788, %v1786
    %1793 = xla_tuple %v1792
    %1794 = xla_tuple %v1792, %v1784
    %1795 = xla_tuple %1794
    %v1796 = vmax.bf16 %v1792, %v1784
    %1797 = xla_tuple %v1796
    %1798 = xla_tuple %v1796, %v1782
    %1799 = xla_tuple %1798
    %v1800 = vmax.bf16 %v1796, %v1782
    %1801 = xla_tuple %v1800
    %v1802 = vunpack.c.l.bf16 %v1800
    %v1803 = vunpack.c.h.bf16 %v1800
    %s1804 = scalar_lea.vmem [#allocation22], 96
    %v1805 = vpack.c.bf16 0.0, %v1802
    %1807 = vst [vmem:[%s1804] sm:$0xf] %v1805
    %s1808 = scalar_lea.vmem [#allocation22], 100
    %v1809 = vpack.c.bf16 0.0, %v1803
    %1811 = vst [vmem:[%s1808] sm:$0xf] %v1809
    %s1812 = scalar_lea.vmem %s128, 40
    %s1813 = scalar_lea.vmem %s143, 40
    %s1814 = scalar_lea.vmem %s158, 40
    %v1815 = vlaneseq
    %v1816 = vshrl.u32 %v1815, 7
    %v1817 = vadd.s32 %v1816, 16
    %vm1818 = vcmp.lt.s32.totalorder %v1817, 25
    %v1819 = vsel %vm1818, %v1065, %v23
    %v1820 = vlaneseq
    %v1821 = vand.u32 %v1820, 127
    %v1822 = vadd.s32 %v1821, 256
    %vm1823 = vcmp.lt.s32.totalorder %v1822, 392
    %v1824 = vsel %vm1823, %v1819, %v23
    %s1825 = scalar_lea.vmem %s128, 44
    %s1826 = scalar_lea.vmem %s143, 44
    %s1827 = scalar_lea.vmem %s158, 44
    %v1828 = vlaneseq
    %v1829 = vshrl.u32 %v1828, 7
    %v1830 = vadd.s32 %v1829, 16
    %vm1831 = vcmp.lt.s32.totalorder %v1830, 25
    %v1832 = vsel %vm1831, %v1136, %v23
    %v1833 = vlaneseq
    %v1834 = vand.u32 %v1833, 127
    %v1835 = vadd.s32 %v1834, 384
    %vm1836 = vcmp.lt.s32.totalorder %v1835, 392
    %v1837 = vsel %vm1836, %v1832, %v23
    %v1838 = vpack.c.bf16 %v13, %v13
    %v1840 = vpack.c.bf16 %v18, %v18
    %v1842 = vpack.c.bf16 %v1837, %v1824
    %v1844 = vpack.c.bf16 %v28, %v28
    %1846 = xla_tuple %v1844, %v1842
    %1847 = xla_tuple %1846
    %v1848 = vmax.bf16 %v1844, %v1842
    %1849 = xla_tuple %v1848
    %1850 = xla_tuple %v1848, %v1840
    %1851 = xla_tuple %1850
    %v1852 = vmax.bf16 %v1848, %v1840
    %1853 = xla_tuple %v1852
    %1854 = xla_tuple %v1852, %v1838
    %1855 = xla_tuple %1854
    %v1856 = vmax.bf16 %v1852, %v1838
    %1857 = xla_tuple %v1856
    %v1858 = vunpack.c.l.bf16 %v1856
    %v1859 = vunpack.c.h.bf16 %v1856
    %s1860 = scalar_lea.vmem [#allocation22], 104
    %v1861 = vpack.c.bf16 0.0, %v1858
    %1863 = vst [vmem:[%s1860] sm:$0xf] %v1861
    %s1864 = scalar_lea.vmem [#allocation22], 108
    %v1865 = vpack.c.bf16 0.0, %v1859
    %1867 = vst [vmem:[%s1864] sm:$0xf] %v1865
    %s1868 = scalar_lea.vmem %s128, 48
    %s1869 = scalar_lea.vmem %s143, 48
    %s1870 = scalar_lea.vmem %s158, 48
    %v1871 = vlaneseq
    %v1872 = vshrl.u32 %v1871, 7
    %v1873 = vadd.s32 %v1872, 24
    %vm1874 = vcmp.lt.s32.totalorder %v1873, 25
    %v1875 = vsel %vm1874, %v1237, %v23
    %v1876 = vlaneseq
    %v1877 = vand.u32 %v1876, 127
    %vm1879 = vcmp.lt.s32.totalorder %v1877, 392
    %v1880 = vsel %vm1879, %v1875, %v23
    %s1881 = scalar_lea.vmem %s128, 52
    %s1882 = scalar_lea.vmem %s143, 52
    %s1883 = scalar_lea.vmem %s158, 52
    %v1884 = vlaneseq
    %v1885 = vshrl.u32 %v1884, 7
    %v1886 = vadd.s32 %v1885, 24
    %vm1887 = vcmp.lt.s32.totalorder %v1886, 25
    %v1888 = vsel %vm1887, %v1308, %v23
    %v1889 = vlaneseq
    %v1890 = vand.u32 %v1889, 127
    %v1891 = vadd.s32 %v1890, 128
    %vm1892 = vcmp.lt.s32.totalorder %v1891, 392
    %v1893 = vsel %vm1892, %v1888, %v23
    %v1894 = vpack.c.bf16 %v13, %v13
    %v1896 = vpack.c.bf16 %v18, %v18
    %v1898 = vpack.c.bf16 %v1893, %v1880
    %v1900 = vpack.c.bf16 %v28, %v28
    %1902 = xla_tuple %v1900, %v1898
    %1903 = xla_tuple %1902
    %v1904 = vmax.bf16 %v1900, %v1898
    %1905 = xla_tuple %v1904
    %1906 = xla_tuple %v1904, %v1896
    %1907 = xla_tuple %1906
    %v1908 = vmax.bf16 %v1904, %v1896
    %1909 = xla_tuple %v1908
    %1910 = xla_tuple %v1908, %v1894
    %1911 = xla_tuple %1910
    %v1912 = vmax.bf16 %v1908, %v1894
    %1913 = xla_tuple %v1912
    %v1914 = vunpack.c.l.bf16 %v1912
    %v1915 = vunpack.c.h.bf16 %v1912
    %s1916 = scalar_lea.vmem [#allocation22], 112
    %v1917 = vpack.c.bf16 0.0, %v1914
    %1919 = vst [vmem:[%s1916] sm:$0xf] %v1917
    %s1920 = scalar_lea.vmem [#allocation22], 116
    %v1921 = vpack.c.bf16 0.0, %v1915
    %1923 = vst [vmem:[%s1920] sm:$0xf] %v1921
    %s1924 = scalar_lea.vmem %s128, 56
    %s1925 = scalar_lea.vmem %s143, 56
    %s1926 = scalar_lea.vmem %s158, 56
    %v1927 = vlaneseq
    %v1928 = vshrl.u32 %v1927, 7
    %v1929 = vadd.s32 %v1928, 24
    %vm1930 = vcmp.lt.s32.totalorder %v1929, 25
    %v1931 = vsel %vm1930, %v1409, %v23
    %v1932 = vlaneseq
    %v1933 = vand.u32 %v1932, 127
    %v1934 = vadd.s32 %v1933, 256
    %vm1935 = vcmp.lt.s32.totalorder %v1934, 392
    %v1936 = vsel %vm1935, %v1931, %v23
    %s1937 = scalar_lea.vmem %s128, 60
    %s1938 = scalar_lea.vmem %s143, 60
    %s1939 = scalar_lea.vmem %s158, 60
    %v1940 = vlaneseq
    %v1941 = vshrl.u32 %v1940, 7
    %v1942 = vadd.s32 %v1941, 24
    %vm1943 = vcmp.lt.s32.totalorder %v1942, 25
    %v1944 = vsel %vm1943, %v1480, %v23
    %v1945 = vlaneseq
    %v1946 = vand.u32 %v1945, 127
    %v1947 = vadd.s32 %v1946, 384
    %vm1948 = vcmp.lt.s32.totalorder %v1947, 392
    %v1949 = vsel %vm1948, %v1944, %v23
    %v1950 = vpack.c.bf16 %v13, %v13
    %v1952 = vpack.c.bf16 %v18, %v18
    %v1954 = vpack.c.bf16 %v1949, %v1936
    %v1956 = vpack.c.bf16 %v28, %v28
    %1958 = xla_tuple %v1956, %v1954
    %1959 = xla_tuple %1958
    %v1960 = vmax.bf16 %v1956, %v1954
    %1961 = xla_tuple %v1960
    %1962 = xla_tuple %v1960, %v1952
    %1963 = xla_tuple %1962
    %v1964 = vmax.bf16 %v1960, %v1952
    %1965 = xla_tuple %v1964
    %1966 = xla_tuple %v1964, %v1950
    %1967 = xla_tuple %1966
    %v1968 = vmax.bf16 %v1964, %v1950
    %1969 = xla_tuple %v1968
    %v1970 = vunpack.c.l.bf16 %v1968
    %v1971 = vunpack.c.h.bf16 %v1968
    %s1972 = scalar_lea.vmem [#allocation22], 120
    %v1973 = vpack.c.bf16 0.0, %v1970
    %1975 = vst [vmem:[%s1972] sm:$0xf] %v1973
    %s1976 = scalar_lea.vmem [#allocation22], 124
    %v1977 = vpack.c.bf16 0.0, %v1971
    %1979 = vst [vmem:[%s1976] sm:$0xf] %v1977
    %v1980 = vlaneseq
    %v1981 = vshrl.u32 %v1980, 7
    %vm1983 = vcmp.lt.s32.totalorder %v1981, 25
    %v1984 = vsel %vm1983, %v192, %v18
    %v1985 = vlaneseq
    %v1986 = vand.u32 %v1985, 127
    %vm1988 = vcmp.lt.s32.totalorder %v1986, 392
    %v1989 = vsel %vm1988, %v1984, %v18
    %s1990 = scalar_lea.vmem %s128, 4
    %s1991 = scalar_lea.vmem %s143, 4
    %v1992 = vlaneseq
    %v1993 = vshrl.u32 %v1992, 7
    %vm1995 = vcmp.lt.s32.totalorder %v1993, 25
    %v1996 = vsel %vm1995, %v261, %v18
    %v1997 = vlaneseq
    %v1998 = vand.u32 %v1997, 127
    %v1999 = vadd.s32 %v1998, 128
    %vm2000 = vcmp.lt.s32.totalorder %v1999, 392
    %v2001 = vsel %vm2000, %v1996, %v18
    %s2002 = scalar_lea.vmem %s158, 4
    %v2003 = vpack.c.bf16 %v13, %v13
    %v2005 = vpack.c.bf16 %v2001, %v1989
    %v2007 = vpack.c.bf16 %v23, %v23
    %v2009 = vpack.c.bf16 %v28, %v28
    %2011 = xla_tuple %v2009, %v2007
    %2012 = xla_tuple %2011
    %v2013 = vmax.bf16 %v2009, %v2007
    %2014 = xla_tuple %v2013
    %2015 = xla_tuple %v2013, %v2005
    %2016 = xla_tuple %2015
    %v2017 = vmax.bf16 %v2013, %v2005
    %2018 = xla_tuple %v2017
    %2019 = xla_tuple %v2017, %v2003
    %2020 = xla_tuple %2019
    %v2021 = vmax.bf16 %v2017, %v2003
    %2022 = xla_tuple %v2021
    %v2023 = vunpack.c.l.bf16 %v2021
    %v2024 = vunpack.c.h.bf16 %v2021
    %s2025 = scalar_lea.vmem [#allocation22], 128
    %v2026 = vpack.c.bf16 0.0, %v2023
    %2028 = vst [vmem:[%s2025] sm:$0xf] %v2026
    %s2029 = scalar_lea.vmem [#allocation22], 132
    %v2030 = vpack.c.bf16 0.0, %v2024
    %2032 = vst [vmem:[%s2029] sm:$0xf] %v2030
    %s2033 = scalar_lea.vmem %s128, 8
    %s2034 = scalar_lea.vmem %s143, 8
    %v2035 = vlaneseq
    %v2036 = vshrl.u32 %v2035, 7
    %vm2038 = vcmp.lt.s32.totalorder %v2036, 25
    %v2039 = vsel %vm2038, %v361, %v18
    %v2040 = vlaneseq
    %v2041 = vand.u32 %v2040, 127
    %v2042 = vadd.s32 %v2041, 256
    %vm2043 = vcmp.lt.s32.totalorder %v2042, 392
    %v2044 = vsel %vm2043, %v2039, %v18
    %s2045 = scalar_lea.vmem %s158, 8
    %s2046 = scalar_lea.vmem %s128, 12
    %s2047 = scalar_lea.vmem %s143, 12
    %v2048 = vlaneseq
    %v2049 = vshrl.u32 %v2048, 7
    %vm2051 = vcmp.lt.s32.totalorder %v2049, 25
    %v2052 = vsel %vm2051, %v432, %v18
    %v2053 = vlaneseq
    %v2054 = vand.u32 %v2053, 127
    %v2055 = vadd.s32 %v2054, 384
    %vm2056 = vcmp.lt.s32.totalorder %v2055, 392
    %v2057 = vsel %vm2056, %v2052, %v18
    %s2058 = scalar_lea.vmem %s158, 12
    %v2059 = vpack.c.bf16 %v13, %v13
    %v2061 = vpack.c.bf16 %v2057, %v2044
    %v2063 = vpack.c.bf16 %v23, %v23
    %v2065 = vpack.c.bf16 %v28, %v28
    %2067 = xla_tuple %v2065, %v2063
    %2068 = xla_tuple %2067
    %v2069 = vmax.bf16 %v2065, %v2063
    %2070 = xla_tuple %v2069
    %2071 = xla_tuple %v2069, %v2061
    %2072 = xla_tuple %2071
    %v2073 = vmax.bf16 %v2069, %v2061
    %2074 = xla_tuple %v2073
    %2075 = xla_tuple %v2073, %v2059
    %2076 = xla_tuple %2075
    %v2077 = vmax.bf16 %v2073, %v2059
    %2078 = xla_tuple %v2077
    %v2079 = vunpack.c.l.bf16 %v2077
    %v2080 = vunpack.c.h.bf16 %v2077
    %s2081 = scalar_lea.vmem [#allocation22], 136
    %v2082 = vpack.c.bf16 0.0, %v2079
    %2084 = vst [vmem:[%s2081] sm:$0xf] %v2082
    %s2085 = scalar_lea.vmem [#allocation22], 140
    %v2086 = vpack.c.bf16 0.0, %v2080
    %2088 = vst [vmem:[%s2085] sm:$0xf] %v2086
    %s2089 = scalar_lea.vmem %s128, 16
    %s2090 = scalar_lea.vmem %s143, 16
    %v2091 = vlaneseq
    %v2092 = vshrl.u32 %v2091, 7
    %v2093 = vadd.s32 %v2092, 8
    %vm2094 = vcmp.lt.s32.totalorder %v2093, 25
    %v2095 = vsel %vm2094, %v533, %v18
    %v2096 = vlaneseq
    %v2097 = vand.u32 %v2096, 127
    %vm2099 = vcmp.lt.s32.totalorder %v2097, 392
    %v2100 = vsel %vm2099, %v2095, %v18
    %s2101 = scalar_lea.vmem %s158, 16
    %s2102 = scalar_lea.vmem %s128, 20
    %s2103 = scalar_lea.vmem %s143, 20
    %v2104 = vlaneseq
    %v2105 = vshrl.u32 %v2104, 7
    %v2106 = vadd.s32 %v2105, 8
    %vm2107 = vcmp.lt.s32.totalorder %v2106, 25
    %v2108 = vsel %vm2107, %v604, %v18
    %v2109 = vlaneseq
    %v2110 = vand.u32 %v2109, 127
    %v2111 = vadd.s32 %v2110, 128
    %vm2112 = vcmp.lt.s32.totalorder %v2111, 392
    %v2113 = vsel %vm2112, %v2108, %v18
    %s2114 = scalar_lea.vmem %s158, 20
    %v2115 = vpack.c.bf16 %v13, %v13
    %v2117 = vpack.c.bf16 %v2113, %v2100
    %v2119 = vpack.c.bf16 %v23, %v23
    %v2121 = vpack.c.bf16 %v28, %v28
    %2123 = xla_tuple %v2121, %v2119
    %2124 = xla_tuple %2123
    %v2125 = vmax.bf16 %v2121, %v2119
    %2126 = xla_tuple %v2125
    %2127 = xla_tuple %v2125, %v2117
    %2128 = xla_tuple %2127
    %v2129 = vmax.bf16 %v2125, %v2117
    %2130 = xla_tuple %v2129
    %2131 = xla_tuple %v2129, %v2115
    %2132 = xla_tuple %2131
    %v2133 = vmax.bf16 %v2129, %v2115
    %2134 = xla_tuple %v2133
    %v2135 = vunpack.c.l.bf16 %v2133
    %v2136 = vunpack.c.h.bf16 %v2133
    %s2137 = scalar_lea.vmem [#allocation22], 144
    %v2138 = vpack.c.bf16 0.0, %v2135
    %2140 = vst [vmem:[%s2137] sm:$0xf] %v2138
    %s2141 = scalar_lea.vmem [#allocation22], 148
    %v2142 = vpack.c.bf16 0.0, %v2136
    %2144 = vst [vmem:[%s2141] sm:$0xf] %v2142
    %s2145 = scalar_lea.vmem %s128, 24
    %s2146 = scalar_lea.vmem %s143, 24
    %v2147 = vlaneseq
    %v2148 = vshrl.u32 %v2147, 7
    %v2149 = vadd.s32 %v2148, 8
    %vm2150 = vcmp.lt.s32.totalorder %v2149, 25
    %v2151 = vsel %vm2150, %v705, %v18
    %v2152 = vlaneseq
    %v2153 = vand.u32 %v2152, 127
    %v2154 = vadd.s32 %v2153, 256
    %vm2155 = vcmp.lt.s32.totalorder %v2154, 392
    %v2156 = vsel %vm2155, %v2151, %v18
    %s2157 = scalar_lea.vmem %s158, 24
    %s2158 = scalar_lea.vmem %s128, 28
    %s2159 = scalar_lea.vmem %s143, 28
    %v2160 = vlaneseq
    %v2161 = vshrl.u32 %v2160, 7
    %v2162 = vadd.s32 %v2161, 8
    %vm2163 = vcmp.lt.s32.totalorder %v2162, 25
    %v2164 = vsel %vm2163, %v776, %v18
    %v2165 = vlaneseq
    %v2166 = vand.u32 %v2165, 127
    %v2167 = vadd.s32 %v2166, 384
    %vm2168 = vcmp.lt.s32.totalorder %v2167, 392
    %v2169 = vsel %vm2168, %v2164, %v18
    %s2170 = scalar_lea.vmem %s158, 28
    %v2171 = vpack.c.bf16 %v13, %v13
    %v2173 = vpack.c.bf16 %v2169, %v2156
    %v2175 = vpack.c.bf16 %v23, %v23
    %v2177 = vpack.c.bf16 %v28, %v28
    %2179 = xla_tuple %v2177, %v2175
    %2180 = xla_tuple %2179
    %v2181 = vmax.bf16 %v2177, %v2175
    %2182 = xla_tuple %v2181
    %2183 = xla_tuple %v2181, %v2173
    %2184 = xla_tuple %2183
    %v2185 = vmax.bf16 %v2181, %v2173
    %2186 = xla_tuple %v2185
    %2187 = xla_tuple %v2185, %v2171
    %2188 = xla_tuple %2187
    %v2189 = vmax.bf16 %v2185, %v2171
    %2190 = xla_tuple %v2189
    %v2191 = vunpack.c.l.bf16 %v2189
    %v2192 = vunpack.c.h.bf16 %v2189
    %s2193 = scalar_lea.vmem [#allocation22], 152
    %v2194 = vpack.c.bf16 0.0, %v2191
    %2196 = vst [vmem:[%s2193] sm:$0xf] %v2194
    %s2197 = scalar_lea.vmem [#allocation22], 156
    %v2198 = vpack.c.bf16 0.0, %v2192
    %2200 = vst [vmem:[%s2197] sm:$0xf] %v2198
    %s2201 = scalar_lea.vmem %s128, 32
    %s2202 = scalar_lea.vmem %s143, 32
    %v2203 = vlaneseq
    %v2204 = vshrl.u32 %v2203, 7
    %v2205 = vadd.s32 %v2204, 16
    %vm2206 = vcmp.lt.s32.totalorder %v2205, 25
    %v2207 = vsel %vm2206, %v877, %v18
    %v2208 = vlaneseq
    %v2209 = vand.u32 %v2208, 127
    %vm2211 = vcmp.lt.s32.totalorder %v2209, 392
    %v2212 = vsel %vm2211, %v2207, %v18
    %s2213 = scalar_lea.vmem %s158, 32
    %s2214 = scalar_lea.vmem %s128, 36
    %s2215 = scalar_lea.vmem %s143, 36
    %v2216 = vlaneseq
    %v2217 = vshrl.u32 %v2216, 7
    %v2218 = vadd.s32 %v2217, 16
    %vm2219 = vcmp.lt.s32.totalorder %v2218, 25
    %v2220 = vsel %vm2219, %v948, %v18
    %v2221 = vlaneseq
    %v2222 = vand.u32 %v2221, 127
    %v2223 = vadd.s32 %v2222, 128
    %vm2224 = vcmp.lt.s32.totalorder %v2223, 392
    %v2225 = vsel %vm2224, %v2220, %v18
    %s2226 = scalar_lea.vmem %s158, 36
    %v2227 = vpack.c.bf16 %v13, %v13
    %v2229 = vpack.c.bf16 %v2225, %v2212
    %v2231 = vpack.c.bf16 %v23, %v23
    %v2233 = vpack.c.bf16 %v28, %v28
    %2235 = xla_tuple %v2233, %v2231
    %2236 = xla_tuple %2235
    %v2237 = vmax.bf16 %v2233, %v2231
    %2238 = xla_tuple %v2237
    %2239 = xla_tuple %v2237, %v2229
    %2240 = xla_tuple %2239
    %v2241 = vmax.bf16 %v2237, %v2229
    %2242 = xla_tuple %v2241
    %2243 = xla_tuple %v2241, %v2227
    %2244 = xla_tuple %2243
    %v2245 = vmax.bf16 %v2241, %v2227
    %2246 = xla_tuple %v2245
    %v2247 = vunpack.c.l.bf16 %v2245
    %v2248 = vunpack.c.h.bf16 %v2245
    %s2249 = scalar_lea.vmem [#allocation22], 160
    %v2250 = vpack.c.bf16 0.0, %v2247
    %2252 = vst [vmem:[%s2249] sm:$0xf] %v2250
    %s2253 = scalar_lea.vmem [#allocation22], 164
    %v2254 = vpack.c.bf16 0.0, %v2248
    %2256 = vst [vmem:[%s2253] sm:$0xf] %v2254
    %s2257 = scalar_lea.vmem %s128, 40
    %s2258 = scalar_lea.vmem %s143, 40
    %v2259 = vlaneseq
    %v2260 = vshrl.u32 %v2259, 7
    %v2261 = vadd.s32 %v2260, 16
    %vm2262 = vcmp.lt.s32.totalorder %v2261, 25
    %v2263 = vsel %vm2262, %v1049, %v18
    %v2264 = vlaneseq
    %v2265 = vand.u32 %v2264, 127
    %v2266 = vadd.s32 %v2265, 256
    %vm2267 = vcmp.lt.s32.totalorder %v2266, 392
    %v2268 = vsel %vm2267, %v2263, %v18
    %s2269 = scalar_lea.vmem %s158, 40
    %s2270 = scalar_lea.vmem %s128, 44
    %s2271 = scalar_lea.vmem %s143, 44
    %v2272 = vlaneseq
    %v2273 = vshrl.u32 %v2272, 7
    %v2274 = vadd.s32 %v2273, 16
    %vm2275 = vcmp.lt.s32.totalorder %v2274, 25
    %v2276 = vsel %vm2275, %v1120, %v18
    %v2277 = vlaneseq
    %v2278 = vand.u32 %v2277, 127
    %v2279 = vadd.s32 %v2278, 384
    %vm2280 = vcmp.lt.s32.totalorder %v2279, 392
    %v2281 = vsel %vm2280, %v2276, %v18
    %s2282 = scalar_lea.vmem %s158, 44
    %v2283 = vpack.c.bf16 %v13, %v13
    %v2285 = vpack.c.bf16 %v2281, %v2268
    %v2287 = vpack.c.bf16 %v23, %v23
    %v2289 = vpack.c.bf16 %v28, %v28
    %2291 = xla_tuple %v2289, %v2287
    %2292 = xla_tuple %2291
    %v2293 = vmax.bf16 %v2289, %v2287
    %2294 = xla_tuple %v2293
    %2295 = xla_tuple %v2293, %v2285
    %2296 = xla_tuple %2295
    %v2297 = vmax.bf16 %v2293, %v2285
    %2298 = xla_tuple %v2297
    %2299 = xla_tuple %v2297, %v2283
    %2300 = xla_tuple %2299
    %v2301 = vmax.bf16 %v2297, %v2283
    %2302 = xla_tuple %v2301
    %v2303 = vunpack.c.l.bf16 %v2301
    %v2304 = vunpack.c.h.bf16 %v2301
    %s2305 = scalar_lea.vmem [#allocation22], 168
    %v2306 = vpack.c.bf16 0.0, %v2303
    %2308 = vst [vmem:[%s2305] sm:$0xf] %v2306
    %s2309 = scalar_lea.vmem [#allocation22], 172
    %v2310 = vpack.c.bf16 0.0, %v2304
    %2312 = vst [vmem:[%s2309] sm:$0xf] %v2310
    %s2313 = scalar_lea.vmem %s128, 48
    %s2314 = scalar_lea.vmem %s143, 48
    %v2315 = vlaneseq
    %v2316 = vshrl.u32 %v2315, 7
    %v2317 = vadd.s32 %v2316, 24
    %vm2318 = vcmp.lt.s32.totalorder %v2317, 25
    %v2319 = vsel %vm2318, %v1221, %v18
    %v2320 = vlaneseq
    %v2321 = vand.u32 %v2320, 127
    %vm2323 = vcmp.lt.s32.totalorder %v2321, 392
    %v2324 = vsel %vm2323, %v2319, %v18
    %s2325 = scalar_lea.vmem %s158, 48
    %s2326 = scalar_lea.vmem %s128, 52
    %s2327 = scalar_lea.vmem %s143, 52
    %v2328 = vlaneseq
    %v2329 = vshrl.u32 %v2328, 7
    %v2330 = vadd.s32 %v2329, 24
    %vm2331 = vcmp.lt.s32.totalorder %v2330, 25
    %v2332 = vsel %vm2331, %v1292, %v18
    %v2333 = vlaneseq
    %v2334 = vand.u32 %v2333, 127
    %v2335 = vadd.s32 %v2334, 128
    %vm2336 = vcmp.lt.s32.totalorder %v2335, 392
    %v2337 = vsel %vm2336, %v2332, %v18
    %s2338 = scalar_lea.vmem %s158, 52
    %v2339 = vpack.c.bf16 %v13, %v13
    %v2341 = vpack.c.bf16 %v2337, %v2324
    %v2343 = vpack.c.bf16 %v23, %v23
    %v2345 = vpack.c.bf16 %v28, %v28
    %2347 = xla_tuple %v2345, %v2343
    %2348 = xla_tuple %2347
    %v2349 = vmax.bf16 %v2345, %v2343
    %2350 = xla_tuple %v2349
    %2351 = xla_tuple %v2349, %v2341
    %2352 = xla_tuple %2351
    %v2353 = vmax.bf16 %v2349, %v2341
    %2354 = xla_tuple %v2353
    %2355 = xla_tuple %v2353, %v2339
    %2356 = xla_tuple %2355
    %v2357 = vmax.bf16 %v2353, %v2339
    %2358 = xla_tuple %v2357
    %v2359 = vunpack.c.l.bf16 %v2357
    %v2360 = vunpack.c.h.bf16 %v2357
    %s2361 = scalar_lea.vmem [#allocation22], 176
    %v2362 = vpack.c.bf16 0.0, %v2359
    %2364 = vst [vmem:[%s2361] sm:$0xf] %v2362
    %s2365 = scalar_lea.vmem [#allocation22], 180
    %v2366 = vpack.c.bf16 0.0, %v2360
    %2368 = vst [vmem:[%s2365] sm:$0xf] %v2366
    %s2369 = scalar_lea.vmem %s128, 56
    %s2370 = scalar_lea.vmem %s143, 56
    %v2371 = vlaneseq
    %v2372 = vshrl.u32 %v2371, 7
    %v2373 = vadd.s32 %v2372, 24
    %vm2374 = vcmp.lt.s32.totalorder %v2373, 25
    %v2375 = vsel %vm2374, %v1393, %v18
    %v2376 = vlaneseq
    %v2377 = vand.u32 %v2376, 127
    %v2378 = vadd.s32 %v2377, 256
    %vm2379 = vcmp.lt.s32.totalorder %v2378, 392
    %v2380 = vsel %vm2379, %v2375, %v18
    %s2381 = scalar_lea.vmem %s158, 56
    %s2382 = scalar_lea.vmem %s128, 60
    %s2383 = scalar_lea.vmem %s143, 60
    %v2384 = vlaneseq
    %v2385 = vshrl.u32 %v2384, 7
    %v2386 = vadd.s32 %v2385, 24
    %vm2387 = vcmp.lt.s32.totalorder %v2386, 25
    %v2388 = vsel %vm2387, %v1464, %v18
    %v2389 = vlaneseq
    %v2390 = vand.u32 %v2389, 127
    %v2391 = vadd.s32 %v2390, 384
    %vm2392 = vcmp.lt.s32.totalorder %v2391, 392
    %v2393 = vsel %vm2392, %v2388, %v18
    %s2394 = scalar_lea.vmem %s158, 60
    %v2395 = vpack.c.bf16 %v13, %v13
    %v2397 = vpack.c.bf16 %v2393, %v2380
    %v2399 = vpack.c.bf16 %v23, %v23
    %v2401 = vpack.c.bf16 %v28, %v28
    %2403 = xla_tuple %v2401, %v2399
    %2404 = xla_tuple %2403
    %v2405 = vmax.bf16 %v2401, %v2399
    %2406 = xla_tuple %v2405
    %2407 = xla_tuple %v2405, %v2397
    %2408 = xla_tuple %2407
    %v2409 = vmax.bf16 %v2405, %v2397
    %2410 = xla_tuple %v2409
    %2411 = xla_tuple %v2409, %v2395
    %2412 = xla_tuple %2411
    %v2413 = vmax.bf16 %v2409, %v2395
    %2414 = xla_tuple %v2413
    %v2415 = vunpack.c.l.bf16 %v2413
    %v2416 = vunpack.c.h.bf16 %v2413
    %s2417 = scalar_lea.vmem [#allocation22], 184
    %v2418 = vpack.c.bf16 0.0, %v2415
    %2420 = vst [vmem:[%s2417] sm:$0xf] %v2418
    %s2421 = scalar_lea.vmem [#allocation22], 188
    %v2422 = vpack.c.bf16 0.0, %v2416
    %2424 = vst [vmem:[%s2421] sm:$0xf] %v2422
    %v2425 = vlaneseq
    %v2426 = vshrl.u32 %v2425, 7
    %vm2428 = vcmp.lt.s32.totalorder %v2426, 25
    %v2429 = vsel %vm2428, %v177, %v13
    %v2430 = vlaneseq
    %v2431 = vand.u32 %v2430, 127
    %vm2433 = vcmp.lt.s32.totalorder %v2431, 392
    %v2434 = vsel %vm2433, %v2429, %v13
    %s2435 = scalar_lea.vmem %s128, 4
    %v2436 = vlaneseq
    %v2437 = vshrl.u32 %v2436, 7
    %vm2439 = vcmp.lt.s32.totalorder %v2437, 25
    %v2440 = vsel %vm2439, %v245, %v13
    %v2441 = vlaneseq
    %v2442 = vand.u32 %v2441, 127
    %v2443 = vadd.s32 %v2442, 128
    %vm2444 = vcmp.lt.s32.totalorder %v2443, 392
    %v2445 = vsel %vm2444, %v2440, %v13
    %s2446 = scalar_lea.vmem %s143, 4
    %s2447 = scalar_lea.vmem %s158, 4
    %v2448 = vpack.c.bf16 %v2445, %v2434
    %v2450 = vpack.c.bf16 %v18, %v18
    %v2452 = vpack.c.bf16 %v23, %v23
    %v2454 = vpack.c.bf16 %v28, %v28
    %2456 = xla_tuple %v2454, %v2452
    %2457 = xla_tuple %2456
    %v2458 = vmax.bf16 %v2454, %v2452
    %2459 = xla_tuple %v2458
    %2460 = xla_tuple %v2458, %v2450
    %2461 = xla_tuple %2460
    %v2462 = vmax.bf16 %v2458, %v2450
    %2463 = xla_tuple %v2462
    %2464 = xla_tuple %v2462, %v2448
    %2465 = xla_tuple %2464
    %v2466 = vmax.bf16 %v2462, %v2448
    %2467 = xla_tuple %v2466
    %v2468 = vunpack.c.l.bf16 %v2466
    %v2469 = vunpack.c.h.bf16 %v2466
    %s2470 = scalar_lea.vmem [#allocation22], 192
    %v2471 = vpack.c.bf16 0.0, %v2468
    %2473 = vst [vmem:[%s2470] sm:$0xf] %v2471
    %s2474 = scalar_lea.vmem [#allocation22], 196
    %v2475 = vpack.c.bf16 0.0, %v2469
    %2477 = vst [vmem:[%s2474] sm:$0xf] %v2475
    %s2478 = scalar_lea.vmem %s128, 8
    %v2479 = vlaneseq
    %v2480 = vshrl.u32 %v2479, 7
    %vm2482 = vcmp.lt.s32.totalorder %v2480, 25
    %v2483 = vsel %vm2482, %v345, %v13
    %v2484 = vlaneseq
    %v2485 = vand.u32 %v2484, 127
    %v2486 = vadd.s32 %v2485, 256
    %vm2487 = vcmp.lt.s32.totalorder %v2486, 392
    %v2488 = vsel %vm2487, %v2483, %v13
    %s2489 = scalar_lea.vmem %s143, 8
    %s2490 = scalar_lea.vmem %s158, 8
    %s2491 = scalar_lea.vmem %s128, 12
    %v2492 = vlaneseq
    %v2493 = vshrl.u32 %v2492, 7
    %vm2495 = vcmp.lt.s32.totalorder %v2493, 25
    %v2496 = vsel %vm2495, %v416, %v13
    %v2497 = vlaneseq
    %v2498 = vand.u32 %v2497, 127
    %v2499 = vadd.s32 %v2498, 384
    %vm2500 = vcmp.lt.s32.totalorder %v2499, 392
    %v2501 = vsel %vm2500, %v2496, %v13
    %s2502 = scalar_lea.vmem %s143, 12
    %s2503 = scalar_lea.vmem %s158, 12
    %v2504 = vpack.c.bf16 %v2501, %v2488
    %v2506 = vpack.c.bf16 %v18, %v18
    %v2508 = vpack.c.bf16 %v23, %v23
    %v2510 = vpack.c.bf16 %v28, %v28
    %2512 = xla_tuple %v2510, %v2508
    %2513 = xla_tuple %2512
    %v2514 = vmax.bf16 %v2510, %v2508
    %2515 = xla_tuple %v2514
    %2516 = xla_tuple %v2514, %v2506
    %2517 = xla_tuple %2516
    %v2518 = vmax.bf16 %v2514, %v2506
    %2519 = xla_tuple %v2518
    %2520 = xla_tuple %v2518, %v2504
    %2521 = xla_tuple %2520
    %v2522 = vmax.bf16 %v2518, %v2504
    %2523 = xla_tuple %v2522
    %v2524 = vunpack.c.l.bf16 %v2522
    %v2525 = vunpack.c.h.bf16 %v2522
    %s2526 = scalar_lea.vmem [#allocation22], 200
    %v2527 = vpack.c.bf16 0.0, %v2524
    %2529 = vst [vmem:[%s2526] sm:$0xf] %v2527
    %s2530 = scalar_lea.vmem [#allocation22], 204
    %v2531 = vpack.c.bf16 0.0, %v2525
    %2533 = vst [vmem:[%s2530] sm:$0xf] %v2531
    %s2534 = scalar_lea.vmem %s128, 16
    %v2535 = vlaneseq
    %v2536 = vshrl.u32 %v2535, 7
    %v2537 = vadd.s32 %v2536, 8
    %vm2538 = vcmp.lt.s32.totalorder %v2537, 25
    %v2539 = vsel %vm2538, %v517, %v13
    %v2540 = vlaneseq
    %v2541 = vand.u32 %v2540, 127
    %vm2543 = vcmp.lt.s32.totalorder %v2541, 392
    %v2544 = vsel %vm2543, %v2539, %v13
    %s2545 = scalar_lea.vmem %s143, 16
    %s2546 = scalar_lea.vmem %s158, 16
    %s2547 = scalar_lea.vmem %s128, 20
    %v2548 = vlaneseq
    %v2549 = vshrl.u32 %v2548, 7
    %v2550 = vadd.s32 %v2549, 8
    %vm2551 = vcmp.lt.s32.totalorder %v2550, 25
    %v2552 = vsel %vm2551, %v588, %v13
    %v2553 = vlaneseq
    %v2554 = vand.u32 %v2553, 127
    %v2555 = vadd.s32 %v2554, 128
    %vm2556 = vcmp.lt.s32.totalorder %v2555, 392
    %v2557 = vsel %vm2556, %v2552, %v13
    %s2558 = scalar_lea.vmem %s143, 20
    %s2559 = scalar_lea.vmem %s158, 20
    %v2560 = vpack.c.bf16 %v2557, %v2544
    %v2562 = vpack.c.bf16 %v18, %v18
    %v2564 = vpack.c.bf16 %v23, %v23
    %v2566 = vpack.c.bf16 %v28, %v28
    %2568 = xla_tuple %v2566, %v2564
    %2569 = xla_tuple %2568
    %v2570 = vmax.bf16 %v2566, %v2564
    %2571 = xla_tuple %v2570
    %2572 = xla_tuple %v2570, %v2562
    %2573 = xla_tuple %2572
    %v2574 = vmax.bf16 %v2570, %v2562
    %2575 = xla_tuple %v2574
    %2576 = xla_tuple %v2574, %v2560
    %2577 = xla_tuple %2576
    %v2578 = vmax.bf16 %v2574, %v2560
    %2579 = xla_tuple %v2578
    %v2580 = vunpack.c.l.bf16 %v2578
    %v2581 = vunpack.c.h.bf16 %v2578
    %s2582 = scalar_lea.vmem [#allocation22], 208
    %v2583 = vpack.c.bf16 0.0, %v2580
    %2585 = vst [vmem:[%s2582] sm:$0xf] %v2583
    %s2586 = scalar_lea.vmem [#allocation22], 212
    %v2587 = vpack.c.bf16 0.0, %v2581
    %2589 = vst [vmem:[%s2586] sm:$0xf] %v2587
    %s2590 = scalar_lea.vmem %s128, 24
    %v2591 = vlaneseq
    %v2592 = vshrl.u32 %v2591, 7
    %v2593 = vadd.s32 %v2592, 8
    %vm2594 = vcmp.lt.s32.totalorder %v2593, 25
    %v2595 = vsel %vm2594, %v689, %v13
    %v2596 = vlaneseq
    %v2597 = vand.u32 %v2596, 127
    %v2598 = vadd.s32 %v2597, 256
    %vm2599 = vcmp.lt.s32.totalorder %v2598, 392
    %v2600 = vsel %vm2599, %v2595, %v13
    %s2601 = scalar_lea.vmem %s143, 24
    %s2602 = scalar_lea.vmem %s158, 24
    %s2603 = scalar_lea.vmem %s128, 28
    %v2604 = vlaneseq
    %v2605 = vshrl.u32 %v2604, 7
    %v2606 = vadd.s32 %v2605, 8
    %vm2607 = vcmp.lt.s32.totalorder %v2606, 25
    %v2608 = vsel %vm2607, %v760, %v13
    %v2609 = vlaneseq
    %v2610 = vand.u32 %v2609, 127
    %v2611 = vadd.s32 %v2610, 384
    %vm2612 = vcmp.lt.s32.totalorder %v2611, 392
    %v2613 = vsel %vm2612, %v2608, %v13
    %s2614 = scalar_lea.vmem %s143, 28
    %s2615 = scalar_lea.vmem %s158, 28
    %v2616 = vpack.c.bf16 %v2613, %v2600
    %v2618 = vpack.c.bf16 %v18, %v18
    %v2620 = vpack.c.bf16 %v23, %v23
    %v2622 = vpack.c.bf16 %v28, %v28
    %2624 = xla_tuple %v2622, %v2620
    %2625 = xla_tuple %2624
    %v2626 = vmax.bf16 %v2622, %v2620
    %2627 = xla_tuple %v2626
    %2628 = xla_tuple %v2626, %v2618
    %2629 = xla_tuple %2628
    %v2630 = vmax.bf16 %v2626, %v2618
    %2631 = xla_tuple %v2630
    %2632 = xla_tuple %v2630, %v2616
    %2633 = xla_tuple %2632
    %v2634 = vmax.bf16 %v2630, %v2616
    %2635 = xla_tuple %v2634
    %v2636 = vunpack.c.l.bf16 %v2634
    %v2637 = vunpack.c.h.bf16 %v2634
    %s2638 = scalar_lea.vmem [#allocation22], 216
    %v2639 = vpack.c.bf16 0.0, %v2636
    %2641 = vst [vmem:[%s2638] sm:$0xf] %v2639
    %s2642 = scalar_lea.vmem [#allocation22], 220
    %v2643 = vpack.c.bf16 0.0, %v2637
    %2645 = vst [vmem:[%s2642] sm:$0xf] %v2643
    %s2646 = scalar_lea.vmem %s128, 32
    %v2647 = vlaneseq
    %v2648 = vshrl.u32 %v2647, 7
    %v2649 = vadd.s32 %v2648, 16
    %vm2650 = vcmp.lt.s32.totalorder %v2649, 25
    %v2651 = vsel %vm2650, %v861, %v13
    %v2652 = vlaneseq
    %v2653 = vand.u32 %v2652, 127
    %vm2655 = vcmp.lt.s32.totalorder %v2653, 392
    %v2656 = vsel %vm2655, %v2651, %v13
    %s2657 = scalar_lea.vmem %s143, 32
    %s2658 = scalar_lea.vmem %s158, 32
    %s2659 = scalar_lea.vmem %s128, 36
    %v2660 = vlaneseq
    %v2661 = vshrl.u32 %v2660, 7
    %v2662 = vadd.s32 %v2661, 16
    %vm2663 = vcmp.lt.s32.totalorder %v2662, 25
    %v2664 = vsel %vm2663, %v932, %v13
    %v2665 = vlaneseq
    %v2666 = vand.u32 %v2665, 127
    %v2667 = vadd.s32 %v2666, 128
    %vm2668 = vcmp.lt.s32.totalorder %v2667, 392
    %v2669 = vsel %vm2668, %v2664, %v13
    %s2670 = scalar_lea.vmem %s143, 36
    %s2671 = scalar_lea.vmem %s158, 36
    %v2672 = vpack.c.bf16 %v2669, %v2656
    %v2674 = vpack.c.bf16 %v18, %v18
    %v2676 = vpack.c.bf16 %v23, %v23
    %v2678 = vpack.c.bf16 %v28, %v28
    %2680 = xla_tuple %v2678, %v2676
    %2681 = xla_tuple %2680
    %v2682 = vmax.bf16 %v2678, %v2676
    %2683 = xla_tuple %v2682
    %2684 = xla_tuple %v2682, %v2674
    %2685 = xla_tuple %2684
    %v2686 = vmax.bf16 %v2682, %v2674
    %2687 = xla_tuple %v2686
    %2688 = xla_tuple %v2686, %v2672
    %2689 = xla_tuple %2688
    %v2690 = vmax.bf16 %v2686, %v2672
    %2691 = xla_tuple %v2690
    %v2692 = vunpack.c.l.bf16 %v2690
    %v2693 = vunpack.c.h.bf16 %v2690
    %s2694 = scalar_lea.vmem [#allocation22], 224
    %v2695 = vpack.c.bf16 0.0, %v2692
    %2697 = vst [vmem:[%s2694] sm:$0xf] %v2695
    %s2698 = scalar_lea.vmem [#allocation22], 228
    %v2699 = vpack.c.bf16 0.0, %v2693
    %2701 = vst [vmem:[%s2698] sm:$0xf] %v2699
    %s2702 = scalar_lea.vmem %s128, 40
    %v2703 = vlaneseq
    %v2704 = vshrl.u32 %v2703, 7
    %v2705 = vadd.s32 %v2704, 16
    %vm2706 = vcmp.lt.s32.totalorder %v2705, 25
    %v2707 = vsel %vm2706, %v1033, %v13
    %v2708 = vlaneseq
    %v2709 = vand.u32 %v2708, 127
    %v2710 = vadd.s32 %v2709, 256
    %vm2711 = vcmp.lt.s32.totalorder %v2710, 392
    %v2712 = vsel %vm2711, %v2707, %v13
    %s2713 = scalar_lea.vmem %s143, 40
    %s2714 = scalar_lea.vmem %s158, 40
    %s2715 = scalar_lea.vmem %s128, 44
    %v2716 = vlaneseq
    %v2717 = vshrl.u32 %v2716, 7
    %v2718 = vadd.s32 %v2717, 16
    %vm2719 = vcmp.lt.s32.totalorder %v2718, 25
    %v2720 = vsel %vm2719, %v1104, %v13
    %v2721 = vlaneseq
    %v2722 = vand.u32 %v2721, 127
    %v2723 = vadd.s32 %v2722, 384
    %vm2724 = vcmp.lt.s32.totalorder %v2723, 392
    %v2725 = vsel %vm2724, %v2720, %v13
    %s2726 = scalar_lea.vmem %s143, 44
    %s2727 = scalar_lea.vmem %s158, 44
    %v2728 = vpack.c.bf16 %v2725, %v2712
    %v2730 = vpack.c.bf16 %v18, %v18
    %v2732 = vpack.c.bf16 %v23, %v23
    %v2734 = vpack.c.bf16 %v28, %v28
    %2736 = xla_tuple %v2734, %v2732
    %2737 = xla_tuple %2736
    %v2738 = vmax.bf16 %v2734, %v2732
    %2739 = xla_tuple %v2738
    %2740 = xla_tuple %v2738, %v2730
    %2741 = xla_tuple %2740
    %v2742 = vmax.bf16 %v2738, %v2730
    %2743 = xla_tuple %v2742
    %2744 = xla_tuple %v2742, %v2728
    %2745 = xla_tuple %2744
    %v2746 = vmax.bf16 %v2742, %v2728
    %2747 = xla_tuple %v2746
    %v2748 = vunpack.c.l.bf16 %v2746
    %v2749 = vunpack.c.h.bf16 %v2746
    %s2750 = scalar_lea.vmem [#allocation22], 232
    %v2751 = vpack.c.bf16 0.0, %v2748
    %2753 = vst [vmem:[%s2750] sm:$0xf] %v2751
    %s2754 = scalar_lea.vmem [#allocation22], 236
    %v2755 = vpack.c.bf16 0.0, %v2749
    %2757 = vst [vmem:[%s2754] sm:$0xf] %v2755
    %s2758 = scalar_lea.vmem %s128, 48
    %v2759 = vlaneseq
    %v2760 = vshrl.u32 %v2759, 7
    %v2761 = vadd.s32 %v2760, 24
    %vm2762 = vcmp.lt.s32.totalorder %v2761, 25
    %v2763 = vsel %vm2762, %v1205, %v13
    %v2764 = vlaneseq
    %v2765 = vand.u32 %v2764, 127
    %vm2767 = vcmp.lt.s32.totalorder %v2765, 392
    %v2768 = vsel %vm2767, %v2763, %v13
    %s2769 = scalar_lea.vmem %s143, 48
    %s2770 = scalar_lea.vmem %s158, 48
    %s2771 = scalar_lea.vmem %s128, 52
    %v2772 = vlaneseq
    %v2773 = vshrl.u32 %v2772, 7
    %v2774 = vadd.s32 %v2773, 24
    %vm2775 = vcmp.lt.s32.totalorder %v2774, 25
    %v2776 = vsel %vm2775, %v1276, %v13
    %v2777 = vlaneseq
    %v2778 = vand.u32 %v2777, 127
    %v2779 = vadd.s32 %v2778, 128
    %vm2780 = vcmp.lt.s32.totalorder %v2779, 392
    %v2781 = vsel %vm2780, %v2776, %v13
    %s2782 = scalar_lea.vmem %s143, 52
    %s2783 = scalar_lea.vmem %s158, 52
    %v2784 = vpack.c.bf16 %v2781, %v2768
    %v2786 = vpack.c.bf16 %v18, %v18
    %v2788 = vpack.c.bf16 %v23, %v23
    %v2790 = vpack.c.bf16 %v28, %v28
    %2792 = xla_tuple %v2790, %v2788
    %2793 = xla_tuple %2792
    %v2794 = vmax.bf16 %v2790, %v2788
    %2795 = xla_tuple %v2794
    %2796 = xla_tuple %v2794, %v2786
    %2797 = xla_tuple %2796
    %v2798 = vmax.bf16 %v2794, %v2786
    %2799 = xla_tuple %v2798
    %2800 = xla_tuple %v2798, %v2784
    %2801 = xla_tuple %2800
    %v2802 = vmax.bf16 %v2798, %v2784
    %2803 = xla_tuple %v2802
    %v2804 = vunpack.c.l.bf16 %v2802
    %v2805 = vunpack.c.h.bf16 %v2802
    %s2806 = scalar_lea.vmem [#allocation22], 240
    %v2807 = vpack.c.bf16 0.0, %v2804
    %2809 = vst [vmem:[%s2806] sm:$0xf] %v2807
    %s2810 = scalar_lea.vmem [#allocation22], 244
    %v2811 = vpack.c.bf16 0.0, %v2805
    %2813 = vst [vmem:[%s2810] sm:$0xf] %v2811
    %s2814 = scalar_lea.vmem %s128, 56
    %v2815 = vlaneseq
    %v2816 = vshrl.u32 %v2815, 7
    %v2817 = vadd.s32 %v2816, 24
    %vm2818 = vcmp.lt.s32.totalorder %v2817, 25
    %v2819 = vsel %vm2818, %v1377, %v13
    %v2820 = vlaneseq
    %v2821 = vand.u32 %v2820, 127
    %v2822 = vadd.s32 %v2821, 256
    %vm2823 = vcmp.lt.s32.totalorder %v2822, 392
    %v2824 = vsel %vm2823, %v2819, %v13
    %s2825 = scalar_lea.vmem %s143, 56
    %s2826 = scalar_lea.vmem %s158, 56
    %s2827 = scalar_lea.vmem %s128, 60
    %v2828 = vlaneseq
    %v2829 = vshrl.u32 %v2828, 7
    %v2830 = vadd.s32 %v2829, 24
    %vm2831 = vcmp.lt.s32.totalorder %v2830, 25
    %v2832 = vsel %vm2831, %v1448, %v13
    %v2833 = vlaneseq
    %v2834 = vand.u32 %v2833, 127
    %v2835 = vadd.s32 %v2834, 384
    %vm2836 = vcmp.lt.s32.totalorder %v2835, 392
    %v2837 = vsel %vm2836, %v2832, %v13
    %s2838 = scalar_lea.vmem %s143, 60
    %s2839 = scalar_lea.vmem %s158, 60
    %v2840 = vpack.c.bf16 %v2837, %v2824
    %v2842 = vpack.c.bf16 %v18, %v18
    %v2844 = vpack.c.bf16 %v23, %v23
    %v2846 = vpack.c.bf16 %v28, %v28
    %2848 = xla_tuple %v2846, %v2844
    %2849 = xla_tuple %2848
    %v2850 = vmax.bf16 %v2846, %v2844
    %2851 = xla_tuple %v2850
    %2852 = xla_tuple %v2850, %v2842
    %2853 = xla_tuple %2852
    %v2854 = vmax.bf16 %v2850, %v2842
    %2855 = xla_tuple %v2854
    %2856 = xla_tuple %v2854, %v2840
    %2857 = xla_tuple %2856
    %v2858 = vmax.bf16 %v2854, %v2840
    %2859 = xla_tuple %v2858
    %v2860 = vunpack.c.l.bf16 %v2858
    %v2861 = vunpack.c.h.bf16 %v2858
    %s2862 = scalar_lea.vmem [#allocation22], 248
    %v2863 = vpack.c.bf16 0.0, %v2860
    %2865 = vst [vmem:[%s2862] sm:$0xf] %v2863
    %s2866 = scalar_lea.vmem [#allocation22], 252
    %v2867 = vpack.c.bf16 0.0, %v2861
    %2869 = vst [vmem:[%s2866] sm:$0xf] %v2867
    %v2871 = vld [vmem:[%s0] sm:$0xf]
    %v2872 = vld [vmem:[#allocation22] sm:$0xff]
    %v2873 = vld [vmem:[#allocation22 + $0x8] sm:$0xff]
    %v2874 = vld [vmem:[#allocation22 + $0x10] sm:$0xff]
    %v2875 = vld [vmem:[#allocation22 + $0x18] sm:$0xff]
    %v2876 = vld [vmem:[#allocation22 + $0x20] sm:$0xff]
    %v2877 = vld [vmem:[#allocation22 + $0x28] sm:$0xff]
    %v2878 = vld [vmem:[#allocation22 + $0x30] sm:$0x11]
    %v2879 = vld [vmem:[#allocation22 + $0x38] sm:$0x11]
    %v2888 = vunpack.c.l.b16 %v2872
    %v2889 = vunpack.c.h.b16 %v2872
    %v2890 = vunpack.c.l.b16 %v2873
    %v2891 = vunpack.c.h.b16 %v2873
    %v2892 = vunpack.c.l.b16 %v2874
    %v2893 = vunpack.c.h.b16 %v2874
    %v2894 = vunpack.c.l.b16 %v2875
    %v2895 = vunpack.c.h.b16 %v2875
    %v2896 = vunpack.c.l.b16 %v2876
    %v2897 = vunpack.c.h.b16 %v2876
    %v2898 = vunpack.c.l.b16 %v2877
    %v2899 = vunpack.c.h.b16 %v2877
    %v2900 = vunpack.c.l.b16 %v2878
    %v2901 = vunpack.c.h.b16 %v2878
    %v2902 = vunpack.c.l.b16 %v2879
    %v2903 = vunpack.c.h.b16 %v2879
    %v2904 = vpack.c.b16 %v2892, %v2888
    %v2905 = vpack.c.b16 %v2893, %v2889
    %v2906 = vpack.c.b16 %v2894, %v2890
    %v2907 = vpack.c.b16 %v2895, %v2891
    %v2908 = vpack.c.b16 %v2900, %v2896
    %v2909 = vpack.c.b16 %v2901, %v2897
    %v2910 = vpack.c.b16 %v2902, %v2898
    %v2911 = vpack.c.b16 %v2903, %v2899
    %vm2916 = vcmask 203776
    %v2918 = vsel %vm2916, %v2871, 0
    %vm2920 = vcmask 1043456
    %vm2921 = vcmask 1044480
    %v2922 = vsel %vm2920, 4294967295, 65535
    %v2923 = vsel %vm2921, %v2922, 0
    %v2925 = vand.u32 %v2908, %v2923
    %v2928 = vand.u32 %v2909, %v2923
    %v2931 = vand.u32 %v2910, %v2923
    %v2934 = vand.u32 %v2911, %v2923
    %2936 = vmatprep.subr.bf16.mxu0 %v2905
    %2937 = vmatpush1.bf16.msra.mxu0 %v2904
    %2938 = vmatprep.subr.bf16.mxu0 %v2928
    %2939 = vmatpush1.bf16.msra.mxu0 %v2925
    %2940 = vmatprep.subr.bf16.mxu0 0
    %2941 = vmatpush1.bf16.msra.mxu0 0
    %2942 = vmatprep.subr.bf16.mxu0 0
    %2943 = vmatpush1.bf16.msra.mxu0 0
    %2944 = vmatprep.subr.bf16.mxu0 0
    %2945 = vmatpush1.bf16.msra.mxu0 0
    %2946 = vmatprep.subr.bf16.mxu0 0
    %2947 = vmatpush1.bf16.msra.mxu0 0
    %2948 = vmatprep.subr.bf16.mxu0 0
    %2949 = vmatpush1.bf16.msra.mxu0 0
    %2950 = vmatprep.subr.bf16.mxu0 0
    %2951 = vmatpush1.bf16.msra.mxu0 0
    %2952 = vmatprep.subr.bf16.mxu0 0
    %2953 = vmatpush1.bf16.msra.mxu0 0
    %2954 = vmatprep.subr.bf16.mxu0 0
    %2955 = vmatpush1.bf16.msra.mxu0 0
    %2956 = vmatprep.subr.bf16.mxu0 0
    %2957 = vmatpush1.bf16.msra.mxu0 0
    %2958 = vmatprep.subr.bf16.mxu0 0
    %2959 = vmatpush1.bf16.msra.mxu0 0
    %2960 = vmatprep.subr.bf16.mxu0 0
    %2961 = vmatpush1.bf16.msra.mxu0 0
    %2962 = vmatprep.subr.bf16.mxu0 0
    %2963 = vmatpush1.bf16.msra.mxu0 0
    %2964 = vmatprep.subr.bf16.mxu0 0
    %2965 = vmatpush1.bf16.msra.mxu0 0
    %2966 = vmatprep.subr.bf16.mxu0 0
    %2967 = vmatpush1.bf16.msra.mxu0 0
    %2968 = vmatprep.mubr.bf16.mxu0 0
    %2969 = vmatmul.mubr.bf16.gmra.mrb[0].mxu0 %v2918
    %v2970 = vpop.f32.mrb[0].mxu0
    %v2971 = vadd.f32 0.0, %v2970
    %v2972 = vpop.f32.mrb[0].mxu0
    %v2973 = vadd.f32 0.0, %v2972
    %v2974 = vpop.f32.mrb[0].mxu0
    %v2975 = vpop.f32.mrb[0].mxu0
    %2976 = vdwg.mxu0
    %2977 = vmatprep.subr.bf16.mxu0 %v2907
    %2978 = vmatpush1.bf16.msra.mxu0 %v2906
    %2979 = vmatprep.subr.bf16.mxu0 %v2934
    %2980 = vmatpush1.bf16.msra.mxu0 %v2931
    %2981 = vmatprep.subr.bf16.mxu0 0
    %2982 = vmatpush1.bf16.msra.mxu0 0
    %2983 = vmatprep.subr.bf16.mxu0 0
    %2984 = vmatpush1.bf16.msra.mxu0 0
    %2985 = vmatprep.subr.bf16.mxu0 0
    %2986 = vmatpush1.bf16.msra.mxu0 0
    %2987 = vmatprep.subr.bf16.mxu0 0
    %2988 = vmatpush1.bf16.msra.mxu0 0
    %2989 = vmatprep.subr.bf16.mxu0 0
    %2990 = vmatpush1.bf16.msra.mxu0 0
    %2991 = vmatprep.subr.bf16.mxu0 0
    %2992 = vmatpush1.bf16.msra.mxu0 0
    %2993 = vmatprep.subr.bf16.mxu0 0
    %2994 = vmatpush1.bf16.msra.mxu0 0
    %2995 = vmatprep.subr.bf16.mxu0 0
    %2996 = vmatpush1.bf16.msra.mxu0 0
    %2997 = vmatprep.subr.bf16.mxu0 0
    %2998 = vmatpush1.bf16.msra.mxu0 0
    %2999 = vmatprep.subr.bf16.mxu0 0
    %3000 = vmatpush1.bf16.msra.mxu0 0
    %3001 = vmatprep.subr.bf16.mxu0 0
    %3002 = vmatpush1.bf16.msra.mxu0 0
    %3003 = vmatprep.subr.bf16.mxu0 0
    %3004 = vmatpush1.bf16.msra.mxu0 0
    %3005 = vmatprep.subr.bf16.mxu0 0
    %3006 = vmatpush1.bf16.msra.mxu0 0
    %3007 = vmatprep.subr.bf16.mxu0 0
    %3008 = vmatpush1.bf16.msra.mxu0 0
    %3009 = vmatprep.mubr.bf16.mxu0 0
    %3010 = vmatmul.mubr.bf16.gmra.mrb[0].mxu0 %v2918
    %v3011 = vpop.f32.mrb[0].mxu0
    %v3012 = vadd.f32 0.0, %v3011
    %v3013 = vpop.f32.mrb[0].mxu0
    %v3014 = vadd.f32 0.0, %v3013
    %v3015 = vpop.f32.mrb[0].mxu0
    %v3016 = vpop.f32.mrb[0].mxu0
    %3017 = vdwg.mxu0
    %s3018 = scalar_lea.vmem [#allocation22], 64
    %v3019 = vld [vmem:[%s3018] sm:$0xff]
    %v3020 = vld [vmem:[%s3018 + $0x8] sm:$0xff]
    %v3021 = vld [vmem:[%s3018 + $0x10] sm:$0xff]
    %v3022 = vld [vmem:[%s3018 + $0x18] sm:$0xff]
    %v3023 = vld [vmem:[%s3018 + $0x20] sm:$0xff]
    %v3024 = vld [vmem:[%s3018 + $0x28] sm:$0xff]
    %v3025 = vld [vmem:[%s3018 + $0x30] sm:$0x11]
    %v3026 = vld [vmem:[%s3018 + $0x38] sm:$0x11]
    %v3035 = vunpack.c.l.b16 %v3019
    %v3036 = vunpack.c.h.b16 %v3019
    %v3037 = vunpack.c.l.b16 %v3020
    %v3038 = vunpack.c.h.b16 %v3020
    %v3039 = vunpack.c.l.b16 %v3021
    %v3040 = vunpack.c.h.b16 %v3021
    %v3041 = vunpack.c.l.b16 %v3022
    %v3042 = vunpack.c.h.b16 %v3022
    %v3043 = vunpack.c.l.b16 %v3023
    %v3044 = vunpack.c.h.b16 %v3023
    %v3045 = vunpack.c.l.b16 %v3024
    %v3046 = vunpack.c.h.b16 %v3024
    %v3047 = vunpack.c.l.b16 %v3025
    %v3048 = vunpack.c.h.b16 %v3025
    %v3049 = vunpack.c.l.b16 %v3026
    %v3050 = vunpack.c.h.b16 %v3026
    %v3051 = vpack.c.b16 %v3039, %v3035
    %v3052 = vpack.c.b16 %v3040, %v3036
    %v3053 = vpack.c.b16 %v3041, %v3037
    %v3054 = vpack.c.b16 %v3042, %v3038
    %v3055 = vpack.c.b16 %v3047, %v3043
    %v3056 = vpack.c.b16 %v3048, %v3044
    %v3057 = vpack.c.b16 %v3049, %v3045
    %v3058 = vpack.c.b16 %v3050, %v3046
    %v3064 = vand.u32 %v3055, %v2923
    %v3067 = vand.u32 %v3056, %v2923
    %v3070 = vand.u32 %v3057, %v2923
    %v3073 = vand.u32 %v3058, %v2923
    %3075 = vmatprep.subr.bf16.mxu0 %v3052
    %3076 = vmatpush1.bf16.msra.mxu0 %v3051
    %3077 = vmatprep.subr.bf16.mxu0 %v3067
    %3078 = vmatpush1.bf16.msra.mxu0 %v3064
    %3079 = vmatprep.subr.bf16.mxu0 0
    %3080 = vmatpush1.bf16.msra.mxu0 0
    %3081 = vmatprep.subr.bf16.mxu0 0
    %3082 = vmatpush1.bf16.msra.mxu0 0
    %3083 = vmatprep.subr.bf16.mxu0 0
    %3084 = vmatpush1.bf16.msra.mxu0 0
    %3085 = vmatprep.subr.bf16.mxu0 0
    %3086 = vmatpush1.bf16.msra.mxu0 0
    %3087 = vmatprep.subr.bf16.mxu0 0
    %3088 = vmatpush1.bf16.msra.mxu0 0
    %3089 = vmatprep.subr.bf16.mxu0 0
    %3090 = vmatpush1.bf16.msra.mxu0 0
    %3091 = vmatprep.subr.bf16.mxu0 0
    %3092 = vmatpush1.bf16.msra.mxu0 0
    %3093 = vmatprep.subr.bf16.mxu0 0
    %3094 = vmatpush1.bf16.msra.mxu0 0
    %3095 = vmatprep.subr.bf16.mxu0 0
    %3096 = vmatpush1.bf16.msra.mxu0 0
    %3097 = vmatprep.subr.bf16.mxu0 0
    %3098 = vmatpush1.bf16.msra.mxu0 0
    %3099 = vmatprep.subr.bf16.mxu0 0
    %3100 = vmatpush1.bf16.msra.mxu0 0
    %3101 = vmatprep.subr.bf16.mxu0 0
    %3102 = vmatpush1.bf16.msra.mxu0 0
    %3103 = vmatprep.subr.bf16.mxu0 0
    %3104 = vmatpush1.bf16.msra.mxu0 0
    %3105 = vmatprep.subr.bf16.mxu0 0
    %3106 = vmatpush1.bf16.msra.mxu0 0
    %3107 = vmatprep.mubr.bf16.mxu0 0
    %3108 = vmatmul.mubr.bf16.gmra.mrb[0].mxu0 %v2918
    %v3109 = vpop.f32.mrb[0].mxu0
    %v3110 = vadd.f32 0.0, %v3109
    %v3111 = vpop.f32.mrb[0].mxu0
    %v3112 = vadd.f32 0.0, %v3111
    %v3113 = vpop.f32.mrb[0].mxu0
    %v3114 = vpop.f32.mrb[0].mxu0
    %3115 = vdwg.mxu0
    %3116 = vmatprep.subr.bf16.mxu0 %v3054
    %3117 = vmatpush1.bf16.msra.mxu0 %v3053
    %3118 = vmatprep.subr.bf16.mxu0 %v3073
    %3119 = vmatpush1.bf16.msra.mxu0 %v3070
    %3120 = vmatprep.subr.bf16.mxu0 0
    %3121 = vmatpush1.bf16.msra.mxu0 0
    %3122 = vmatprep.subr.bf16.mxu0 0
    %3123 = vmatpush1.bf16.msra.mxu0 0
    %3124 = vmatprep.subr.bf16.mxu0 0
    %3125 = vmatpush1.bf16.msra.mxu0 0
    %3126 = vmatprep.subr.bf16.mxu0 0
    %3127 = vmatpush1.bf16.msra.mxu0 0
    %3128 = vmatprep.subr.bf16.mxu0 0
    %3129 = vmatpush1.bf16.msra.mxu0 0
    %3130 = vmatprep.subr.bf16.mxu0 0
    %3131 = vmatpush1.bf16.msra.mxu0 0
    %3132 = vmatprep.subr.bf16.mxu0 0
    %3133 = vmatpush1.bf16.msra.mxu0 0
    %3134 = vmatprep.subr.bf16.mxu0 0
    %3135 = vmatpush1.bf16.msra.mxu0 0
    %3136 = vmatprep.subr.bf16.mxu0 0
    %3137 = vmatpush1.bf16.msra.mxu0 0
    %3138 = vmatprep.subr.bf16.mxu0 0
    %3139 = vmatpush1.bf16.msra.mxu0 0
    %3140 = vmatprep.subr.bf16.mxu0 0
    %3141 = vmatpush1.bf16.msra.mxu0 0
    %3142 = vmatprep.subr.bf16.mxu0 0
    %3143 = vmatpush1.bf16.msra.mxu0 0
    %3144 = vmatprep.subr.bf16.mxu0 0
    %3145 = vmatpush1.bf16.msra.mxu0 0
    %3146 = vmatprep.subr.bf16.mxu0 0
    %3147 = vmatpush1.bf16.msra.mxu0 0
    %3148 = vmatprep.mubr.bf16.mxu0 0
    %3149 = vmatmul.mubr.bf16.gmra.mrb[0].mxu0 %v2918
    %v3150 = vpop.f32.mrb[0].mxu0
    %v3151 = vadd.f32 0.0, %v3150
    %v3152 = vpop.f32.mrb[0].mxu0
    %v3153 = vadd.f32 0.0, %v3152
    %v3154 = vpop.f32.mrb[0].mxu0
    %v3155 = vpop.f32.mrb[0].mxu0
    %3156 = vdwg.mxu0
    %v3157 = vmax.f32 %v2971, %v3110
    %v3158 = vmax.f32 %v2973, %v3112
    %v3159 = vmax.f32 %v3012, %v3151
    %v3160 = vmax.f32 %v3014, %v3153
    %s3161 = scalar_lea.vmem [#allocation22], 128
    %v3162 = vld [vmem:[%s3161] sm:$0xff]
    %v3163 = vld [vmem:[%s3161 + $0x8] sm:$0xff]
    %v3164 = vld [vmem:[%s3161 + $0x10] sm:$0xff]
    %v3165 = vld [vmem:[%s3161 + $0x18] sm:$0xff]
    %v3166 = vld [vmem:[%s3161 + $0x20] sm:$0xff]
    %v3167 = vld [vmem:[%s3161 + $0x28] sm:$0xff]
    %v3168 = vld [vmem:[%s3161 + $0x30] sm:$0x11]
    %v3169 = vld [vmem:[%s3161 + $0x38] sm:$0x11]
    %v3178 = vunpack.c.l.b16 %v3162
    %v3179 = vunpack.c.h.b16 %v3162
    %v3180 = vunpack.c.l.b16 %v3163
    %v3181 = vunpack.c.h.b16 %v3163
    %v3182 = vunpack.c.l.b16 %v3164
    %v3183 = vunpack.c.h.b16 %v3164
    %v3184 = vunpack.c.l.b16 %v3165
    %v3185 = vunpack.c.h.b16 %v3165
    %v3186 = vunpack.c.l.b16 %v3166
    %v3187 = vunpack.c.h.b16 %v3166
    %v3188 = vunpack.c.l.b16 %v3167
    %v3189 = vunpack.c.h.b16 %v3167
    %v3190 = vunpack.c.l.b16 %v3168
    %v3191 = vunpack.c.h.b16 %v3168
    %v3192 = vunpack.c.l.b16 %v3169
    %v3193 = vunpack.c.h.b16 %v3169
    %v3194 = vpack.c.b16 %v3182, %v3178
    %v3195 = vpack.c.b16 %v3183, %v3179
    %v3196 = vpack.c.b16 %v3184, %v3180
    %v3197 = vpack.c.b16 %v3185, %v3181
    %v3198 = vpack.c.b16 %v3190, %v3186
    %v3199 = vpack.c.b16 %v3191, %v3187
    %v3200 = vpack.c.b16 %v3192, %v3188
    %v3201 = vpack.c.b16 %v3193, %v3189
    %v3207 = vand.u32 %v3198, %v2923
    %v3210 = vand.u32 %v3199, %v2923
    %v3213 = vand.u32 %v3200, %v2923
    %v3216 = vand.u32 %v3201, %v2923
    %3218 = vmatprep.subr.bf16.mxu0 %v3195
    %3219 = vmatpush1.bf16.msra.mxu0 %v3194
    %3220 = vmatprep.subr.bf16.mxu0 %v3210
    %3221 = vmatpush1.bf16.msra.mxu0 %v3207
    %3222 = vmatprep.subr.bf16.mxu0 0
    %3223 = vmatpush1.bf16.msra.mxu0 0
    %3224 = vmatprep.subr.bf16.mxu0 0
    %3225 = vmatpush1.bf16.msra.mxu0 0
    %3226 = vmatprep.subr.bf16.mxu0 0
    %3227 = vmatpush1.bf16.msra.mxu0 0
    %3228 = vmatprep.subr.bf16.mxu0 0
    %3229 = vmatpush1.bf16.msra.mxu0 0
    %3230 = vmatprep.subr.bf16.mxu0 0
    %3231 = vmatpush1.bf16.msra.mxu0 0
    %3232 = vmatprep.subr.bf16.mxu0 0
    %3233 = vmatpush1.bf16.msra.mxu0 0
    %3234 = vmatprep.subr.bf16.mxu0 0
    %3235 = vmatpush1.bf16.msra.mxu0 0
    %3236 = vmatprep.subr.bf16.mxu0 0
    %3237 = vmatpush1.bf16.msra.mxu0 0
    %3238 = vmatprep.subr.bf16.mxu0 0
    %3239 = vmatpush1.bf16.msra.mxu0 0
    %3240 = vmatprep.subr.bf16.mxu0 0
    %3241 = vmatpush1.bf16.msra.mxu0 0
    %3242 = vmatprep.subr.bf16.mxu0 0
    %3243 = vmatpush1.bf16.msra.mxu0 0
    %3244 = vmatprep.subr.bf16.mxu0 0
    %3245 = vmatpush1.bf16.msra.mxu0 0
    %3246 = vmatprep.subr.bf16.mxu0 0
    %3247 = vmatpush1.bf16.msra.mxu0 0
    %3248 = vmatprep.subr.bf16.mxu0 0
    %3249 = vmatpush1.bf16.msra.mxu0 0
    %3250 = vmatprep.mubr.bf16.mxu0 0
    %3251 = vmatmul.mubr.bf16.gmra.mrb[0].mxu0 %v2918
    %v3252 = vpop.f32.mrb[0].mxu0
    %v3253 = vadd.f32 0.0, %v3252
    %v3254 = vpop.f32.mrb[0].mxu0
    %v3255 = vadd.f32 0.0, %v3254
    %v3256 = vpop.f32.mrb[0].mxu0
    %v3257 = vpop.f32.mrb[0].mxu0
    %3258 = vdwg.mxu0
    %3259 = vmatprep.subr.bf16.mxu0 %v3197
    %3260 = vmatpush1.bf16.msra.mxu0 %v3196
    %3261 = vmatprep.subr.bf16.mxu0 %v3216
    %3262 = vmatpush1.bf16.msra.mxu0 %v3213
    %3263 = vmatprep.subr.bf16.mxu0 0
    %3264 = vmatpush1.bf16.msra.mxu0 0
    %3265 = vmatprep.subr.bf16.mxu0 0
    %3266 = vmatpush1.bf16.msra.mxu0 0
    %3267 = vmatprep.subr.bf16.mxu0 0
    %3268 = vmatpush1.bf16.msra.mxu0 0
    %3269 = vmatprep.subr.bf16.mxu0 0
    %3270 = vmatpush1.bf16.msra.mxu0 0
    %3271 = vmatprep.subr.bf16.mxu0 0
    %3272 = vmatpush1.bf16.msra.mxu0 0
    %3273 = vmatprep.subr.bf16.mxu0 0
    %3274 = vmatpush1.bf16.msra.mxu0 0
    %3275 = vmatprep.subr.bf16.mxu0 0
    %3276 = vmatpush1.bf16.msra.mxu0 0
    %3277 = vmatprep.subr.bf16.mxu0 0
    %3278 = vmatpush1.bf16.msra.mxu0 0
    %3279 = vmatprep.subr.bf16.mxu0 0
    %3280 = vmatpush1.bf16.msra.mxu0 0
    %3281 = vmatprep.subr.bf16.mxu0 0
    %3282 = vmatpush1.bf16.msra.mxu0 0
    %3283 = vmatprep.subr.bf16.mxu0 0
    %3284 = vmatpush1.bf16.msra.mxu0 0
    %3285 = vmatprep.subr.bf16.mxu0 0
    %3286 = vmatpush1.bf16.msra.mxu0 0
    %3287 = vmatprep.subr.bf16.mxu0 0
    %3288 = vmatpush1.bf16.msra.mxu0 0
    %3289 = vmatprep.subr.bf16.mxu0 0
    %3290 = vmatpush1.bf16.msra.mxu0 0
    %3291 = vmatprep.mubr.bf16.mxu0 0
    %3292 = vmatmul.mubr.bf16.gmra.mrb[0].mxu0 %v2918
    %v3293 = vpop.f32.mrb[0].mxu0
    %v3294 = vadd.f32 0.0, %v3293
    %v3295 = vpop.f32.mrb[0].mxu0
    %v3296 = vadd.f32 0.0, %v3295
    %v3297 = vpop.f32.mrb[0].mxu0
    %v3298 = vpop.f32.mrb[0].mxu0
    %3299 = vdwg.mxu0
    %v3300 = vmax.f32 %v3157, %v3253
    %v3301 = vmax.f32 %v3158, %v3255
    %v3302 = vmax.f32 %v3159, %v3294
    %v3303 = vmax.f32 %v3160, %v3296
    %s3304 = scalar_lea.vmem [#allocation22], 192
    %v3305 = vld [vmem:[%s3304] sm:$0xff]
    %v3306 = vld [vmem:[%s3304 + $0x8] sm:$0xff]
    %v3307 = vld [vmem:[%s3304 + $0x10] sm:$0xff]
    %v3308 = vld [vmem:[%s3304 + $0x18] sm:$0xff]
    %v3309 = vld [vmem:[%s3304 + $0x20] sm:$0xff]
    %v3310 = vld [vmem:[%s3304 + $0x28] sm:$0xff]
    %v3311 = vld [vmem:[%s3304 + $0x30] sm:$0x11]
    %v3312 = vld [vmem:[%s3304 + $0x38] sm:$0x11]
    %v3321 = vunpack.c.l.b16 %v3305
    %v3322 = vunpack.c.h.b16 %v3305
    %v3323 = vunpack.c.l.b16 %v3306
    %v3324 = vunpack.c.h.b16 %v3306
    %v3325 = vunpack.c.l.b16 %v3307
    %v3326 = vunpack.c.h.b16 %v3307
    %v3327 = vunpack.c.l.b16 %v3308
    %v3328 = vunpack.c.h.b16 %v3308
    %v3329 = vunpack.c.l.b16 %v3309
    %v3330 = vunpack.c.h.b16 %v3309
    %v3331 = vunpack.c.l.b16 %v3310
    %v3332 = vunpack.c.h.b16 %v3310
    %v3333 = vunpack.c.l.b16 %v3311
    %v3334 = vunpack.c.h.b16 %v3311
    %v3335 = vunpack.c.l.b16 %v3312
    %v3336 = vunpack.c.h.b16 %v3312
    %v3337 = vpack.c.b16 %v3325, %v3321
    %v3338 = vpack.c.b16 %v3326, %v3322
    %v3339 = vpack.c.b16 %v3327, %v3323
    %v3340 = vpack.c.b16 %v3328, %v3324
    %v3341 = vpack.c.b16 %v3333, %v3329
    %v3342 = vpack.c.b16 %v3334, %v3330
    %v3343 = vpack.c.b16 %v3335, %v3331
    %v3344 = vpack.c.b16 %v3336, %v3332
    %v3350 = vand.u32 %v3341, %v2923
    %v3353 = vand.u32 %v3342, %v2923
    %v3356 = vand.u32 %v3343, %v2923
    %v3359 = vand.u32 %v3344, %v2923
    %3361 = vmatprep.subr.bf16.mxu0 %v3338
    %3362 = vmatpush1.bf16.msra.mxu0 %v3337
    %3363 = vmatprep.subr.bf16.mxu0 %v3353
    %3364 = vmatpush1.bf16.msra.mxu0 %v3350
    %3365 = vmatprep.subr.bf16.mxu0 0
    %3366 = vmatpush1.bf16.msra.mxu0 0
    %3367 = vmatprep.subr.bf16.mxu0 0
    %3368 = vmatpush1.bf16.msra.mxu0 0
    %3369 = vmatprep.subr.bf16.mxu0 0
    %3370 = vmatpush1.bf16.msra.mxu0 0
    %3371 = vmatprep.subr.bf16.mxu0 0
    %3372 = vmatpush1.bf16.msra.mxu0 0
    %3373 = vmatprep.subr.bf16.mxu0 0
    %3374 = vmatpush1.bf16.msra.mxu0 0
    %3375 = vmatprep.subr.bf16.mxu0 0
    %3376 = vmatpush1.bf16.msra.mxu0 0
    %3377 = vmatprep.subr.bf16.mxu0 0
    %3378 = vmatpush1.bf16.msra.mxu0 0
    %3379 = vmatprep.subr.bf16.mxu0 0
    %3380 = vmatpush1.bf16.msra.mxu0 0
    %3381 = vmatprep.subr.bf16.mxu0 0
    %3382 = vmatpush1.bf16.msra.mxu0 0
    %3383 = vmatprep.subr.bf16.mxu0 0
    %3384 = vmatpush1.bf16.msra.mxu0 0
    %3385 = vmatprep.subr.bf16.mxu0 0
    %3386 = vmatpush1.bf16.msra.mxu0 0
    %3387 = vmatprep.subr.bf16.mxu0 0
    %3388 = vmatpush1.bf16.msra.mxu0 0
    %3389 = vmatprep.subr.bf16.mxu0 0
    %3390 = vmatpush1.bf16.msra.mxu0 0
    %3391 = vmatprep.subr.bf16.mxu0 0
    %3392 = vmatpush1.bf16.msra.mxu0 0
    %3393 = vmatprep.mubr.bf16.mxu0 0
    %3394 = vmatmul.mubr.bf16.gmra.mrb[0].mxu0 %v2918
    %v3395 = vpop.f32.mrb[0].mxu0
    %v3396 = vadd.f32 0.0, %v3395
    %v3397 = vpop.f32.mrb[0].mxu0
    %v3398 = vadd.f32 0.0, %v3397
    %v3399 = vpop.f32.mrb[0].mxu0
    %v3400 = vpop.f32.mrb[0].mxu0
    %3401 = vdwg.mxu0
    %3402 = vmatprep.subr.bf16.mxu0 %v3340
    %3403 = vmatpush1.bf16.msra.mxu0 %v3339
    %3404 = vmatprep.subr.bf16.mxu0 %v3359
    %3405 = vmatpush1.bf16.msra.mxu0 %v3356
    %3406 = vmatprep.subr.bf16.mxu0 0
    %3407 = vmatpush1.bf16.msra.mxu0 0
    %3408 = vmatprep.subr.bf16.mxu0 0
    %3409 = vmatpush1.bf16.msra.mxu0 0
    %3410 = vmatprep.subr.bf16.mxu0 0
    %3411 = vmatpush1.bf16.msra.mxu0 0
    %3412 = vmatprep.subr.bf16.mxu0 0
    %3413 = vmatpush1.bf16.msra.mxu0 0
    %3414 = vmatprep.subr.bf16.mxu0 0
    %3415 = vmatpush1.bf16.msra.mxu0 0
    %3416 = vmatprep.subr.bf16.mxu0 0
    %3417 = vmatpush1.bf16.msra.mxu0 0
    %3418 = vmatprep.subr.bf16.mxu0 0
    %3419 = vmatpush1.bf16.msra.mxu0 0
    %3420 = vmatprep.subr.bf16.mxu0 0
    %3421 = vmatpush1.bf16.msra.mxu0 0
    %3422 = vmatprep.subr.bf16.mxu0 0
    %3423 = vmatpush1.bf16.msra.mxu0 0
    %3424 = vmatprep.subr.bf16.mxu0 0
    %3425 = vmatpush1.bf16.msra.mxu0 0
    %3426 = vmatprep.subr.bf16.mxu0 0
    %3427 = vmatpush1.bf16.msra.mxu0 0
    %3428 = vmatprep.subr.bf16.mxu0 0
    %3429 = vmatpush1.bf16.msra.mxu0 0
    %3430 = vmatprep.subr.bf16.mxu0 0
    %3431 = vmatpush1.bf16.msra.mxu0 0
    %3432 = vmatprep.subr.bf16.mxu0 0
    %3433 = vmatpush1.bf16.msra.mxu0 0
    %3434 = vmatprep.mubr.bf16.mxu0 0
    %3435 = vmatmul.mubr.bf16.gmra.mrb[0].mxu0 %v2918
    %v3436 = vpop.f32.mrb[0].mxu0
    %v3437 = vadd.f32 0.0, %v3436
    %v3438 = vpop.f32.mrb[0].mxu0
    %v3439 = vadd.f32 0.0, %v3438
    %v3440 = vpop.f32.mrb[0].mxu0
    %v3441 = vpop.f32.mrb[0].mxu0
    %3442 = vdwg.mxu0
    %v3443 = vmax.f32 %v3300, %v3396
    %v3444 = vmax.f32 %v3301, %v3398
    %v3445 = vmax.f32 %v3302, %v3437
    %v3446 = vmax.f32 %v3303, %v3439
    %v3447 = vld [vmem:[%s1] sm:$0xff]
    %3449 = vset.pattern.permute.xlu0 0
    %3450 = vperm.xlu0 %3449, %v3447
    %v3451 = vpop.permute.xlu0 %3450
    %v3453 = vadd.f32 %v3443, %v3451
    %v3454 = vadd.f32 %v3444, %v3451
    %v3455 = vadd.f32 %v3445, %v3451
    %v3456 = vadd.f32 %v3446, %v3451
    %v3457 = vmax.f32 %v3453, 0.0
    %v3458 = vmax.f32 %v3454, 0.0
    %v3459 = vmax.f32 %v3455, 0.0
    %v3460 = vmax.f32 %v3456, 0.0
    %v3461 = vpack.c.bf16 %v3457, %v3457
    %v3462 = vpack.c.bf16 %v3458, %v3458
    %v3463 = vpack.c.bf16 %v3459, %v3459
    %v3464 = vpack.c.bf16 %v3460, %v3460
    %v3469 = vunpack.c.l.b16 %v3461
    %v3470 = vunpack.c.l.b16 %v3462
    %v3471 = vunpack.c.l.b16 %v3463
    %v3472 = vunpack.c.l.b16 %v3464
    %v3473 = vpack.c.b16 %v3470, %v3469
    %v3474 = vpack.c.b16 %v3472, %v3471
    %3477 = vst [vmem:[%s7] sm:$0xff] %v3473
    %vm3478 = vcmask 64516
    %vm3479 = vmor %vm3478, %vm2920
    %3480 = vst.msk [vmem:[%s7 + $0x8] sm:$0xff] %vm3479, %v3474
    // Predicated region
    $region26: #{lenet5_forward.7} parent=1 // pred_check
      _
    $region27: #{lenet5_forward.7} parent=1 // pred_check_branch
      %3482 = sbr.rel (0) target = $region29
    $region28: #{lenet5_forward.7} parent=1 // pred_region
      _
    $region29: #{lenet5_forward.7} parent=1 // pred_fallthru
      _
    // Predicated region
    $region30: #{lenet5_forward.7} parent=1 // pred_check
      _
    $region31: #{lenet5_forward.7} parent=1 // pred_check_branch
      %3484 = sbr.rel (0) target = $region33
    $region32: #{lenet5_forward.7} parent=1 // pred_region
      _
    $region33: #{lenet5_forward.7} parent=1 // pred_fallthru
      _

// kernel: lenet5_forward.6
$region0: #{lenet5_forward.6}
  #allocation0 [shape = 'u32[]', space=smem, size = 0x4, offset = 0x4, fixed_abs, tag = 'smem constant byte address 0x4 - core index']
  #allocation1 [shape = 'u32[144,128]{1,0:T(1,128)}', space=vmem, size = 0x12000, scoped, tag = 'internal scratch']
  #allocation2 [shape = 'u32[2048]{0}', space=vmem, size = 0x2000, scoped, tag = 'scoped memory for lenet5_forward.6']
  #allocation3 [shape = 'u32[2048]{0}', space=vmem, size = 0x2000, scoped, tag = 'scoped memory for lenet5_forward.6']
  #allocation4 [shape = 'u32[2048]{0}', space=vmem, size = 0x2000, scoped, tag = 'scoped memory for lenet5_forward.6']
  #allocation5 [shape = 'u32[2048]{0}', space=vmem, size = 0x2000, scoped, tag = 'scoped memory for lenet5_forward.6']
  #allocation6 [shape = 'u32[2048]{0}', space=vmem, size = 0x2000, scoped, tag = 'scoped memory for lenet5_forward.6']
  #allocation7 [shape = 'u32[2048]{0}', space=vmem, size = 0x2000, scoped, tag = 'scoped memory for lenet5_forward.6']
  #allocation8 [shape = 'u32[2048]{0}', space=vmem, size = 0x2000, scoped, tag = 'scoped memory for lenet5_forward.6']
  #allocation9 [shape = 'u32[2048]{0}', space=vmem, size = 0x2000, scoped, tag = 'scoped memory for lenet5_forward.6']
  #allocation10 [shape = 'u32[2048]{0}', space=vmem, size = 0x2000, scoped, tag = 'scoped memory for lenet5_forward.6']
  #allocation11 [shape = 'u32[2048]{0}', space=vmem, size = 0x2000, scoped, tag = 'scoped memory for lenet5_forward.6']
  #allocation12 [shape = 'u32[2048]{0}', space=vmem, size = 0x2000, scoped, tag = 'scoped memory for lenet5_forward.6']
  #allocation13 [shape = 'u32[2048]{0}', space=vmem, size = 0x2000, scoped, tag = 'scoped memory for lenet5_forward.6']
  #allocation14 [shape = 'u32[2048]{0}', space=vmem, size = 0x2000, scoped, tag = 'scoped memory for lenet5_forward.6']
  #allocation15 [shape = 'u32[2048]{0}', space=vmem, size = 0x2000, scoped, tag = 'scoped memory for lenet5_forward.6']
  #allocation16 [shape = 'u32[2048]{0}', space=vmem, size = 0x2000, scoped, tag = 'scoped memory for lenet5_forward.6']
  #allocation17 [shape = 'u32[2048]{0}', space=vmem, size = 0x2000, scoped, tag = 'scoped memory for lenet5_forward.6']
  #allocation18 [shape = 'u32[2048]{0}', space=vmem, size = 0x2000, scoped, tag = 'scoped memory for lenet5_forward.6']
  #allocation19 [shape = 'u32[2048]{0}', space=vmem, size = 0x2000, scoped, tag = 'scoped memory for lenet5_forward.6']
  #allocation20 [shape = 'u32[2048]{0}', space=vmem, size = 0x2000, scoped, tag = 'scoped memory for lenet5_forward.6']
  #allocation21 [shape = 'u32[2048]{0}', space=vmem, size = 0x2000, scoped, tag = 'scoped memory for lenet5_forward.6']
  %s0 = inlined_call_operand.vmem [shape: bf16[16,200], index: 0, kind: input, shape index: {}]
  %s1 = inlined_call_operand.vmem [shape: f32[16,1], index: 1, kind: input, shape index: {}]
  %s2 = inlined_call_operand.vmem [shape: bf16[1,200,50], index: 2, kind: input, shape index: {}]
  %s3 = inlined_call_operand.<no memory space> [shape: bf16[], index: 3, kind: input, shape index: {}]
  %s4 = inlined_call_operand.vmem [shape: bf16[1,200,50], index: 4, kind: input, shape index: {}]
  %s5 = inlined_call_operand.vmem [shape: bf16[1,200,50], index: 5, kind: input, shape index: {}]
  %s6 = inlined_call_operand.vmem [shape: bf16[1,200,50], index: 6, kind: input, shape index: {}]
  %s7 = inlined_call_operand.vmem [shape: bf16[16,50], index: 7, kind: output, shape index: {}]
  %s8 = sld [smem:[#allocation0]]
  $region34: #{lenet5_forward.6} parent=0
    _
  %s10 = ssub.s32 1, %s8
  %s11 = scalar_select 0, %s10, %s8
  %v12 = vstv %s3
  %v13 = vunpack.i.l.bf16 %v12
  %v15 = vunpack.i.h.bf16 %v12
  %v17 = vstv %s3
  %v18 = vunpack.i.l.bf16 %v17
  %v20 = vunpack.i.h.bf16 %v17
  %v22 = vstv %s3
  %v23 = vunpack.i.l.bf16 %v22
  %v25 = vunpack.i.h.bf16 %v22
  %v27 = vstv %s3
  %v28 = vunpack.i.l.bf16 %v27
  %v30 = vunpack.i.h.bf16 %v27
  $region1: #{lenet5_forward.6} parent=0
    #allocation22 [shape = 'u8[204800]{0}', space=vmem, size = 0x32000, dematerialized = true, scoped, tag = 'FusionAdapter Buffer %fusion.1 = bf16[4,200,50]{2,1,0:T(8,128)(2,1)} fusion(%param_2.103, %param_3.98, %param_4.2, %param_5.3, %param_6.2), kind=kLoop, calls=%fused_computation.101.clone, metadata={op_name="jit(lenet5_forward)/concatenate" stack_frame_id=21}']
    // Predicated region
    $region2: #{lenet5_forward.6} parent=1 // pred_check
      _
    $region3: #{lenet5_forward.6} parent=1 // pred_check_branch
      %33 = sbr.rel (0) target = $region5
    $region4: #{lenet5_forward.6} parent=1 // pred_region
      %s35 = ssub.s32 1, 0
      %s36 = smul.u32 64, %s35
      %s37 = smul.u32 %s36, 25
      %p38 = scmp.lt.s32.totalorder 0, 0
      %s39 = scalar_select %p38, 0, 0
      %s40 = smul.addr %s39, 25
      %s41 = smul.addr %s40, 4
      %s42 = scalar_lea.vmem %s2, %s41
      %s44 = ssub.s32 1, 0
      %s45 = smul.u32 64, %s44
      %s46 = smul.u32 %s45, 25
    $region5: #{lenet5_forward.6} parent=1 // pred_fallthru
      _
    // Predicated region
    $region6: #{lenet5_forward.6} parent=1 // pred_check
      _
    $region7: #{lenet5_forward.6} parent=1 // pred_check_branch
      %48 = sbr.rel (0) target = $region9
    $region8: #{lenet5_forward.6} parent=1 // pred_region
      %s50 = ssub.s32 1, 0
      %s51 = smul.u32 64, %s50
      %s52 = smul.u32 %s51, 25
      %p53 = scmp.lt.s32.totalorder 0, 0
      %s54 = scalar_select %p53, 0, 0
      %s55 = smul.addr %s54, 25
      %s56 = smul.addr %s55, 4
      %s57 = scalar_lea.vmem %s4, %s56
      %s59 = ssub.s32 1, 0
      %s60 = smul.u32 64, %s59
      %s61 = smul.u32 %s60, 25
    $region9: #{lenet5_forward.6} parent=1 // pred_fallthru
      _
    // Predicated region
    $region10: #{lenet5_forward.6} parent=1 // pred_check
      _
    $region11: #{lenet5_forward.6} parent=1 // pred_check_branch
      %63 = sbr.rel (0) target = $region13
    $region12: #{lenet5_forward.6} parent=1 // pred_region
      %s65 = ssub.s32 1, 0
      %s66 = smul.u32 64, %s65
      %s67 = smul.u32 %s66, 25
      %p68 = scmp.lt.s32.totalorder 0, 0
      %s69 = scalar_select %p68, 0, 0
      %s70 = smul.addr %s69, 25
      %s71 = smul.addr %s70, 4
      %s72 = scalar_lea.vmem %s5, %s71
      %s74 = ssub.s32 1, 0
      %s75 = smul.u32 64, %s74
      %s76 = smul.u32 %s75, 25
    $region13: #{lenet5_forward.6} parent=1 // pred_fallthru
      _
    // Predicated region
    $region14: #{lenet5_forward.6} parent=1 // pred_check
      _
    $region15: #{lenet5_forward.6} parent=1 // pred_check_branch
      %78 = sbr.rel (0) target = $region17
    $region16: #{lenet5_forward.6} parent=1 // pred_region
      _
    $region17: #{lenet5_forward.6} parent=1 // pred_fallthru
      _
    // Predicated region
    $region18: #{lenet5_forward.6} parent=1 // pred_check
      _
    $region19: #{lenet5_forward.6} parent=1 // pred_check_branch
      %80 = sbr.rel (0) target = $region21
    $region20: #{lenet5_forward.6} parent=1 // pred_region
      _
    $region21: #{lenet5_forward.6} parent=1 // pred_fallthru
      _
    // Predicated region
    $region22: #{lenet5_forward.6} parent=1 // pred_check
      _
    $region23: #{lenet5_forward.6} parent=1 // pred_check_branch
      %82 = sbr.rel (0) target = $region25
    $region24: #{lenet5_forward.6} parent=1 // pred_region
      _
    $region25: #{lenet5_forward.6} parent=1 // pred_fallthru
      _
    %s84 = ssub.s32 1, 0
    %s85 = smul.u32 64, %s84
    %s86 = smul.u32 %s85, 25
    %p87 = scmp.lt.s32.totalorder 0, 0
    %s88 = scalar_select %p87, 0, 0
    %s89 = smul.addr %s88, 25
    %s90 = smul.addr %s89, 4
    %s91 = scalar_lea.vmem %s2, %s90
    %s93 = ssub.s32 1, 0
    %s94 = smul.u32 64, %s93
    %s95 = smul.u32 %s94, 25
    %p96 = scmp.lt.s32.totalorder 0, 0
    %s97 = scalar_select %p96, 0, 0
    %s98 = smul.addr %s97, 25
    %s99 = smul.addr %s98, 4
    %s100 = scalar_lea.vmem %s4, %s99
    %s102 = ssub.s32 1, 0
    %s103 = smul.u32 64, %s102
    %s104 = smul.u32 %s103, 25
    %p105 = scmp.lt.s32.totalorder 0, 0
    %s106 = scalar_select %p105, 0, 0
    %s107 = smul.addr %s106, 25
    %s108 = smul.addr %s107, 4
    %s109 = scalar_lea.vmem %s5, %s108
    %s111 = ssub.s32 1, 0
    %s112 = smul.u32 64, %s111
    %s113 = smul.u32 %s112, 25
    %p114 = scmp.lt.s32.totalorder 0, 0
    %s115 = scalar_select %p114, 0, 0
    %s116 = smul.addr %s115, 25
    %s117 = smul.addr %s116, 4
    %s118 = scalar_lea.vmem %s2, %s117
    %s120 = ssub.s32 1, 0
    %s121 = smul.u32 64, %s120
    %s122 = smul.u32 %s121, 25
    %s124 = ssub.s32 1, 0
    %s125 = smul.u32 64, %s124
    %s126 = smul.u32 %s125, 25
    %p127 = scmp.lt.s32.totalorder 0, 0
    %s128 = scalar_select %p127, 0, 0
    %s129 = smul.addr %s128, 25
    %s130 = smul.addr %s129, 4
    %s131 = scalar_lea.vmem %s4, %s130
    %s133 = ssub.s32 1, 0
    %s134 = smul.u32 64, %s133
    %s135 = smul.u32 %s134, 25
    %s137 = ssub.s32 1, 0
    %s138 = smul.u32 64, %s137
    %s139 = smul.u32 %s138, 25
    %p140 = scmp.lt.s32.totalorder 0, 0
    %s141 = scalar_select %p140, 0, 0
    %s142 = smul.addr %s141, 25
    %s143 = smul.addr %s142, 4
    %s144 = scalar_lea.vmem %s5, %s143
    %s146 = ssub.s32 1, 0
    %s147 = smul.u32 64, %s146
    %s148 = smul.u32 %s147, 25
    %s149 = ssub.s32 0, 0
    %p150 = scmp.lt.s32.totalorder %s149, 0
    %s151 = scalar_select %p150, 0, 255
    %s152 = sshrl.u32 %s151, 1
    %s153 = sor.u32 %s151, %s152
    %s154 = sand.u32 %s153, 85
    %s155 = sshrl.u32 %s154, 1
    %s156 = sor.u32 %s154, %s155
    %s157 = sand.u32 51, %s156
    %s158 = sshrl.u32 %s157, 2
    %s159 = sor.u32 %s157, %s158
    %s160 = sand.u32 15, %s159
    %v161 = vld [vmem:[%s118] sm:%s160]
    %v162 = vunpack.c.l.bf16 %v161
    %v163 = vunpack.c.h.bf16 %v161
    %s164 = ssub.s32 0, 0
    %p165 = scmp.lt.s32.totalorder %s164, 0
    %s166 = scalar_select %p165, 0, 255
    %s167 = sshrl.u32 %s166, 1
    %s168 = sor.u32 %s166, %s167
    %s169 = sand.u32 %s168, 85
    %s170 = sshrl.u32 %s169, 1
    %s171 = sor.u32 %s169, %s170
    %s172 = sand.u32 51, %s171
    %s173 = sshrl.u32 %s172, 2
    %s174 = sor.u32 %s172, %s173
    %s175 = sand.u32 15, %s174
    %v176 = vld [vmem:[%s131] sm:%s175]
    %v177 = vunpack.c.l.bf16 %v176
    %v178 = vunpack.c.h.bf16 %v176
    %s179 = ssub.s32 0, 0
    %p180 = scmp.lt.s32.totalorder %s179, 0
    %s181 = scalar_select %p180, 0, 255
    %s182 = sshrl.u32 %s181, 1
    %s183 = sor.u32 %s181, %s182
    %s184 = sand.u32 %s183, 85
    %s185 = sshrl.u32 %s184, 1
    %s186 = sor.u32 %s184, %s185
    %s187 = sand.u32 51, %s186
    %s188 = sshrl.u32 %s187, 2
    %s189 = sor.u32 %s187, %s188
    %s190 = sand.u32 15, %s189
    %v191 = vld [vmem:[%s144] sm:%s190]
    %v192 = vunpack.c.l.bf16 %v191
    %v193 = vunpack.c.h.bf16 %v191
    %s195 = sor.u32 255, 127
    %s196 = sand.u32 %s195, 85
    %s197 = sshrl.u32 %s196, 1
    %s198 = sor.u32 %s196, %s197
    %s199 = sand.u32 51, %s198
    %s200 = sshrl.u32 %s199, 2
    %s201 = sor.u32 %s199, %s200
    %s202 = sand.u32 15, %s201
    %v203 = vld [vmem:[%s6] sm:%s202]
    %v204 = vunpack.c.l.bf16 %v203
    %v205 = vunpack.c.h.bf16 %v203
    %v206 = vlaneseq
    %v207 = vand.u32 %v206, 127
    %vm209 = vcmp.lt.s32.totalorder %v207, 50
    %v210 = vsel %vm209, %v204, %v28
    %s211 = scalar_lea.vmem %s118, 4
    %s212 = ssub.s32 0, 0
    %p213 = scmp.lt.s32.totalorder %s212, 0
    %s214 = scalar_select %p213, 0, 255
    %s215 = sshrl.u32 %s214, 1
    %s216 = sor.u32 %s214, %s215
    %s217 = sand.u32 %s216, 85
    %s218 = sshrl.u32 %s217, 1
    %s219 = sor.u32 %s217, %s218
    %s220 = sand.u32 51, %s219
    %s221 = sshrl.u32 %s220, 2
    %s222 = sor.u32 %s220, %s221
    %s223 = sand.u32 15, %s222
    %v224 = vld [vmem:[%s211] sm:%s223]
    %v225 = vunpack.c.l.bf16 %v224
    %v226 = vunpack.c.h.bf16 %v224
    %s227 = scalar_lea.vmem %s131, 4
    %s228 = ssub.s32 0, 0
    %p229 = scmp.lt.s32.totalorder %s228, 0
    %s230 = scalar_select %p229, 0, 255
    %s231 = sshrl.u32 %s230, 1
    %s232 = sor.u32 %s230, %s231
    %s233 = sand.u32 %s232, 85
    %s234 = sshrl.u32 %s233, 1
    %s235 = sor.u32 %s233, %s234
    %s236 = sand.u32 51, %s235
    %s237 = sshrl.u32 %s236, 2
    %s238 = sor.u32 %s236, %s237
    %s239 = sand.u32 15, %s238
    %v240 = vld [vmem:[%s227] sm:%s239]
    %v241 = vunpack.c.l.bf16 %v240
    %v242 = vunpack.c.h.bf16 %v240
    %s243 = scalar_lea.vmem %s144, 4
    %s244 = ssub.s32 0, 0
    %p245 = scmp.lt.s32.totalorder %s244, 0
    %s246 = scalar_select %p245, 0, 255
    %s247 = sshrl.u32 %s246, 1
    %s248 = sor.u32 %s246, %s247
    %s249 = sand.u32 %s248, 85
    %s250 = sshrl.u32 %s249, 1
    %s251 = sor.u32 %s249, %s250
    %s252 = sand.u32 51, %s251
    %s253 = sshrl.u32 %s252, 2
    %s254 = sor.u32 %s252, %s253
    %s255 = sand.u32 15, %s254
    %v256 = vld [vmem:[%s243] sm:%s255]
    %v257 = vunpack.c.l.bf16 %v256
    %v258 = vunpack.c.h.bf16 %v256
    %s259 = scalar_lea.vmem %s6, 4
    %s261 = sor.u32 255, 127
    %s262 = sand.u32 %s261, 85
    %s263 = sshrl.u32 %s262, 1
    %s264 = sor.u32 %s262, %s263
    %s265 = sand.u32 51, %s264
    %s266 = sshrl.u32 %s265, 2
    %s267 = sor.u32 %s265, %s266
    %s268 = sand.u32 15, %s267
    %v269 = vld [vmem:[%s259] sm:%s268]
    %v270 = vunpack.c.l.bf16 %v269
    %v271 = vunpack.c.h.bf16 %v269
    %v272 = vlaneseq
    %v273 = vand.u32 %v272, 127
    %vm275 = vcmp.lt.s32.totalorder %v273, 50
    %v276 = vsel %vm275, %v270, %v28
    %v277 = vpack.c.bf16 %v13, %v13
    %v279 = vpack.c.bf16 %v18, %v18
    %v281 = vpack.c.bf16 %v23, %v23
    %v283 = vpack.c.bf16 %v276, %v210
    %285 = xla_tuple %v283, %v281
    %286 = xla_tuple %285
    %v287 = vmax.bf16 %v283, %v281
    %288 = xla_tuple %v287
    %289 = xla_tuple %v287, %v279
    %290 = xla_tuple %289
    %v291 = vmax.bf16 %v287, %v279
    %292 = xla_tuple %v291
    %293 = xla_tuple %v291, %v277
    %294 = xla_tuple %293
    %v295 = vmax.bf16 %v291, %v277
    %296 = xla_tuple %v295
    %v297 = vunpack.c.l.bf16 %v295
    %v298 = vunpack.c.h.bf16 %v295
    %v299 = vpack.c.bf16 0.0, %v297
    %301 = vst [vmem:[#allocation22] sm:$0xf] %v299
    %s302 = scalar_lea.vmem [#allocation22], 4
    %v303 = vpack.c.bf16 0.0, %v298
    %305 = vst [vmem:[%s302] sm:$0xf] %v303
    %s306 = scalar_lea.vmem %s118, 8
    %s307 = ssub.s32 0, 0
    %p308 = scmp.lt.s32.totalorder %s307, 0
    %s309 = scalar_select %p308, 0, 255
    %s310 = sshrl.u32 %s309, 1
    %s311 = sor.u32 %s309, %s310
    %s312 = sand.u32 %s311, 85
    %s313 = sshrl.u32 %s312, 1
    %s314 = sor.u32 %s312, %s313
    %s315 = sand.u32 51, %s314
    %s316 = sshrl.u32 %s315, 2
    %s317 = sor.u32 %s315, %s316
    %s318 = sand.u32 15, %s317
    %v319 = vld [vmem:[%s306] sm:%s318]
    %v320 = vunpack.c.l.bf16 %v319
    %v321 = vunpack.c.h.bf16 %v319
    %s322 = scalar_lea.vmem %s131, 8
    %s323 = ssub.s32 0, 0
    %p324 = scmp.lt.s32.totalorder %s323, 0
    %s325 = scalar_select %p324, 0, 255
    %s326 = sshrl.u32 %s325, 1
    %s327 = sor.u32 %s325, %s326
    %s328 = sand.u32 %s327, 85
    %s329 = sshrl.u32 %s328, 1
    %s330 = sor.u32 %s328, %s329
    %s331 = sand.u32 51, %s330
    %s332 = sshrl.u32 %s331, 2
    %s333 = sor.u32 %s331, %s332
    %s334 = sand.u32 15, %s333
    %v335 = vld [vmem:[%s322] sm:%s334]
    %v336 = vunpack.c.l.bf16 %v335
    %v337 = vunpack.c.h.bf16 %v335
    %s338 = scalar_lea.vmem %s144, 8
    %s339 = ssub.s32 0, 0
    %p340 = scmp.lt.s32.totalorder %s339, 0
    %s341 = scalar_select %p340, 0, 255
    %s342 = sshrl.u32 %s341, 1
    %s343 = sor.u32 %s341, %s342
    %s344 = sand.u32 %s343, 85
    %s345 = sshrl.u32 %s344, 1
    %s346 = sor.u32 %s344, %s345
    %s347 = sand.u32 51, %s346
    %s348 = sshrl.u32 %s347, 2
    %s349 = sor.u32 %s347, %s348
    %s350 = sand.u32 15, %s349
    %v351 = vld [vmem:[%s338] sm:%s350]
    %v352 = vunpack.c.l.bf16 %v351
    %v353 = vunpack.c.h.bf16 %v351
    %s354 = scalar_lea.vmem %s6, 8
    %s356 = sor.u32 255, 127
    %s357 = sand.u32 %s356, 85
    %s358 = sshrl.u32 %s357, 1
    %s359 = sor.u32 %s357, %s358
    %s360 = sand.u32 51, %s359
    %s361 = sshrl.u32 %s360, 2
    %s362 = sor.u32 %s360, %s361
    %s363 = sand.u32 15, %s362
    %v364 = vld [vmem:[%s354] sm:%s363]
    %v365 = vunpack.c.l.bf16 %v364
    %v366 = vunpack.c.h.bf16 %v364
    %v367 = vlaneseq
    %v368 = vand.u32 %v367, 127
    %vm370 = vcmp.lt.s32.totalorder %v368, 50
    %v371 = vsel %vm370, %v365, %v28
    %s372 = scalar_lea.vmem %s118, 12
    %s373 = ssub.s32 0, 0
    %p374 = scmp.lt.s32.totalorder %s373, 0
    %s375 = scalar_select %p374, 0, 255
    %s376 = sshrl.u32 %s375, 1
    %s377 = sor.u32 %s375, %s376
    %s378 = sand.u32 %s377, 85
    %s379 = sshrl.u32 %s378, 1
    %s380 = sor.u32 %s378, %s379
    %s381 = sand.u32 51, %s380
    %s382 = sshrl.u32 %s381, 2
    %s383 = sor.u32 %s381, %s382
    %s384 = sand.u32 15, %s383
    %v385 = vld [vmem:[%s372] sm:%s384]
    %v386 = vunpack.c.l.bf16 %v385
    %v387 = vunpack.c.h.bf16 %v385
    %s388 = scalar_lea.vmem %s131, 12
    %s389 = ssub.s32 0, 0
    %p390 = scmp.lt.s32.totalorder %s389, 0
    %s391 = scalar_select %p390, 0, 255
    %s392 = sshrl.u32 %s391, 1
    %s393 = sor.u32 %s391, %s392
    %s394 = sand.u32 %s393, 85
    %s395 = sshrl.u32 %s394, 1
    %s396 = sor.u32 %s394, %s395
    %s397 = sand.u32 51, %s396
    %s398 = sshrl.u32 %s397, 2
    %s399 = sor.u32 %s397, %s398
    %s400 = sand.u32 15, %s399
    %v401 = vld [vmem:[%s388] sm:%s400]
    %v402 = vunpack.c.l.bf16 %v401
    %v403 = vunpack.c.h.bf16 %v401
    %s404 = scalar_lea.vmem %s144, 12
    %s405 = ssub.s32 0, 0
    %p406 = scmp.lt.s32.totalorder %s405, 0
    %s407 = scalar_select %p406, 0, 255
    %s408 = sshrl.u32 %s407, 1
    %s409 = sor.u32 %s407, %s408
    %s410 = sand.u32 %s409, 85
    %s411 = sshrl.u32 %s410, 1
    %s412 = sor.u32 %s410, %s411
    %s413 = sand.u32 51, %s412
    %s414 = sshrl.u32 %s413, 2
    %s415 = sor.u32 %s413, %s414
    %s416 = sand.u32 15, %s415
    %v417 = vld [vmem:[%s404] sm:%s416]
    %v418 = vunpack.c.l.bf16 %v417
    %v419 = vunpack.c.h.bf16 %v417
    %s420 = scalar_lea.vmem %s6, 12
    %s422 = sor.u32 255, 127
    %s423 = sand.u32 %s422, 85
    %s424 = sshrl.u32 %s423, 1
    %s425 = sor.u32 %s423, %s424
    %s426 = sand.u32 51, %s425
    %s427 = sshrl.u32 %s426, 2
    %s428 = sor.u32 %s426, %s427
    %s429 = sand.u32 15, %s428
    %v430 = vld [vmem:[%s420] sm:%s429]
    %v431 = vunpack.c.l.bf16 %v430
    %v432 = vunpack.c.h.bf16 %v430
    %v433 = vlaneseq
    %v434 = vand.u32 %v433, 127
    %vm436 = vcmp.lt.s32.totalorder %v434, 50
    %v437 = vsel %vm436, %v431, %v28
    %v438 = vpack.c.bf16 %v13, %v13
    %v440 = vpack.c.bf16 %v18, %v18
    %v442 = vpack.c.bf16 %v23, %v23
    %v444 = vpack.c.bf16 %v437, %v371
    %446 = xla_tuple %v444, %v442
    %447 = xla_tuple %446
    %v448 = vmax.bf16 %v444, %v442
    %449 = xla_tuple %v448
    %450 = xla_tuple %v448, %v440
    %451 = xla_tuple %450
    %v452 = vmax.bf16 %v448, %v440
    %453 = xla_tuple %v452
    %454 = xla_tuple %v452, %v438
    %455 = xla_tuple %454
    %v456 = vmax.bf16 %v452, %v438
    %457 = xla_tuple %v456
    %v458 = vunpack.c.l.bf16 %v456
    %v459 = vunpack.c.h.bf16 %v456
    %s460 = scalar_lea.vmem [#allocation22], 8
    %v461 = vpack.c.bf16 0.0, %v458
    %463 = vst [vmem:[%s460] sm:$0xf] %v461
    %s464 = scalar_lea.vmem [#allocation22], 12
    %v465 = vpack.c.bf16 0.0, %v459
    %467 = vst [vmem:[%s464] sm:$0xf] %v465
    %s468 = scalar_lea.vmem %s118, 16
    %s469 = ssub.s32 0, 0
    %p470 = scmp.lt.s32.totalorder %s469, 0
    %s471 = scalar_select %p470, 0, 255
    %s472 = sshrl.u32 %s471, 1
    %s473 = sor.u32 %s471, %s472
    %s474 = sand.u32 %s473, 85
    %s475 = sshrl.u32 %s474, 1
    %s476 = sor.u32 %s474, %s475
    %s477 = sand.u32 51, %s476
    %s478 = sshrl.u32 %s477, 2
    %s479 = sor.u32 %s477, %s478
    %s480 = sand.u32 15, %s479
    %v481 = vld [vmem:[%s468] sm:%s480]
    %v482 = vunpack.c.l.bf16 %v481
    %v483 = vunpack.c.h.bf16 %v481
    %s484 = scalar_lea.vmem %s131, 16
    %s485 = ssub.s32 0, 0
    %p486 = scmp.lt.s32.totalorder %s485, 0
    %s487 = scalar_select %p486, 0, 255
    %s488 = sshrl.u32 %s487, 1
    %s489 = sor.u32 %s487, %s488
    %s490 = sand.u32 %s489, 85
    %s491 = sshrl.u32 %s490, 1
    %s492 = sor.u32 %s490, %s491
    %s493 = sand.u32 51, %s492
    %s494 = sshrl.u32 %s493, 2
    %s495 = sor.u32 %s493, %s494
    %s496 = sand.u32 15, %s495
    %v497 = vld [vmem:[%s484] sm:%s496]
    %v498 = vunpack.c.l.bf16 %v497
    %v499 = vunpack.c.h.bf16 %v497
    %s500 = scalar_lea.vmem %s144, 16
    %s501 = ssub.s32 0, 0
    %p502 = scmp.lt.s32.totalorder %s501, 0
    %s503 = scalar_select %p502, 0, 255
    %s504 = sshrl.u32 %s503, 1
    %s505 = sor.u32 %s503, %s504
    %s506 = sand.u32 %s505, 85
    %s507 = sshrl.u32 %s506, 1
    %s508 = sor.u32 %s506, %s507
    %s509 = sand.u32 51, %s508
    %s510 = sshrl.u32 %s509, 2
    %s511 = sor.u32 %s509, %s510
    %s512 = sand.u32 15, %s511
    %v513 = vld [vmem:[%s500] sm:%s512]
    %v514 = vunpack.c.l.bf16 %v513
    %v515 = vunpack.c.h.bf16 %v513
    %s516 = scalar_lea.vmem %s6, 16
    %s518 = sor.u32 255, 127
    %s519 = sand.u32 %s518, 85
    %s520 = sshrl.u32 %s519, 1
    %s521 = sor.u32 %s519, %s520
    %s522 = sand.u32 51, %s521
    %s523 = sshrl.u32 %s522, 2
    %s524 = sor.u32 %s522, %s523
    %s525 = sand.u32 15, %s524
    %v526 = vld [vmem:[%s516] sm:%s525]
    %v527 = vunpack.c.l.bf16 %v526
    %v528 = vunpack.c.h.bf16 %v526
    %v529 = vlaneseq
    %v530 = vand.u32 %v529, 127
    %vm532 = vcmp.lt.s32.totalorder %v530, 50
    %v533 = vsel %vm532, %v527, %v28
    %s534 = scalar_lea.vmem %s118, 20
    %s535 = ssub.s32 0, 0
    %p536 = scmp.lt.s32.totalorder %s535, 0
    %s537 = scalar_select %p536, 0, 255
    %s538 = sshrl.u32 %s537, 1
    %s539 = sor.u32 %s537, %s538
    %s540 = sand.u32 %s539, 85
    %s541 = sshrl.u32 %s540, 1
    %s542 = sor.u32 %s540, %s541
    %s543 = sand.u32 51, %s542
    %s544 = sshrl.u32 %s543, 2
    %s545 = sor.u32 %s543, %s544
    %s546 = sand.u32 15, %s545
    %v547 = vld [vmem:[%s534] sm:%s546]
    %v548 = vunpack.c.l.bf16 %v547
    %v549 = vunpack.c.h.bf16 %v547
    %s550 = scalar_lea.vmem %s131, 20
    %s551 = ssub.s32 0, 0
    %p552 = scmp.lt.s32.totalorder %s551, 0
    %s553 = scalar_select %p552, 0, 255
    %s554 = sshrl.u32 %s553, 1
    %s555 = sor.u32 %s553, %s554
    %s556 = sand.u32 %s555, 85
    %s557 = sshrl.u32 %s556, 1
    %s558 = sor.u32 %s556, %s557
    %s559 = sand.u32 51, %s558
    %s560 = sshrl.u32 %s559, 2
    %s561 = sor.u32 %s559, %s560
    %s562 = sand.u32 15, %s561
    %v563 = vld [vmem:[%s550] sm:%s562]
    %v564 = vunpack.c.l.bf16 %v563
    %v565 = vunpack.c.h.bf16 %v563
    %s566 = scalar_lea.vmem %s144, 20
    %s567 = ssub.s32 0, 0
    %p568 = scmp.lt.s32.totalorder %s567, 0
    %s569 = scalar_select %p568, 0, 255
    %s570 = sshrl.u32 %s569, 1
    %s571 = sor.u32 %s569, %s570
    %s572 = sand.u32 %s571, 85
    %s573 = sshrl.u32 %s572, 1
    %s574 = sor.u32 %s572, %s573
    %s575 = sand.u32 51, %s574
    %s576 = sshrl.u32 %s575, 2
    %s577 = sor.u32 %s575, %s576
    %s578 = sand.u32 15, %s577
    %v579 = vld [vmem:[%s566] sm:%s578]
    %v580 = vunpack.c.l.bf16 %v579
    %v581 = vunpack.c.h.bf16 %v579
    %s582 = scalar_lea.vmem %s6, 20
    %s584 = sor.u32 255, 127
    %s585 = sand.u32 %s584, 85
    %s586 = sshrl.u32 %s585, 1
    %s587 = sor.u32 %s585, %s586
    %s588 = sand.u32 51, %s587
    %s589 = sshrl.u32 %s588, 2
    %s590 = sor.u32 %s588, %s589
    %s591 = sand.u32 15, %s590
    %v592 = vld [vmem:[%s582] sm:%s591]
    %v593 = vunpack.c.l.bf16 %v592
    %v594 = vunpack.c.h.bf16 %v592
    %v595 = vlaneseq
    %v596 = vand.u32 %v595, 127
    %vm598 = vcmp.lt.s32.totalorder %v596, 50
    %v599 = vsel %vm598, %v593, %v28
    %v600 = vpack.c.bf16 %v13, %v13
    %v602 = vpack.c.bf16 %v18, %v18
    %v604 = vpack.c.bf16 %v23, %v23
    %v606 = vpack.c.bf16 %v599, %v533
    %608 = xla_tuple %v606, %v604
    %609 = xla_tuple %608
    %v610 = vmax.bf16 %v606, %v604
    %611 = xla_tuple %v610
    %612 = xla_tuple %v610, %v602
    %613 = xla_tuple %612
    %v614 = vmax.bf16 %v610, %v602
    %615 = xla_tuple %v614
    %616 = xla_tuple %v614, %v600
    %617 = xla_tuple %616
    %v618 = vmax.bf16 %v614, %v600
    %619 = xla_tuple %v618
    %v620 = vunpack.c.l.bf16 %v618
    %v621 = vunpack.c.h.bf16 %v618
    %s622 = scalar_lea.vmem [#allocation22], 16
    %v623 = vpack.c.bf16 0.0, %v620
    %625 = vst [vmem:[%s622] sm:$0xf] %v623
    %s626 = scalar_lea.vmem [#allocation22], 20
    %v627 = vpack.c.bf16 0.0, %v621
    %629 = vst [vmem:[%s626] sm:$0xf] %v627
    %s630 = scalar_lea.vmem %s118, 24
    %s631 = ssub.s32 0, 0
    %p632 = scmp.lt.s32.totalorder %s631, 0
    %s633 = scalar_select %p632, 0, 255
    %s634 = sshrl.u32 %s633, 1
    %s635 = sor.u32 %s633, %s634
    %s636 = sand.u32 %s635, 85
    %s637 = sshrl.u32 %s636, 1
    %s638 = sor.u32 %s636, %s637
    %s639 = sand.u32 51, %s638
    %s640 = sshrl.u32 %s639, 2
    %s641 = sor.u32 %s639, %s640
    %s642 = sand.u32 15, %s641
    %v643 = vld [vmem:[%s630] sm:%s642]
    %v644 = vunpack.c.l.bf16 %v643
    %v645 = vunpack.c.h.bf16 %v643
    %s646 = scalar_lea.vmem %s131, 24
    %s647 = ssub.s32 0, 0
    %p648 = scmp.lt.s32.totalorder %s647, 0
    %s649 = scalar_select %p648, 0, 255
    %s650 = sshrl.u32 %s649, 1
    %s651 = sor.u32 %s649, %s650
    %s652 = sand.u32 %s651, 85
    %s653 = sshrl.u32 %s652, 1
    %s654 = sor.u32 %s652, %s653
    %s655 = sand.u32 51, %s654
    %s656 = sshrl.u32 %s655, 2
    %s657 = sor.u32 %s655, %s656
    %s658 = sand.u32 15, %s657
    %v659 = vld [vmem:[%s646] sm:%s658]
    %v660 = vunpack.c.l.bf16 %v659
    %v661 = vunpack.c.h.bf16 %v659
    %s662 = scalar_lea.vmem %s144, 24
    %s663 = ssub.s32 0, 0
    %p664 = scmp.lt.s32.totalorder %s663, 0
    %s665 = scalar_select %p664, 0, 255
    %s666 = sshrl.u32 %s665, 1
    %s667 = sor.u32 %s665, %s666
    %s668 = sand.u32 %s667, 85
    %s669 = sshrl.u32 %s668, 1
    %s670 = sor.u32 %s668, %s669
    %s671 = sand.u32 51, %s670
    %s672 = sshrl.u32 %s671, 2
    %s673 = sor.u32 %s671, %s672
    %s674 = sand.u32 15, %s673
    %v675 = vld [vmem:[%s662] sm:%s674]
    %v676 = vunpack.c.l.bf16 %v675
    %v677 = vunpack.c.h.bf16 %v675
    %s678 = scalar_lea.vmem %s6, 24
    %s680 = sor.u32 255, 127
    %s681 = sand.u32 %s680, 85
    %s682 = sshrl.u32 %s681, 1
    %s683 = sor.u32 %s681, %s682
    %s684 = sand.u32 51, %s683
    %s685 = sshrl.u32 %s684, 2
    %s686 = sor.u32 %s684, %s685
    %s687 = sand.u32 15, %s686
    %v688 = vld [vmem:[%s678] sm:%s687]
    %v689 = vunpack.c.l.bf16 %v688
    %v690 = vunpack.c.h.bf16 %v688
    %v691 = vlaneseq
    %v692 = vand.u32 %v691, 127
    %vm694 = vcmp.lt.s32.totalorder %v692, 50
    %v695 = vsel %vm694, %v689, %v28
    %s696 = scalar_lea.vmem %s118, 28
    %s697 = ssub.s32 0, 0
    %p698 = scmp.lt.s32.totalorder %s697, 0
    %s699 = scalar_select %p698, 0, 255
    %s700 = sshrl.u32 %s699, 1
    %s701 = sor.u32 %s699, %s700
    %s702 = sand.u32 %s701, 85
    %s703 = sshrl.u32 %s702, 1
    %s704 = sor.u32 %s702, %s703
    %s705 = sand.u32 51, %s704
    %s706 = sshrl.u32 %s705, 2
    %s707 = sor.u32 %s705, %s706
    %s708 = sand.u32 15, %s707
    %v709 = vld [vmem:[%s696] sm:%s708]
    %v710 = vunpack.c.l.bf16 %v709
    %v711 = vunpack.c.h.bf16 %v709
    %s712 = scalar_lea.vmem %s131, 28
    %s713 = ssub.s32 0, 0
    %p714 = scmp.lt.s32.totalorder %s713, 0
    %s715 = scalar_select %p714, 0, 255
    %s716 = sshrl.u32 %s715, 1
    %s717 = sor.u32 %s715, %s716
    %s718 = sand.u32 %s717, 85
    %s719 = sshrl.u32 %s718, 1
    %s720 = sor.u32 %s718, %s719
    %s721 = sand.u32 51, %s720
    %s722 = sshrl.u32 %s721, 2
    %s723 = sor.u32 %s721, %s722
    %s724 = sand.u32 15, %s723
    %v725 = vld [vmem:[%s712] sm:%s724]
    %v726 = vunpack.c.l.bf16 %v725
    %v727 = vunpack.c.h.bf16 %v725
    %s728 = scalar_lea.vmem %s144, 28
    %s729 = ssub.s32 0, 0
    %p730 = scmp.lt.s32.totalorder %s729, 0
    %s731 = scalar_select %p730, 0, 255
    %s732 = sshrl.u32 %s731, 1
    %s733 = sor.u32 %s731, %s732
    %s734 = sand.u32 %s733, 85
    %s735 = sshrl.u32 %s734, 1
    %s736 = sor.u32 %s734, %s735
    %s737 = sand.u32 51, %s736
    %s738 = sshrl.u32 %s737, 2
    %s739 = sor.u32 %s737, %s738
    %s740 = sand.u32 15, %s739
    %v741 = vld [vmem:[%s728] sm:%s740]
    %v742 = vunpack.c.l.bf16 %v741
    %v743 = vunpack.c.h.bf16 %v741
    %s744 = scalar_lea.vmem %s6, 28
    %s746 = sor.u32 255, 127
    %s747 = sand.u32 %s746, 85
    %s748 = sshrl.u32 %s747, 1
    %s749 = sor.u32 %s747, %s748
    %s750 = sand.u32 51, %s749
    %s751 = sshrl.u32 %s750, 2
    %s752 = sor.u32 %s750, %s751
    %s753 = sand.u32 15, %s752
    %v754 = vld [vmem:[%s744] sm:%s753]
    %v755 = vunpack.c.l.bf16 %v754
    %v756 = vunpack.c.h.bf16 %v754
    %v757 = vlaneseq
    %v758 = vand.u32 %v757, 127
    %vm760 = vcmp.lt.s32.totalorder %v758, 50
    %v761 = vsel %vm760, %v755, %v28
    %v762 = vpack.c.bf16 %v13, %v13
    %v764 = vpack.c.bf16 %v18, %v18
    %v766 = vpack.c.bf16 %v23, %v23
    %v768 = vpack.c.bf16 %v761, %v695
    %770 = xla_tuple %v768, %v766
    %771 = xla_tuple %770
    %v772 = vmax.bf16 %v768, %v766
    %773 = xla_tuple %v772
    %774 = xla_tuple %v772, %v764
    %775 = xla_tuple %774
    %v776 = vmax.bf16 %v772, %v764
    %777 = xla_tuple %v776
    %778 = xla_tuple %v776, %v762
    %779 = xla_tuple %778
    %v780 = vmax.bf16 %v776, %v762
    %781 = xla_tuple %v780
    %v782 = vunpack.c.l.bf16 %v780
    %v783 = vunpack.c.h.bf16 %v780
    %s784 = scalar_lea.vmem [#allocation22], 24
    %v785 = vpack.c.bf16 0.0, %v782
    %787 = vst [vmem:[%s784] sm:$0xf] %v785
    %s788 = scalar_lea.vmem [#allocation22], 28
    %v789 = vpack.c.bf16 0.0, %v783
    %791 = vst [vmem:[%s788] sm:$0xf] %v789
    %s792 = scalar_lea.vmem %s118, 32
    %s793 = ssub.s32 0, 0
    %p794 = scmp.lt.s32.totalorder %s793, 0
    %s795 = scalar_select %p794, 0, 255
    %s796 = sshrl.u32 %s795, 1
    %s797 = sor.u32 %s795, %s796
    %s798 = sand.u32 %s797, 85
    %s799 = sshrl.u32 %s798, 1
    %s800 = sor.u32 %s798, %s799
    %s801 = sand.u32 51, %s800
    %s802 = sshrl.u32 %s801, 2
    %s803 = sor.u32 %s801, %s802
    %s804 = sand.u32 15, %s803
    %v805 = vld [vmem:[%s792] sm:%s804]
    %v806 = vunpack.c.l.bf16 %v805
    %v807 = vunpack.c.h.bf16 %v805
    %s808 = scalar_lea.vmem %s131, 32
    %s809 = ssub.s32 0, 0
    %p810 = scmp.lt.s32.totalorder %s809, 0
    %s811 = scalar_select %p810, 0, 255
    %s812 = sshrl.u32 %s811, 1
    %s813 = sor.u32 %s811, %s812
    %s814 = sand.u32 %s813, 85
    %s815 = sshrl.u32 %s814, 1
    %s816 = sor.u32 %s814, %s815
    %s817 = sand.u32 51, %s816
    %s818 = sshrl.u32 %s817, 2
    %s819 = sor.u32 %s817, %s818
    %s820 = sand.u32 15, %s819
    %v821 = vld [vmem:[%s808] sm:%s820]
    %v822 = vunpack.c.l.bf16 %v821
    %v823 = vunpack.c.h.bf16 %v821
    %s824 = scalar_lea.vmem %s144, 32
    %s825 = ssub.s32 0, 0
    %p826 = scmp.lt.s32.totalorder %s825, 0
    %s827 = scalar_select %p826, 0, 255
    %s828 = sshrl.u32 %s827, 1
    %s829 = sor.u32 %s827, %s828
    %s830 = sand.u32 %s829, 85
    %s831 = sshrl.u32 %s830, 1
    %s832 = sor.u32 %s830, %s831
    %s833 = sand.u32 51, %s832
    %s834 = sshrl.u32 %s833, 2
    %s835 = sor.u32 %s833, %s834
    %s836 = sand.u32 15, %s835
    %v837 = vld [vmem:[%s824] sm:%s836]
    %v838 = vunpack.c.l.bf16 %v837
    %v839 = vunpack.c.h.bf16 %v837
    %s840 = scalar_lea.vmem %s6, 32
    %s842 = sor.u32 255, 127
    %s843 = sand.u32 %s842, 85
    %s844 = sshrl.u32 %s843, 1
    %s845 = sor.u32 %s843, %s844
    %s846 = sand.u32 51, %s845
    %s847 = sshrl.u32 %s846, 2
    %s848 = sor.u32 %s846, %s847
    %s849 = sand.u32 15, %s848
    %v850 = vld [vmem:[%s840] sm:%s849]
    %v851 = vunpack.c.l.bf16 %v850
    %v852 = vunpack.c.h.bf16 %v850
    %v853 = vlaneseq
    %v854 = vand.u32 %v853, 127
    %vm856 = vcmp.lt.s32.totalorder %v854, 50
    %v857 = vsel %vm856, %v851, %v28
    %s858 = scalar_lea.vmem %s118, 36
    %s859 = ssub.s32 0, 0
    %p860 = scmp.lt.s32.totalorder %s859, 0
    %s861 = scalar_select %p860, 0, 255
    %s862 = sshrl.u32 %s861, 1
    %s863 = sor.u32 %s861, %s862
    %s864 = sand.u32 %s863, 85
    %s865 = sshrl.u32 %s864, 1
    %s866 = sor.u32 %s864, %s865
    %s867 = sand.u32 51, %s866
    %s868 = sshrl.u32 %s867, 2
    %s869 = sor.u32 %s867, %s868
    %s870 = sand.u32 15, %s869
    %v871 = vld [vmem:[%s858] sm:%s870]
    %v872 = vunpack.c.l.bf16 %v871
    %v873 = vunpack.c.h.bf16 %v871
    %s874 = scalar_lea.vmem %s131, 36
    %s875 = ssub.s32 0, 0
    %p876 = scmp.lt.s32.totalorder %s875, 0
    %s877 = scalar_select %p876, 0, 255
    %s878 = sshrl.u32 %s877, 1
    %s879 = sor.u32 %s877, %s878
    %s880 = sand.u32 %s879, 85
    %s881 = sshrl.u32 %s880, 1
    %s882 = sor.u32 %s880, %s881
    %s883 = sand.u32 51, %s882
    %s884 = sshrl.u32 %s883, 2
    %s885 = sor.u32 %s883, %s884
    %s886 = sand.u32 15, %s885
    %v887 = vld [vmem:[%s874] sm:%s886]
    %v888 = vunpack.c.l.bf16 %v887
    %v889 = vunpack.c.h.bf16 %v887
    %s890 = scalar_lea.vmem %s144, 36
    %s891 = ssub.s32 0, 0
    %p892 = scmp.lt.s32.totalorder %s891, 0
    %s893 = scalar_select %p892, 0, 255
    %s894 = sshrl.u32 %s893, 1
    %s895 = sor.u32 %s893, %s894
    %s896 = sand.u32 %s895, 85
    %s897 = sshrl.u32 %s896, 1
    %s898 = sor.u32 %s896, %s897
    %s899 = sand.u32 51, %s898
    %s900 = sshrl.u32 %s899, 2
    %s901 = sor.u32 %s899, %s900
    %s902 = sand.u32 15, %s901
    %v903 = vld [vmem:[%s890] sm:%s902]
    %v904 = vunpack.c.l.bf16 %v903
    %v905 = vunpack.c.h.bf16 %v903
    %s906 = scalar_lea.vmem %s6, 36
    %s908 = sor.u32 255, 127
    %s909 = sand.u32 %s908, 85
    %s910 = sshrl.u32 %s909, 1
    %s911 = sor.u32 %s909, %s910
    %s912 = sand.u32 51, %s911
    %s913 = sshrl.u32 %s912, 2
    %s914 = sor.u32 %s912, %s913
    %s915 = sand.u32 15, %s914
    %v916 = vld [vmem:[%s906] sm:%s915]
    %v917 = vunpack.c.l.bf16 %v916
    %v918 = vunpack.c.h.bf16 %v916
    %v919 = vlaneseq
    %v920 = vand.u32 %v919, 127
    %vm922 = vcmp.lt.s32.totalorder %v920, 50
    %v923 = vsel %vm922, %v917, %v28
    %v924 = vpack.c.bf16 %v13, %v13
    %v926 = vpack.c.bf16 %v18, %v18
    %v928 = vpack.c.bf16 %v23, %v23
    %v930 = vpack.c.bf16 %v923, %v857
    %932 = xla_tuple %v930, %v928
    %933 = xla_tuple %932
    %v934 = vmax.bf16 %v930, %v928
    %935 = xla_tuple %v934
    %936 = xla_tuple %v934, %v926
    %937 = xla_tuple %936
    %v938 = vmax.bf16 %v934, %v926
    %939 = xla_tuple %v938
    %940 = xla_tuple %v938, %v924
    %941 = xla_tuple %940
    %v942 = vmax.bf16 %v938, %v924
    %943 = xla_tuple %v942
    %v944 = vunpack.c.l.bf16 %v942
    %v945 = vunpack.c.h.bf16 %v942
    %s946 = scalar_lea.vmem [#allocation22], 32
    %v947 = vpack.c.bf16 0.0, %v944
    %949 = vst [vmem:[%s946] sm:$0xf] %v947
    %s950 = scalar_lea.vmem [#allocation22], 36
    %v951 = vpack.c.bf16 0.0, %v945
    %953 = vst [vmem:[%s950] sm:$0xf] %v951
    %s954 = scalar_lea.vmem %s118, 40
    %s955 = ssub.s32 0, 0
    %p956 = scmp.lt.s32.totalorder %s955, 0
    %s957 = scalar_select %p956, 0, 255
    %s958 = sshrl.u32 %s957, 1
    %s959 = sor.u32 %s957, %s958
    %s960 = sand.u32 %s959, 85
    %s961 = sshrl.u32 %s960, 1
    %s962 = sor.u32 %s960, %s961
    %s963 = sand.u32 51, %s962
    %s964 = sshrl.u32 %s963, 2
    %s965 = sor.u32 %s963, %s964
    %s966 = sand.u32 15, %s965
    %v967 = vld [vmem:[%s954] sm:%s966]
    %v968 = vunpack.c.l.bf16 %v967
    %v969 = vunpack.c.h.bf16 %v967
    %s970 = scalar_lea.vmem %s131, 40
    %s971 = ssub.s32 0, 0
    %p972 = scmp.lt.s32.totalorder %s971, 0
    %s973 = scalar_select %p972, 0, 255
    %s974 = sshrl.u32 %s973, 1
    %s975 = sor.u32 %s973, %s974
    %s976 = sand.u32 %s975, 85
    %s977 = sshrl.u32 %s976, 1
    %s978 = sor.u32 %s976, %s977
    %s979 = sand.u32 51, %s978
    %s980 = sshrl.u32 %s979, 2
    %s981 = sor.u32 %s979, %s980
    %s982 = sand.u32 15, %s981
    %v983 = vld [vmem:[%s970] sm:%s982]
    %v984 = vunpack.c.l.bf16 %v983
    %v985 = vunpack.c.h.bf16 %v983
    %s986 = scalar_lea.vmem %s144, 40
    %s987 = ssub.s32 0, 0
    %p988 = scmp.lt.s32.totalorder %s987, 0
    %s989 = scalar_select %p988, 0, 255
    %s990 = sshrl.u32 %s989, 1
    %s991 = sor.u32 %s989, %s990
    %s992 = sand.u32 %s991, 85
    %s993 = sshrl.u32 %s992, 1
    %s994 = sor.u32 %s992, %s993
    %s995 = sand.u32 51, %s994
    %s996 = sshrl.u32 %s995, 2
    %s997 = sor.u32 %s995, %s996
    %s998 = sand.u32 15, %s997
    %v999 = vld [vmem:[%s986] sm:%s998]
    %v1000 = vunpack.c.l.bf16 %v999
    %v1001 = vunpack.c.h.bf16 %v999
    %s1002 = scalar_lea.vmem %s6, 40
    %s1004 = sor.u32 255, 127
    %s1005 = sand.u32 %s1004, 85
    %s1006 = sshrl.u32 %s1005, 1
    %s1007 = sor.u32 %s1005, %s1006
    %s1008 = sand.u32 51, %s1007
    %s1009 = sshrl.u32 %s1008, 2
    %s1010 = sor.u32 %s1008, %s1009
    %s1011 = sand.u32 15, %s1010
    %v1012 = vld [vmem:[%s1002] sm:%s1011]
    %v1013 = vunpack.c.l.bf16 %v1012
    %v1014 = vunpack.c.h.bf16 %v1012
    %v1015 = vlaneseq
    %v1016 = vand.u32 %v1015, 127
    %vm1018 = vcmp.lt.s32.totalorder %v1016, 50
    %v1019 = vsel %vm1018, %v1013, %v28
    %s1020 = scalar_lea.vmem %s118, 44
    %s1021 = ssub.s32 0, 0
    %p1022 = scmp.lt.s32.totalorder %s1021, 0
    %s1023 = scalar_select %p1022, 0, 255
    %s1024 = sshrl.u32 %s1023, 1
    %s1025 = sor.u32 %s1023, %s1024
    %s1026 = sand.u32 %s1025, 85
    %s1027 = sshrl.u32 %s1026, 1
    %s1028 = sor.u32 %s1026, %s1027
    %s1029 = sand.u32 51, %s1028
    %s1030 = sshrl.u32 %s1029, 2
    %s1031 = sor.u32 %s1029, %s1030
    %s1032 = sand.u32 15, %s1031
    %v1033 = vld [vmem:[%s1020] sm:%s1032]
    %v1034 = vunpack.c.l.bf16 %v1033
    %v1035 = vunpack.c.h.bf16 %v1033
    %s1036 = scalar_lea.vmem %s131, 44
    %s1037 = ssub.s32 0, 0
    %p1038 = scmp.lt.s32.totalorder %s1037, 0
    %s1039 = scalar_select %p1038, 0, 255
    %s1040 = sshrl.u32 %s1039, 1
    %s1041 = sor.u32 %s1039, %s1040
    %s1042 = sand.u32 %s1041, 85
    %s1043 = sshrl.u32 %s1042, 1
    %s1044 = sor.u32 %s1042, %s1043
    %s1045 = sand.u32 51, %s1044
    %s1046 = sshrl.u32 %s1045, 2
    %s1047 = sor.u32 %s1045, %s1046
    %s1048 = sand.u32 15, %s1047
    %v1049 = vld [vmem:[%s1036] sm:%s1048]
    %v1050 = vunpack.c.l.bf16 %v1049
    %v1051 = vunpack.c.h.bf16 %v1049
    %s1052 = scalar_lea.vmem %s144, 44
    %s1053 = ssub.s32 0, 0
    %p1054 = scmp.lt.s32.totalorder %s1053, 0
    %s1055 = scalar_select %p1054, 0, 255
    %s1056 = sshrl.u32 %s1055, 1
    %s1057 = sor.u32 %s1055, %s1056
    %s1058 = sand.u32 %s1057, 85
    %s1059 = sshrl.u32 %s1058, 1
    %s1060 = sor.u32 %s1058, %s1059
    %s1061 = sand.u32 51, %s1060
    %s1062 = sshrl.u32 %s1061, 2
    %s1063 = sor.u32 %s1061, %s1062
    %s1064 = sand.u32 15, %s1063
    %v1065 = vld [vmem:[%s1052] sm:%s1064]
    %v1066 = vunpack.c.l.bf16 %v1065
    %v1067 = vunpack.c.h.bf16 %v1065
    %s1068 = scalar_lea.vmem %s6, 44
    %s1070 = sor.u32 255, 127
    %s1071 = sand.u32 %s1070, 85
    %s1072 = sshrl.u32 %s1071, 1
    %s1073 = sor.u32 %s1071, %s1072
    %s1074 = sand.u32 51, %s1073
    %s1075 = sshrl.u32 %s1074, 2
    %s1076 = sor.u32 %s1074, %s1075
    %s1077 = sand.u32 15, %s1076
    %v1078 = vld [vmem:[%s1068] sm:%s1077]
    %v1079 = vunpack.c.l.bf16 %v1078
    %v1080 = vunpack.c.h.bf16 %v1078
    %v1081 = vlaneseq
    %v1082 = vand.u32 %v1081, 127
    %vm1084 = vcmp.lt.s32.totalorder %v1082, 50
    %v1085 = vsel %vm1084, %v1079, %v28
    %v1086 = vpack.c.bf16 %v13, %v13
    %v1088 = vpack.c.bf16 %v18, %v18
    %v1090 = vpack.c.bf16 %v23, %v23
    %v1092 = vpack.c.bf16 %v1085, %v1019
    %1094 = xla_tuple %v1092, %v1090
    %1095 = xla_tuple %1094
    %v1096 = vmax.bf16 %v1092, %v1090
    %1097 = xla_tuple %v1096
    %1098 = xla_tuple %v1096, %v1088
    %1099 = xla_tuple %1098
    %v1100 = vmax.bf16 %v1096, %v1088
    %1101 = xla_tuple %v1100
    %1102 = xla_tuple %v1100, %v1086
    %1103 = xla_tuple %1102
    %v1104 = vmax.bf16 %v1100, %v1086
    %1105 = xla_tuple %v1104
    %v1106 = vunpack.c.l.bf16 %v1104
    %v1107 = vunpack.c.h.bf16 %v1104
    %s1108 = scalar_lea.vmem [#allocation22], 40
    %v1109 = vpack.c.bf16 0.0, %v1106
    %1111 = vst [vmem:[%s1108] sm:$0xf] %v1109
    %s1112 = scalar_lea.vmem [#allocation22], 44
    %v1113 = vpack.c.bf16 0.0, %v1107
    %1115 = vst [vmem:[%s1112] sm:$0xf] %v1113
    %s1116 = scalar_lea.vmem %s118, 48
    %s1117 = ssub.s32 0, 0
    %p1118 = scmp.lt.s32.totalorder %s1117, 0
    %s1119 = scalar_select %p1118, 0, 255
    %s1120 = sshrl.u32 %s1119, 1
    %s1121 = sor.u32 %s1119, %s1120
    %s1122 = sand.u32 %s1121, 85
    %s1123 = sshrl.u32 %s1122, 1
    %s1124 = sor.u32 %s1122, %s1123
    %s1125 = sand.u32 51, %s1124
    %s1126 = sshrl.u32 %s1125, 2
    %s1127 = sor.u32 %s1125, %s1126
    %s1128 = sand.u32 15, %s1127
    %v1129 = vld [vmem:[%s1116] sm:%s1128]
    %v1130 = vunpack.c.l.bf16 %v1129
    %v1131 = vunpack.c.h.bf16 %v1129
    %s1132 = scalar_lea.vmem %s131, 48
    %s1133 = ssub.s32 0, 0
    %p1134 = scmp.lt.s32.totalorder %s1133, 0
    %s1135 = scalar_select %p1134, 0, 255
    %s1136 = sshrl.u32 %s1135, 1
    %s1137 = sor.u32 %s1135, %s1136
    %s1138 = sand.u32 %s1137, 85
    %s1139 = sshrl.u32 %s1138, 1
    %s1140 = sor.u32 %s1138, %s1139
    %s1141 = sand.u32 51, %s1140
    %s1142 = sshrl.u32 %s1141, 2
    %s1143 = sor.u32 %s1141, %s1142
    %s1144 = sand.u32 15, %s1143
    %v1145 = vld [vmem:[%s1132] sm:%s1144]
    %v1146 = vunpack.c.l.bf16 %v1145
    %v1147 = vunpack.c.h.bf16 %v1145
    %s1148 = scalar_lea.vmem %s144, 48
    %s1149 = ssub.s32 0, 0
    %p1150 = scmp.lt.s32.totalorder %s1149, 0
    %s1151 = scalar_select %p1150, 0, 255
    %s1152 = sshrl.u32 %s1151, 1
    %s1153 = sor.u32 %s1151, %s1152
    %s1154 = sand.u32 %s1153, 85
    %s1155 = sshrl.u32 %s1154, 1
    %s1156 = sor.u32 %s1154, %s1155
    %s1157 = sand.u32 51, %s1156
    %s1158 = sshrl.u32 %s1157, 2
    %s1159 = sor.u32 %s1157, %s1158
    %s1160 = sand.u32 15, %s1159
    %v1161 = vld [vmem:[%s1148] sm:%s1160]
    %v1162 = vunpack.c.l.bf16 %v1161
    %v1163 = vunpack.c.h.bf16 %v1161
    %s1164 = scalar_lea.vmem %s6, 48
    %s1166 = sor.u32 255, 127
    %s1167 = sand.u32 %s1166, 85
    %s1168 = sshrl.u32 %s1167, 1
    %s1169 = sor.u32 %s1167, %s1168
    %s1170 = sand.u32 51, %s1169
    %s1171 = sshrl.u32 %s1170, 2
    %s1172 = sor.u32 %s1170, %s1171
    %s1173 = sand.u32 15, %s1172
    %v1174 = vld [vmem:[%s1164] sm:%s1173]
    %v1175 = vunpack.c.l.bf16 %v1174
    %v1176 = vunpack.c.h.bf16 %v1174
    %v1177 = vlaneseq
    %v1178 = vand.u32 %v1177, 127
    %vm1180 = vcmp.lt.s32.totalorder %v1178, 50
    %v1181 = vsel %vm1180, %v1175, %v28
    %s1182 = scalar_lea.vmem %s118, 52
    %s1183 = ssub.s32 0, 0
    %p1184 = scmp.lt.s32.totalorder %s1183, 0
    %s1185 = scalar_select %p1184, 0, 255
    %s1186 = sshrl.u32 %s1185, 1
    %s1187 = sor.u32 %s1185, %s1186
    %s1188 = sand.u32 %s1187, 85
    %s1189 = sshrl.u32 %s1188, 1
    %s1190 = sor.u32 %s1188, %s1189
    %s1191 = sand.u32 51, %s1190
    %s1192 = sshrl.u32 %s1191, 2
    %s1193 = sor.u32 %s1191, %s1192
    %s1194 = sand.u32 15, %s1193
    %v1195 = vld [vmem:[%s1182] sm:%s1194]
    %v1196 = vunpack.c.l.bf16 %v1195
    %v1197 = vunpack.c.h.bf16 %v1195
    %s1198 = scalar_lea.vmem %s131, 52
    %s1199 = ssub.s32 0, 0
    %p1200 = scmp.lt.s32.totalorder %s1199, 0
    %s1201 = scalar_select %p1200, 0, 255
    %s1202 = sshrl.u32 %s1201, 1
    %s1203 = sor.u32 %s1201, %s1202
    %s1204 = sand.u32 %s1203, 85
    %s1205 = sshrl.u32 %s1204, 1
    %s1206 = sor.u32 %s1204, %s1205
    %s1207 = sand.u32 51, %s1206
    %s1208 = sshrl.u32 %s1207, 2
    %s1209 = sor.u32 %s1207, %s1208
    %s1210 = sand.u32 15, %s1209
    %v1211 = vld [vmem:[%s1198] sm:%s1210]
    %v1212 = vunpack.c.l.bf16 %v1211
    %v1213 = vunpack.c.h.bf16 %v1211
    %s1214 = scalar_lea.vmem %s144, 52
    %s1215 = ssub.s32 0, 0
    %p1216 = scmp.lt.s32.totalorder %s1215, 0
    %s1217 = scalar_select %p1216, 0, 255
    %s1218 = sshrl.u32 %s1217, 1
    %s1219 = sor.u32 %s1217, %s1218
    %s1220 = sand.u32 %s1219, 85
    %s1221 = sshrl.u32 %s1220, 1
    %s1222 = sor.u32 %s1220, %s1221
    %s1223 = sand.u32 51, %s1222
    %s1224 = sshrl.u32 %s1223, 2
    %s1225 = sor.u32 %s1223, %s1224
    %s1226 = sand.u32 15, %s1225
    %v1227 = vld [vmem:[%s1214] sm:%s1226]
    %v1228 = vunpack.c.l.bf16 %v1227
    %v1229 = vunpack.c.h.bf16 %v1227
    %s1230 = scalar_lea.vmem %s6, 52
    %s1232 = sor.u32 255, 127
    %s1233 = sand.u32 %s1232, 85
    %s1234 = sshrl.u32 %s1233, 1
    %s1235 = sor.u32 %s1233, %s1234
    %s1236 = sand.u32 51, %s1235
    %s1237 = sshrl.u32 %s1236, 2
    %s1238 = sor.u32 %s1236, %s1237
    %s1239 = sand.u32 15, %s1238
    %v1240 = vld [vmem:[%s1230] sm:%s1239]
    %v1241 = vunpack.c.l.bf16 %v1240
    %v1242 = vunpack.c.h.bf16 %v1240
    %v1243 = vlaneseq
    %v1244 = vand.u32 %v1243, 127
    %vm1246 = vcmp.lt.s32.totalorder %v1244, 50
    %v1247 = vsel %vm1246, %v1241, %v28
    %v1248 = vpack.c.bf16 %v13, %v13
    %v1250 = vpack.c.bf16 %v18, %v18
    %v1252 = vpack.c.bf16 %v23, %v23
    %v1254 = vpack.c.bf16 %v1247, %v1181
    %1256 = xla_tuple %v1254, %v1252
    %1257 = xla_tuple %1256
    %v1258 = vmax.bf16 %v1254, %v1252
    %1259 = xla_tuple %v1258
    %1260 = xla_tuple %v1258, %v1250
    %1261 = xla_tuple %1260
    %v1262 = vmax.bf16 %v1258, %v1250
    %1263 = xla_tuple %v1262
    %1264 = xla_tuple %v1262, %v1248
    %1265 = xla_tuple %1264
    %v1266 = vmax.bf16 %v1262, %v1248
    %1267 = xla_tuple %v1266
    %v1268 = vunpack.c.l.bf16 %v1266
    %v1269 = vunpack.c.h.bf16 %v1266
    %s1270 = scalar_lea.vmem [#allocation22], 48
    %v1271 = vpack.c.bf16 0.0, %v1268
    %1273 = vst [vmem:[%s1270] sm:$0xf] %v1271
    %s1274 = scalar_lea.vmem [#allocation22], 52
    %v1275 = vpack.c.bf16 0.0, %v1269
    %1277 = vst [vmem:[%s1274] sm:$0xf] %v1275
    %s1278 = scalar_lea.vmem %s118, 56
    %s1279 = ssub.s32 0, 0
    %p1280 = scmp.lt.s32.totalorder %s1279, 0
    %s1281 = scalar_select %p1280, 0, 255
    %s1282 = sshrl.u32 %s1281, 1
    %s1283 = sor.u32 %s1281, %s1282
    %s1284 = sand.u32 %s1283, 85
    %s1285 = sshrl.u32 %s1284, 1
    %s1286 = sor.u32 %s1284, %s1285
    %s1287 = sand.u32 51, %s1286
    %s1288 = sshrl.u32 %s1287, 2
    %s1289 = sor.u32 %s1287, %s1288
    %s1290 = sand.u32 15, %s1289
    %v1291 = vld [vmem:[%s1278] sm:%s1290]
    %v1292 = vunpack.c.l.bf16 %v1291
    %v1293 = vunpack.c.h.bf16 %v1291
    %s1294 = scalar_lea.vmem %s131, 56
    %s1295 = ssub.s32 0, 0
    %p1296 = scmp.lt.s32.totalorder %s1295, 0
    %s1297 = scalar_select %p1296, 0, 255
    %s1298 = sshrl.u32 %s1297, 1
    %s1299 = sor.u32 %s1297, %s1298
    %s1300 = sand.u32 %s1299, 85
    %s1301 = sshrl.u32 %s1300, 1
    %s1302 = sor.u32 %s1300, %s1301
    %s1303 = sand.u32 51, %s1302
    %s1304 = sshrl.u32 %s1303, 2
    %s1305 = sor.u32 %s1303, %s1304
    %s1306 = sand.u32 15, %s1305
    %v1307 = vld [vmem:[%s1294] sm:%s1306]
    %v1308 = vunpack.c.l.bf16 %v1307
    %v1309 = vunpack.c.h.bf16 %v1307
    %s1310 = scalar_lea.vmem %s144, 56
    %s1311 = ssub.s32 0, 0
    %p1312 = scmp.lt.s32.totalorder %s1311, 0
    %s1313 = scalar_select %p1312, 0, 255
    %s1314 = sshrl.u32 %s1313, 1
    %s1315 = sor.u32 %s1313, %s1314
    %s1316 = sand.u32 %s1315, 85
    %s1317 = sshrl.u32 %s1316, 1
    %s1318 = sor.u32 %s1316, %s1317
    %s1319 = sand.u32 51, %s1318
    %s1320 = sshrl.u32 %s1319, 2
    %s1321 = sor.u32 %s1319, %s1320
    %s1322 = sand.u32 15, %s1321
    %v1323 = vld [vmem:[%s1310] sm:%s1322]
    %v1324 = vunpack.c.l.bf16 %v1323
    %v1325 = vunpack.c.h.bf16 %v1323
    %s1326 = scalar_lea.vmem %s6, 56
    %s1328 = sor.u32 255, 127
    %s1329 = sand.u32 %s1328, 85
    %s1330 = sshrl.u32 %s1329, 1
    %s1331 = sor.u32 %s1329, %s1330
    %s1332 = sand.u32 51, %s1331
    %s1333 = sshrl.u32 %s1332, 2
    %s1334 = sor.u32 %s1332, %s1333
    %s1335 = sand.u32 15, %s1334
    %v1336 = vld [vmem:[%s1326] sm:%s1335]
    %v1337 = vunpack.c.l.bf16 %v1336
    %v1338 = vunpack.c.h.bf16 %v1336
    %v1339 = vlaneseq
    %v1340 = vand.u32 %v1339, 127
    %vm1342 = vcmp.lt.s32.totalorder %v1340, 50
    %v1343 = vsel %vm1342, %v1337, %v28
    %s1344 = scalar_lea.vmem %s118, 60
    %s1345 = ssub.s32 0, 0
    %p1346 = scmp.lt.s32.totalorder %s1345, 0
    %s1347 = scalar_select %p1346, 0, 255
    %s1348 = sshrl.u32 %s1347, 1
    %s1349 = sor.u32 %s1347, %s1348
    %s1350 = sand.u32 %s1349, 85
    %s1351 = sshrl.u32 %s1350, 1
    %s1352 = sor.u32 %s1350, %s1351
    %s1353 = sand.u32 51, %s1352
    %s1354 = sshrl.u32 %s1353, 2
    %s1355 = sor.u32 %s1353, %s1354
    %s1356 = sand.u32 15, %s1355
    %v1357 = vld [vmem:[%s1344] sm:%s1356]
    %v1358 = vunpack.c.l.bf16 %v1357
    %v1359 = vunpack.c.h.bf16 %v1357
    %s1360 = scalar_lea.vmem %s131, 60
    %s1361 = ssub.s32 0, 0
    %p1362 = scmp.lt.s32.totalorder %s1361, 0
    %s1363 = scalar_select %p1362, 0, 255
    %s1364 = sshrl.u32 %s1363, 1
    %s1365 = sor.u32 %s1363, %s1364
    %s1366 = sand.u32 %s1365, 85
    %s1367 = sshrl.u32 %s1366, 1
    %s1368 = sor.u32 %s1366, %s1367
    %s1369 = sand.u32 51, %s1368
    %s1370 = sshrl.u32 %s1369, 2
    %s1371 = sor.u32 %s1369, %s1370
    %s1372 = sand.u32 15, %s1371
    %v1373 = vld [vmem:[%s1360] sm:%s1372]
    %v1374 = vunpack.c.l.bf16 %v1373
    %v1375 = vunpack.c.h.bf16 %v1373
    %s1376 = scalar_lea.vmem %s144, 60
    %s1377 = ssub.s32 0, 0
    %p1378 = scmp.lt.s32.totalorder %s1377, 0
    %s1379 = scalar_select %p1378, 0, 255
    %s1380 = sshrl.u32 %s1379, 1
    %s1381 = sor.u32 %s1379, %s1380
    %s1382 = sand.u32 %s1381, 85
    %s1383 = sshrl.u32 %s1382, 1
    %s1384 = sor.u32 %s1382, %s1383
    %s1385 = sand.u32 51, %s1384
    %s1386 = sshrl.u32 %s1385, 2
    %s1387 = sor.u32 %s1385, %s1386
    %s1388 = sand.u32 15, %s1387
    %v1389 = vld [vmem:[%s1376] sm:%s1388]
    %v1390 = vunpack.c.l.bf16 %v1389
    %v1391 = vunpack.c.h.bf16 %v1389
    %s1392 = scalar_lea.vmem %s6, 60
    %s1394 = sor.u32 255, 127
    %s1395 = sand.u32 %s1394, 85
    %s1396 = sshrl.u32 %s1395, 1
    %s1397 = sor.u32 %s1395, %s1396
    %s1398 = sand.u32 51, %s1397
    %s1399 = sshrl.u32 %s1398, 2
    %s1400 = sor.u32 %s1398, %s1399
    %s1401 = sand.u32 15, %s1400
    %v1402 = vld [vmem:[%s1392] sm:%s1401]
    %v1403 = vunpack.c.l.bf16 %v1402
    %v1404 = vunpack.c.h.bf16 %v1402
    %v1405 = vlaneseq
    %v1406 = vand.u32 %v1405, 127
    %vm1408 = vcmp.lt.s32.totalorder %v1406, 50
    %v1409 = vsel %vm1408, %v1403, %v28
    %v1410 = vpack.c.bf16 %v13, %v13
    %v1412 = vpack.c.bf16 %v18, %v18
    %v1414 = vpack.c.bf16 %v23, %v23
    %v1416 = vpack.c.bf16 %v1409, %v1343
    %1418 = xla_tuple %v1416, %v1414
    %1419 = xla_tuple %1418
    %v1420 = vmax.bf16 %v1416, %v1414
    %1421 = xla_tuple %v1420
    %1422 = xla_tuple %v1420, %v1412
    %1423 = xla_tuple %1422
    %v1424 = vmax.bf16 %v1420, %v1412
    %1425 = xla_tuple %v1424
    %1426 = xla_tuple %v1424, %v1410
    %1427 = xla_tuple %1426
    %v1428 = vmax.bf16 %v1424, %v1410
    %1429 = xla_tuple %v1428
    %v1430 = vunpack.c.l.bf16 %v1428
    %v1431 = vunpack.c.h.bf16 %v1428
    %s1432 = scalar_lea.vmem [#allocation22], 56
    %v1433 = vpack.c.bf16 0.0, %v1430
    %1435 = vst [vmem:[%s1432] sm:$0xf] %v1433
    %s1436 = scalar_lea.vmem [#allocation22], 60
    %v1437 = vpack.c.bf16 0.0, %v1431
    %1439 = vst [vmem:[%s1436] sm:$0xf] %v1437
    %s1440 = scalar_lea.vmem %s118, 64
    %s1441 = ssub.s32 0, 0
    %p1442 = scmp.lt.s32.totalorder %s1441, 0
    %s1443 = scalar_select %p1442, 0, 255
    %s1444 = sshrl.u32 %s1443, 1
    %s1445 = sor.u32 %s1443, %s1444
    %s1446 = sand.u32 %s1445, 85
    %s1447 = sshrl.u32 %s1446, 1
    %s1448 = sor.u32 %s1446, %s1447
    %s1449 = sand.u32 51, %s1448
    %s1450 = sshrl.u32 %s1449, 2
    %s1451 = sor.u32 %s1449, %s1450
    %s1452 = sand.u32 15, %s1451
    %v1453 = vld [vmem:[%s1440] sm:%s1452]
    %v1454 = vunpack.c.l.bf16 %v1453
    %v1455 = vunpack.c.h.bf16 %v1453
    %s1456 = scalar_lea.vmem %s131, 64
    %s1457 = ssub.s32 0, 0
    %p1458 = scmp.lt.s32.totalorder %s1457, 0
    %s1459 = scalar_select %p1458, 0, 255
    %s1460 = sshrl.u32 %s1459, 1
    %s1461 = sor.u32 %s1459, %s1460
    %s1462 = sand.u32 %s1461, 85
    %s1463 = sshrl.u32 %s1462, 1
    %s1464 = sor.u32 %s1462, %s1463
    %s1465 = sand.u32 51, %s1464
    %s1466 = sshrl.u32 %s1465, 2
    %s1467 = sor.u32 %s1465, %s1466
    %s1468 = sand.u32 15, %s1467
    %v1469 = vld [vmem:[%s1456] sm:%s1468]
    %v1470 = vunpack.c.l.bf16 %v1469
    %v1471 = vunpack.c.h.bf16 %v1469
    %s1472 = scalar_lea.vmem %s144, 64
    %s1473 = ssub.s32 0, 0
    %p1474 = scmp.lt.s32.totalorder %s1473, 0
    %s1475 = scalar_select %p1474, 0, 255
    %s1476 = sshrl.u32 %s1475, 1
    %s1477 = sor.u32 %s1475, %s1476
    %s1478 = sand.u32 %s1477, 85
    %s1479 = sshrl.u32 %s1478, 1
    %s1480 = sor.u32 %s1478, %s1479
    %s1481 = sand.u32 51, %s1480
    %s1482 = sshrl.u32 %s1481, 2
    %s1483 = sor.u32 %s1481, %s1482
    %s1484 = sand.u32 15, %s1483
    %v1485 = vld [vmem:[%s1472] sm:%s1484]
    %v1486 = vunpack.c.l.bf16 %v1485
    %v1487 = vunpack.c.h.bf16 %v1485
    %s1488 = scalar_lea.vmem %s6, 64
    %s1490 = sor.u32 255, 127
    %s1491 = sand.u32 %s1490, 85
    %s1492 = sshrl.u32 %s1491, 1
    %s1493 = sor.u32 %s1491, %s1492
    %s1494 = sand.u32 51, %s1493
    %s1495 = sshrl.u32 %s1494, 2
    %s1496 = sor.u32 %s1494, %s1495
    %s1497 = sand.u32 15, %s1496
    %v1498 = vld [vmem:[%s1488] sm:%s1497]
    %v1499 = vunpack.c.l.bf16 %v1498
    %v1500 = vunpack.c.h.bf16 %v1498
    %v1501 = vlaneseq
    %v1502 = vand.u32 %v1501, 127
    %vm1504 = vcmp.lt.s32.totalorder %v1502, 50
    %v1505 = vsel %vm1504, %v1499, %v28
    %s1506 = scalar_lea.vmem %s118, 68
    %s1507 = ssub.s32 0, 0
    %p1508 = scmp.lt.s32.totalorder %s1507, 0
    %s1509 = scalar_select %p1508, 0, 255
    %s1510 = sshrl.u32 %s1509, 1
    %s1511 = sor.u32 %s1509, %s1510
    %s1512 = sand.u32 %s1511, 85
    %s1513 = sshrl.u32 %s1512, 1
    %s1514 = sor.u32 %s1512, %s1513
    %s1515 = sand.u32 51, %s1514
    %s1516 = sshrl.u32 %s1515, 2
    %s1517 = sor.u32 %s1515, %s1516
    %s1518 = sand.u32 15, %s1517
    %v1519 = vld [vmem:[%s1506] sm:%s1518]
    %v1520 = vunpack.c.l.bf16 %v1519
    %v1521 = vunpack.c.h.bf16 %v1519
    %s1522 = scalar_lea.vmem %s131, 68
    %s1523 = ssub.s32 0, 0
    %p1524 = scmp.lt.s32.totalorder %s1523, 0
    %s1525 = scalar_select %p1524, 0, 255
    %s1526 = sshrl.u32 %s1525, 1
    %s1527 = sor.u32 %s1525, %s1526
    %s1528 = sand.u32 %s1527, 85
    %s1529 = sshrl.u32 %s1528, 1
    %s1530 = sor.u32 %s1528, %s1529
    %s1531 = sand.u32 51, %s1530
    %s1532 = sshrl.u32 %s1531, 2
    %s1533 = sor.u32 %s1531, %s1532
    %s1534 = sand.u32 15, %s1533
    %v1535 = vld [vmem:[%s1522] sm:%s1534]
    %v1536 = vunpack.c.l.bf16 %v1535
    %v1537 = vunpack.c.h.bf16 %v1535
    %s1538 = scalar_lea.vmem %s144, 68
    %s1539 = ssub.s32 0, 0
    %p1540 = scmp.lt.s32.totalorder %s1539, 0
    %s1541 = scalar_select %p1540, 0, 255
    %s1542 = sshrl.u32 %s1541, 1
    %s1543 = sor.u32 %s1541, %s1542
    %s1544 = sand.u32 %s1543, 85
    %s1545 = sshrl.u32 %s1544, 1
    %s1546 = sor.u32 %s1544, %s1545
    %s1547 = sand.u32 51, %s1546
    %s1548 = sshrl.u32 %s1547, 2
    %s1549 = sor.u32 %s1547, %s1548
    %s1550 = sand.u32 15, %s1549
    %v1551 = vld [vmem:[%s1538] sm:%s1550]
    %v1552 = vunpack.c.l.bf16 %v1551
    %v1553 = vunpack.c.h.bf16 %v1551
    %s1554 = scalar_lea.vmem %s6, 68
    %s1556 = sor.u32 255, 127
    %s1557 = sand.u32 %s1556, 85
    %s1558 = sshrl.u32 %s1557, 1
    %s1559 = sor.u32 %s1557, %s1558
    %s1560 = sand.u32 51, %s1559
    %s1561 = sshrl.u32 %s1560, 2
    %s1562 = sor.u32 %s1560, %s1561
    %s1563 = sand.u32 15, %s1562
    %v1564 = vld [vmem:[%s1554] sm:%s1563]
    %v1565 = vunpack.c.l.bf16 %v1564
    %v1566 = vunpack.c.h.bf16 %v1564
    %v1567 = vlaneseq
    %v1568 = vand.u32 %v1567, 127
    %vm1570 = vcmp.lt.s32.totalorder %v1568, 50
    %v1571 = vsel %vm1570, %v1565, %v28
    %v1572 = vpack.c.bf16 %v13, %v13
    %v1574 = vpack.c.bf16 %v18, %v18
    %v1576 = vpack.c.bf16 %v23, %v23
    %v1578 = vpack.c.bf16 %v1571, %v1505
    %1580 = xla_tuple %v1578, %v1576
    %1581 = xla_tuple %1580
    %v1582 = vmax.bf16 %v1578, %v1576
    %1583 = xla_tuple %v1582
    %1584 = xla_tuple %v1582, %v1574
    %1585 = xla_tuple %1584
    %v1586 = vmax.bf16 %v1582, %v1574
    %1587 = xla_tuple %v1586
    %1588 = xla_tuple %v1586, %v1572
    %1589 = xla_tuple %1588
    %v1590 = vmax.bf16 %v1586, %v1572
    %1591 = xla_tuple %v1590
    %v1592 = vunpack.c.l.bf16 %v1590
    %v1593 = vunpack.c.h.bf16 %v1590
    %s1594 = scalar_lea.vmem [#allocation22], 64
    %v1595 = vpack.c.bf16 0.0, %v1592
    %1597 = vst [vmem:[%s1594] sm:$0xf] %v1595
    %s1598 = scalar_lea.vmem [#allocation22], 68
    %v1599 = vpack.c.bf16 0.0, %v1593
    %1601 = vst [vmem:[%s1598] sm:$0xf] %v1599
    %s1602 = scalar_lea.vmem %s118, 72
    %s1603 = ssub.s32 0, 0
    %p1604 = scmp.lt.s32.totalorder %s1603, 0
    %s1605 = scalar_select %p1604, 0, 255
    %s1606 = sshrl.u32 %s1605, 1
    %s1607 = sor.u32 %s1605, %s1606
    %s1608 = sand.u32 %s1607, 85
    %s1609 = sshrl.u32 %s1608, 1
    %s1610 = sor.u32 %s1608, %s1609
    %s1611 = sand.u32 51, %s1610
    %s1612 = sshrl.u32 %s1611, 2
    %s1613 = sor.u32 %s1611, %s1612
    %s1614 = sand.u32 15, %s1613
    %v1615 = vld [vmem:[%s1602] sm:%s1614]
    %v1616 = vunpack.c.l.bf16 %v1615
    %v1617 = vunpack.c.h.bf16 %v1615
    %s1618 = scalar_lea.vmem %s131, 72
    %s1619 = ssub.s32 0, 0
    %p1620 = scmp.lt.s32.totalorder %s1619, 0
    %s1621 = scalar_select %p1620, 0, 255
    %s1622 = sshrl.u32 %s1621, 1
    %s1623 = sor.u32 %s1621, %s1622
    %s1624 = sand.u32 %s1623, 85
    %s1625 = sshrl.u32 %s1624, 1
    %s1626 = sor.u32 %s1624, %s1625
    %s1627 = sand.u32 51, %s1626
    %s1628 = sshrl.u32 %s1627, 2
    %s1629 = sor.u32 %s1627, %s1628
    %s1630 = sand.u32 15, %s1629
    %v1631 = vld [vmem:[%s1618] sm:%s1630]
    %v1632 = vunpack.c.l.bf16 %v1631
    %v1633 = vunpack.c.h.bf16 %v1631
    %s1634 = scalar_lea.vmem %s144, 72
    %s1635 = ssub.s32 0, 0
    %p1636 = scmp.lt.s32.totalorder %s1635, 0
    %s1637 = scalar_select %p1636, 0, 255
    %s1638 = sshrl.u32 %s1637, 1
    %s1639 = sor.u32 %s1637, %s1638
    %s1640 = sand.u32 %s1639, 85
    %s1641 = sshrl.u32 %s1640, 1
    %s1642 = sor.u32 %s1640, %s1641
    %s1643 = sand.u32 51, %s1642
    %s1644 = sshrl.u32 %s1643, 2
    %s1645 = sor.u32 %s1643, %s1644
    %s1646 = sand.u32 15, %s1645
    %v1647 = vld [vmem:[%s1634] sm:%s1646]
    %v1648 = vunpack.c.l.bf16 %v1647
    %v1649 = vunpack.c.h.bf16 %v1647
    %s1650 = scalar_lea.vmem %s6, 72
    %s1652 = sor.u32 255, 127
    %s1653 = sand.u32 %s1652, 85
    %s1654 = sshrl.u32 %s1653, 1
    %s1655 = sor.u32 %s1653, %s1654
    %s1656 = sand.u32 51, %s1655
    %s1657 = sshrl.u32 %s1656, 2
    %s1658 = sor.u32 %s1656, %s1657
    %s1659 = sand.u32 15, %s1658
    %v1660 = vld [vmem:[%s1650] sm:%s1659]
    %v1661 = vunpack.c.l.bf16 %v1660
    %v1662 = vunpack.c.h.bf16 %v1660
    %v1663 = vlaneseq
    %v1664 = vand.u32 %v1663, 127
    %vm1666 = vcmp.lt.s32.totalorder %v1664, 50
    %v1667 = vsel %vm1666, %v1661, %v28
    %s1668 = scalar_lea.vmem %s118, 76
    %s1669 = ssub.s32 0, 0
    %p1670 = scmp.lt.s32.totalorder %s1669, 0
    %s1671 = scalar_select %p1670, 0, 255
    %s1672 = sshrl.u32 %s1671, 1
    %s1673 = sor.u32 %s1671, %s1672
    %s1674 = sand.u32 %s1673, 85
    %s1675 = sshrl.u32 %s1674, 1
    %s1676 = sor.u32 %s1674, %s1675
    %s1677 = sand.u32 51, %s1676
    %s1678 = sshrl.u32 %s1677, 2
    %s1679 = sor.u32 %s1677, %s1678
    %s1680 = sand.u32 15, %s1679
    %v1681 = vld [vmem:[%s1668] sm:%s1680]
    %v1682 = vunpack.c.l.bf16 %v1681
    %v1683 = vunpack.c.h.bf16 %v1681
    %s1684 = scalar_lea.vmem %s131, 76
    %s1685 = ssub.s32 0, 0
    %p1686 = scmp.lt.s32.totalorder %s1685, 0
    %s1687 = scalar_select %p1686, 0, 255
    %s1688 = sshrl.u32 %s1687, 1
    %s1689 = sor.u32 %s1687, %s1688
    %s1690 = sand.u32 %s1689, 85
    %s1691 = sshrl.u32 %s1690, 1
    %s1692 = sor.u32 %s1690, %s1691
    %s1693 = sand.u32 51, %s1692
    %s1694 = sshrl.u32 %s1693, 2
    %s1695 = sor.u32 %s1693, %s1694
    %s1696 = sand.u32 15, %s1695
    %v1697 = vld [vmem:[%s1684] sm:%s1696]
    %v1698 = vunpack.c.l.bf16 %v1697
    %v1699 = vunpack.c.h.bf16 %v1697
    %s1700 = scalar_lea.vmem %s144, 76
    %s1701 = ssub.s32 0, 0
    %p1702 = scmp.lt.s32.totalorder %s1701, 0
    %s1703 = scalar_select %p1702, 0, 255
    %s1704 = sshrl.u32 %s1703, 1
    %s1705 = sor.u32 %s1703, %s1704
    %s1706 = sand.u32 %s1705, 85
    %s1707 = sshrl.u32 %s1706, 1
    %s1708 = sor.u32 %s1706, %s1707
    %s1709 = sand.u32 51, %s1708
    %s1710 = sshrl.u32 %s1709, 2
    %s1711 = sor.u32 %s1709, %s1710
    %s1712 = sand.u32 15, %s1711
    %v1713 = vld [vmem:[%s1700] sm:%s1712]
    %v1714 = vunpack.c.l.bf16 %v1713
    %v1715 = vunpack.c.h.bf16 %v1713
    %s1716 = scalar_lea.vmem %s6, 76
    %s1718 = sor.u32 255, 127
    %s1719 = sand.u32 %s1718, 85
    %s1720 = sshrl.u32 %s1719, 1
    %s1721 = sor.u32 %s1719, %s1720
    %s1722 = sand.u32 51, %s1721
    %s1723 = sshrl.u32 %s1722, 2
    %s1724 = sor.u32 %s1722, %s1723
    %s1725 = sand.u32 15, %s1724
    %v1726 = vld [vmem:[%s1716] sm:%s1725]
    %v1727 = vunpack.c.l.bf16 %v1726
    %v1728 = vunpack.c.h.bf16 %v1726
    %v1729 = vlaneseq
    %v1730 = vand.u32 %v1729, 127
    %vm1732 = vcmp.lt.s32.totalorder %v1730, 50
    %v1733 = vsel %vm1732, %v1727, %v28
    %v1734 = vpack.c.bf16 %v13, %v13
    %v1736 = vpack.c.bf16 %v18, %v18
    %v1738 = vpack.c.bf16 %v23, %v23
    %v1740 = vpack.c.bf16 %v1733, %v1667
    %1742 = xla_tuple %v1740, %v1738
    %1743 = xla_tuple %1742
    %v1744 = vmax.bf16 %v1740, %v1738
    %1745 = xla_tuple %v1744
    %1746 = xla_tuple %v1744, %v1736
    %1747 = xla_tuple %1746
    %v1748 = vmax.bf16 %v1744, %v1736
    %1749 = xla_tuple %v1748
    %1750 = xla_tuple %v1748, %v1734
    %1751 = xla_tuple %1750
    %v1752 = vmax.bf16 %v1748, %v1734
    %1753 = xla_tuple %v1752
    %v1754 = vunpack.c.l.bf16 %v1752
    %v1755 = vunpack.c.h.bf16 %v1752
    %s1756 = scalar_lea.vmem [#allocation22], 72
    %v1757 = vpack.c.bf16 0.0, %v1754
    %1759 = vst [vmem:[%s1756] sm:$0xf] %v1757
    %s1760 = scalar_lea.vmem [#allocation22], 76
    %v1761 = vpack.c.bf16 0.0, %v1755
    %1763 = vst [vmem:[%s1760] sm:$0xf] %v1761
    %s1764 = scalar_lea.vmem %s118, 80
    %s1765 = ssub.s32 0, 0
    %p1766 = scmp.lt.s32.totalorder %s1765, 0
    %s1767 = scalar_select %p1766, 0, 255
    %s1768 = sshrl.u32 %s1767, 1
    %s1769 = sor.u32 %s1767, %s1768
    %s1770 = sand.u32 %s1769, 85
    %s1771 = sshrl.u32 %s1770, 1
    %s1772 = sor.u32 %s1770, %s1771
    %s1773 = sand.u32 51, %s1772
    %s1774 = sshrl.u32 %s1773, 2
    %s1775 = sor.u32 %s1773, %s1774
    %s1776 = sand.u32 15, %s1775
    %v1777 = vld [vmem:[%s1764] sm:%s1776]
    %v1778 = vunpack.c.l.bf16 %v1777
    %v1779 = vunpack.c.h.bf16 %v1777
    %s1780 = scalar_lea.vmem %s131, 80
    %s1781 = ssub.s32 0, 0
    %p1782 = scmp.lt.s32.totalorder %s1781, 0
    %s1783 = scalar_select %p1782, 0, 255
    %s1784 = sshrl.u32 %s1783, 1
    %s1785 = sor.u32 %s1783, %s1784
    %s1786 = sand.u32 %s1785, 85
    %s1787 = sshrl.u32 %s1786, 1
    %s1788 = sor.u32 %s1786, %s1787
    %s1789 = sand.u32 51, %s1788
    %s1790 = sshrl.u32 %s1789, 2
    %s1791 = sor.u32 %s1789, %s1790
    %s1792 = sand.u32 15, %s1791
    %v1793 = vld [vmem:[%s1780] sm:%s1792]
    %v1794 = vunpack.c.l.bf16 %v1793
    %v1795 = vunpack.c.h.bf16 %v1793
    %s1796 = scalar_lea.vmem %s144, 80
    %s1797 = ssub.s32 0, 0
    %p1798 = scmp.lt.s32.totalorder %s1797, 0
    %s1799 = scalar_select %p1798, 0, 255
    %s1800 = sshrl.u32 %s1799, 1
    %s1801 = sor.u32 %s1799, %s1800
    %s1802 = sand.u32 %s1801, 85
    %s1803 = sshrl.u32 %s1802, 1
    %s1804 = sor.u32 %s1802, %s1803
    %s1805 = sand.u32 51, %s1804
    %s1806 = sshrl.u32 %s1805, 2
    %s1807 = sor.u32 %s1805, %s1806
    %s1808 = sand.u32 15, %s1807
    %v1809 = vld [vmem:[%s1796] sm:%s1808]
    %v1810 = vunpack.c.l.bf16 %v1809
    %v1811 = vunpack.c.h.bf16 %v1809
    %s1812 = scalar_lea.vmem %s6, 80
    %s1814 = sor.u32 255, 127
    %s1815 = sand.u32 %s1814, 85
    %s1816 = sshrl.u32 %s1815, 1
    %s1817 = sor.u32 %s1815, %s1816
    %s1818 = sand.u32 51, %s1817
    %s1819 = sshrl.u32 %s1818, 2
    %s1820 = sor.u32 %s1818, %s1819
    %s1821 = sand.u32 15, %s1820
    %v1822 = vld [vmem:[%s1812] sm:%s1821]
    %v1823 = vunpack.c.l.bf16 %v1822
    %v1824 = vunpack.c.h.bf16 %v1822
    %v1825 = vlaneseq
    %v1826 = vand.u32 %v1825, 127
    %vm1828 = vcmp.lt.s32.totalorder %v1826, 50
    %v1829 = vsel %vm1828, %v1823, %v28
    %s1830 = scalar_lea.vmem %s118, 84
    %s1831 = ssub.s32 0, 0
    %p1832 = scmp.lt.s32.totalorder %s1831, 0
    %s1833 = scalar_select %p1832, 0, 255
    %s1834 = sshrl.u32 %s1833, 1
    %s1835 = sor.u32 %s1833, %s1834
    %s1836 = sand.u32 %s1835, 85
    %s1837 = sshrl.u32 %s1836, 1
    %s1838 = sor.u32 %s1836, %s1837
    %s1839 = sand.u32 51, %s1838
    %s1840 = sshrl.u32 %s1839, 2
    %s1841 = sor.u32 %s1839, %s1840
    %s1842 = sand.u32 15, %s1841
    %v1843 = vld [vmem:[%s1830] sm:%s1842]
    %v1844 = vunpack.c.l.bf16 %v1843
    %v1845 = vunpack.c.h.bf16 %v1843
    %s1846 = scalar_lea.vmem %s131, 84
    %s1847 = ssub.s32 0, 0
    %p1848 = scmp.lt.s32.totalorder %s1847, 0
    %s1849 = scalar_select %p1848, 0, 255
    %s1850 = sshrl.u32 %s1849, 1
    %s1851 = sor.u32 %s1849, %s1850
    %s1852 = sand.u32 %s1851, 85
    %s1853 = sshrl.u32 %s1852, 1
    %s1854 = sor.u32 %s1852, %s1853
    %s1855 = sand.u32 51, %s1854
    %s1856 = sshrl.u32 %s1855, 2
    %s1857 = sor.u32 %s1855, %s1856
    %s1858 = sand.u32 15, %s1857
    %v1859 = vld [vmem:[%s1846] sm:%s1858]
    %v1860 = vunpack.c.l.bf16 %v1859
    %v1861 = vunpack.c.h.bf16 %v1859
    %s1862 = scalar_lea.vmem %s144, 84
    %s1863 = ssub.s32 0, 0
    %p1864 = scmp.lt.s32.totalorder %s1863, 0
    %s1865 = scalar_select %p1864, 0, 255
    %s1866 = sshrl.u32 %s1865, 1
    %s1867 = sor.u32 %s1865, %s1866
    %s1868 = sand.u32 %s1867, 85
    %s1869 = sshrl.u32 %s1868, 1
    %s1870 = sor.u32 %s1868, %s1869
    %s1871 = sand.u32 51, %s1870
    %s1872 = sshrl.u32 %s1871, 2
    %s1873 = sor.u32 %s1871, %s1872
    %s1874 = sand.u32 15, %s1873
    %v1875 = vld [vmem:[%s1862] sm:%s1874]
    %v1876 = vunpack.c.l.bf16 %v1875
    %v1877 = vunpack.c.h.bf16 %v1875
    %s1878 = scalar_lea.vmem %s6, 84
    %s1880 = sor.u32 255, 127
    %s1881 = sand.u32 %s1880, 85
    %s1882 = sshrl.u32 %s1881, 1
    %s1883 = sor.u32 %s1881, %s1882
    %s1884 = sand.u32 51, %s1883
    %s1885 = sshrl.u32 %s1884, 2
    %s1886 = sor.u32 %s1884, %s1885
    %s1887 = sand.u32 15, %s1886
    %v1888 = vld [vmem:[%s1878] sm:%s1887]
    %v1889 = vunpack.c.l.bf16 %v1888
    %v1890 = vunpack.c.h.bf16 %v1888
    %v1891 = vlaneseq
    %v1892 = vand.u32 %v1891, 127
    %vm1894 = vcmp.lt.s32.totalorder %v1892, 50
    %v1895 = vsel %vm1894, %v1889, %v28
    %v1896 = vpack.c.bf16 %v13, %v13
    %v1898 = vpack.c.bf16 %v18, %v18
    %v1900 = vpack.c.bf16 %v23, %v23
    %v1902 = vpack.c.bf16 %v1895, %v1829
    %1904 = xla_tuple %v1902, %v1900
    %1905 = xla_tuple %1904
    %v1906 = vmax.bf16 %v1902, %v1900
    %1907 = xla_tuple %v1906
    %1908 = xla_tuple %v1906, %v1898
    %1909 = xla_tuple %1908
    %v1910 = vmax.bf16 %v1906, %v1898
    %1911 = xla_tuple %v1910
    %1912 = xla_tuple %v1910, %v1896
    %1913 = xla_tuple %1912
    %v1914 = vmax.bf16 %v1910, %v1896
    %1915 = xla_tuple %v1914
    %v1916 = vunpack.c.l.bf16 %v1914
    %v1917 = vunpack.c.h.bf16 %v1914
    %s1918 = scalar_lea.vmem [#allocation22], 80
    %v1919 = vpack.c.bf16 0.0, %v1916
    %1921 = vst [vmem:[%s1918] sm:$0xf] %v1919
    %s1922 = scalar_lea.vmem [#allocation22], 84
    %v1923 = vpack.c.bf16 0.0, %v1917
    %1925 = vst [vmem:[%s1922] sm:$0xf] %v1923
    %s1926 = scalar_lea.vmem %s118, 88
    %s1927 = ssub.s32 0, 0
    %p1928 = scmp.lt.s32.totalorder %s1927, 0
    %s1929 = scalar_select %p1928, 0, 255
    %s1930 = sshrl.u32 %s1929, 1
    %s1931 = sor.u32 %s1929, %s1930
    %s1932 = sand.u32 %s1931, 85
    %s1933 = sshrl.u32 %s1932, 1
    %s1934 = sor.u32 %s1932, %s1933
    %s1935 = sand.u32 51, %s1934
    %s1936 = sshrl.u32 %s1935, 2
    %s1937 = sor.u32 %s1935, %s1936
    %s1938 = sand.u32 15, %s1937
    %v1939 = vld [vmem:[%s1926] sm:%s1938]
    %v1940 = vunpack.c.l.bf16 %v1939
    %v1941 = vunpack.c.h.bf16 %v1939
    %s1942 = scalar_lea.vmem %s131, 88
    %s1943 = ssub.s32 0, 0
    %p1944 = scmp.lt.s32.totalorder %s1943, 0
    %s1945 = scalar_select %p1944, 0, 255
    %s1946 = sshrl.u32 %s1945, 1
    %s1947 = sor.u32 %s1945, %s1946
    %s1948 = sand.u32 %s1947, 85
    %s1949 = sshrl.u32 %s1948, 1
    %s1950 = sor.u32 %s1948, %s1949
    %s1951 = sand.u32 51, %s1950
    %s1952 = sshrl.u32 %s1951, 2
    %s1953 = sor.u32 %s1951, %s1952
    %s1954 = sand.u32 15, %s1953
    %v1955 = vld [vmem:[%s1942] sm:%s1954]
    %v1956 = vunpack.c.l.bf16 %v1955
    %v1957 = vunpack.c.h.bf16 %v1955
    %s1958 = scalar_lea.vmem %s144, 88
    %s1959 = ssub.s32 0, 0
    %p1960 = scmp.lt.s32.totalorder %s1959, 0
    %s1961 = scalar_select %p1960, 0, 255
    %s1962 = sshrl.u32 %s1961, 1
    %s1963 = sor.u32 %s1961, %s1962
    %s1964 = sand.u32 %s1963, 85
    %s1965 = sshrl.u32 %s1964, 1
    %s1966 = sor.u32 %s1964, %s1965
    %s1967 = sand.u32 51, %s1966
    %s1968 = sshrl.u32 %s1967, 2
    %s1969 = sor.u32 %s1967, %s1968
    %s1970 = sand.u32 15, %s1969
    %v1971 = vld [vmem:[%s1958] sm:%s1970]
    %v1972 = vunpack.c.l.bf16 %v1971
    %v1973 = vunpack.c.h.bf16 %v1971
    %s1974 = scalar_lea.vmem %s6, 88
    %s1976 = sor.u32 255, 127
    %s1977 = sand.u32 %s1976, 85
    %s1978 = sshrl.u32 %s1977, 1
    %s1979 = sor.u32 %s1977, %s1978
    %s1980 = sand.u32 51, %s1979
    %s1981 = sshrl.u32 %s1980, 2
    %s1982 = sor.u32 %s1980, %s1981
    %s1983 = sand.u32 15, %s1982
    %v1984 = vld [vmem:[%s1974] sm:%s1983]
    %v1985 = vunpack.c.l.bf16 %v1984
    %v1986 = vunpack.c.h.bf16 %v1984
    %v1987 = vlaneseq
    %v1988 = vand.u32 %v1987, 127
    %vm1990 = vcmp.lt.s32.totalorder %v1988, 50
    %v1991 = vsel %vm1990, %v1985, %v28
    %s1992 = scalar_lea.vmem %s118, 92
    %s1993 = ssub.s32 0, 0
    %p1994 = scmp.lt.s32.totalorder %s1993, 0
    %s1995 = scalar_select %p1994, 0, 255
    %s1996 = sshrl.u32 %s1995, 1
    %s1997 = sor.u32 %s1995, %s1996
    %s1998 = sand.u32 %s1997, 85
    %s1999 = sshrl.u32 %s1998, 1
    %s2000 = sor.u32 %s1998, %s1999
    %s2001 = sand.u32 51, %s2000
    %s2002 = sshrl.u32 %s2001, 2
    %s2003 = sor.u32 %s2001, %s2002
    %s2004 = sand.u32 15, %s2003
    %v2005 = vld [vmem:[%s1992] sm:%s2004]
    %v2006 = vunpack.c.l.bf16 %v2005
    %v2007 = vunpack.c.h.bf16 %v2005
    %s2008 = scalar_lea.vmem %s131, 92
    %s2009 = ssub.s32 0, 0
    %p2010 = scmp.lt.s32.totalorder %s2009, 0
    %s2011 = scalar_select %p2010, 0, 255
    %s2012 = sshrl.u32 %s2011, 1
    %s2013 = sor.u32 %s2011, %s2012
    %s2014 = sand.u32 %s2013, 85
    %s2015 = sshrl.u32 %s2014, 1
    %s2016 = sor.u32 %s2014, %s2015
    %s2017 = sand.u32 51, %s2016
    %s2018 = sshrl.u32 %s2017, 2
    %s2019 = sor.u32 %s2017, %s2018
    %s2020 = sand.u32 15, %s2019
    %v2021 = vld [vmem:[%s2008] sm:%s2020]
    %v2022 = vunpack.c.l.bf16 %v2021
    %v2023 = vunpack.c.h.bf16 %v2021
    %s2024 = scalar_lea.vmem %s144, 92
    %s2025 = ssub.s32 0, 0
    %p2026 = scmp.lt.s32.totalorder %s2025, 0
    %s2027 = scalar_select %p2026, 0, 255
    %s2028 = sshrl.u32 %s2027, 1
    %s2029 = sor.u32 %s2027, %s2028
    %s2030 = sand.u32 %s2029, 85
    %s2031 = sshrl.u32 %s2030, 1
    %s2032 = sor.u32 %s2030, %s2031
    %s2033 = sand.u32 51, %s2032
    %s2034 = sshrl.u32 %s2033, 2
    %s2035 = sor.u32 %s2033, %s2034
    %s2036 = sand.u32 15, %s2035
    %v2037 = vld [vmem:[%s2024] sm:%s2036]
    %v2038 = vunpack.c.l.bf16 %v2037
    %v2039 = vunpack.c.h.bf16 %v2037
    %s2040 = scalar_lea.vmem %s6, 92
    %s2042 = sor.u32 255, 127
    %s2043 = sand.u32 %s2042, 85
    %s2044 = sshrl.u32 %s2043, 1
    %s2045 = sor.u32 %s2043, %s2044
    %s2046 = sand.u32 51, %s2045
    %s2047 = sshrl.u32 %s2046, 2
    %s2048 = sor.u32 %s2046, %s2047
    %s2049 = sand.u32 15, %s2048
    %v2050 = vld [vmem:[%s2040] sm:%s2049]
    %v2051 = vunpack.c.l.bf16 %v2050
    %v2052 = vunpack.c.h.bf16 %v2050
    %v2053 = vlaneseq
    %v2054 = vand.u32 %v2053, 127
    %vm2056 = vcmp.lt.s32.totalorder %v2054, 50
    %v2057 = vsel %vm2056, %v2051, %v28
    %v2058 = vpack.c.bf16 %v13, %v13
    %v2060 = vpack.c.bf16 %v18, %v18
    %v2062 = vpack.c.bf16 %v23, %v23
    %v2064 = vpack.c.bf16 %v2057, %v1991
    %2066 = xla_tuple %v2064, %v2062
    %2067 = xla_tuple %2066
    %v2068 = vmax.bf16 %v2064, %v2062
    %2069 = xla_tuple %v2068
    %2070 = xla_tuple %v2068, %v2060
    %2071 = xla_tuple %2070
    %v2072 = vmax.bf16 %v2068, %v2060
    %2073 = xla_tuple %v2072
    %2074 = xla_tuple %v2072, %v2058
    %2075 = xla_tuple %2074
    %v2076 = vmax.bf16 %v2072, %v2058
    %2077 = xla_tuple %v2076
    %v2078 = vunpack.c.l.bf16 %v2076
    %v2079 = vunpack.c.h.bf16 %v2076
    %s2080 = scalar_lea.vmem [#allocation22], 88
    %v2081 = vpack.c.bf16 0.0, %v2078
    %2083 = vst [vmem:[%s2080] sm:$0xf] %v2081
    %s2084 = scalar_lea.vmem [#allocation22], 92
    %v2085 = vpack.c.bf16 0.0, %v2079
    %2087 = vst [vmem:[%s2084] sm:$0xf] %v2085
    %s2088 = scalar_lea.vmem %s118, 96
    %s2089 = ssub.s32 0, 0
    %p2090 = scmp.lt.s32.totalorder %s2089, 0
    %s2091 = scalar_select %p2090, 0, 255
    %s2092 = sshrl.u32 %s2091, 1
    %s2093 = sor.u32 %s2091, %s2092
    %s2094 = sand.u32 %s2093, 85
    %s2095 = sshrl.u32 %s2094, 1
    %s2096 = sor.u32 %s2094, %s2095
    %s2097 = sand.u32 51, %s2096
    %s2098 = sshrl.u32 %s2097, 2
    %s2099 = sor.u32 %s2097, %s2098
    %s2100 = sand.u32 15, %s2099
    %v2101 = vld [vmem:[%s2088] sm:%s2100]
    %v2102 = vunpack.c.l.bf16 %v2101
    %v2103 = vunpack.c.h.bf16 %v2101
    %s2104 = scalar_lea.vmem %s131, 96
    %s2105 = ssub.s32 0, 0
    %p2106 = scmp.lt.s32.totalorder %s2105, 0
    %s2107 = scalar_select %p2106, 0, 255
    %s2108 = sshrl.u32 %s2107, 1
    %s2109 = sor.u32 %s2107, %s2108
    %s2110 = sand.u32 %s2109, 85
    %s2111 = sshrl.u32 %s2110, 1
    %s2112 = sor.u32 %s2110, %s2111
    %s2113 = sand.u32 51, %s2112
    %s2114 = sshrl.u32 %s2113, 2
    %s2115 = sor.u32 %s2113, %s2114
    %s2116 = sand.u32 15, %s2115
    %v2117 = vld [vmem:[%s2104] sm:%s2116]
    %v2118 = vunpack.c.l.bf16 %v2117
    %v2119 = vunpack.c.h.bf16 %v2117
    %s2120 = scalar_lea.vmem %s144, 96
    %s2121 = ssub.s32 0, 0
    %p2122 = scmp.lt.s32.totalorder %s2121, 0
    %s2123 = scalar_select %p2122, 0, 255
    %s2124 = sshrl.u32 %s2123, 1
    %s2125 = sor.u32 %s2123, %s2124
    %s2126 = sand.u32 %s2125, 85
    %s2127 = sshrl.u32 %s2126, 1
    %s2128 = sor.u32 %s2126, %s2127
    %s2129 = sand.u32 51, %s2128
    %s2130 = sshrl.u32 %s2129, 2
    %s2131 = sor.u32 %s2129, %s2130
    %s2132 = sand.u32 15, %s2131
    %v2133 = vld [vmem:[%s2120] sm:%s2132]
    %v2134 = vunpack.c.l.bf16 %v2133
    %v2135 = vunpack.c.h.bf16 %v2133
    %s2136 = scalar_lea.vmem %s6, 96
    %s2138 = sor.u32 255, 127
    %s2139 = sand.u32 %s2138, 85
    %s2140 = sshrl.u32 %s2139, 1
    %s2141 = sor.u32 %s2139, %s2140
    %s2142 = sand.u32 51, %s2141
    %s2143 = sshrl.u32 %s2142, 2
    %s2144 = sor.u32 %s2142, %s2143
    %s2145 = sand.u32 15, %s2144
    %v2146 = vld [vmem:[%s2136] sm:%s2145]
    %v2147 = vunpack.c.l.bf16 %v2146
    %v2148 = vunpack.c.h.bf16 %v2146
    %v2149 = vlaneseq
    %v2150 = vand.u32 %v2149, 127
    %vm2152 = vcmp.lt.s32.totalorder %v2150, 50
    %v2153 = vsel %vm2152, %v2147, %v28
    %v2154 = vlaneseq
    %v2155 = vand.u32 %v2154, 127
    %vm2157 = vcmp.lt.s32.totalorder %v2155, 50
    %v2158 = vsel %vm2157, %v192, %v23
    %v2159 = vpack.c.bf16 %v13, %v13
    %v2161 = vpack.c.bf16 %v18, %v18
    %v2163 = vpack.c.bf16 %v2158, %v23
    %v2165 = vpack.c.bf16 %v28, %v2153
    %2167 = xla_tuple %v2165, %v2163
    %2168 = xla_tuple %2167
    %v2169 = vmax.bf16 %v2165, %v2163
    %2170 = xla_tuple %v2169
    %2171 = xla_tuple %v2169, %v2161
    %2172 = xla_tuple %2171
    %v2173 = vmax.bf16 %v2169, %v2161
    %2174 = xla_tuple %v2173
    %2175 = xla_tuple %v2173, %v2159
    %2176 = xla_tuple %2175
    %v2177 = vmax.bf16 %v2173, %v2159
    %2178 = xla_tuple %v2177
    %v2179 = vunpack.c.l.bf16 %v2177
    %v2180 = vunpack.c.h.bf16 %v2177
    %s2181 = scalar_lea.vmem [#allocation22], 96
    %v2182 = vpack.c.bf16 0.0, %v2179
    %2184 = vst [vmem:[%s2181] sm:$0xf] %v2182
    %s2185 = scalar_lea.vmem [#allocation22], 100
    %v2186 = vpack.c.bf16 0.0, %v2180
    %2188 = vst [vmem:[%s2185] sm:$0xf] %v2186
    %s2189 = scalar_lea.vmem %s118, 4
    %s2190 = scalar_lea.vmem %s131, 4
    %s2191 = scalar_lea.vmem %s144, 4
    %v2192 = vlaneseq
    %v2193 = vand.u32 %v2192, 127
    %vm2195 = vcmp.lt.s32.totalorder %v2193, 50
    %v2196 = vsel %vm2195, %v257, %v23
    %s2197 = scalar_lea.vmem %s118, 8
    %s2198 = scalar_lea.vmem %s131, 8
    %s2199 = scalar_lea.vmem %s144, 8
    %v2200 = vlaneseq
    %v2201 = vand.u32 %v2200, 127
    %vm2203 = vcmp.lt.s32.totalorder %v2201, 50
    %v2204 = vsel %vm2203, %v352, %v23
    %v2205 = vpack.c.bf16 %v13, %v13
    %v2207 = vpack.c.bf16 %v18, %v18
    %v2209 = vpack.c.bf16 %v2204, %v2196
    %v2211 = vpack.c.bf16 %v28, %v28
    %2213 = xla_tuple %v2211, %v2209
    %2214 = xla_tuple %2213
    %v2215 = vmax.bf16 %v2211, %v2209
    %2216 = xla_tuple %v2215
    %2217 = xla_tuple %v2215, %v2207
    %2218 = xla_tuple %2217
    %v2219 = vmax.bf16 %v2215, %v2207
    %2220 = xla_tuple %v2219
    %2221 = xla_tuple %v2219, %v2205
    %2222 = xla_tuple %2221
    %v2223 = vmax.bf16 %v2219, %v2205
    %2224 = xla_tuple %v2223
    %v2225 = vunpack.c.l.bf16 %v2223
    %v2226 = vunpack.c.h.bf16 %v2223
    %s2227 = scalar_lea.vmem [#allocation22], 104
    %v2228 = vpack.c.bf16 0.0, %v2225
    %2230 = vst [vmem:[%s2227] sm:$0xf] %v2228
    %s2231 = scalar_lea.vmem [#allocation22], 108
    %v2232 = vpack.c.bf16 0.0, %v2226
    %2234 = vst [vmem:[%s2231] sm:$0xf] %v2232
    %s2235 = scalar_lea.vmem %s118, 12
    %s2236 = scalar_lea.vmem %s131, 12
    %s2237 = scalar_lea.vmem %s144, 12
    %v2238 = vlaneseq
    %v2239 = vand.u32 %v2238, 127
    %vm2241 = vcmp.lt.s32.totalorder %v2239, 50
    %v2242 = vsel %vm2241, %v418, %v23
    %s2243 = scalar_lea.vmem %s118, 16
    %s2244 = scalar_lea.vmem %s131, 16
    %s2245 = scalar_lea.vmem %s144, 16
    %v2246 = vlaneseq
    %v2247 = vand.u32 %v2246, 127
    %vm2249 = vcmp.lt.s32.totalorder %v2247, 50
    %v2250 = vsel %vm2249, %v514, %v23
    %v2251 = vpack.c.bf16 %v13, %v13
    %v2253 = vpack.c.bf16 %v18, %v18
    %v2255 = vpack.c.bf16 %v2250, %v2242
    %v2257 = vpack.c.bf16 %v28, %v28
    %2259 = xla_tuple %v2257, %v2255
    %2260 = xla_tuple %2259
    %v2261 = vmax.bf16 %v2257, %v2255
    %2262 = xla_tuple %v2261
    %2263 = xla_tuple %v2261, %v2253
    %2264 = xla_tuple %2263
    %v2265 = vmax.bf16 %v2261, %v2253
    %2266 = xla_tuple %v2265
    %2267 = xla_tuple %v2265, %v2251
    %2268 = xla_tuple %2267
    %v2269 = vmax.bf16 %v2265, %v2251
    %2270 = xla_tuple %v2269
    %v2271 = vunpack.c.l.bf16 %v2269
    %v2272 = vunpack.c.h.bf16 %v2269
    %s2273 = scalar_lea.vmem [#allocation22], 112
    %v2274 = vpack.c.bf16 0.0, %v2271
    %2276 = vst [vmem:[%s2273] sm:$0xf] %v2274
    %s2277 = scalar_lea.vmem [#allocation22], 116
    %v2278 = vpack.c.bf16 0.0, %v2272
    %2280 = vst [vmem:[%s2277] sm:$0xf] %v2278
    %s2281 = scalar_lea.vmem %s118, 20
    %s2282 = scalar_lea.vmem %s131, 20
    %s2283 = scalar_lea.vmem %s144, 20
    %v2284 = vlaneseq
    %v2285 = vand.u32 %v2284, 127
    %vm2287 = vcmp.lt.s32.totalorder %v2285, 50
    %v2288 = vsel %vm2287, %v580, %v23
    %s2289 = scalar_lea.vmem %s118, 24
    %s2290 = scalar_lea.vmem %s131, 24
    %s2291 = scalar_lea.vmem %s144, 24
    %v2292 = vlaneseq
    %v2293 = vand.u32 %v2292, 127
    %vm2295 = vcmp.lt.s32.totalorder %v2293, 50
    %v2296 = vsel %vm2295, %v676, %v23
    %v2297 = vpack.c.bf16 %v13, %v13
    %v2299 = vpack.c.bf16 %v18, %v18
    %v2301 = vpack.c.bf16 %v2296, %v2288
    %v2303 = vpack.c.bf16 %v28, %v28
    %2305 = xla_tuple %v2303, %v2301
    %2306 = xla_tuple %2305
    %v2307 = vmax.bf16 %v2303, %v2301
    %2308 = xla_tuple %v2307
    %2309 = xla_tuple %v2307, %v2299
    %2310 = xla_tuple %2309
    %v2311 = vmax.bf16 %v2307, %v2299
    %2312 = xla_tuple %v2311
    %2313 = xla_tuple %v2311, %v2297
    %2314 = xla_tuple %2313
    %v2315 = vmax.bf16 %v2311, %v2297
    %2316 = xla_tuple %v2315
    %v2317 = vunpack.c.l.bf16 %v2315
    %v2318 = vunpack.c.h.bf16 %v2315
    %s2319 = scalar_lea.vmem [#allocation22], 120
    %v2320 = vpack.c.bf16 0.0, %v2317
    %2322 = vst [vmem:[%s2319] sm:$0xf] %v2320
    %s2323 = scalar_lea.vmem [#allocation22], 124
    %v2324 = vpack.c.bf16 0.0, %v2318
    %2326 = vst [vmem:[%s2323] sm:$0xf] %v2324
    %s2327 = scalar_lea.vmem %s118, 28
    %s2328 = scalar_lea.vmem %s131, 28
    %s2329 = scalar_lea.vmem %s144, 28
    %v2330 = vlaneseq
    %v2331 = vand.u32 %v2330, 127
    %vm2333 = vcmp.lt.s32.totalorder %v2331, 50
    %v2334 = vsel %vm2333, %v742, %v23
    %s2335 = scalar_lea.vmem %s118, 32
    %s2336 = scalar_lea.vmem %s131, 32
    %s2337 = scalar_lea.vmem %s144, 32
    %v2338 = vlaneseq
    %v2339 = vand.u32 %v2338, 127
    %vm2341 = vcmp.lt.s32.totalorder %v2339, 50
    %v2342 = vsel %vm2341, %v838, %v23
    %v2343 = vpack.c.bf16 %v13, %v13
    %v2345 = vpack.c.bf16 %v18, %v18
    %v2347 = vpack.c.bf16 %v2342, %v2334
    %v2349 = vpack.c.bf16 %v28, %v28
    %2351 = xla_tuple %v2349, %v2347
    %2352 = xla_tuple %2351
    %v2353 = vmax.bf16 %v2349, %v2347
    %2354 = xla_tuple %v2353
    %2355 = xla_tuple %v2353, %v2345
    %2356 = xla_tuple %2355
    %v2357 = vmax.bf16 %v2353, %v2345
    %2358 = xla_tuple %v2357
    %2359 = xla_tuple %v2357, %v2343
    %2360 = xla_tuple %2359
    %v2361 = vmax.bf16 %v2357, %v2343
    %2362 = xla_tuple %v2361
    %v2363 = vunpack.c.l.bf16 %v2361
    %v2364 = vunpack.c.h.bf16 %v2361
    %s2365 = scalar_lea.vmem [#allocation22], 128
    %v2366 = vpack.c.bf16 0.0, %v2363
    %2368 = vst [vmem:[%s2365] sm:$0xf] %v2366
    %s2369 = scalar_lea.vmem [#allocation22], 132
    %v2370 = vpack.c.bf16 0.0, %v2364
    %2372 = vst [vmem:[%s2369] sm:$0xf] %v2370
    %s2373 = scalar_lea.vmem %s118, 36
    %s2374 = scalar_lea.vmem %s131, 36
    %s2375 = scalar_lea.vmem %s144, 36
    %v2376 = vlaneseq
    %v2377 = vand.u32 %v2376, 127
    %vm2379 = vcmp.lt.s32.totalorder %v2377, 50
    %v2380 = vsel %vm2379, %v904, %v23
    %s2381 = scalar_lea.vmem %s118, 40
    %s2382 = scalar_lea.vmem %s131, 40
    %s2383 = scalar_lea.vmem %s144, 40
    %v2384 = vlaneseq
    %v2385 = vand.u32 %v2384, 127
    %vm2387 = vcmp.lt.s32.totalorder %v2385, 50
    %v2388 = vsel %vm2387, %v1000, %v23
    %v2389 = vpack.c.bf16 %v13, %v13
    %v2391 = vpack.c.bf16 %v18, %v18
    %v2393 = vpack.c.bf16 %v2388, %v2380
    %v2395 = vpack.c.bf16 %v28, %v28
    %2397 = xla_tuple %v2395, %v2393
    %2398 = xla_tuple %2397
    %v2399 = vmax.bf16 %v2395, %v2393
    %2400 = xla_tuple %v2399
    %2401 = xla_tuple %v2399, %v2391
    %2402 = xla_tuple %2401
    %v2403 = vmax.bf16 %v2399, %v2391
    %2404 = xla_tuple %v2403
    %2405 = xla_tuple %v2403, %v2389
    %2406 = xla_tuple %2405
    %v2407 = vmax.bf16 %v2403, %v2389
    %2408 = xla_tuple %v2407
    %v2409 = vunpack.c.l.bf16 %v2407
    %v2410 = vunpack.c.h.bf16 %v2407
    %s2411 = scalar_lea.vmem [#allocation22], 136
    %v2412 = vpack.c.bf16 0.0, %v2409
    %2414 = vst [vmem:[%s2411] sm:$0xf] %v2412
    %s2415 = scalar_lea.vmem [#allocation22], 140
    %v2416 = vpack.c.bf16 0.0, %v2410
    %2418 = vst [vmem:[%s2415] sm:$0xf] %v2416
    %s2419 = scalar_lea.vmem %s118, 44
    %s2420 = scalar_lea.vmem %s131, 44
    %s2421 = scalar_lea.vmem %s144, 44
    %v2422 = vlaneseq
    %v2423 = vand.u32 %v2422, 127
    %vm2425 = vcmp.lt.s32.totalorder %v2423, 50
    %v2426 = vsel %vm2425, %v1066, %v23
    %s2427 = scalar_lea.vmem %s118, 48
    %s2428 = scalar_lea.vmem %s131, 48
    %s2429 = scalar_lea.vmem %s144, 48
    %v2430 = vlaneseq
    %v2431 = vand.u32 %v2430, 127
    %vm2433 = vcmp.lt.s32.totalorder %v2431, 50
    %v2434 = vsel %vm2433, %v1162, %v23
    %v2435 = vpack.c.bf16 %v13, %v13
    %v2437 = vpack.c.bf16 %v18, %v18
    %v2439 = vpack.c.bf16 %v2434, %v2426
    %v2441 = vpack.c.bf16 %v28, %v28
    %2443 = xla_tuple %v2441, %v2439
    %2444 = xla_tuple %2443
    %v2445 = vmax.bf16 %v2441, %v2439
    %2446 = xla_tuple %v2445
    %2447 = xla_tuple %v2445, %v2437
    %2448 = xla_tuple %2447
    %v2449 = vmax.bf16 %v2445, %v2437
    %2450 = xla_tuple %v2449
    %2451 = xla_tuple %v2449, %v2435
    %2452 = xla_tuple %2451
    %v2453 = vmax.bf16 %v2449, %v2435
    %2454 = xla_tuple %v2453
    %v2455 = vunpack.c.l.bf16 %v2453
    %v2456 = vunpack.c.h.bf16 %v2453
    %s2457 = scalar_lea.vmem [#allocation22], 144
    %v2458 = vpack.c.bf16 0.0, %v2455
    %2460 = vst [vmem:[%s2457] sm:$0xf] %v2458
    %s2461 = scalar_lea.vmem [#allocation22], 148
    %v2462 = vpack.c.bf16 0.0, %v2456
    %2464 = vst [vmem:[%s2461] sm:$0xf] %v2462
    %s2465 = scalar_lea.vmem %s118, 52
    %s2466 = scalar_lea.vmem %s131, 52
    %s2467 = scalar_lea.vmem %s144, 52
    %v2468 = vlaneseq
    %v2469 = vand.u32 %v2468, 127
    %vm2471 = vcmp.lt.s32.totalorder %v2469, 50
    %v2472 = vsel %vm2471, %v1228, %v23
    %s2473 = scalar_lea.vmem %s118, 56
    %s2474 = scalar_lea.vmem %s131, 56
    %s2475 = scalar_lea.vmem %s144, 56
    %v2476 = vlaneseq
    %v2477 = vand.u32 %v2476, 127
    %vm2479 = vcmp.lt.s32.totalorder %v2477, 50
    %v2480 = vsel %vm2479, %v1324, %v23
    %v2481 = vpack.c.bf16 %v13, %v13
    %v2483 = vpack.c.bf16 %v18, %v18
    %v2485 = vpack.c.bf16 %v2480, %v2472
    %v2487 = vpack.c.bf16 %v28, %v28
    %2489 = xla_tuple %v2487, %v2485
    %2490 = xla_tuple %2489
    %v2491 = vmax.bf16 %v2487, %v2485
    %2492 = xla_tuple %v2491
    %2493 = xla_tuple %v2491, %v2483
    %2494 = xla_tuple %2493
    %v2495 = vmax.bf16 %v2491, %v2483
    %2496 = xla_tuple %v2495
    %2497 = xla_tuple %v2495, %v2481
    %2498 = xla_tuple %2497
    %v2499 = vmax.bf16 %v2495, %v2481
    %2500 = xla_tuple %v2499
    %v2501 = vunpack.c.l.bf16 %v2499
    %v2502 = vunpack.c.h.bf16 %v2499
    %s2503 = scalar_lea.vmem [#allocation22], 152
    %v2504 = vpack.c.bf16 0.0, %v2501
    %2506 = vst [vmem:[%s2503] sm:$0xf] %v2504
    %s2507 = scalar_lea.vmem [#allocation22], 156
    %v2508 = vpack.c.bf16 0.0, %v2502
    %2510 = vst [vmem:[%s2507] sm:$0xf] %v2508
    %s2511 = scalar_lea.vmem %s118, 60
    %s2512 = scalar_lea.vmem %s131, 60
    %s2513 = scalar_lea.vmem %s144, 60
    %v2514 = vlaneseq
    %v2515 = vand.u32 %v2514, 127
    %vm2517 = vcmp.lt.s32.totalorder %v2515, 50
    %v2518 = vsel %vm2517, %v1390, %v23
    %s2519 = scalar_lea.vmem %s118, 64
    %s2520 = scalar_lea.vmem %s131, 64
    %s2521 = scalar_lea.vmem %s144, 64
    %v2522 = vlaneseq
    %v2523 = vand.u32 %v2522, 127
    %vm2525 = vcmp.lt.s32.totalorder %v2523, 50
    %v2526 = vsel %vm2525, %v1486, %v23
    %v2527 = vpack.c.bf16 %v13, %v13
    %v2529 = vpack.c.bf16 %v18, %v18
    %v2531 = vpack.c.bf16 %v2526, %v2518
    %v2533 = vpack.c.bf16 %v28, %v28
    %2535 = xla_tuple %v2533, %v2531
    %2536 = xla_tuple %2535
    %v2537 = vmax.bf16 %v2533, %v2531
    %2538 = xla_tuple %v2537
    %2539 = xla_tuple %v2537, %v2529
    %2540 = xla_tuple %2539
    %v2541 = vmax.bf16 %v2537, %v2529
    %2542 = xla_tuple %v2541
    %2543 = xla_tuple %v2541, %v2527
    %2544 = xla_tuple %2543
    %v2545 = vmax.bf16 %v2541, %v2527
    %2546 = xla_tuple %v2545
    %v2547 = vunpack.c.l.bf16 %v2545
    %v2548 = vunpack.c.h.bf16 %v2545
    %s2549 = scalar_lea.vmem [#allocation22], 160
    %v2550 = vpack.c.bf16 0.0, %v2547
    %2552 = vst [vmem:[%s2549] sm:$0xf] %v2550
    %s2553 = scalar_lea.vmem [#allocation22], 164
    %v2554 = vpack.c.bf16 0.0, %v2548
    %2556 = vst [vmem:[%s2553] sm:$0xf] %v2554
    %s2557 = scalar_lea.vmem %s118, 68
    %s2558 = scalar_lea.vmem %s131, 68
    %s2559 = scalar_lea.vmem %s144, 68
    %v2560 = vlaneseq
    %v2561 = vand.u32 %v2560, 127
    %vm2563 = vcmp.lt.s32.totalorder %v2561, 50
    %v2564 = vsel %vm2563, %v1552, %v23
    %s2565 = scalar_lea.vmem %s118, 72
    %s2566 = scalar_lea.vmem %s131, 72
    %s2567 = scalar_lea.vmem %s144, 72
    %v2568 = vlaneseq
    %v2569 = vand.u32 %v2568, 127
    %vm2571 = vcmp.lt.s32.totalorder %v2569, 50
    %v2572 = vsel %vm2571, %v1648, %v23
    %v2573 = vpack.c.bf16 %v13, %v13
    %v2575 = vpack.c.bf16 %v18, %v18
    %v2577 = vpack.c.bf16 %v2572, %v2564
    %v2579 = vpack.c.bf16 %v28, %v28
    %2581 = xla_tuple %v2579, %v2577
    %2582 = xla_tuple %2581
    %v2583 = vmax.bf16 %v2579, %v2577
    %2584 = xla_tuple %v2583
    %2585 = xla_tuple %v2583, %v2575
    %2586 = xla_tuple %2585
    %v2587 = vmax.bf16 %v2583, %v2575
    %2588 = xla_tuple %v2587
    %2589 = xla_tuple %v2587, %v2573
    %2590 = xla_tuple %2589
    %v2591 = vmax.bf16 %v2587, %v2573
    %2592 = xla_tuple %v2591
    %v2593 = vunpack.c.l.bf16 %v2591
    %v2594 = vunpack.c.h.bf16 %v2591
    %s2595 = scalar_lea.vmem [#allocation22], 168
    %v2596 = vpack.c.bf16 0.0, %v2593
    %2598 = vst [vmem:[%s2595] sm:$0xf] %v2596
    %s2599 = scalar_lea.vmem [#allocation22], 172
    %v2600 = vpack.c.bf16 0.0, %v2594
    %2602 = vst [vmem:[%s2599] sm:$0xf] %v2600
    %s2603 = scalar_lea.vmem %s118, 76
    %s2604 = scalar_lea.vmem %s131, 76
    %s2605 = scalar_lea.vmem %s144, 76
    %v2606 = vlaneseq
    %v2607 = vand.u32 %v2606, 127
    %vm2609 = vcmp.lt.s32.totalorder %v2607, 50
    %v2610 = vsel %vm2609, %v1714, %v23
    %s2611 = scalar_lea.vmem %s118, 80
    %s2612 = scalar_lea.vmem %s131, 80
    %s2613 = scalar_lea.vmem %s144, 80
    %v2614 = vlaneseq
    %v2615 = vand.u32 %v2614, 127
    %vm2617 = vcmp.lt.s32.totalorder %v2615, 50
    %v2618 = vsel %vm2617, %v1810, %v23
    %v2619 = vpack.c.bf16 %v13, %v13
    %v2621 = vpack.c.bf16 %v18, %v18
    %v2623 = vpack.c.bf16 %v2618, %v2610
    %v2625 = vpack.c.bf16 %v28, %v28
    %2627 = xla_tuple %v2625, %v2623
    %2628 = xla_tuple %2627
    %v2629 = vmax.bf16 %v2625, %v2623
    %2630 = xla_tuple %v2629
    %2631 = xla_tuple %v2629, %v2621
    %2632 = xla_tuple %2631
    %v2633 = vmax.bf16 %v2629, %v2621
    %2634 = xla_tuple %v2633
    %2635 = xla_tuple %v2633, %v2619
    %2636 = xla_tuple %2635
    %v2637 = vmax.bf16 %v2633, %v2619
    %2638 = xla_tuple %v2637
    %v2639 = vunpack.c.l.bf16 %v2637
    %v2640 = vunpack.c.h.bf16 %v2637
    %s2641 = scalar_lea.vmem [#allocation22], 176
    %v2642 = vpack.c.bf16 0.0, %v2639
    %2644 = vst [vmem:[%s2641] sm:$0xf] %v2642
    %s2645 = scalar_lea.vmem [#allocation22], 180
    %v2646 = vpack.c.bf16 0.0, %v2640
    %2648 = vst [vmem:[%s2645] sm:$0xf] %v2646
    %s2649 = scalar_lea.vmem %s118, 84
    %s2650 = scalar_lea.vmem %s131, 84
    %s2651 = scalar_lea.vmem %s144, 84
    %v2652 = vlaneseq
    %v2653 = vand.u32 %v2652, 127
    %vm2655 = vcmp.lt.s32.totalorder %v2653, 50
    %v2656 = vsel %vm2655, %v1876, %v23
    %s2657 = scalar_lea.vmem %s118, 88
    %s2658 = scalar_lea.vmem %s131, 88
    %s2659 = scalar_lea.vmem %s144, 88
    %v2660 = vlaneseq
    %v2661 = vand.u32 %v2660, 127
    %vm2663 = vcmp.lt.s32.totalorder %v2661, 50
    %v2664 = vsel %vm2663, %v1972, %v23
    %v2665 = vpack.c.bf16 %v13, %v13
    %v2667 = vpack.c.bf16 %v18, %v18
    %v2669 = vpack.c.bf16 %v2664, %v2656
    %v2671 = vpack.c.bf16 %v28, %v28
    %2673 = xla_tuple %v2671, %v2669
    %2674 = xla_tuple %2673
    %v2675 = vmax.bf16 %v2671, %v2669
    %2676 = xla_tuple %v2675
    %2677 = xla_tuple %v2675, %v2667
    %2678 = xla_tuple %2677
    %v2679 = vmax.bf16 %v2675, %v2667
    %2680 = xla_tuple %v2679
    %2681 = xla_tuple %v2679, %v2665
    %2682 = xla_tuple %2681
    %v2683 = vmax.bf16 %v2679, %v2665
    %2684 = xla_tuple %v2683
    %v2685 = vunpack.c.l.bf16 %v2683
    %v2686 = vunpack.c.h.bf16 %v2683
    %s2687 = scalar_lea.vmem [#allocation22], 184
    %v2688 = vpack.c.bf16 0.0, %v2685
    %2690 = vst [vmem:[%s2687] sm:$0xf] %v2688
    %s2691 = scalar_lea.vmem [#allocation22], 188
    %v2692 = vpack.c.bf16 0.0, %v2686
    %2694 = vst [vmem:[%s2691] sm:$0xf] %v2692
    %s2695 = scalar_lea.vmem %s118, 92
    %s2696 = scalar_lea.vmem %s131, 92
    %s2697 = scalar_lea.vmem %s144, 92
    %v2698 = vlaneseq
    %v2699 = vand.u32 %v2698, 127
    %vm2701 = vcmp.lt.s32.totalorder %v2699, 50
    %v2702 = vsel %vm2701, %v2038, %v23
    %s2703 = scalar_lea.vmem %s118, 96
    %s2704 = scalar_lea.vmem %s131, 96
    %s2705 = scalar_lea.vmem %s144, 96
    %v2706 = vlaneseq
    %v2707 = vand.u32 %v2706, 127
    %vm2709 = vcmp.lt.s32.totalorder %v2707, 50
    %v2710 = vsel %vm2709, %v2134, %v23
    %v2711 = vpack.c.bf16 %v13, %v13
    %v2713 = vpack.c.bf16 %v18, %v18
    %v2715 = vpack.c.bf16 %v2710, %v2702
    %v2717 = vpack.c.bf16 %v28, %v28
    %2719 = xla_tuple %v2717, %v2715
    %2720 = xla_tuple %2719
    %v2721 = vmax.bf16 %v2717, %v2715
    %2722 = xla_tuple %v2721
    %2723 = xla_tuple %v2721, %v2713
    %2724 = xla_tuple %2723
    %v2725 = vmax.bf16 %v2721, %v2713
    %2726 = xla_tuple %v2725
    %2727 = xla_tuple %v2725, %v2711
    %2728 = xla_tuple %2727
    %v2729 = vmax.bf16 %v2725, %v2711
    %2730 = xla_tuple %v2729
    %v2731 = vunpack.c.l.bf16 %v2729
    %v2732 = vunpack.c.h.bf16 %v2729
    %s2733 = scalar_lea.vmem [#allocation22], 192
    %v2734 = vpack.c.bf16 0.0, %v2731
    %2736 = vst [vmem:[%s2733] sm:$0xf] %v2734
    %s2737 = scalar_lea.vmem [#allocation22], 196
    %v2738 = vpack.c.bf16 0.0, %v2732
    %2740 = vst [vmem:[%s2737] sm:$0xf] %v2738
    %v2741 = vlaneseq
    %v2742 = vand.u32 %v2741, 127
    %vm2744 = vcmp.lt.s32.totalorder %v2742, 50
    %v2745 = vsel %vm2744, %v177, %v18
    %s2746 = scalar_lea.vmem %s118, 4
    %s2747 = scalar_lea.vmem %s131, 4
    %v2748 = vlaneseq
    %v2749 = vand.u32 %v2748, 127
    %vm2751 = vcmp.lt.s32.totalorder %v2749, 50
    %v2752 = vsel %vm2751, %v241, %v18
    %s2753 = scalar_lea.vmem %s144, 4
    %v2754 = vpack.c.bf16 %v13, %v13
    %v2756 = vpack.c.bf16 %v2752, %v2745
    %v2758 = vpack.c.bf16 %v23, %v23
    %v2760 = vpack.c.bf16 %v28, %v28
    %2762 = xla_tuple %v2760, %v2758
    %2763 = xla_tuple %2762
    %v2764 = vmax.bf16 %v2760, %v2758
    %2765 = xla_tuple %v2764
    %2766 = xla_tuple %v2764, %v2756
    %2767 = xla_tuple %2766
    %v2768 = vmax.bf16 %v2764, %v2756
    %2769 = xla_tuple %v2768
    %2770 = xla_tuple %v2768, %v2754
    %2771 = xla_tuple %2770
    %v2772 = vmax.bf16 %v2768, %v2754
    %2773 = xla_tuple %v2772
    %v2774 = vunpack.c.l.bf16 %v2772
    %v2775 = vunpack.c.h.bf16 %v2772
    %s2776 = scalar_lea.vmem [#allocation22], 200
    %v2777 = vpack.c.bf16 0.0, %v2774
    %2779 = vst [vmem:[%s2776] sm:$0xf] %v2777
    %s2780 = scalar_lea.vmem [#allocation22], 204
    %v2781 = vpack.c.bf16 0.0, %v2775
    %2783 = vst [vmem:[%s2780] sm:$0xf] %v2781
    %s2784 = scalar_lea.vmem %s118, 8
    %s2785 = scalar_lea.vmem %s131, 8
    %v2786 = vlaneseq
    %v2787 = vand.u32 %v2786, 127
    %vm2789 = vcmp.lt.s32.totalorder %v2787, 50
    %v2790 = vsel %vm2789, %v336, %v18
    %s2791 = scalar_lea.vmem %s144, 8
    %s2792 = scalar_lea.vmem %s118, 12
    %s2793 = scalar_lea.vmem %s131, 12
    %v2794 = vlaneseq
    %v2795 = vand.u32 %v2794, 127
    %vm2797 = vcmp.lt.s32.totalorder %v2795, 50
    %v2798 = vsel %vm2797, %v402, %v18
    %s2799 = scalar_lea.vmem %s144, 12
    %v2800 = vpack.c.bf16 %v13, %v13
    %v2802 = vpack.c.bf16 %v2798, %v2790
    %v2804 = vpack.c.bf16 %v23, %v23
    %v2806 = vpack.c.bf16 %v28, %v28
    %2808 = xla_tuple %v2806, %v2804
    %2809 = xla_tuple %2808
    %v2810 = vmax.bf16 %v2806, %v2804
    %2811 = xla_tuple %v2810
    %2812 = xla_tuple %v2810, %v2802
    %2813 = xla_tuple %2812
    %v2814 = vmax.bf16 %v2810, %v2802
    %2815 = xla_tuple %v2814
    %2816 = xla_tuple %v2814, %v2800
    %2817 = xla_tuple %2816
    %v2818 = vmax.bf16 %v2814, %v2800
    %2819 = xla_tuple %v2818
    %v2820 = vunpack.c.l.bf16 %v2818
    %v2821 = vunpack.c.h.bf16 %v2818
    %s2822 = scalar_lea.vmem [#allocation22], 208
    %v2823 = vpack.c.bf16 0.0, %v2820
    %2825 = vst [vmem:[%s2822] sm:$0xf] %v2823
    %s2826 = scalar_lea.vmem [#allocation22], 212
    %v2827 = vpack.c.bf16 0.0, %v2821
    %2829 = vst [vmem:[%s2826] sm:$0xf] %v2827
    %s2830 = scalar_lea.vmem %s118, 16
    %s2831 = scalar_lea.vmem %s131, 16
    %v2832 = vlaneseq
    %v2833 = vand.u32 %v2832, 127
    %vm2835 = vcmp.lt.s32.totalorder %v2833, 50
    %v2836 = vsel %vm2835, %v498, %v18
    %s2837 = scalar_lea.vmem %s144, 16
    %s2838 = scalar_lea.vmem %s118, 20
    %s2839 = scalar_lea.vmem %s131, 20
    %v2840 = vlaneseq
    %v2841 = vand.u32 %v2840, 127
    %vm2843 = vcmp.lt.s32.totalorder %v2841, 50
    %v2844 = vsel %vm2843, %v564, %v18
    %s2845 = scalar_lea.vmem %s144, 20
    %v2846 = vpack.c.bf16 %v13, %v13
    %v2848 = vpack.c.bf16 %v2844, %v2836
    %v2850 = vpack.c.bf16 %v23, %v23
    %v2852 = vpack.c.bf16 %v28, %v28
    %2854 = xla_tuple %v2852, %v2850
    %2855 = xla_tuple %2854
    %v2856 = vmax.bf16 %v2852, %v2850
    %2857 = xla_tuple %v2856
    %2858 = xla_tuple %v2856, %v2848
    %2859 = xla_tuple %2858
    %v2860 = vmax.bf16 %v2856, %v2848
    %2861 = xla_tuple %v2860
    %2862 = xla_tuple %v2860, %v2846
    %2863 = xla_tuple %2862
    %v2864 = vmax.bf16 %v2860, %v2846
    %2865 = xla_tuple %v2864
    %v2866 = vunpack.c.l.bf16 %v2864
    %v2867 = vunpack.c.h.bf16 %v2864
    %s2868 = scalar_lea.vmem [#allocation22], 216
    %v2869 = vpack.c.bf16 0.0, %v2866
    %2871 = vst [vmem:[%s2868] sm:$0xf] %v2869
    %s2872 = scalar_lea.vmem [#allocation22], 220
    %v2873 = vpack.c.bf16 0.0, %v2867
    %2875 = vst [vmem:[%s2872] sm:$0xf] %v2873
    %s2876 = scalar_lea.vmem %s118, 24
    %s2877 = scalar_lea.vmem %s131, 24
    %v2878 = vlaneseq
    %v2879 = vand.u32 %v2878, 127
    %vm2881 = vcmp.lt.s32.totalorder %v2879, 50
    %v2882 = vsel %vm2881, %v660, %v18
    %s2883 = scalar_lea.vmem %s144, 24
    %s2884 = scalar_lea.vmem %s118, 28
    %s2885 = scalar_lea.vmem %s131, 28
    %v2886 = vlaneseq
    %v2887 = vand.u32 %v2886, 127
    %vm2889 = vcmp.lt.s32.totalorder %v2887, 50
    %v2890 = vsel %vm2889, %v726, %v18
    %s2891 = scalar_lea.vmem %s144, 28
    %v2892 = vpack.c.bf16 %v13, %v13
    %v2894 = vpack.c.bf16 %v2890, %v2882
    %v2896 = vpack.c.bf16 %v23, %v23
    %v2898 = vpack.c.bf16 %v28, %v28
    %2900 = xla_tuple %v2898, %v2896
    %2901 = xla_tuple %2900
    %v2902 = vmax.bf16 %v2898, %v2896
    %2903 = xla_tuple %v2902
    %2904 = xla_tuple %v2902, %v2894
    %2905 = xla_tuple %2904
    %v2906 = vmax.bf16 %v2902, %v2894
    %2907 = xla_tuple %v2906
    %2908 = xla_tuple %v2906, %v2892
    %2909 = xla_tuple %2908
    %v2910 = vmax.bf16 %v2906, %v2892
    %2911 = xla_tuple %v2910
    %v2912 = vunpack.c.l.bf16 %v2910
    %v2913 = vunpack.c.h.bf16 %v2910
    %s2914 = scalar_lea.vmem [#allocation22], 224
    %v2915 = vpack.c.bf16 0.0, %v2912
    %2917 = vst [vmem:[%s2914] sm:$0xf] %v2915
    %s2918 = scalar_lea.vmem [#allocation22], 228
    %v2919 = vpack.c.bf16 0.0, %v2913
    %2921 = vst [vmem:[%s2918] sm:$0xf] %v2919
    %s2922 = scalar_lea.vmem %s118, 32
    %s2923 = scalar_lea.vmem %s131, 32
    %v2924 = vlaneseq
    %v2925 = vand.u32 %v2924, 127
    %vm2927 = vcmp.lt.s32.totalorder %v2925, 50
    %v2928 = vsel %vm2927, %v822, %v18
    %s2929 = scalar_lea.vmem %s144, 32
    %s2930 = scalar_lea.vmem %s118, 36
    %s2931 = scalar_lea.vmem %s131, 36
    %v2932 = vlaneseq
    %v2933 = vand.u32 %v2932, 127
    %vm2935 = vcmp.lt.s32.totalorder %v2933, 50
    %v2936 = vsel %vm2935, %v888, %v18
    %s2937 = scalar_lea.vmem %s144, 36
    %v2938 = vpack.c.bf16 %v13, %v13
    %v2940 = vpack.c.bf16 %v2936, %v2928
    %v2942 = vpack.c.bf16 %v23, %v23
    %v2944 = vpack.c.bf16 %v28, %v28
    %2946 = xla_tuple %v2944, %v2942
    %2947 = xla_tuple %2946
    %v2948 = vmax.bf16 %v2944, %v2942
    %2949 = xla_tuple %v2948
    %2950 = xla_tuple %v2948, %v2940
    %2951 = xla_tuple %2950
    %v2952 = vmax.bf16 %v2948, %v2940
    %2953 = xla_tuple %v2952
    %2954 = xla_tuple %v2952, %v2938
    %2955 = xla_tuple %2954
    %v2956 = vmax.bf16 %v2952, %v2938
    %2957 = xla_tuple %v2956
    %v2958 = vunpack.c.l.bf16 %v2956
    %v2959 = vunpack.c.h.bf16 %v2956
    %s2960 = scalar_lea.vmem [#allocation22], 232
    %v2961 = vpack.c.bf16 0.0, %v2958
    %2963 = vst [vmem:[%s2960] sm:$0xf] %v2961
    %s2964 = scalar_lea.vmem [#allocation22], 236
    %v2965 = vpack.c.bf16 0.0, %v2959
    %2967 = vst [vmem:[%s2964] sm:$0xf] %v2965
    %s2968 = scalar_lea.vmem %s118, 40
    %s2969 = scalar_lea.vmem %s131, 40
    %v2970 = vlaneseq
    %v2971 = vand.u32 %v2970, 127
    %vm2973 = vcmp.lt.s32.totalorder %v2971, 50
    %v2974 = vsel %vm2973, %v984, %v18
    %s2975 = scalar_lea.vmem %s144, 40
    %s2976 = scalar_lea.vmem %s118, 44
    %s2977 = scalar_lea.vmem %s131, 44
    %v2978 = vlaneseq
    %v2979 = vand.u32 %v2978, 127
    %vm2981 = vcmp.lt.s32.totalorder %v2979, 50
    %v2982 = vsel %vm2981, %v1050, %v18
    %s2983 = scalar_lea.vmem %s144, 44
    %v2984 = vpack.c.bf16 %v13, %v13
    %v2986 = vpack.c.bf16 %v2982, %v2974
    %v2988 = vpack.c.bf16 %v23, %v23
    %v2990 = vpack.c.bf16 %v28, %v28
    %2992 = xla_tuple %v2990, %v2988
    %2993 = xla_tuple %2992
    %v2994 = vmax.bf16 %v2990, %v2988
    %2995 = xla_tuple %v2994
    %2996 = xla_tuple %v2994, %v2986
    %2997 = xla_tuple %2996
    %v2998 = vmax.bf16 %v2994, %v2986
    %2999 = xla_tuple %v2998
    %3000 = xla_tuple %v2998, %v2984
    %3001 = xla_tuple %3000
    %v3002 = vmax.bf16 %v2998, %v2984
    %3003 = xla_tuple %v3002
    %v3004 = vunpack.c.l.bf16 %v3002
    %v3005 = vunpack.c.h.bf16 %v3002
    %s3006 = scalar_lea.vmem [#allocation22], 240
    %v3007 = vpack.c.bf16 0.0, %v3004
    %3009 = vst [vmem:[%s3006] sm:$0xf] %v3007
    %s3010 = scalar_lea.vmem [#allocation22], 244
    %v3011 = vpack.c.bf16 0.0, %v3005
    %3013 = vst [vmem:[%s3010] sm:$0xf] %v3011
    %s3014 = scalar_lea.vmem %s118, 48
    %s3015 = scalar_lea.vmem %s131, 48
    %v3016 = vlaneseq
    %v3017 = vand.u32 %v3016, 127
    %vm3019 = vcmp.lt.s32.totalorder %v3017, 50
    %v3020 = vsel %vm3019, %v1146, %v18
    %s3021 = scalar_lea.vmem %s144, 48
    %s3022 = scalar_lea.vmem %s118, 52
    %s3023 = scalar_lea.vmem %s131, 52
    %v3024 = vlaneseq
    %v3025 = vand.u32 %v3024, 127
    %vm3027 = vcmp.lt.s32.totalorder %v3025, 50
    %v3028 = vsel %vm3027, %v1212, %v18
    %s3029 = scalar_lea.vmem %s144, 52
    %v3030 = vpack.c.bf16 %v13, %v13
    %v3032 = vpack.c.bf16 %v3028, %v3020
    %v3034 = vpack.c.bf16 %v23, %v23
    %v3036 = vpack.c.bf16 %v28, %v28
    %3038 = xla_tuple %v3036, %v3034
    %3039 = xla_tuple %3038
    %v3040 = vmax.bf16 %v3036, %v3034
    %3041 = xla_tuple %v3040
    %3042 = xla_tuple %v3040, %v3032
    %3043 = xla_tuple %3042
    %v3044 = vmax.bf16 %v3040, %v3032
    %3045 = xla_tuple %v3044
    %3046 = xla_tuple %v3044, %v3030
    %3047 = xla_tuple %3046
    %v3048 = vmax.bf16 %v3044, %v3030
    %3049 = xla_tuple %v3048
    %v3050 = vunpack.c.l.bf16 %v3048
    %v3051 = vunpack.c.h.bf16 %v3048
    %s3052 = scalar_lea.vmem [#allocation22], 248
    %v3053 = vpack.c.bf16 0.0, %v3050
    %3055 = vst [vmem:[%s3052] sm:$0xf] %v3053
    %s3056 = scalar_lea.vmem [#allocation22], 252
    %v3057 = vpack.c.bf16 0.0, %v3051
    %3059 = vst [vmem:[%s3056] sm:$0xf] %v3057
    %s3060 = scalar_lea.vmem %s118, 56
    %s3061 = scalar_lea.vmem %s131, 56
    %v3062 = vlaneseq
    %v3063 = vand.u32 %v3062, 127
    %vm3065 = vcmp.lt.s32.totalorder %v3063, 50
    %v3066 = vsel %vm3065, %v1308, %v18
    %s3067 = scalar_lea.vmem %s144, 56
    %s3068 = scalar_lea.vmem %s118, 60
    %s3069 = scalar_lea.vmem %s131, 60
    %v3070 = vlaneseq
    %v3071 = vand.u32 %v3070, 127
    %vm3073 = vcmp.lt.s32.totalorder %v3071, 50
    %v3074 = vsel %vm3073, %v1374, %v18
    %s3075 = scalar_lea.vmem %s144, 60
    %v3076 = vpack.c.bf16 %v13, %v13
    %v3078 = vpack.c.bf16 %v3074, %v3066
    %v3080 = vpack.c.bf16 %v23, %v23
    %v3082 = vpack.c.bf16 %v28, %v28
    %3084 = xla_tuple %v3082, %v3080
    %3085 = xla_tuple %3084
    %v3086 = vmax.bf16 %v3082, %v3080
    %3087 = xla_tuple %v3086
    %3088 = xla_tuple %v3086, %v3078
    %3089 = xla_tuple %3088
    %v3090 = vmax.bf16 %v3086, %v3078
    %3091 = xla_tuple %v3090
    %3092 = xla_tuple %v3090, %v3076
    %3093 = xla_tuple %3092
    %v3094 = vmax.bf16 %v3090, %v3076
    %3095 = xla_tuple %v3094
    %v3096 = vunpack.c.l.bf16 %v3094
    %v3097 = vunpack.c.h.bf16 %v3094
    %s3098 = scalar_lea.vmem [#allocation22], 256
    %v3099 = vpack.c.bf16 0.0, %v3096
    %3101 = vst [vmem:[%s3098] sm:$0xf] %v3099
    %s3102 = scalar_lea.vmem [#allocation22], 260
    %v3103 = vpack.c.bf16 0.0, %v3097
    %3105 = vst [vmem:[%s3102] sm:$0xf] %v3103
    %s3106 = scalar_lea.vmem %s118, 64
    %s3107 = scalar_lea.vmem %s131, 64
    %v3108 = vlaneseq
    %v3109 = vand.u32 %v3108, 127
    %vm3111 = vcmp.lt.s32.totalorder %v3109, 50
    %v3112 = vsel %vm3111, %v1470, %v18
    %s3113 = scalar_lea.vmem %s144, 64
    %s3114 = scalar_lea.vmem %s118, 68
    %s3115 = scalar_lea.vmem %s131, 68
    %v3116 = vlaneseq
    %v3117 = vand.u32 %v3116, 127
    %vm3119 = vcmp.lt.s32.totalorder %v3117, 50
    %v3120 = vsel %vm3119, %v1536, %v18
    %s3121 = scalar_lea.vmem %s144, 68
    %v3122 = vpack.c.bf16 %v13, %v13
    %v3124 = vpack.c.bf16 %v3120, %v3112
    %v3126 = vpack.c.bf16 %v23, %v23
    %v3128 = vpack.c.bf16 %v28, %v28
    %3130 = xla_tuple %v3128, %v3126
    %3131 = xla_tuple %3130
    %v3132 = vmax.bf16 %v3128, %v3126
    %3133 = xla_tuple %v3132
    %3134 = xla_tuple %v3132, %v3124
    %3135 = xla_tuple %3134
    %v3136 = vmax.bf16 %v3132, %v3124
    %3137 = xla_tuple %v3136
    %3138 = xla_tuple %v3136, %v3122
    %3139 = xla_tuple %3138
    %v3140 = vmax.bf16 %v3136, %v3122
    %3141 = xla_tuple %v3140
    %v3142 = vunpack.c.l.bf16 %v3140
    %v3143 = vunpack.c.h.bf16 %v3140
    %s3144 = scalar_lea.vmem [#allocation22], 264
    %v3145 = vpack.c.bf16 0.0, %v3142
    %3147 = vst [vmem:[%s3144] sm:$0xf] %v3145
    %s3148 = scalar_lea.vmem [#allocation22], 268
    %v3149 = vpack.c.bf16 0.0, %v3143
    %3151 = vst [vmem:[%s3148] sm:$0xf] %v3149
    %s3152 = scalar_lea.vmem %s118, 72
    %s3153 = scalar_lea.vmem %s131, 72
    %v3154 = vlaneseq
    %v3155 = vand.u32 %v3154, 127
    %vm3157 = vcmp.lt.s32.totalorder %v3155, 50
    %v3158 = vsel %vm3157, %v1632, %v18
    %s3159 = scalar_lea.vmem %s144, 72
    %s3160 = scalar_lea.vmem %s118, 76
    %s3161 = scalar_lea.vmem %s131, 76
    %v3162 = vlaneseq
    %v3163 = vand.u32 %v3162, 127
    %vm3165 = vcmp.lt.s32.totalorder %v3163, 50
    %v3166 = vsel %vm3165, %v1698, %v18
    %s3167 = scalar_lea.vmem %s144, 76
    %v3168 = vpack.c.bf16 %v13, %v13
    %v3170 = vpack.c.bf16 %v3166, %v3158
    %v3172 = vpack.c.bf16 %v23, %v23
    %v3174 = vpack.c.bf16 %v28, %v28
    %3176 = xla_tuple %v3174, %v3172
    %3177 = xla_tuple %3176
    %v3178 = vmax.bf16 %v3174, %v3172
    %3179 = xla_tuple %v3178
    %3180 = xla_tuple %v3178, %v3170
    %3181 = xla_tuple %3180
    %v3182 = vmax.bf16 %v3178, %v3170
    %3183 = xla_tuple %v3182
    %3184 = xla_tuple %v3182, %v3168
    %3185 = xla_tuple %3184
    %v3186 = vmax.bf16 %v3182, %v3168
    %3187 = xla_tuple %v3186
    %v3188 = vunpack.c.l.bf16 %v3186
    %v3189 = vunpack.c.h.bf16 %v3186
    %s3190 = scalar_lea.vmem [#allocation22], 272
    %v3191 = vpack.c.bf16 0.0, %v3188
    %3193 = vst [vmem:[%s3190] sm:$0xf] %v3191
    %s3194 = scalar_lea.vmem [#allocation22], 276
    %v3195 = vpack.c.bf16 0.0, %v3189
    %3197 = vst [vmem:[%s3194] sm:$0xf] %v3195
    %s3198 = scalar_lea.vmem %s118, 80
    %s3199 = scalar_lea.vmem %s131, 80
    %v3200 = vlaneseq
    %v3201 = vand.u32 %v3200, 127
    %vm3203 = vcmp.lt.s32.totalorder %v3201, 50
    %v3204 = vsel %vm3203, %v1794, %v18
    %s3205 = scalar_lea.vmem %s144, 80
    %s3206 = scalar_lea.vmem %s118, 84
    %s3207 = scalar_lea.vmem %s131, 84
    %v3208 = vlaneseq
    %v3209 = vand.u32 %v3208, 127
    %vm3211 = vcmp.lt.s32.totalorder %v3209, 50
    %v3212 = vsel %vm3211, %v1860, %v18
    %s3213 = scalar_lea.vmem %s144, 84
    %v3214 = vpack.c.bf16 %v13, %v13
    %v3216 = vpack.c.bf16 %v3212, %v3204
    %v3218 = vpack.c.bf16 %v23, %v23
    %v3220 = vpack.c.bf16 %v28, %v28
    %3222 = xla_tuple %v3220, %v3218
    %3223 = xla_tuple %3222
    %v3224 = vmax.bf16 %v3220, %v3218
    %3225 = xla_tuple %v3224
    %3226 = xla_tuple %v3224, %v3216
    %3227 = xla_tuple %3226
    %v3228 = vmax.bf16 %v3224, %v3216
    %3229 = xla_tuple %v3228
    %3230 = xla_tuple %v3228, %v3214
    %3231 = xla_tuple %3230
    %v3232 = vmax.bf16 %v3228, %v3214
    %3233 = xla_tuple %v3232
    %v3234 = vunpack.c.l.bf16 %v3232
    %v3235 = vunpack.c.h.bf16 %v3232
    %s3236 = scalar_lea.vmem [#allocation22], 280
    %v3237 = vpack.c.bf16 0.0, %v3234
    %3239 = vst [vmem:[%s3236] sm:$0xf] %v3237
    %s3240 = scalar_lea.vmem [#allocation22], 284
    %v3241 = vpack.c.bf16 0.0, %v3235
    %3243 = vst [vmem:[%s3240] sm:$0xf] %v3241
    %s3244 = scalar_lea.vmem %s118, 88
    %s3245 = scalar_lea.vmem %s131, 88
    %v3246 = vlaneseq
    %v3247 = vand.u32 %v3246, 127
    %vm3249 = vcmp.lt.s32.totalorder %v3247, 50
    %v3250 = vsel %vm3249, %v1956, %v18
    %s3251 = scalar_lea.vmem %s144, 88
    %s3252 = scalar_lea.vmem %s118, 92
    %s3253 = scalar_lea.vmem %s131, 92
    %v3254 = vlaneseq
    %v3255 = vand.u32 %v3254, 127
    %vm3257 = vcmp.lt.s32.totalorder %v3255, 50
    %v3258 = vsel %vm3257, %v2022, %v18
    %s3259 = scalar_lea.vmem %s144, 92
    %v3260 = vpack.c.bf16 %v13, %v13
    %v3262 = vpack.c.bf16 %v3258, %v3250
    %v3264 = vpack.c.bf16 %v23, %v23
    %v3266 = vpack.c.bf16 %v28, %v28
    %3268 = xla_tuple %v3266, %v3264
    %3269 = xla_tuple %3268
    %v3270 = vmax.bf16 %v3266, %v3264
    %3271 = xla_tuple %v3270
    %3272 = xla_tuple %v3270, %v3262
    %3273 = xla_tuple %3272
    %v3274 = vmax.bf16 %v3270, %v3262
    %3275 = xla_tuple %v3274
    %3276 = xla_tuple %v3274, %v3260
    %3277 = xla_tuple %3276
    %v3278 = vmax.bf16 %v3274, %v3260
    %3279 = xla_tuple %v3278
    %v3280 = vunpack.c.l.bf16 %v3278
    %v3281 = vunpack.c.h.bf16 %v3278
    %s3282 = scalar_lea.vmem [#allocation22], 288
    %v3283 = vpack.c.bf16 0.0, %v3280
    %3285 = vst [vmem:[%s3282] sm:$0xf] %v3283
    %s3286 = scalar_lea.vmem [#allocation22], 292
    %v3287 = vpack.c.bf16 0.0, %v3281
    %3289 = vst [vmem:[%s3286] sm:$0xf] %v3287
    %s3290 = scalar_lea.vmem %s118, 96
    %s3291 = scalar_lea.vmem %s131, 96
    %v3292 = vlaneseq
    %v3293 = vand.u32 %v3292, 127
    %vm3295 = vcmp.lt.s32.totalorder %v3293, 50
    %v3296 = vsel %vm3295, %v2118, %v18
    %s3297 = scalar_lea.vmem %s144, 96
    %v3298 = vlaneseq
    %v3299 = vand.u32 %v3298, 127
    %vm3301 = vcmp.lt.s32.totalorder %v3299, 50
    %v3302 = vsel %vm3301, %v162, %v13
    %v3303 = vpack.c.bf16 %v3302, %v13
    %v3305 = vpack.c.bf16 %v18, %v3296
    %v3307 = vpack.c.bf16 %v23, %v23
    %v3309 = vpack.c.bf16 %v28, %v28
    %3311 = xla_tuple %v3309, %v3307
    %3312 = xla_tuple %3311
    %v3313 = vmax.bf16 %v3309, %v3307
    %3314 = xla_tuple %v3313
    %3315 = xla_tuple %v3313, %v3305
    %3316 = xla_tuple %3315
    %v3317 = vmax.bf16 %v3313, %v3305
    %3318 = xla_tuple %v3317
    %3319 = xla_tuple %v3317, %v3303
    %3320 = xla_tuple %3319
    %v3321 = vmax.bf16 %v3317, %v3303
    %3322 = xla_tuple %v3321
    %v3323 = vunpack.c.l.bf16 %v3321
    %v3324 = vunpack.c.h.bf16 %v3321
    %s3325 = scalar_lea.vmem [#allocation22], 296
    %v3326 = vpack.c.bf16 0.0, %v3323
    %3328 = vst [vmem:[%s3325] sm:$0xf] %v3326
    %s3329 = scalar_lea.vmem [#allocation22], 300
    %v3330 = vpack.c.bf16 0.0, %v3324
    %3332 = vst [vmem:[%s3329] sm:$0xf] %v3330
    %s3333 = scalar_lea.vmem %s118, 4
    %v3334 = vlaneseq
    %v3335 = vand.u32 %v3334, 127
    %vm3337 = vcmp.lt.s32.totalorder %v3335, 50
    %v3338 = vsel %vm3337, %v225, %v13
    %s3339 = scalar_lea.vmem %s131, 4
    %s3340 = scalar_lea.vmem %s144, 4
    %s3341 = scalar_lea.vmem %s118, 8
    %v3342 = vlaneseq
    %v3343 = vand.u32 %v3342, 127
    %vm3345 = vcmp.lt.s32.totalorder %v3343, 50
    %v3346 = vsel %vm3345, %v320, %v13
    %s3347 = scalar_lea.vmem %s131, 8
    %s3348 = scalar_lea.vmem %s144, 8
    %v3349 = vpack.c.bf16 %v3346, %v3338
    %v3351 = vpack.c.bf16 %v18, %v18
    %v3353 = vpack.c.bf16 %v23, %v23
    %v3355 = vpack.c.bf16 %v28, %v28
    %3357 = xla_tuple %v3355, %v3353
    %3358 = xla_tuple %3357
    %v3359 = vmax.bf16 %v3355, %v3353
    %3360 = xla_tuple %v3359
    %3361 = xla_tuple %v3359, %v3351
    %3362 = xla_tuple %3361
    %v3363 = vmax.bf16 %v3359, %v3351
    %3364 = xla_tuple %v3363
    %3365 = xla_tuple %v3363, %v3349
    %3366 = xla_tuple %3365
    %v3367 = vmax.bf16 %v3363, %v3349
    %3368 = xla_tuple %v3367
    %v3369 = vunpack.c.l.bf16 %v3367
    %v3370 = vunpack.c.h.bf16 %v3367
    %s3371 = scalar_lea.vmem [#allocation22], 304
    %v3372 = vpack.c.bf16 0.0, %v3369
    %3374 = vst [vmem:[%s3371] sm:$0xf] %v3372
    %s3375 = scalar_lea.vmem [#allocation22], 308
    %v3376 = vpack.c.bf16 0.0, %v3370
    %3378 = vst [vmem:[%s3375] sm:$0xf] %v3376
    %s3379 = scalar_lea.vmem %s118, 12
    %v3380 = vlaneseq
    %v3381 = vand.u32 %v3380, 127
    %vm3383 = vcmp.lt.s32.totalorder %v3381, 50
    %v3384 = vsel %vm3383, %v386, %v13
    %s3385 = scalar_lea.vmem %s131, 12
    %s3386 = scalar_lea.vmem %s144, 12
    %s3387 = scalar_lea.vmem %s118, 16
    %v3388 = vlaneseq
    %v3389 = vand.u32 %v3388, 127
    %vm3391 = vcmp.lt.s32.totalorder %v3389, 50
    %v3392 = vsel %vm3391, %v482, %v13
    %s3393 = scalar_lea.vmem %s131, 16
    %s3394 = scalar_lea.vmem %s144, 16
    %v3395 = vpack.c.bf16 %v3392, %v3384
    %v3397 = vpack.c.bf16 %v18, %v18
    %v3399 = vpack.c.bf16 %v23, %v23
    %v3401 = vpack.c.bf16 %v28, %v28
    %3403 = xla_tuple %v3401, %v3399
    %3404 = xla_tuple %3403
    %v3405 = vmax.bf16 %v3401, %v3399
    %3406 = xla_tuple %v3405
    %3407 = xla_tuple %v3405, %v3397
    %3408 = xla_tuple %3407
    %v3409 = vmax.bf16 %v3405, %v3397
    %3410 = xla_tuple %v3409
    %3411 = xla_tuple %v3409, %v3395
    %3412 = xla_tuple %3411
    %v3413 = vmax.bf16 %v3409, %v3395
    %3414 = xla_tuple %v3413
    %v3415 = vunpack.c.l.bf16 %v3413
    %v3416 = vunpack.c.h.bf16 %v3413
    %s3417 = scalar_lea.vmem [#allocation22], 312
    %v3418 = vpack.c.bf16 0.0, %v3415
    %3420 = vst [vmem:[%s3417] sm:$0xf] %v3418
    %s3421 = scalar_lea.vmem [#allocation22], 316
    %v3422 = vpack.c.bf16 0.0, %v3416
    %3424 = vst [vmem:[%s3421] sm:$0xf] %v3422
    %s3425 = scalar_lea.vmem %s118, 20
    %v3426 = vlaneseq
    %v3427 = vand.u32 %v3426, 127
    %vm3429 = vcmp.lt.s32.totalorder %v3427, 50
    %v3430 = vsel %vm3429, %v548, %v13
    %s3431 = scalar_lea.vmem %s131, 20
    %s3432 = scalar_lea.vmem %s144, 20
    %s3433 = scalar_lea.vmem %s118, 24
    %v3434 = vlaneseq
    %v3435 = vand.u32 %v3434, 127
    %vm3437 = vcmp.lt.s32.totalorder %v3435, 50
    %v3438 = vsel %vm3437, %v644, %v13
    %s3439 = scalar_lea.vmem %s131, 24
    %s3440 = scalar_lea.vmem %s144, 24
    %v3441 = vpack.c.bf16 %v3438, %v3430
    %v3443 = vpack.c.bf16 %v18, %v18
    %v3445 = vpack.c.bf16 %v23, %v23
    %v3447 = vpack.c.bf16 %v28, %v28
    %3449 = xla_tuple %v3447, %v3445
    %3450 = xla_tuple %3449
    %v3451 = vmax.bf16 %v3447, %v3445
    %3452 = xla_tuple %v3451
    %3453 = xla_tuple %v3451, %v3443
    %3454 = xla_tuple %3453
    %v3455 = vmax.bf16 %v3451, %v3443
    %3456 = xla_tuple %v3455
    %3457 = xla_tuple %v3455, %v3441
    %3458 = xla_tuple %3457
    %v3459 = vmax.bf16 %v3455, %v3441
    %3460 = xla_tuple %v3459
    %v3461 = vunpack.c.l.bf16 %v3459
    %v3462 = vunpack.c.h.bf16 %v3459
    %s3463 = scalar_lea.vmem [#allocation22], 320
    %v3464 = vpack.c.bf16 0.0, %v3461
    %3466 = vst [vmem:[%s3463] sm:$0xf] %v3464
    %s3467 = scalar_lea.vmem [#allocation22], 324
    %v3468 = vpack.c.bf16 0.0, %v3462
    %3470 = vst [vmem:[%s3467] sm:$0xf] %v3468
    %s3471 = scalar_lea.vmem %s118, 28
    %v3472 = vlaneseq
    %v3473 = vand.u32 %v3472, 127
    %vm3475 = vcmp.lt.s32.totalorder %v3473, 50
    %v3476 = vsel %vm3475, %v710, %v13
    %s3477 = scalar_lea.vmem %s131, 28
    %s3478 = scalar_lea.vmem %s144, 28
    %s3479 = scalar_lea.vmem %s118, 32
    %v3480 = vlaneseq
    %v3481 = vand.u32 %v3480, 127
    %vm3483 = vcmp.lt.s32.totalorder %v3481, 50
    %v3484 = vsel %vm3483, %v806, %v13
    %s3485 = scalar_lea.vmem %s131, 32
    %s3486 = scalar_lea.vmem %s144, 32
    %v3487 = vpack.c.bf16 %v3484, %v3476
    %v3489 = vpack.c.bf16 %v18, %v18
    %v3491 = vpack.c.bf16 %v23, %v23
    %v3493 = vpack.c.bf16 %v28, %v28
    %3495 = xla_tuple %v3493, %v3491
    %3496 = xla_tuple %3495
    %v3497 = vmax.bf16 %v3493, %v3491
    %3498 = xla_tuple %v3497
    %3499 = xla_tuple %v3497, %v3489
    %3500 = xla_tuple %3499
    %v3501 = vmax.bf16 %v3497, %v3489
    %3502 = xla_tuple %v3501
    %3503 = xla_tuple %v3501, %v3487
    %3504 = xla_tuple %3503
    %v3505 = vmax.bf16 %v3501, %v3487
    %3506 = xla_tuple %v3505
    %v3507 = vunpack.c.l.bf16 %v3505
    %v3508 = vunpack.c.h.bf16 %v3505
    %s3509 = scalar_lea.vmem [#allocation22], 328
    %v3510 = vpack.c.bf16 0.0, %v3507
    %3512 = vst [vmem:[%s3509] sm:$0xf] %v3510
    %s3513 = scalar_lea.vmem [#allocation22], 332
    %v3514 = vpack.c.bf16 0.0, %v3508
    %3516 = vst [vmem:[%s3513] sm:$0xf] %v3514
    %s3517 = scalar_lea.vmem %s118, 36
    %v3518 = vlaneseq
    %v3519 = vand.u32 %v3518, 127
    %vm3521 = vcmp.lt.s32.totalorder %v3519, 50
    %v3522 = vsel %vm3521, %v872, %v13
    %s3523 = scalar_lea.vmem %s131, 36
    %s3524 = scalar_lea.vmem %s144, 36
    %s3525 = scalar_lea.vmem %s118, 40
    %v3526 = vlaneseq
    %v3527 = vand.u32 %v3526, 127
    %vm3529 = vcmp.lt.s32.totalorder %v3527, 50
    %v3530 = vsel %vm3529, %v968, %v13
    %s3531 = scalar_lea.vmem %s131, 40
    %s3532 = scalar_lea.vmem %s144, 40
    %v3533 = vpack.c.bf16 %v3530, %v3522
    %v3535 = vpack.c.bf16 %v18, %v18
    %v3537 = vpack.c.bf16 %v23, %v23
    %v3539 = vpack.c.bf16 %v28, %v28
    %3541 = xla_tuple %v3539, %v3537
    %3542 = xla_tuple %3541
    %v3543 = vmax.bf16 %v3539, %v3537
    %3544 = xla_tuple %v3543
    %3545 = xla_tuple %v3543, %v3535
    %3546 = xla_tuple %3545
    %v3547 = vmax.bf16 %v3543, %v3535
    %3548 = xla_tuple %v3547
    %3549 = xla_tuple %v3547, %v3533
    %3550 = xla_tuple %3549
    %v3551 = vmax.bf16 %v3547, %v3533
    %3552 = xla_tuple %v3551
    %v3553 = vunpack.c.l.bf16 %v3551
    %v3554 = vunpack.c.h.bf16 %v3551
    %s3555 = scalar_lea.vmem [#allocation22], 336
    %v3556 = vpack.c.bf16 0.0, %v3553
    %3558 = vst [vmem:[%s3555] sm:$0xf] %v3556
    %s3559 = scalar_lea.vmem [#allocation22], 340
    %v3560 = vpack.c.bf16 0.0, %v3554
    %3562 = vst [vmem:[%s3559] sm:$0xf] %v3560
    %s3563 = scalar_lea.vmem %s118, 44
    %v3564 = vlaneseq
    %v3565 = vand.u32 %v3564, 127
    %vm3567 = vcmp.lt.s32.totalorder %v3565, 50
    %v3568 = vsel %vm3567, %v1034, %v13
    %s3569 = scalar_lea.vmem %s131, 44
    %s3570 = scalar_lea.vmem %s144, 44
    %s3571 = scalar_lea.vmem %s118, 48
    %v3572 = vlaneseq
    %v3573 = vand.u32 %v3572, 127
    %vm3575 = vcmp.lt.s32.totalorder %v3573, 50
    %v3576 = vsel %vm3575, %v1130, %v13
    %s3577 = scalar_lea.vmem %s131, 48
    %s3578 = scalar_lea.vmem %s144, 48
    %v3579 = vpack.c.bf16 %v3576, %v3568
    %v3581 = vpack.c.bf16 %v18, %v18
    %v3583 = vpack.c.bf16 %v23, %v23
    %v3585 = vpack.c.bf16 %v28, %v28
    %3587 = xla_tuple %v3585, %v3583
    %3588 = xla_tuple %3587
    %v3589 = vmax.bf16 %v3585, %v3583
    %3590 = xla_tuple %v3589
    %3591 = xla_tuple %v3589, %v3581
    %3592 = xla_tuple %3591
    %v3593 = vmax.bf16 %v3589, %v3581
    %3594 = xla_tuple %v3593
    %3595 = xla_tuple %v3593, %v3579
    %3596 = xla_tuple %3595
    %v3597 = vmax.bf16 %v3593, %v3579
    %3598 = xla_tuple %v3597
    %v3599 = vunpack.c.l.bf16 %v3597
    %v3600 = vunpack.c.h.bf16 %v3597
    %s3601 = scalar_lea.vmem [#allocation22], 344
    %v3602 = vpack.c.bf16 0.0, %v3599
    %3604 = vst [vmem:[%s3601] sm:$0xf] %v3602
    %s3605 = scalar_lea.vmem [#allocation22], 348
    %v3606 = vpack.c.bf16 0.0, %v3600
    %3608 = vst [vmem:[%s3605] sm:$0xf] %v3606
    %s3609 = scalar_lea.vmem %s118, 52
    %v3610 = vlaneseq
    %v3611 = vand.u32 %v3610, 127
    %vm3613 = vcmp.lt.s32.totalorder %v3611, 50
    %v3614 = vsel %vm3613, %v1196, %v13
    %s3615 = scalar_lea.vmem %s131, 52
    %s3616 = scalar_lea.vmem %s144, 52
    %s3617 = scalar_lea.vmem %s118, 56
    %v3618 = vlaneseq
    %v3619 = vand.u32 %v3618, 127
    %vm3621 = vcmp.lt.s32.totalorder %v3619, 50
    %v3622 = vsel %vm3621, %v1292, %v13
    %s3623 = scalar_lea.vmem %s131, 56
    %s3624 = scalar_lea.vmem %s144, 56
    %v3625 = vpack.c.bf16 %v3622, %v3614
    %v3627 = vpack.c.bf16 %v18, %v18
    %v3629 = vpack.c.bf16 %v23, %v23
    %v3631 = vpack.c.bf16 %v28, %v28
    %3633 = xla_tuple %v3631, %v3629
    %3634 = xla_tuple %3633
    %v3635 = vmax.bf16 %v3631, %v3629
    %3636 = xla_tuple %v3635
    %3637 = xla_tuple %v3635, %v3627
    %3638 = xla_tuple %3637
    %v3639 = vmax.bf16 %v3635, %v3627
    %3640 = xla_tuple %v3639
    %3641 = xla_tuple %v3639, %v3625
    %3642 = xla_tuple %3641
    %v3643 = vmax.bf16 %v3639, %v3625
    %3644 = xla_tuple %v3643
    %v3645 = vunpack.c.l.bf16 %v3643
    %v3646 = vunpack.c.h.bf16 %v3643
    %s3647 = scalar_lea.vmem [#allocation22], 352
    %v3648 = vpack.c.bf16 0.0, %v3645
    %3650 = vst [vmem:[%s3647] sm:$0xf] %v3648
    %s3651 = scalar_lea.vmem [#allocation22], 356
    %v3652 = vpack.c.bf16 0.0, %v3646
    %3654 = vst [vmem:[%s3651] sm:$0xf] %v3652
    %s3655 = scalar_lea.vmem %s118, 60
    %v3656 = vlaneseq
    %v3657 = vand.u32 %v3656, 127
    %vm3659 = vcmp.lt.s32.totalorder %v3657, 50
    %v3660 = vsel %vm3659, %v1358, %v13
    %s3661 = scalar_lea.vmem %s131, 60
    %s3662 = scalar_lea.vmem %s144, 60
    %s3663 = scalar_lea.vmem %s118, 64
    %v3664 = vlaneseq
    %v3665 = vand.u32 %v3664, 127
    %vm3667 = vcmp.lt.s32.totalorder %v3665, 50
    %v3668 = vsel %vm3667, %v1454, %v13
    %s3669 = scalar_lea.vmem %s131, 64
    %s3670 = scalar_lea.vmem %s144, 64
    %v3671 = vpack.c.bf16 %v3668, %v3660
    %v3673 = vpack.c.bf16 %v18, %v18
    %v3675 = vpack.c.bf16 %v23, %v23
    %v3677 = vpack.c.bf16 %v28, %v28
    %3679 = xla_tuple %v3677, %v3675
    %3680 = xla_tuple %3679
    %v3681 = vmax.bf16 %v3677, %v3675
    %3682 = xla_tuple %v3681
    %3683 = xla_tuple %v3681, %v3673
    %3684 = xla_tuple %3683
    %v3685 = vmax.bf16 %v3681, %v3673
    %3686 = xla_tuple %v3685
    %3687 = xla_tuple %v3685, %v3671
    %3688 = xla_tuple %3687
    %v3689 = vmax.bf16 %v3685, %v3671
    %3690 = xla_tuple %v3689
    %v3691 = vunpack.c.l.bf16 %v3689
    %v3692 = vunpack.c.h.bf16 %v3689
    %s3693 = scalar_lea.vmem [#allocation22], 360
    %v3694 = vpack.c.bf16 0.0, %v3691
    %3696 = vst [vmem:[%s3693] sm:$0xf] %v3694
    %s3697 = scalar_lea.vmem [#allocation22], 364
    %v3698 = vpack.c.bf16 0.0, %v3692
    %3700 = vst [vmem:[%s3697] sm:$0xf] %v3698
    %s3701 = scalar_lea.vmem %s118, 68
    %v3702 = vlaneseq
    %v3703 = vand.u32 %v3702, 127
    %vm3705 = vcmp.lt.s32.totalorder %v3703, 50
    %v3706 = vsel %vm3705, %v1520, %v13
    %s3707 = scalar_lea.vmem %s131, 68
    %s3708 = scalar_lea.vmem %s144, 68
    %s3709 = scalar_lea.vmem %s118, 72
    %v3710 = vlaneseq
    %v3711 = vand.u32 %v3710, 127
    %vm3713 = vcmp.lt.s32.totalorder %v3711, 50
    %v3714 = vsel %vm3713, %v1616, %v13
    %s3715 = scalar_lea.vmem %s131, 72
    %s3716 = scalar_lea.vmem %s144, 72
    %v3717 = vpack.c.bf16 %v3714, %v3706
    %v3719 = vpack.c.bf16 %v18, %v18
    %v3721 = vpack.c.bf16 %v23, %v23
    %v3723 = vpack.c.bf16 %v28, %v28
    %3725 = xla_tuple %v3723, %v3721
    %3726 = xla_tuple %3725
    %v3727 = vmax.bf16 %v3723, %v3721
    %3728 = xla_tuple %v3727
    %3729 = xla_tuple %v3727, %v3719
    %3730 = xla_tuple %3729
    %v3731 = vmax.bf16 %v3727, %v3719
    %3732 = xla_tuple %v3731
    %3733 = xla_tuple %v3731, %v3717
    %3734 = xla_tuple %3733
    %v3735 = vmax.bf16 %v3731, %v3717
    %3736 = xla_tuple %v3735
    %v3737 = vunpack.c.l.bf16 %v3735
    %v3738 = vunpack.c.h.bf16 %v3735
    %s3739 = scalar_lea.vmem [#allocation22], 368
    %v3740 = vpack.c.bf16 0.0, %v3737
    %3742 = vst [vmem:[%s3739] sm:$0xf] %v3740
    %s3743 = scalar_lea.vmem [#allocation22], 372
    %v3744 = vpack.c.bf16 0.0, %v3738
    %3746 = vst [vmem:[%s3743] sm:$0xf] %v3744
    %s3747 = scalar_lea.vmem %s118, 76
    %v3748 = vlaneseq
    %v3749 = vand.u32 %v3748, 127
    %vm3751 = vcmp.lt.s32.totalorder %v3749, 50
    %v3752 = vsel %vm3751, %v1682, %v13
    %s3753 = scalar_lea.vmem %s131, 76
    %s3754 = scalar_lea.vmem %s144, 76
    %s3755 = scalar_lea.vmem %s118, 80
    %v3756 = vlaneseq
    %v3757 = vand.u32 %v3756, 127
    %vm3759 = vcmp.lt.s32.totalorder %v3757, 50
    %v3760 = vsel %vm3759, %v1778, %v13
    %s3761 = scalar_lea.vmem %s131, 80
    %s3762 = scalar_lea.vmem %s144, 80
    %v3763 = vpack.c.bf16 %v3760, %v3752
    %v3765 = vpack.c.bf16 %v18, %v18
    %v3767 = vpack.c.bf16 %v23, %v23
    %v3769 = vpack.c.bf16 %v28, %v28
    %3771 = xla_tuple %v3769, %v3767
    %3772 = xla_tuple %3771
    %v3773 = vmax.bf16 %v3769, %v3767
    %3774 = xla_tuple %v3773
    %3775 = xla_tuple %v3773, %v3765
    %3776 = xla_tuple %3775
    %v3777 = vmax.bf16 %v3773, %v3765
    %3778 = xla_tuple %v3777
    %3779 = xla_tuple %v3777, %v3763
    %3780 = xla_tuple %3779
    %v3781 = vmax.bf16 %v3777, %v3763
    %3782 = xla_tuple %v3781
    %v3783 = vunpack.c.l.bf16 %v3781
    %v3784 = vunpack.c.h.bf16 %v3781
    %s3785 = scalar_lea.vmem [#allocation22], 376
    %v3786 = vpack.c.bf16 0.0, %v3783
    %3788 = vst [vmem:[%s3785] sm:$0xf] %v3786
    %s3789 = scalar_lea.vmem [#allocation22], 380
    %v3790 = vpack.c.bf16 0.0, %v3784
    %3792 = vst [vmem:[%s3789] sm:$0xf] %v3790
    %s3793 = scalar_lea.vmem %s118, 84
    %v3794 = vlaneseq
    %v3795 = vand.u32 %v3794, 127
    %vm3797 = vcmp.lt.s32.totalorder %v3795, 50
    %v3798 = vsel %vm3797, %v1844, %v13
    %s3799 = scalar_lea.vmem %s131, 84
    %s3800 = scalar_lea.vmem %s144, 84
    %s3801 = scalar_lea.vmem %s118, 88
    %v3802 = vlaneseq
    %v3803 = vand.u32 %v3802, 127
    %vm3805 = vcmp.lt.s32.totalorder %v3803, 50
    %v3806 = vsel %vm3805, %v1940, %v13
    %s3807 = scalar_lea.vmem %s131, 88
    %s3808 = scalar_lea.vmem %s144, 88
    %v3809 = vpack.c.bf16 %v3806, %v3798
    %v3811 = vpack.c.bf16 %v18, %v18
    %v3813 = vpack.c.bf16 %v23, %v23
    %v3815 = vpack.c.bf16 %v28, %v28
    %3817 = xla_tuple %v3815, %v3813
    %3818 = xla_tuple %3817
    %v3819 = vmax.bf16 %v3815, %v3813
    %3820 = xla_tuple %v3819
    %3821 = xla_tuple %v3819, %v3811
    %3822 = xla_tuple %3821
    %v3823 = vmax.bf16 %v3819, %v3811
    %3824 = xla_tuple %v3823
    %3825 = xla_tuple %v3823, %v3809
    %3826 = xla_tuple %3825
    %v3827 = vmax.bf16 %v3823, %v3809
    %3828 = xla_tuple %v3827
    %v3829 = vunpack.c.l.bf16 %v3827
    %v3830 = vunpack.c.h.bf16 %v3827
    %s3831 = scalar_lea.vmem [#allocation22], 384
    %v3832 = vpack.c.bf16 0.0, %v3829
    %3834 = vst [vmem:[%s3831] sm:$0xf] %v3832
    %s3835 = scalar_lea.vmem [#allocation22], 388
    %v3836 = vpack.c.bf16 0.0, %v3830
    %3838 = vst [vmem:[%s3835] sm:$0xf] %v3836
    %s3839 = scalar_lea.vmem %s118, 92
    %v3840 = vlaneseq
    %v3841 = vand.u32 %v3840, 127
    %vm3843 = vcmp.lt.s32.totalorder %v3841, 50
    %v3844 = vsel %vm3843, %v2006, %v13
    %s3845 = scalar_lea.vmem %s131, 92
    %s3846 = scalar_lea.vmem %s144, 92
    %s3847 = scalar_lea.vmem %s118, 96
    %v3848 = vlaneseq
    %v3849 = vand.u32 %v3848, 127
    %vm3851 = vcmp.lt.s32.totalorder %v3849, 50
    %v3852 = vsel %vm3851, %v2102, %v13
    %s3853 = scalar_lea.vmem %s131, 96
    %s3854 = scalar_lea.vmem %s144, 96
    %v3855 = vpack.c.bf16 %v3852, %v3844
    %v3857 = vpack.c.bf16 %v18, %v18
    %v3859 = vpack.c.bf16 %v23, %v23
    %v3861 = vpack.c.bf16 %v28, %v28
    %3863 = xla_tuple %v3861, %v3859
    %3864 = xla_tuple %3863
    %v3865 = vmax.bf16 %v3861, %v3859
    %3866 = xla_tuple %v3865
    %3867 = xla_tuple %v3865, %v3857
    %3868 = xla_tuple %3867
    %v3869 = vmax.bf16 %v3865, %v3857
    %3870 = xla_tuple %v3869
    %3871 = xla_tuple %v3869, %v3855
    %3872 = xla_tuple %3871
    %v3873 = vmax.bf16 %v3869, %v3855
    %3874 = xla_tuple %v3873
    %v3875 = vunpack.c.l.bf16 %v3873
    %v3876 = vunpack.c.h.bf16 %v3873
    %s3877 = scalar_lea.vmem [#allocation22], 392
    %v3878 = vpack.c.bf16 0.0, %v3875
    %3880 = vst [vmem:[%s3877] sm:$0xf] %v3878
    %s3881 = scalar_lea.vmem [#allocation22], 396
    %v3882 = vpack.c.bf16 0.0, %v3876
    %3884 = vst [vmem:[%s3881] sm:$0xf] %v3882
    %v3886 = vld [vmem:[%s0] sm:$0xff]
    %v3887 = vld [vmem:[%s0 + $0x8] sm:$0xff]
    %v3888 = vld [vmem:[#allocation22] sm:$0xf]
    %v3889 = vld [vmem:[#allocation22 + $0x4] sm:$0xf]
    %v3890 = vld [vmem:[#allocation22 + $0x8] sm:$0xf]
    %v3891 = vld [vmem:[#allocation22 + $0xc] sm:$0xf]
    %v3892 = vld [vmem:[#allocation22 + $0x10] sm:$0xf]
    %v3893 = vld [vmem:[#allocation22 + $0x14] sm:$0xf]
    %v3894 = vld [vmem:[#allocation22 + $0x18] sm:$0xf]
    %v3895 = vld [vmem:[#allocation22 + $0x1c] sm:$0xf]
    %v3896 = vld [vmem:[#allocation22 + $0x20] sm:$0xf]
    %v3897 = vld [vmem:[#allocation22 + $0x24] sm:$0xf]
    %v3898 = vld [vmem:[#allocation22 + $0x28] sm:$0xf]
    %v3899 = vld [vmem:[#allocation22 + $0x2c] sm:$0xf]
    %v3900 = vld [vmem:[#allocation22 + $0x30] sm:$0xf]
    %v3901 = vld [vmem:[#allocation22 + $0x34] sm:$0xf]
    %v3902 = vld [vmem:[#allocation22 + $0x38] sm:$0xf]
    %v3903 = vld [vmem:[#allocation22 + $0x3c] sm:$0xf]
    %v3904 = vld [vmem:[#allocation22 + $0x40] sm:$0xf]
    %v3905 = vld [vmem:[#allocation22 + $0x44] sm:$0xf]
    %v3906 = vld [vmem:[#allocation22 + $0x48] sm:$0xf]
    %v3907 = vld [vmem:[#allocation22 + $0x4c] sm:$0xf]
    %v3908 = vld [vmem:[#allocation22 + $0x50] sm:$0xf]
    %v3909 = vld [vmem:[#allocation22 + $0x54] sm:$0xf]
    %v3910 = vld [vmem:[#allocation22 + $0x58] sm:$0xf]
    %v3911 = vld [vmem:[#allocation22 + $0x5c] sm:$0xf]
    %v3912 = vld [vmem:[#allocation22 + $0x60] sm:$0xf]
    %v3915 = vunpack.c.l.b16 %v3886
    %v3916 = vunpack.c.h.b16 %v3886
    %v3917 = vunpack.c.l.b16 %v3887
    %v3918 = vunpack.c.h.b16 %v3887
    %v3919 = vpack.c.b16 %v3917, %v3915
    %v3920 = vpack.c.b16 %v3918, %v3916
    %v3947 = vunpack.c.l.b16 %v3888
    %v3948 = vunpack.c.l.b16 %v3889
    %v3949 = vunpack.c.l.b16 %v3890
    %v3950 = vunpack.c.l.b16 %v3891
    %v3951 = vunpack.c.l.b16 %v3892
    %v3952 = vunpack.c.l.b16 %v3893
    %v3953 = vunpack.c.l.b16 %v3894
    %v3954 = vunpack.c.l.b16 %v3895
    %v3955 = vunpack.c.l.b16 %v3896
    %v3956 = vunpack.c.l.b16 %v3897
    %v3957 = vunpack.c.l.b16 %v3898
    %v3958 = vunpack.c.l.b16 %v3899
    %v3959 = vunpack.c.l.b16 %v3900
    %v3960 = vunpack.c.l.b16 %v3901
    %v3961 = vunpack.c.l.b16 %v3902
    %v3962 = vunpack.c.l.b16 %v3903
    %v3963 = vunpack.c.l.b16 %v3904
    %v3964 = vunpack.c.l.b16 %v3905
    %v3965 = vunpack.c.l.b16 %v3906
    %v3966 = vunpack.c.l.b16 %v3907
    %v3967 = vunpack.c.l.b16 %v3908
    %v3968 = vunpack.c.l.b16 %v3909
    %v3969 = vunpack.c.l.b16 %v3910
    %v3970 = vunpack.c.l.b16 %v3911
    %v3971 = vunpack.c.l.b16 %v3912
    %v3972 = vpack.c.b16 %v3948, %v3947
    %v3973 = vpack.c.b16 %v3950, %v3949
    %v3974 = vpack.c.b16 %v3952, %v3951
    %v3975 = vpack.c.b16 %v3954, %v3953
    %v3976 = vpack.c.b16 %v3956, %v3955
    %v3977 = vpack.c.b16 %v3958, %v3957
    %v3978 = vpack.c.b16 %v3960, %v3959
    %v3979 = vpack.c.b16 %v3962, %v3961
    %v3980 = vpack.c.b16 %v3964, %v3963
    %v3981 = vpack.c.b16 %v3966, %v3965
    %v3982 = vpack.c.b16 %v3968, %v3967
    %v3983 = vpack.c.b16 %v3970, %v3969
    %v3984 = vpack.c.b16 %v3971, %v3971
    %vm3997 = vcmask 588800
    %v3999 = vsel %vm3997, %v3920, 0
    %vm4001 = vcmask 1043456
    %v4003 = vsel %vm4001, %v3984, 0
    %4005 = vmatprep.subr.bf16.mxu0 0
    %4006 = vmatpush1.bf16.msra.mxu0 %v3972
    %4007 = vmatprep.subr.bf16.mxu0 0
    %4008 = vmatpush1.bf16.msra.mxu0 %v3973
    %4009 = vmatprep.subr.bf16.mxu0 0
    %4010 = vmatpush1.bf16.msra.mxu0 %v3974
    %4011 = vmatprep.subr.bf16.mxu0 0
    %4012 = vmatpush1.bf16.msra.mxu0 %v3975
    %4013 = vmatprep.subr.bf16.mxu0 0
    %4014 = vmatpush1.bf16.msra.mxu0 %v3976
    %4015 = vmatprep.subr.bf16.mxu0 0
    %4016 = vmatpush1.bf16.msra.mxu0 %v3977
    %4017 = vmatprep.subr.bf16.mxu0 0
    %4018 = vmatpush1.bf16.msra.mxu0 %v3978
    %4019 = vmatprep.subr.bf16.mxu0 0
    %4020 = vmatpush1.bf16.msra.mxu0 %v3979
    %4021 = vmatprep.subr.bf16.mxu0 0
    %4022 = vmatpush1.bf16.msra.mxu0 %v3980
    %4023 = vmatprep.subr.bf16.mxu0 0
    %4024 = vmatpush1.bf16.msra.mxu0 %v3981
    %4025 = vmatprep.subr.bf16.mxu0 0
    %4026 = vmatpush1.bf16.msra.mxu0 %v3982
    %4027 = vmatprep.subr.bf16.mxu0 0
    %4028 = vmatpush1.bf16.msra.mxu0 %v3983
    %4029 = vmatprep.subr.bf16.mxu0 0
    %4030 = vmatpush1.bf16.msra.mxu0 %v4003
    %4031 = vmatprep.subr.bf16.mxu0 0
    %4032 = vmatpush1.bf16.msra.mxu0 0
    %4033 = vmatprep.subr.bf16.mxu0 0
    %4034 = vmatpush1.bf16.msra.mxu0 0
    %4035 = vmatprep.subr.bf16.mxu0 0
    %4036 = vmatpush1.bf16.msra.mxu0 0
    %4037 = vmatprep.mubr.bf16.mxu0 %v3999
    %4038 = vmatmul.mubr.bf16.gmra.mrb[0].mxu0 %v3919
    %v4039 = vpop.f32.mrb[0].mxu0
    %v4040 = vadd.f32 0.0, %v4039
    %v4041 = vpop.f32.mrb[0].mxu0
    %v4042 = vpop.f32.mrb[0].mxu0
    %v4043 = vadd.f32 0.0, %v4042
    %v4044 = vpop.f32.mrb[0].mxu0
    %4045 = vdwg.mxu0
    %s4046 = scalar_lea.vmem [#allocation22], 100
    %v4047 = vld [vmem:[%s4046] sm:$0xf]
    %v4048 = vld [vmem:[%s4046 + $0x4] sm:$0xf]
    %v4049 = vld [vmem:[%s4046 + $0x8] sm:$0xf]
    %v4050 = vld [vmem:[%s4046 + $0xc] sm:$0xf]
    %v4051 = vld [vmem:[%s4046 + $0x10] sm:$0xf]
    %v4052 = vld [vmem:[%s4046 + $0x14] sm:$0xf]
    %v4053 = vld [vmem:[%s4046 + $0x18] sm:$0xf]
    %v4054 = vld [vmem:[%s4046 + $0x1c] sm:$0xf]
    %v4055 = vld [vmem:[%s4046 + $0x20] sm:$0xf]
    %v4056 = vld [vmem:[%s4046 + $0x24] sm:$0xf]
    %v4057 = vld [vmem:[%s4046 + $0x28] sm:$0xf]
    %v4058 = vld [vmem:[%s4046 + $0x2c] sm:$0xf]
    %v4059 = vld [vmem:[%s4046 + $0x30] sm:$0xf]
    %v4060 = vld [vmem:[%s4046 + $0x34] sm:$0xf]
    %v4061 = vld [vmem:[%s4046 + $0x38] sm:$0xf]
    %v4062 = vld [vmem:[%s4046 + $0x3c] sm:$0xf]
    %v4063 = vld [vmem:[%s4046 + $0x40] sm:$0xf]
    %v4064 = vld [vmem:[%s4046 + $0x44] sm:$0xf]
    %v4065 = vld [vmem:[%s4046 + $0x48] sm:$0xf]
    %v4066 = vld [vmem:[%s4046 + $0x4c] sm:$0xf]
    %v4067 = vld [vmem:[%s4046 + $0x50] sm:$0xf]
    %v4068 = vld [vmem:[%s4046 + $0x54] sm:$0xf]
    %v4069 = vld [vmem:[%s4046 + $0x58] sm:$0xf]
    %v4070 = vld [vmem:[%s4046 + $0x5c] sm:$0xf]
    %v4071 = vld [vmem:[%s4046 + $0x60] sm:$0xf]
    %v4097 = vunpack.c.l.b16 %v4047
    %v4098 = vunpack.c.l.b16 %v4048
    %v4099 = vunpack.c.l.b16 %v4049
    %v4100 = vunpack.c.l.b16 %v4050
    %v4101 = vunpack.c.l.b16 %v4051
    %v4102 = vunpack.c.l.b16 %v4052
    %v4103 = vunpack.c.l.b16 %v4053
    %v4104 = vunpack.c.l.b16 %v4054
    %v4105 = vunpack.c.l.b16 %v4055
    %v4106 = vunpack.c.l.b16 %v4056
    %v4107 = vunpack.c.l.b16 %v4057
    %v4108 = vunpack.c.l.b16 %v4058
    %v4109 = vunpack.c.l.b16 %v4059
    %v4110 = vunpack.c.l.b16 %v4060
    %v4111 = vunpack.c.l.b16 %v4061
    %v4112 = vunpack.c.l.b16 %v4062
    %v4113 = vunpack.c.l.b16 %v4063
    %v4114 = vunpack.c.l.b16 %v4064
    %v4115 = vunpack.c.l.b16 %v4065
    %v4116 = vunpack.c.l.b16 %v4066
    %v4117 = vunpack.c.l.b16 %v4067
    %v4118 = vunpack.c.l.b16 %v4068
    %v4119 = vunpack.c.l.b16 %v4069
    %v4120 = vunpack.c.l.b16 %v4070
    %v4121 = vunpack.c.l.b16 %v4071
    %v4122 = vpack.c.b16 %v4098, %v4097
    %v4123 = vpack.c.b16 %v4100, %v4099
    %v4124 = vpack.c.b16 %v4102, %v4101
    %v4125 = vpack.c.b16 %v4104, %v4103
    %v4126 = vpack.c.b16 %v4106, %v4105
    %v4127 = vpack.c.b16 %v4108, %v4107
    %v4128 = vpack.c.b16 %v4110, %v4109
    %v4129 = vpack.c.b16 %v4112, %v4111
    %v4130 = vpack.c.b16 %v4114, %v4113
    %v4131 = vpack.c.b16 %v4116, %v4115
    %v4132 = vpack.c.b16 %v4118, %v4117
    %v4133 = vpack.c.b16 %v4120, %v4119
    %v4134 = vpack.c.b16 %v4121, %v4121
    %v4148 = vsel %vm4001, %v4134, 0
    %4150 = vmatprep.subr.bf16.mxu0 0
    %4151 = vmatpush1.bf16.msra.mxu0 %v4122
    %4152 = vmatprep.subr.bf16.mxu0 0
    %4153 = vmatpush1.bf16.msra.mxu0 %v4123
    %4154 = vmatprep.subr.bf16.mxu0 0
    %4155 = vmatpush1.bf16.msra.mxu0 %v4124
    %4156 = vmatprep.subr.bf16.mxu0 0
    %4157 = vmatpush1.bf16.msra.mxu0 %v4125
    %4158 = vmatprep.subr.bf16.mxu0 0
    %4159 = vmatpush1.bf16.msra.mxu0 %v4126
    %4160 = vmatprep.subr.bf16.mxu0 0
    %4161 = vmatpush1.bf16.msra.mxu0 %v4127
    %4162 = vmatprep.subr.bf16.mxu0 0
    %4163 = vmatpush1.bf16.msra.mxu0 %v4128
    %4164 = vmatprep.subr.bf16.mxu0 0
    %4165 = vmatpush1.bf16.msra.mxu0 %v4129
    %4166 = vmatprep.subr.bf16.mxu0 0
    %4167 = vmatpush1.bf16.msra.mxu0 %v4130
    %4168 = vmatprep.subr.bf16.mxu0 0
    %4169 = vmatpush1.bf16.msra.mxu0 %v4131
    %4170 = vmatprep.subr.bf16.mxu0 0
    %4171 = vmatpush1.bf16.msra.mxu0 %v4132
    %4172 = vmatprep.subr.bf16.mxu0 0
    %4173 = vmatpush1.bf16.msra.mxu0 %v4133
    %4174 = vmatprep.subr.bf16.mxu0 0
    %4175 = vmatpush1.bf16.msra.mxu0 %v4148
    %4176 = vmatprep.subr.bf16.mxu0 0
    %4177 = vmatpush1.bf16.msra.mxu0 0
    %4178 = vmatprep.subr.bf16.mxu0 0
    %4179 = vmatpush1.bf16.msra.mxu0 0
    %4180 = vmatprep.subr.bf16.mxu0 0
    %4181 = vmatpush1.bf16.msra.mxu0 0
    %4182 = vmatprep.mubr.bf16.mxu0 %v3999
    %4183 = vmatmul.mubr.bf16.gmra.mrb[0].mxu0 %v3919
    %v4184 = vpop.f32.mrb[0].mxu0
    %v4185 = vadd.f32 0.0, %v4184
    %v4186 = vpop.f32.mrb[0].mxu0
    %v4187 = vpop.f32.mrb[0].mxu0
    %v4188 = vadd.f32 0.0, %v4187
    %v4189 = vpop.f32.mrb[0].mxu0
    %4190 = vdwg.mxu0
    %v4191 = vmax.f32 %v4040, %v4185
    %v4192 = vmax.f32 %v4043, %v4188
    %s4193 = scalar_lea.vmem [#allocation22], 200
    %v4194 = vld [vmem:[%s4193] sm:$0xf]
    %v4195 = vld [vmem:[%s4193 + $0x4] sm:$0xf]
    %v4196 = vld [vmem:[%s4193 + $0x8] sm:$0xf]
    %v4197 = vld [vmem:[%s4193 + $0xc] sm:$0xf]
    %v4198 = vld [vmem:[%s4193 + $0x10] sm:$0xf]
    %v4199 = vld [vmem:[%s4193 + $0x14] sm:$0xf]
    %v4200 = vld [vmem:[%s4193 + $0x18] sm:$0xf]
    %v4201 = vld [vmem:[%s4193 + $0x1c] sm:$0xf]
    %v4202 = vld [vmem:[%s4193 + $0x20] sm:$0xf]
    %v4203 = vld [vmem:[%s4193 + $0x24] sm:$0xf]
    %v4204 = vld [vmem:[%s4193 + $0x28] sm:$0xf]
    %v4205 = vld [vmem:[%s4193 + $0x2c] sm:$0xf]
    %v4206 = vld [vmem:[%s4193 + $0x30] sm:$0xf]
    %v4207 = vld [vmem:[%s4193 + $0x34] sm:$0xf]
    %v4208 = vld [vmem:[%s4193 + $0x38] sm:$0xf]
    %v4209 = vld [vmem:[%s4193 + $0x3c] sm:$0xf]
    %v4210 = vld [vmem:[%s4193 + $0x40] sm:$0xf]
    %v4211 = vld [vmem:[%s4193 + $0x44] sm:$0xf]
    %v4212 = vld [vmem:[%s4193 + $0x48] sm:$0xf]
    %v4213 = vld [vmem:[%s4193 + $0x4c] sm:$0xf]
    %v4214 = vld [vmem:[%s4193 + $0x50] sm:$0xf]
    %v4215 = vld [vmem:[%s4193 + $0x54] sm:$0xf]
    %v4216 = vld [vmem:[%s4193 + $0x58] sm:$0xf]
    %v4217 = vld [vmem:[%s4193 + $0x5c] sm:$0xf]
    %v4218 = vld [vmem:[%s4193 + $0x60] sm:$0xf]
    %v4244 = vunpack.c.l.b16 %v4194
    %v4245 = vunpack.c.l.b16 %v4195
    %v4246 = vunpack.c.l.b16 %v4196
    %v4247 = vunpack.c.l.b16 %v4197
    %v4248 = vunpack.c.l.b16 %v4198
    %v4249 = vunpack.c.l.b16 %v4199
    %v4250 = vunpack.c.l.b16 %v4200
    %v4251 = vunpack.c.l.b16 %v4201
    %v4252 = vunpack.c.l.b16 %v4202
    %v4253 = vunpack.c.l.b16 %v4203
    %v4254 = vunpack.c.l.b16 %v4204
    %v4255 = vunpack.c.l.b16 %v4205
    %v4256 = vunpack.c.l.b16 %v4206
    %v4257 = vunpack.c.l.b16 %v4207
    %v4258 = vunpack.c.l.b16 %v4208
    %v4259 = vunpack.c.l.b16 %v4209
    %v4260 = vunpack.c.l.b16 %v4210
    %v4261 = vunpack.c.l.b16 %v4211
    %v4262 = vunpack.c.l.b16 %v4212
    %v4263 = vunpack.c.l.b16 %v4213
    %v4264 = vunpack.c.l.b16 %v4214
    %v4265 = vunpack.c.l.b16 %v4215
    %v4266 = vunpack.c.l.b16 %v4216
    %v4267 = vunpack.c.l.b16 %v4217
    %v4268 = vunpack.c.l.b16 %v4218
    %v4269 = vpack.c.b16 %v4245, %v4244
    %v4270 = vpack.c.b16 %v4247, %v4246
    %v4271 = vpack.c.b16 %v4249, %v4248
    %v4272 = vpack.c.b16 %v4251, %v4250
    %v4273 = vpack.c.b16 %v4253, %v4252
    %v4274 = vpack.c.b16 %v4255, %v4254
    %v4275 = vpack.c.b16 %v4257, %v4256
    %v4276 = vpack.c.b16 %v4259, %v4258
    %v4277 = vpack.c.b16 %v4261, %v4260
    %v4278 = vpack.c.b16 %v4263, %v4262
    %v4279 = vpack.c.b16 %v4265, %v4264
    %v4280 = vpack.c.b16 %v4267, %v4266
    %v4281 = vpack.c.b16 %v4268, %v4268
    %v4295 = vsel %vm4001, %v4281, 0
    %4297 = vmatprep.subr.bf16.mxu0 0
    %4298 = vmatpush1.bf16.msra.mxu0 %v4269
    %4299 = vmatprep.subr.bf16.mxu0 0
    %4300 = vmatpush1.bf16.msra.mxu0 %v4270
    %4301 = vmatprep.subr.bf16.mxu0 0
    %4302 = vmatpush1.bf16.msra.mxu0 %v4271
    %4303 = vmatprep.subr.bf16.mxu0 0
    %4304 = vmatpush1.bf16.msra.mxu0 %v4272
    %4305 = vmatprep.subr.bf16.mxu0 0
    %4306 = vmatpush1.bf16.msra.mxu0 %v4273
    %4307 = vmatprep.subr.bf16.mxu0 0
    %4308 = vmatpush1.bf16.msra.mxu0 %v4274
    %4309 = vmatprep.subr.bf16.mxu0 0
    %4310 = vmatpush1.bf16.msra.mxu0 %v4275
    %4311 = vmatprep.subr.bf16.mxu0 0
    %4312 = vmatpush1.bf16.msra.mxu0 %v4276
    %4313 = vmatprep.subr.bf16.mxu0 0
    %4314 = vmatpush1.bf16.msra.mxu0 %v4277
    %4315 = vmatprep.subr.bf16.mxu0 0
    %4316 = vmatpush1.bf16.msra.mxu0 %v4278
    %4317 = vmatprep.subr.bf16.mxu0 0
    %4318 = vmatpush1.bf16.msra.mxu0 %v4279
    %4319 = vmatprep.subr.bf16.mxu0 0
    %4320 = vmatpush1.bf16.msra.mxu0 %v4280
    %4321 = vmatprep.subr.bf16.mxu0 0
    %4322 = vmatpush1.bf16.msra.mxu0 %v4295
    %4323 = vmatprep.subr.bf16.mxu0 0
    %4324 = vmatpush1.bf16.msra.mxu0 0
    %4325 = vmatprep.subr.bf16.mxu0 0
    %4326 = vmatpush1.bf16.msra.mxu0 0
    %4327 = vmatprep.subr.bf16.mxu0 0
    %4328 = vmatpush1.bf16.msra.mxu0 0
    %4329 = vmatprep.mubr.bf16.mxu0 %v3999
    %4330 = vmatmul.mubr.bf16.gmra.mrb[0].mxu0 %v3919
    %v4331 = vpop.f32.mrb[0].mxu0
    %v4332 = vadd.f32 0.0, %v4331
    %v4333 = vpop.f32.mrb[0].mxu0
    %v4334 = vpop.f32.mrb[0].mxu0
    %v4335 = vadd.f32 0.0, %v4334
    %v4336 = vpop.f32.mrb[0].mxu0
    %4337 = vdwg.mxu0
    %v4338 = vmax.f32 %v4191, %v4332
    %v4339 = vmax.f32 %v4192, %v4335
    %s4340 = scalar_lea.vmem [#allocation22], 300
    %v4341 = vld [vmem:[%s4340] sm:$0xf]
    %v4342 = vld [vmem:[%s4340 + $0x4] sm:$0xf]
    %v4343 = vld [vmem:[%s4340 + $0x8] sm:$0xf]
    %v4344 = vld [vmem:[%s4340 + $0xc] sm:$0xf]
    %v4345 = vld [vmem:[%s4340 + $0x10] sm:$0xf]
    %v4346 = vld [vmem:[%s4340 + $0x14] sm:$0xf]
    %v4347 = vld [vmem:[%s4340 + $0x18] sm:$0xf]
    %v4348 = vld [vmem:[%s4340 + $0x1c] sm:$0xf]
    %v4349 = vld [vmem:[%s4340 + $0x20] sm:$0xf]
    %v4350 = vld [vmem:[%s4340 + $0x24] sm:$0xf]
    %v4351 = vld [vmem:[%s4340 + $0x28] sm:$0xf]
    %v4352 = vld [vmem:[%s4340 + $0x2c] sm:$0xf]
    %v4353 = vld [vmem:[%s4340 + $0x30] sm:$0xf]
    %v4354 = vld [vmem:[%s4340 + $0x34] sm:$0xf]
    %v4355 = vld [vmem:[%s4340 + $0x38] sm:$0xf]
    %v4356 = vld [vmem:[%s4340 + $0x3c] sm:$0xf]
    %v4357 = vld [vmem:[%s4340 + $0x40] sm:$0xf]
    %v4358 = vld [vmem:[%s4340 + $0x44] sm:$0xf]
    %v4359 = vld [vmem:[%s4340 + $0x48] sm:$0xf]
    %v4360 = vld [vmem:[%s4340 + $0x4c] sm:$0xf]
    %v4361 = vld [vmem:[%s4340 + $0x50] sm:$0xf]
    %v4362 = vld [vmem:[%s4340 + $0x54] sm:$0xf]
    %v4363 = vld [vmem:[%s4340 + $0x58] sm:$0xf]
    %v4364 = vld [vmem:[%s4340 + $0x5c] sm:$0xf]
    %v4365 = vld [vmem:[%s4340 + $0x60] sm:$0xf]
    %v4391 = vunpack.c.l.b16 %v4341
    %v4392 = vunpack.c.l.b16 %v4342
    %v4393 = vunpack.c.l.b16 %v4343
    %v4394 = vunpack.c.l.b16 %v4344
    %v4395 = vunpack.c.l.b16 %v4345
    %v4396 = vunpack.c.l.b16 %v4346
    %v4397 = vunpack.c.l.b16 %v4347
    %v4398 = vunpack.c.l.b16 %v4348
    %v4399 = vunpack.c.l.b16 %v4349
    %v4400 = vunpack.c.l.b16 %v4350
    %v4401 = vunpack.c.l.b16 %v4351
    %v4402 = vunpack.c.l.b16 %v4352
    %v4403 = vunpack.c.l.b16 %v4353
    %v4404 = vunpack.c.l.b16 %v4354
    %v4405 = vunpack.c.l.b16 %v4355
    %v4406 = vunpack.c.l.b16 %v4356
    %v4407 = vunpack.c.l.b16 %v4357
    %v4408 = vunpack.c.l.b16 %v4358
    %v4409 = vunpack.c.l.b16 %v4359
    %v4410 = vunpack.c.l.b16 %v4360
    %v4411 = vunpack.c.l.b16 %v4361
    %v4412 = vunpack.c.l.b16 %v4362
    %v4413 = vunpack.c.l.b16 %v4363
    %v4414 = vunpack.c.l.b16 %v4364
    %v4415 = vunpack.c.l.b16 %v4365
    %v4416 = vpack.c.b16 %v4392, %v4391
    %v4417 = vpack.c.b16 %v4394, %v4393
    %v4418 = vpack.c.b16 %v4396, %v4395
    %v4419 = vpack.c.b16 %v4398, %v4397
    %v4420 = vpack.c.b16 %v4400, %v4399
    %v4421 = vpack.c.b16 %v4402, %v4401
    %v4422 = vpack.c.b16 %v4404, %v4403
    %v4423 = vpack.c.b16 %v4406, %v4405
    %v4424 = vpack.c.b16 %v4408, %v4407
    %v4425 = vpack.c.b16 %v4410, %v4409
    %v4426 = vpack.c.b16 %v4412, %v4411
    %v4427 = vpack.c.b16 %v4414, %v4413
    %v4428 = vpack.c.b16 %v4415, %v4415
    %v4442 = vsel %vm4001, %v4428, 0
    %4444 = vmatprep.subr.bf16.mxu0 0
    %4445 = vmatpush1.bf16.msra.mxu0 %v4416
    %4446 = vmatprep.subr.bf16.mxu0 0
    %4447 = vmatpush1.bf16.msra.mxu0 %v4417
    %4448 = vmatprep.subr.bf16.mxu0 0
    %4449 = vmatpush1.bf16.msra.mxu0 %v4418
    %4450 = vmatprep.subr.bf16.mxu0 0
    %4451 = vmatpush1.bf16.msra.mxu0 %v4419
    %4452 = vmatprep.subr.bf16.mxu0 0
    %4453 = vmatpush1.bf16.msra.mxu0 %v4420
    %4454 = vmatprep.subr.bf16.mxu0 0
    %4455 = vmatpush1.bf16.msra.mxu0 %v4421
    %4456 = vmatprep.subr.bf16.mxu0 0
    %4457 = vmatpush1.bf16.msra.mxu0 %v4422
    %4458 = vmatprep.subr.bf16.mxu0 0
    %4459 = vmatpush1.bf16.msra.mxu0 %v4423
    %4460 = vmatprep.subr.bf16.mxu0 0
    %4461 = vmatpush1.bf16.msra.mxu0 %v4424
    %4462 = vmatprep.subr.bf16.mxu0 0
    %4463 = vmatpush1.bf16.msra.mxu0 %v4425
    %4464 = vmatprep.subr.bf16.mxu0 0
    %4465 = vmatpush1.bf16.msra.mxu0 %v4426
    %4466 = vmatprep.subr.bf16.mxu0 0
    %4467 = vmatpush1.bf16.msra.mxu0 %v4427
    %4468 = vmatprep.subr.bf16.mxu0 0
    %4469 = vmatpush1.bf16.msra.mxu0 %v4442
    %4470 = vmatprep.subr.bf16.mxu0 0
    %4471 = vmatpush1.bf16.msra.mxu0 0
    %4472 = vmatprep.subr.bf16.mxu0 0
    %4473 = vmatpush1.bf16.msra.mxu0 0
    %4474 = vmatprep.subr.bf16.mxu0 0
    %4475 = vmatpush1.bf16.msra.mxu0 0
    %4476 = vmatprep.mubr.bf16.mxu0 %v3999
    %4477 = vmatmul.mubr.bf16.gmra.mrb[0].mxu0 %v3919
    %v4478 = vpop.f32.mrb[0].mxu0
    %v4479 = vadd.f32 0.0, %v4478
    %v4480 = vpop.f32.mrb[0].mxu0
    %v4481 = vpop.f32.mrb[0].mxu0
    %v4482 = vadd.f32 0.0, %v4481
    %v4483 = vpop.f32.mrb[0].mxu0
    %4484 = vdwg.mxu0
    %v4485 = vmax.f32 %v4338, %v4479
    %v4486 = vmax.f32 %v4339, %v4482
    %v4487 = vld [vmem:[%s1] sm:$0xff]
    %v4488 = vld [vmem:[%s1 + $0x8] sm:$0xff]
    %4490 = vset.pattern.permute.xlu0 0
    %4491 = vperm.xlu0 %4490, %v4487
    %v4492 = vpop.permute.xlu0 %4491
    %4495 = vset.pattern.permute.xlu0 0
    %4496 = vperm.xlu0 %4495, %v4488
    %v4497 = vpop.permute.xlu0 %4496
    %v4499 = vadd.f32 %v4485, %v4492
    %v4500 = vadd.f32 %v4486, %v4497
    %v4501 = vmax.f32 %v4499, 0.0
    %v4502 = vmax.f32 %v4500, 0.0
    %v4503 = vpack.c.bf16 %v4502, %v4501
    %v4505 = vunpack.c.l.b16 %v4503
    %v4506 = vunpack.c.h.b16 %v4503
    %v4507 = vpack.c.b16 %v4505, %v4505
    %v4508 = vpack.c.b16 %v4506, %v4506
    %vm4511 = vcmask 404480
    %4512 = vst.msk [vmem:[%s7] sm:$0xf] %vm4511, %v4507
    %4513 = vst.msk [vmem:[%s7 + $0x4] sm:$0xf] %vm4511, %v4508
    // Predicated region
    $region26: #{lenet5_forward.6} parent=1 // pred_check
      _
    $region27: #{lenet5_forward.6} parent=1 // pred_check_branch
      %4515 = sbr.rel (0) target = $region29
    $region28: #{lenet5_forward.6} parent=1 // pred_region
      _
    $region29: #{lenet5_forward.6} parent=1 // pred_fallthru
      _
    // Predicated region
    $region30: #{lenet5_forward.6} parent=1 // pred_check
      _
    $region31: #{lenet5_forward.6} parent=1 // pred_check_branch
      %4517 = sbr.rel (0) target = $region33
    $region32: #{lenet5_forward.6} parent=1 // pred_region
      _
    $region33: #{lenet5_forward.6} parent=1 // pred_fallthru
      _

// kernel: lenet5_forward.5
$region0: #{lenet5_forward.5}
  #allocation0 [shape = 'u32[]', space=smem, size = 0x4, offset = 0x4, fixed_abs, tag = 'smem constant byte address 0x4 - core index']
  #allocation1 [shape = 'u32[144,128]{1,0:T(1,128)}', space=vmem, size = 0x12000, scoped, tag = 'internal scratch']
  %s0 = inlined_call_operand.vmem [shape: bf16[400,2], index: 0, kind: input, shape index: {}]
  %s1 = inlined_call_operand.vmem [shape: bf16[120,400], index: 1, kind: input, shape index: {}]
  %s2 = inlined_call_operand.vmem [shape: f32[120,1], index: 2, kind: input, shape index: {}]
  %s3 = inlined_call_operand.vmem [shape: bf16[84,120], index: 3, kind: input, shape index: {}]
  %s4 = inlined_call_operand.vmem [shape: f32[84,1], index: 4, kind: input, shape index: {}]
  %s5 = inlined_call_operand.vmem [shape: bf16[10,84], index: 5, kind: input, shape index: {}]
  %s6 = inlined_call_operand.vmem [shape: f32[10,1], index: 6, kind: input, shape index: {}]
  %s7 = inlined_call_operand.vmem [shape: f32[10,2], index: 7, kind: output, shape index: {}]
  %s8 = sld [smem:[#allocation0]]
  $region38: #{lenet5_forward.5} parent=0
    _
  %s10 = ssub.s32 1, %s8
  %s11 = scalar_select 0, %s10, %s8
  // Predicated region
  $region2: #{lenet5_forward.5} parent=0 // pred_check
    _
  $region3: #{lenet5_forward.5} parent=0 // pred_check_branch
    %13 = sbr.rel (0) target = $region5
  $region4: #{lenet5_forward.5} parent=0 // pred_region
    _
  $region5: #{lenet5_forward.5} parent=0 // pred_fallthru
    _
  // Predicated region
  $region6: #{lenet5_forward.5} parent=0 // pred_check
    _
  $region7: #{lenet5_forward.5} parent=0 // pred_check_branch
    %15 = sbr.rel (0) target = $region9
  $region8: #{lenet5_forward.5} parent=0 // pred_region
    _
  $region9: #{lenet5_forward.5} parent=0 // pred_fallthru
    _
  // Predicated region
  $region10: #{lenet5_forward.5} parent=0 // pred_check
    _
  $region11: #{lenet5_forward.5} parent=0 // pred_check_branch
    %17 = sbr.rel (0) target = $region13
  $region12: #{lenet5_forward.5} parent=0 // pred_region
    _
  $region13: #{lenet5_forward.5} parent=0 // pred_fallthru
    _
  // Predicated region
  $region14: #{lenet5_forward.5} parent=0 // pred_check
    _
  $region15: #{lenet5_forward.5} parent=0 // pred_check_branch
    %19 = sbr.rel (0) target = $region17
  $region16: #{lenet5_forward.5} parent=0 // pred_region
    _
  $region17: #{lenet5_forward.5} parent=0 // pred_fallthru
    _
  // Predicated region
  $region18: #{lenet5_forward.5} parent=0 // pred_check
    _
  $region19: #{lenet5_forward.5} parent=0 // pred_check_branch
    %21 = sbr.rel (0) target = $region21
  $region20: #{lenet5_forward.5} parent=0 // pred_region
    _
  $region21: #{lenet5_forward.5} parent=0 // pred_fallthru
    _
  // Predicated region
  $region22: #{lenet5_forward.5} parent=0 // pred_check
    _
  $region23: #{lenet5_forward.5} parent=0 // pred_check_branch
    %23 = sbr.rel (0) target = $region25
  $region24: #{lenet5_forward.5} parent=0 // pred_region
    _
  $region25: #{lenet5_forward.5} parent=0 // pred_fallthru
    _
  // Predicated region
  $region26: #{lenet5_forward.5} parent=0 // pred_check
    _
  $region27: #{lenet5_forward.5} parent=0 // pred_check_branch
    %25 = sbr.rel (0) target = $region29
  $region28: #{lenet5_forward.5} parent=0 // pred_region
    _
  $region29: #{lenet5_forward.5} parent=0 // pred_fallthru
    _
  %v27 = vld [vmem:[%s1] sm:$0xff]
  %v28 = vld [vmem:[%s1 + $0x8] sm:$0xff]
  %v29 = vld [vmem:[%s1 + $0x10] sm:$0xff]
  %v30 = vld [vmem:[%s1 + $0x18] sm:$0xff]
  %v31 = vld [vmem:[%s1 + $0x20] sm:$0xff]
  %v32 = vld [vmem:[%s1 + $0x28] sm:$0xff]
  %v33 = vld [vmem:[%s1 + $0x30] sm:$0xff]
  %v34 = vld [vmem:[%s1 + $0x38] sm:$0xff]
  %v35 = vld [vmem:[%s1 + $0x40] sm:$0xff]
  %v36 = vld [vmem:[%s1 + $0x48] sm:$0xff]
  %v37 = vld [vmem:[%s1 + $0x50] sm:$0xff]
  %v38 = vld [vmem:[%s1 + $0x58] sm:$0xff]
  %v39 = vld [vmem:[%s1 + $0x60] sm:$0xff]
  %v40 = vld [vmem:[%s1 + $0x68] sm:$0xff]
  %v41 = vld [vmem:[%s1 + $0x70] sm:$0xff]
  %v42 = vld [vmem:[%s1 + $0x78] sm:$0xff]
  %v43 = vld [vmem:[%s1 + $0x80] sm:$0xff]
  %v44 = vld [vmem:[%s1 + $0x88] sm:$0xff]
  %v45 = vld [vmem:[%s1 + $0x90] sm:$0xff]
  %v46 = vld [vmem:[%s1 + $0x98] sm:$0xff]
  %v47 = vld [vmem:[%s1 + $0xa0] sm:$0xff]
  %v48 = vld [vmem:[%s1 + $0xa8] sm:$0xff]
  %v49 = vld [vmem:[%s1 + $0xb0] sm:$0xff]
  %v50 = vld [vmem:[%s1 + $0xb8] sm:$0xff]
  %v51 = vld [vmem:[%s1 + $0xc0] sm:$0xff]
  %v52 = vld [vmem:[%s1 + $0xc8] sm:$0xff]
  %v53 = vld [vmem:[%s1 + $0xd0] sm:$0xff]
  %v54 = vld [vmem:[%s1 + $0xd8] sm:$0xff]
  %v55 = vld [vmem:[%s1 + $0xe0] sm:$0xff]
  %v56 = vld [vmem:[%s1 + $0xe8] sm:$0xff]
  %v57 = vld [vmem:[%s0] sm:$0xf]
  %v58 = vld [vmem:[%s0 + $0x4] sm:$0xf]
  %v59 = vld [vmem:[%s0 + $0x8] sm:$0xf]
  %v60 = vld [vmem:[%s0 + $0xc] sm:$0xf]
  %v61 = vld [vmem:[%s0 + $0x10] sm:$0xf]
  %v62 = vld [vmem:[%s0 + $0x14] sm:$0xf]
  %v63 = vld [vmem:[%s0 + $0x18] sm:$0xf]
  %v64 = vld [vmem:[%s0 + $0x1c] sm:$0xf]
  %v65 = vld [vmem:[%s0 + $0x20] sm:$0xf]
  %v66 = vld [vmem:[%s0 + $0x24] sm:$0xf]
  %v67 = vld [vmem:[%s0 + $0x28] sm:$0xf]
  %v68 = vld [vmem:[%s0 + $0x2c] sm:$0xf]
  %v69 = vld [vmem:[%s0 + $0x30] sm:$0xf]
  %v70 = vld [vmem:[%s0 + $0x34] sm:$0xf]
  %v71 = vld [vmem:[%s0 + $0x38] sm:$0xf]
  %v72 = vld [vmem:[%s0 + $0x3c] sm:$0xf]
  %v73 = vld [vmem:[%s0 + $0x40] sm:$0xf]
  %v74 = vld [vmem:[%s0 + $0x44] sm:$0xf]
  %v75 = vld [vmem:[%s0 + $0x48] sm:$0xf]
  %v76 = vld [vmem:[%s0 + $0x4c] sm:$0xf]
  %v77 = vld [vmem:[%s0 + $0x50] sm:$0xf]
  %v78 = vld [vmem:[%s0 + $0x54] sm:$0xf]
  %v79 = vld [vmem:[%s0 + $0x58] sm:$0xf]
  %v80 = vld [vmem:[%s0 + $0x5c] sm:$0xf]
  %v81 = vld [vmem:[%s0 + $0x60] sm:$0xf]
  %v82 = vld [vmem:[%s0 + $0x64] sm:$0xf]
  %v83 = vld [vmem:[%s0 + $0x68] sm:$0xf]
  %v84 = vld [vmem:[%s0 + $0x6c] sm:$0xf]
  %v85 = vld [vmem:[%s0 + $0x70] sm:$0xf]
  %v86 = vld [vmem:[%s0 + $0x74] sm:$0xf]
  %v87 = vld [vmem:[%s0 + $0x78] sm:$0xf]
  %v88 = vld [vmem:[%s0 + $0x7c] sm:$0xf]
  %v89 = vld [vmem:[%s0 + $0x80] sm:$0xf]
  %v90 = vld [vmem:[%s0 + $0x84] sm:$0xf]
  %v91 = vld [vmem:[%s0 + $0x88] sm:$0xf]
  %v92 = vld [vmem:[%s0 + $0x8c] sm:$0xf]
  %v93 = vld [vmem:[%s0 + $0x90] sm:$0xf]
  %v94 = vld [vmem:[%s0 + $0x94] sm:$0xf]
  %v95 = vld [vmem:[%s0 + $0x98] sm:$0xf]
  %v96 = vld [vmem:[%s0 + $0x9c] sm:$0xf]
  %v97 = vld [vmem:[%s0 + $0xa0] sm:$0xf]
  %v98 = vld [vmem:[%s0 + $0xa4] sm:$0xf]
  %v99 = vld [vmem:[%s0 + $0xa8] sm:$0xf]
  %v100 = vld [vmem:[%s0 + $0xac] sm:$0xf]
  %v101 = vld [vmem:[%s0 + $0xb0] sm:$0xf]
  %v102 = vld [vmem:[%s0 + $0xb4] sm:$0xf]
  %v103 = vld [vmem:[%s0 + $0xb8] sm:$0xf]
  %v104 = vld [vmem:[%s0 + $0xbc] sm:$0xf]
  %v105 = vld [vmem:[%s0 + $0xc0] sm:$0xf]
  %v106 = vld [vmem:[%s0 + $0xc4] sm:$0xf]
  %v107 = vld [vmem:[%s2] sm:$0xff]
  %v108 = vld [vmem:[%s2 + $0x8] sm:$0xff]
  %v109 = vld [vmem:[%s2 + $0x10] sm:$0xff]
  %v110 = vld [vmem:[%s2 + $0x18] sm:$0xff]
  %v111 = vld [vmem:[%s2 + $0x20] sm:$0xff]
  %v112 = vld [vmem:[%s2 + $0x28] sm:$0xff]
  %v113 = vld [vmem:[%s2 + $0x30] sm:$0xff]
  %v114 = vld [vmem:[%s2 + $0x38] sm:$0xff]
  %v115 = vld [vmem:[%s2 + $0x40] sm:$0xff]
  %v116 = vld [vmem:[%s2 + $0x48] sm:$0xff]
  %v117 = vld [vmem:[%s2 + $0x50] sm:$0xff]
  %v118 = vld [vmem:[%s2 + $0x58] sm:$0xff]
  %v119 = vld [vmem:[%s2 + $0x60] sm:$0xff]
  %v120 = vld [vmem:[%s2 + $0x68] sm:$0xff]
  %v121 = vld [vmem:[%s2 + $0x70] sm:$0xff]
  %123 = vset.pattern.permute.xlu0 0
  %124 = vperm.xlu0 %123, %v107
  %v125 = vpop.permute.xlu0 %124
  %128 = vset.pattern.permute.xlu0 0
  %129 = vperm.xlu0 %128, %v108
  %v130 = vpop.permute.xlu0 %129
  %133 = vset.pattern.permute.xlu0 0
  %134 = vperm.xlu0 %133, %v109
  %v135 = vpop.permute.xlu0 %134
  %138 = vset.pattern.permute.xlu0 0
  %139 = vperm.xlu0 %138, %v110
  %v140 = vpop.permute.xlu0 %139
  %143 = vset.pattern.permute.xlu0 0
  %144 = vperm.xlu0 %143, %v111
  %v145 = vpop.permute.xlu0 %144
  %148 = vset.pattern.permute.xlu0 0
  %149 = vperm.xlu0 %148, %v112
  %v150 = vpop.permute.xlu0 %149
  %153 = vset.pattern.permute.xlu0 0
  %154 = vperm.xlu0 %153, %v113
  %v155 = vpop.permute.xlu0 %154
  %158 = vset.pattern.permute.xlu0 0
  %159 = vperm.xlu0 %158, %v114
  %v160 = vpop.permute.xlu0 %159
  %163 = vset.pattern.permute.xlu0 0
  %164 = vperm.xlu0 %163, %v115
  %v165 = vpop.permute.xlu0 %164
  %168 = vset.pattern.permute.xlu0 0
  %169 = vperm.xlu0 %168, %v116
  %v170 = vpop.permute.xlu0 %169
  %173 = vset.pattern.permute.xlu0 0
  %174 = vperm.xlu0 %173, %v117
  %v175 = vpop.permute.xlu0 %174
  %178 = vset.pattern.permute.xlu0 0
  %179 = vperm.xlu0 %178, %v118
  %v180 = vpop.permute.xlu0 %179
  %183 = vset.pattern.permute.xlu0 0
  %184 = vperm.xlu0 %183, %v119
  %v185 = vpop.permute.xlu0 %184
  %188 = vset.pattern.permute.xlu0 0
  %189 = vperm.xlu0 %188, %v120
  %v190 = vpop.permute.xlu0 %189
  %193 = vset.pattern.permute.xlu0 0
  %194 = vperm.xlu0 %193, %v121
  %v195 = vpop.permute.xlu0 %194
  %v227 = vunpack.c.l.b16 %v27
  %v228 = vunpack.c.h.b16 %v27
  %v229 = vunpack.c.l.b16 %v28
  %v230 = vunpack.c.h.b16 %v28
  %v231 = vunpack.c.l.b16 %v29
  %v232 = vunpack.c.h.b16 %v29
  %v233 = vunpack.c.l.b16 %v30
  %v234 = vunpack.c.h.b16 %v30
  %v235 = vunpack.c.l.b16 %v31
  %v236 = vunpack.c.h.b16 %v31
  %v237 = vunpack.c.l.b16 %v32
  %v238 = vunpack.c.h.b16 %v32
  %v239 = vunpack.c.l.b16 %v33
  %v240 = vunpack.c.h.b16 %v33
  %v241 = vunpack.c.l.b16 %v34
  %v242 = vunpack.c.h.b16 %v34
  %v243 = vunpack.c.l.b16 %v35
  %v244 = vunpack.c.h.b16 %v35
  %v245 = vunpack.c.l.b16 %v36
  %v246 = vunpack.c.h.b16 %v36
  %v247 = vunpack.c.l.b16 %v37
  %v248 = vunpack.c.h.b16 %v37
  %v249 = vunpack.c.l.b16 %v38
  %v250 = vunpack.c.h.b16 %v38
  %v251 = vunpack.c.l.b16 %v39
  %v252 = vunpack.c.h.b16 %v39
  %v253 = vunpack.c.l.b16 %v40
  %v254 = vunpack.c.h.b16 %v40
  %v255 = vunpack.c.l.b16 %v41
  %v256 = vunpack.c.h.b16 %v41
  %v257 = vunpack.c.l.b16 %v42
  %v258 = vunpack.c.h.b16 %v42
  %v259 = vunpack.c.l.b16 %v43
  %v260 = vunpack.c.h.b16 %v43
  %v261 = vunpack.c.l.b16 %v44
  %v262 = vunpack.c.h.b16 %v44
  %v263 = vunpack.c.l.b16 %v45
  %v264 = vunpack.c.h.b16 %v45
  %v265 = vunpack.c.l.b16 %v46
  %v266 = vunpack.c.h.b16 %v46
  %v267 = vunpack.c.l.b16 %v47
  %v268 = vunpack.c.h.b16 %v47
  %v269 = vunpack.c.l.b16 %v48
  %v270 = vunpack.c.h.b16 %v48
  %v271 = vunpack.c.l.b16 %v49
  %v272 = vunpack.c.h.b16 %v49
  %v273 = vunpack.c.l.b16 %v50
  %v274 = vunpack.c.h.b16 %v50
  %v275 = vunpack.c.l.b16 %v51
  %v276 = vunpack.c.h.b16 %v51
  %v277 = vunpack.c.l.b16 %v52
  %v278 = vunpack.c.h.b16 %v52
  %v279 = vunpack.c.l.b16 %v53
  %v280 = vunpack.c.h.b16 %v53
  %v281 = vunpack.c.l.b16 %v54
  %v282 = vunpack.c.h.b16 %v54
  %v283 = vunpack.c.l.b16 %v55
  %v284 = vunpack.c.h.b16 %v55
  %v285 = vunpack.c.l.b16 %v56
  %v286 = vunpack.c.h.b16 %v56
  %v287 = vpack.c.b16 %v231, %v227
  %v288 = vpack.c.b16 %v232, %v228
  %v289 = vpack.c.b16 %v233, %v229
  %v290 = vpack.c.b16 %v234, %v230
  %v291 = vpack.c.b16 %v239, %v235
  %v292 = vpack.c.b16 %v240, %v236
  %v293 = vpack.c.b16 %v241, %v237
  %v294 = vpack.c.b16 %v242, %v238
  %v295 = vpack.c.b16 %v247, %v243
  %v296 = vpack.c.b16 %v248, %v244
  %v297 = vpack.c.b16 %v249, %v245
  %v298 = vpack.c.b16 %v250, %v246
  %v299 = vpack.c.b16 %v255, %v251
  %v300 = vpack.c.b16 %v256, %v252
  %v301 = vpack.c.b16 %v257, %v253
  %v302 = vpack.c.b16 %v258, %v254
  %v303 = vpack.c.b16 %v263, %v259
  %v304 = vpack.c.b16 %v264, %v260
  %v305 = vpack.c.b16 %v265, %v261
  %v306 = vpack.c.b16 %v266, %v262
  %v307 = vpack.c.b16 %v271, %v267
  %v308 = vpack.c.b16 %v272, %v268
  %v309 = vpack.c.b16 %v273, %v269
  %v310 = vpack.c.b16 %v274, %v270
  %v311 = vpack.c.b16 %v279, %v275
  %v312 = vpack.c.b16 %v280, %v276
  %v313 = vpack.c.b16 %v281, %v277
  %v314 = vpack.c.b16 %v282, %v278
  %v315 = vpack.c.b16 %v283, %v283
  %v316 = vpack.c.b16 %v284, %v284
  %v317 = vpack.c.b16 %v285, %v285
  %v318 = vpack.c.b16 %v286, %v286
  %v393 = vunpack.c.l.b16 %v57
  %v394 = vunpack.c.l.b16 %v58
  %v395 = vunpack.c.l.b16 %v59
  %v396 = vunpack.c.l.b16 %v60
  %v397 = vunpack.c.l.b16 %v61
  %v398 = vunpack.c.l.b16 %v62
  %v399 = vunpack.c.l.b16 %v63
  %v400 = vunpack.c.l.b16 %v64
  %v401 = vunpack.c.l.b16 %v65
  %v402 = vunpack.c.l.b16 %v66
  %v403 = vunpack.c.l.b16 %v67
  %v404 = vunpack.c.l.b16 %v68
  %v405 = vunpack.c.l.b16 %v69
  %v406 = vunpack.c.l.b16 %v70
  %v407 = vunpack.c.l.b16 %v71
  %v408 = vunpack.c.l.b16 %v72
  %v409 = vunpack.c.l.b16 %v73
  %v410 = vunpack.c.l.b16 %v74
  %v411 = vunpack.c.l.b16 %v75
  %v412 = vunpack.c.l.b16 %v76
  %v413 = vunpack.c.l.b16 %v77
  %v414 = vunpack.c.l.b16 %v78
  %v415 = vunpack.c.l.b16 %v79
  %v416 = vunpack.c.l.b16 %v80
  %v417 = vunpack.c.l.b16 %v81
  %v418 = vunpack.c.l.b16 %v82
  %v419 = vunpack.c.l.b16 %v83
  %v420 = vunpack.c.l.b16 %v84
  %v421 = vunpack.c.l.b16 %v85
  %v422 = vunpack.c.l.b16 %v86
  %v423 = vunpack.c.l.b16 %v87
  %v424 = vunpack.c.l.b16 %v88
  %v425 = vunpack.c.l.b16 %v89
  %v426 = vunpack.c.l.b16 %v90
  %v427 = vunpack.c.l.b16 %v91
  %v428 = vunpack.c.l.b16 %v92
  %v429 = vunpack.c.l.b16 %v93
  %v430 = vunpack.c.l.b16 %v94
  %v431 = vunpack.c.l.b16 %v95
  %v432 = vunpack.c.l.b16 %v96
  %v433 = vunpack.c.l.b16 %v97
  %v434 = vunpack.c.l.b16 %v98
  %v435 = vunpack.c.l.b16 %v99
  %v436 = vunpack.c.l.b16 %v100
  %v437 = vunpack.c.l.b16 %v101
  %v438 = vunpack.c.l.b16 %v102
  %v439 = vunpack.c.l.b16 %v103
  %v440 = vunpack.c.l.b16 %v104
  %v441 = vunpack.c.l.b16 %v105
  %v442 = vunpack.c.l.b16 %v106
  %v443 = vpack.c.b16 %v394, %v393
  %v444 = vpack.c.b16 %v396, %v395
  %v445 = vpack.c.b16 %v398, %v397
  %v446 = vpack.c.b16 %v400, %v399
  %v447 = vpack.c.b16 %v402, %v401
  %v448 = vpack.c.b16 %v404, %v403
  %v449 = vpack.c.b16 %v406, %v405
  %v450 = vpack.c.b16 %v408, %v407
  %v451 = vpack.c.b16 %v410, %v409
  %v452 = vpack.c.b16 %v412, %v411
  %v453 = vpack.c.b16 %v414, %v413
  %v454 = vpack.c.b16 %v416, %v415
  %v455 = vpack.c.b16 %v418, %v417
  %v456 = vpack.c.b16 %v420, %v419
  %v457 = vpack.c.b16 %v422, %v421
  %v458 = vpack.c.b16 %v424, %v423
  %v459 = vpack.c.b16 %v426, %v425
  %v460 = vpack.c.b16 %v428, %v427
  %v461 = vpack.c.b16 %v430, %v429
  %v462 = vpack.c.b16 %v432, %v431
  %v463 = vpack.c.b16 %v434, %v433
  %v464 = vpack.c.b16 %v436, %v435
  %v465 = vpack.c.b16 %v438, %v437
  %v466 = vpack.c.b16 %v440, %v439
  %v467 = vpack.c.b16 %v442, %v441
  %vm493 = vcmask 130048
  %v495 = vsel %vm493, %v290, 0
  %v498 = vsel %vm493, %v294, 0
  %v501 = vsel %vm493, %v298, 0
  %v504 = vsel %vm493, %v302, 0
  %v507 = vsel %vm493, %v306, 0
  %v510 = vsel %vm493, %v310, 0
  %v513 = vsel %vm493, %v314, 0
  %v516 = vsel %vm493, %v318, 0
  %518 = vmatprep.subr.bf16.mxu0 0
  %519 = vmatpush1.bf16.msra.mxu0 %v443
  %520 = vmatprep.subr.bf16.mxu0 0
  %521 = vmatpush1.bf16.msra.mxu0 %v444
  %522 = vmatprep.subr.bf16.mxu0 0
  %523 = vmatpush1.bf16.msra.mxu0 %v445
  %524 = vmatprep.subr.bf16.mxu0 0
  %525 = vmatpush1.bf16.msra.mxu0 %v446
  %526 = vmatprep.subr.bf16.mxu0 0
  %527 = vmatpush1.bf16.msra.mxu0 %v447
  %528 = vmatprep.subr.bf16.mxu0 0
  %529 = vmatpush1.bf16.msra.mxu0 %v448
  %530 = vmatprep.subr.bf16.mxu0 0
  %531 = vmatpush1.bf16.msra.mxu0 %v449
  %532 = vmatprep.subr.bf16.mxu0 0
  %533 = vmatpush1.bf16.msra.mxu0 %v450
  %534 = vmatprep.subr.bf16.mxu0 0
  %535 = vmatpush1.bf16.msra.mxu0 %v451
  %536 = vmatprep.subr.bf16.mxu0 0
  %537 = vmatpush1.bf16.msra.mxu0 %v452
  %538 = vmatprep.subr.bf16.mxu0 0
  %539 = vmatpush1.bf16.msra.mxu0 %v453
  %540 = vmatprep.subr.bf16.mxu0 0
  %541 = vmatpush1.bf16.msra.mxu0 %v454
  %542 = vmatprep.subr.bf16.mxu0 0
  %543 = vmatpush1.bf16.msra.mxu0 %v455
  %544 = vmatprep.subr.bf16.mxu0 0
  %545 = vmatpush1.bf16.msra.mxu0 %v456
  %546 = vmatprep.subr.bf16.mxu0 0
  %547 = vmatpush1.bf16.msra.mxu0 %v457
  %548 = vmatprep.subr.bf16.mxu0 0
  %549 = vmatpush1.bf16.msra.mxu0 %v458
  %550 = vmatprep.mubr.bf16.mxu0 %v288
  %551 = vmatmul.mubr.bf16.gmra.mrb[0].mxu0 %v287
  %v552 = vpop.f32.mrb[0].mxu0
  %v553 = vadd.f32 %v125, %v552
  %v554 = vpop.f32.mrb[0].mxu0
  %v555 = vpop.f32.mrb[0].mxu0
  %v556 = vadd.f32 %v130, %v555
  %v557 = vpop.f32.mrb[0].mxu0
  %558 = vmatprep.mubr.bf16.mxu0 %v292
  %559 = vmatmul.mubr.bf16.gmra.mrb[0].mxu0 %v291
  %v560 = vpop.f32.mrb[0].mxu0
  %v561 = vadd.f32 %v135, %v560
  %v562 = vpop.f32.mrb[0].mxu0
  %v563 = vpop.f32.mrb[0].mxu0
  %v564 = vadd.f32 %v140, %v563
  %v565 = vpop.f32.mrb[0].mxu0
  %566 = vmatprep.mubr.bf16.mxu0 %v296
  %567 = vmatmul.mubr.bf16.gmra.mrb[0].mxu0 %v295
  %v568 = vpop.f32.mrb[0].mxu0
  %v569 = vadd.f32 %v145, %v568
  %v570 = vpop.f32.mrb[0].mxu0
  %v571 = vpop.f32.mrb[0].mxu0
  %v572 = vadd.f32 %v150, %v571
  %v573 = vpop.f32.mrb[0].mxu0
  %574 = vmatprep.mubr.bf16.mxu0 %v300
  %575 = vmatmul.mubr.bf16.gmra.mrb[0].mxu0 %v299
  %v576 = vpop.f32.mrb[0].mxu0
  %v577 = vadd.f32 %v155, %v576
  %v578 = vpop.f32.mrb[0].mxu0
  %v579 = vpop.f32.mrb[0].mxu0
  %v580 = vadd.f32 %v160, %v579
  %v581 = vpop.f32.mrb[0].mxu0
  %582 = vmatprep.mubr.bf16.mxu0 %v304
  %583 = vmatmul.mubr.bf16.gmra.mrb[0].mxu0 %v303
  %v584 = vpop.f32.mrb[0].mxu0
  %v585 = vadd.f32 %v165, %v584
  %v586 = vpop.f32.mrb[0].mxu0
  %v587 = vpop.f32.mrb[0].mxu0
  %v588 = vadd.f32 %v170, %v587
  %v589 = vpop.f32.mrb[0].mxu0
  %590 = vmatprep.mubr.bf16.mxu0 %v308
  %591 = vmatmul.mubr.bf16.gmra.mrb[0].mxu0 %v307
  %v592 = vpop.f32.mrb[0].mxu0
  %v593 = vadd.f32 %v175, %v592
  %v594 = vpop.f32.mrb[0].mxu0
  %v595 = vpop.f32.mrb[0].mxu0
  %v596 = vadd.f32 %v180, %v595
  %v597 = vpop.f32.mrb[0].mxu0
  %598 = vmatprep.mubr.bf16.mxu0 %v312
  %599 = vmatmul.mubr.bf16.gmra.mrb[0].mxu0 %v311
  %v600 = vpop.f32.mrb[0].mxu0
  %v601 = vadd.f32 %v185, %v600
  %v602 = vpop.f32.mrb[0].mxu0
  %v603 = vpop.f32.mrb[0].mxu0
  %v604 = vadd.f32 %v190, %v603
  %v605 = vpop.f32.mrb[0].mxu0
  %606 = vmatprep.mubr.bf16.mxu0 %v316
  %607 = vmatmul.mubr.bf16.gmra.mrb[0].mxu0 %v315
  %v608 = vpop.f32.mrb[0].mxu0
  %v609 = vadd.f32 %v195, %v608
  %v610 = vpop.f32.mrb[0].mxu0
  %v611 = vpop.f32.mrb[0].mxu0
  %v612 = vpop.f32.mrb[0].mxu0
  %613 = vdwg.mxu0
  %614 = vmatprep.subr.bf16.mxu0 0
  %615 = vmatpush1.bf16.msra.mxu0 %v459
  %616 = vmatprep.subr.bf16.mxu0 0
  %617 = vmatpush1.bf16.msra.mxu0 %v460
  %618 = vmatprep.subr.bf16.mxu0 0
  %619 = vmatpush1.bf16.msra.mxu0 %v461
  %620 = vmatprep.subr.bf16.mxu0 0
  %621 = vmatpush1.bf16.msra.mxu0 %v462
  %622 = vmatprep.subr.bf16.mxu0 0
  %623 = vmatpush1.bf16.msra.mxu0 %v463
  %624 = vmatprep.subr.bf16.mxu0 0
  %625 = vmatpush1.bf16.msra.mxu0 %v464
  %626 = vmatprep.subr.bf16.mxu0 0
  %627 = vmatpush1.bf16.msra.mxu0 %v465
  %628 = vmatprep.subr.bf16.mxu0 0
  %629 = vmatpush1.bf16.msra.mxu0 %v466
  %630 = vmatprep.subr.bf16.mxu0 0
  %631 = vmatpush1.bf16.msra.mxu0 %v467
  %632 = vmatprep.subr.bf16.mxu0 0
  %633 = vmatpush1.bf16.msra.mxu0 0
  %634 = vmatprep.subr.bf16.mxu0 0
  %635 = vmatpush1.bf16.msra.mxu0 0
  %636 = vmatprep.subr.bf16.mxu0 0
  %637 = vmatpush1.bf16.msra.mxu0 0
  %638 = vmatprep.subr.bf16.mxu0 0
  %639 = vmatpush1.bf16.msra.mxu0 0
  %640 = vmatprep.subr.bf16.mxu0 0
  %641 = vmatpush1.bf16.msra.mxu0 0
  %642 = vmatprep.subr.bf16.mxu0 0
  %643 = vmatpush1.bf16.msra.mxu0 0
  %644 = vmatprep.subr.bf16.mxu0 0
  %645 = vmatpush1.bf16.msra.mxu0 0
  %646 = vmatprep.mubr.bf16.mxu0 %v495
  %647 = vmatmul.mubr.bf16.gmra.mrb[0].mxu0 %v289
  %v648 = vpop.f32.mrb[0].mxu0
  %v649 = vadd.f32 %v553, %v648
  %v650 = vpop.f32.mrb[0].mxu0
  %v651 = vpop.f32.mrb[0].mxu0
  %v652 = vadd.f32 %v556, %v651
  %v653 = vpop.f32.mrb[0].mxu0
  %654 = vmatprep.mubr.bf16.mxu0 %v498
  %655 = vmatmul.mubr.bf16.gmra.mrb[0].mxu0 %v293
  %v656 = vpop.f32.mrb[0].mxu0
  %v657 = vadd.f32 %v561, %v656
  %v658 = vpop.f32.mrb[0].mxu0
  %v659 = vpop.f32.mrb[0].mxu0
  %v660 = vadd.f32 %v564, %v659
  %v661 = vpop.f32.mrb[0].mxu0
  %662 = vmatprep.mubr.bf16.mxu0 %v501
  %663 = vmatmul.mubr.bf16.gmra.mrb[0].mxu0 %v297
  %v664 = vpop.f32.mrb[0].mxu0
  %v665 = vadd.f32 %v569, %v664
  %v666 = vpop.f32.mrb[0].mxu0
  %v667 = vpop.f32.mrb[0].mxu0
  %v668 = vadd.f32 %v572, %v667
  %v669 = vpop.f32.mrb[0].mxu0
  %670 = vmatprep.mubr.bf16.mxu0 %v504
  %671 = vmatmul.mubr.bf16.gmra.mrb[0].mxu0 %v301
  %v672 = vpop.f32.mrb[0].mxu0
  %v673 = vadd.f32 %v577, %v672
  %v674 = vpop.f32.mrb[0].mxu0
  %v675 = vpop.f32.mrb[0].mxu0
  %v676 = vadd.f32 %v580, %v675
  %v677 = vpop.f32.mrb[0].mxu0
  %678 = vmatprep.mubr.bf16.mxu0 %v507
  %679 = vmatmul.mubr.bf16.gmra.mrb[0].mxu0 %v305
  %v680 = vpop.f32.mrb[0].mxu0
  %v681 = vadd.f32 %v585, %v680
  %v682 = vpop.f32.mrb[0].mxu0
  %v683 = vpop.f32.mrb[0].mxu0
  %v684 = vadd.f32 %v588, %v683
  %v685 = vpop.f32.mrb[0].mxu0
  %686 = vmatprep.mubr.bf16.mxu0 %v510
  %687 = vmatmul.mubr.bf16.gmra.mrb[0].mxu0 %v309
  %v688 = vpop.f32.mrb[0].mxu0
  %v689 = vadd.f32 %v593, %v688
  %v690 = vpop.f32.mrb[0].mxu0
  %v691 = vpop.f32.mrb[0].mxu0
  %v692 = vadd.f32 %v596, %v691
  %v693 = vpop.f32.mrb[0].mxu0
  %694 = vmatprep.mubr.bf16.mxu0 %v513
  %695 = vmatmul.mubr.bf16.gmra.mrb[0].mxu0 %v313
  %v696 = vpop.f32.mrb[0].mxu0
  %v697 = vadd.f32 %v601, %v696
  %v698 = vpop.f32.mrb[0].mxu0
  %v699 = vpop.f32.mrb[0].mxu0
  %v700 = vadd.f32 %v604, %v699
  %v701 = vpop.f32.mrb[0].mxu0
  %702 = vmatprep.mubr.bf16.mxu0 %v516
  %703 = vmatmul.mubr.bf16.gmra.mrb[0].mxu0 %v317
  %v704 = vpop.f32.mrb[0].mxu0
  %v705 = vadd.f32 %v609, %v704
  %v706 = vpop.f32.mrb[0].mxu0
  %v707 = vpop.f32.mrb[0].mxu0
  %v708 = vpop.f32.mrb[0].mxu0
  %709 = vdwg.mxu0
  %v710 = vmax.f32 %v649, 0.0
  %v711 = vmax.f32 %v652, 0.0
  %v712 = vmax.f32 %v657, 0.0
  %v713 = vmax.f32 %v660, 0.0
  %v714 = vmax.f32 %v665, 0.0
  %v715 = vmax.f32 %v668, 0.0
  %v716 = vmax.f32 %v673, 0.0
  %v717 = vmax.f32 %v676, 0.0
  %v718 = vmax.f32 %v681, 0.0
  %v719 = vmax.f32 %v684, 0.0
  %v720 = vmax.f32 %v689, 0.0
  %v721 = vmax.f32 %v692, 0.0
  %v722 = vmax.f32 %v697, 0.0
  %v723 = vmax.f32 %v700, 0.0
  %v724 = vmax.f32 %v705, 0.0
  %v725 = vld [vmem:[%s3] sm:$0xf]
  %v726 = vld [vmem:[%s3 + $0x4] sm:$0xf]
  %v727 = vld [vmem:[%s3 + $0x8] sm:$0xf]
  %v728 = vld [vmem:[%s3 + $0xc] sm:$0xf]
  %v729 = vld [vmem:[%s3 + $0x10] sm:$0xf]
  %v730 = vld [vmem:[%s3 + $0x14] sm:$0xf]
  %v731 = vld [vmem:[%s3 + $0x18] sm:$0xf]
  %v732 = vld [vmem:[%s3 + $0x1c] sm:$0xf]
  %v733 = vld [vmem:[%s3 + $0x20] sm:$0xf]
  %v734 = vld [vmem:[%s3 + $0x24] sm:$0xf]
  %v735 = vld [vmem:[%s3 + $0x28] sm:$0x3]
  %v736 = vpack.c.bf16 %v711, %v710
  %v737 = vpack.c.bf16 %v713, %v712
  %v738 = vpack.c.bf16 %v715, %v714
  %v739 = vpack.c.bf16 %v717, %v716
  %v740 = vpack.c.bf16 %v719, %v718
  %v741 = vpack.c.bf16 %v721, %v720
  %v742 = vpack.c.bf16 %v723, %v722
  %v743 = vpack.c.bf16 %v724, %v724
  %v744 = vld [vmem:[%s4] sm:$0xff]
  %v745 = vld [vmem:[%s4 + $0x8] sm:$0xff]
  %v746 = vld [vmem:[%s4 + $0x10] sm:$0xff]
  %v747 = vld [vmem:[%s4 + $0x18] sm:$0xff]
  %v748 = vld [vmem:[%s4 + $0x20] sm:$0xff]
  %v749 = vld [vmem:[%s4 + $0x28] sm:$0xff]
  %v750 = vld [vmem:[%s4 + $0x30] sm:$0xff]
  %v751 = vld [vmem:[%s4 + $0x38] sm:$0xff]
  %v752 = vld [vmem:[%s4 + $0x40] sm:$0xff]
  %v753 = vld [vmem:[%s4 + $0x48] sm:$0xff]
  %v754 = vld [vmem:[%s4 + $0x50] sm:$0xf]
  %756 = vset.pattern.permute.xlu0 0
  %757 = vperm.xlu0 %756, %v744
  %v758 = vpop.permute.xlu0 %757
  %761 = vset.pattern.permute.xlu0 0
  %762 = vperm.xlu0 %761, %v745
  %v763 = vpop.permute.xlu0 %762
  %766 = vset.pattern.permute.xlu0 0
  %767 = vperm.xlu0 %766, %v746
  %v768 = vpop.permute.xlu0 %767
  %771 = vset.pattern.permute.xlu0 0
  %772 = vperm.xlu0 %771, %v747
  %v773 = vpop.permute.xlu0 %772
  %776 = vset.pattern.permute.xlu0 0
  %777 = vperm.xlu0 %776, %v748
  %v778 = vpop.permute.xlu0 %777
  %781 = vset.pattern.permute.xlu0 0
  %782 = vperm.xlu0 %781, %v749
  %v783 = vpop.permute.xlu0 %782
  %786 = vset.pattern.permute.xlu0 0
  %787 = vperm.xlu0 %786, %v750
  %v788 = vpop.permute.xlu0 %787
  %791 = vset.pattern.permute.xlu0 0
  %792 = vperm.xlu0 %791, %v751
  %v793 = vpop.permute.xlu0 %792
  %796 = vset.pattern.permute.xlu0 0
  %797 = vperm.xlu0 %796, %v752
  %v798 = vpop.permute.xlu0 %797
  %801 = vset.pattern.permute.xlu0 0
  %802 = vperm.xlu0 %801, %v753
  %v803 = vpop.permute.xlu0 %802
  %806 = vset.pattern.permute.xlu0 0
  %807 = vperm.xlu0 %806, %v754
  %v808 = vpop.permute.xlu0 %807
  %v821 = vunpack.c.l.b16 %v725
  %v822 = vunpack.c.l.b16 %v726
  %v823 = vunpack.c.l.b16 %v727
  %v824 = vunpack.c.l.b16 %v728
  %v825 = vunpack.c.l.b16 %v729
  %v826 = vunpack.c.l.b16 %v730
  %v827 = vunpack.c.l.b16 %v731
  %v828 = vunpack.c.l.b16 %v732
  %v829 = vunpack.c.l.b16 %v733
  %v830 = vunpack.c.l.b16 %v734
  %v831 = vunpack.c.l.b16 %v735
  %v832 = vpack.c.b16 %v822, %v821
  %v833 = vpack.c.b16 %v824, %v823
  %v834 = vpack.c.b16 %v826, %v825
  %v835 = vpack.c.b16 %v828, %v827
  %v836 = vpack.c.b16 %v830, %v829
  %v837 = vpack.c.b16 %v831, %v831
  %vm838 = vcmask 982016
  %v840 = vsel %vm838, %v832, 0
  %v843 = vsel %vm838, %v833, 0
  %v846 = vsel %vm838, %v834, 0
  %v849 = vsel %vm838, %v835, 0
  %v852 = vsel %vm838, %v836, 0
  %v855 = vsel %vm838, %v837, 0
  %vm857 = vcmask 1043456
  %v859 = vsel %vm857, %v743, 0
  %861 = vmatprep.subr.bf16.mxu0 0
  %862 = vmatpush1.bf16.msra.mxu0 %v736
  %863 = vmatprep.subr.bf16.mxu0 0
  %864 = vmatpush1.bf16.msra.mxu0 %v737
  %865 = vmatprep.subr.bf16.mxu0 0
  %866 = vmatpush1.bf16.msra.mxu0 %v738
  %867 = vmatprep.subr.bf16.mxu0 0
  %868 = vmatpush1.bf16.msra.mxu0 %v739
  %869 = vmatprep.subr.bf16.mxu0 0
  %870 = vmatpush1.bf16.msra.mxu0 %v740
  %871 = vmatprep.subr.bf16.mxu0 0
  %872 = vmatpush1.bf16.msra.mxu0 %v741
  %873 = vmatprep.subr.bf16.mxu0 0
  %874 = vmatpush1.bf16.msra.mxu0 %v742
  %875 = vmatprep.subr.bf16.mxu0 0
  %876 = vmatpush1.bf16.msra.mxu0 %v859
  %877 = vmatprep.subr.bf16.mxu0 0
  %878 = vmatpush1.bf16.msra.mxu0 0
  %879 = vmatprep.subr.bf16.mxu0 0
  %880 = vmatpush1.bf16.msra.mxu0 0
  %881 = vmatprep.subr.bf16.mxu0 0
  %882 = vmatpush1.bf16.msra.mxu0 0
  %883 = vmatprep.subr.bf16.mxu0 0
  %884 = vmatpush1.bf16.msra.mxu0 0
  %885 = vmatprep.subr.bf16.mxu0 0
  %886 = vmatpush1.bf16.msra.mxu0 0
  %887 = vmatprep.subr.bf16.mxu0 0
  %888 = vmatpush1.bf16.msra.mxu0 0
  %889 = vmatprep.subr.bf16.mxu0 0
  %890 = vmatpush1.bf16.msra.mxu0 0
  %891 = vmatprep.subr.bf16.mxu0 0
  %892 = vmatpush1.bf16.msra.mxu0 0
  %893 = vmatprep.mubr.bf16.mxu0 0
  %894 = vmatmul.mubr.bf16.gmra.mrb[0].mxu0 %v840
  %v895 = vpop.f32.mrb[0].mxu0
  %v896 = vadd.f32 %v758, %v895
  %v897 = vpop.f32.mrb[0].mxu0
  %v898 = vpop.f32.mrb[0].mxu0
  %v899 = vadd.f32 %v763, %v898
  %v900 = vpop.f32.mrb[0].mxu0
  %901 = vmatprep.mubr.bf16.mxu0 0
  %902 = vmatmul.mubr.bf16.gmra.mrb[0].mxu0 %v843
  %v903 = vpop.f32.mrb[0].mxu0
  %v904 = vadd.f32 %v768, %v903
  %v905 = vpop.f32.mrb[0].mxu0
  %v906 = vpop.f32.mrb[0].mxu0
  %v907 = vadd.f32 %v773, %v906
  %v908 = vpop.f32.mrb[0].mxu0
  %909 = vmatprep.mubr.bf16.mxu0 0
  %910 = vmatmul.mubr.bf16.gmra.mrb[0].mxu0 %v846
  %v911 = vpop.f32.mrb[0].mxu0
  %v912 = vadd.f32 %v778, %v911
  %v913 = vpop.f32.mrb[0].mxu0
  %v914 = vpop.f32.mrb[0].mxu0
  %v915 = vadd.f32 %v783, %v914
  %v916 = vpop.f32.mrb[0].mxu0
  %917 = vmatprep.mubr.bf16.mxu0 0
  %918 = vmatmul.mubr.bf16.gmra.mrb[0].mxu0 %v849
  %v919 = vpop.f32.mrb[0].mxu0
  %v920 = vadd.f32 %v788, %v919
  %v921 = vpop.f32.mrb[0].mxu0
  %v922 = vpop.f32.mrb[0].mxu0
  %v923 = vadd.f32 %v793, %v922
  %v924 = vpop.f32.mrb[0].mxu0
  %925 = vmatprep.mubr.bf16.mxu0 0
  %926 = vmatmul.mubr.bf16.gmra.mrb[0].mxu0 %v852
  %v927 = vpop.f32.mrb[0].mxu0
  %v928 = vadd.f32 %v798, %v927
  %v929 = vpop.f32.mrb[0].mxu0
  %v930 = vpop.f32.mrb[0].mxu0
  %v931 = vadd.f32 %v803, %v930
  %v932 = vpop.f32.mrb[0].mxu0
  %933 = vmatprep.mubr.bf16.mxu0 0
  %934 = vmatmul.mubr.bf16.gmra.mrb[0].mxu0 %v855
  %v935 = vpop.f32.mrb[0].mxu0
  %v936 = vadd.f32 %v808, %v935
  %v937 = vpop.f32.mrb[0].mxu0
  %v938 = vpop.f32.mrb[0].mxu0
  %v939 = vpop.f32.mrb[0].mxu0
  %940 = vdwg.mxu0
  %v941 = vmax.f32 %v896, 0.0
  %v942 = vmax.f32 %v899, 0.0
  %v943 = vmax.f32 %v904, 0.0
  %v944 = vmax.f32 %v907, 0.0
  %v945 = vmax.f32 %v912, 0.0
  %v946 = vmax.f32 %v915, 0.0
  %v947 = vmax.f32 %v920, 0.0
  %v948 = vmax.f32 %v923, 0.0
  %v949 = vmax.f32 %v928, 0.0
  %v950 = vmax.f32 %v931, 0.0
  %v951 = vmax.f32 %v936, 0.0
  %v952 = vld [vmem:[%s5] sm:$0xf]
  %v953 = vld [vmem:[%s5 + $0x4] sm:$0x1]
  %v954 = vpack.c.bf16 %v942, %v941
  %v955 = vpack.c.bf16 %v944, %v943
  %v956 = vpack.c.bf16 %v946, %v945
  %v957 = vpack.c.bf16 %v948, %v947
  %v958 = vpack.c.bf16 %v950, %v949
  %v959 = vpack.c.bf16 %v951, %v951
  %v960 = vld [vmem:[%s6] sm:$0xff]
  %v961 = vld [vmem:[%s6 + $0x8] sm:$0x3]
  %963 = vset.pattern.permute.xlu0 0
  %964 = vperm.xlu0 %963, %v960
  %v965 = vpop.permute.xlu0 %964
  %968 = vset.pattern.permute.xlu0 0
  %969 = vperm.xlu0 %968, %v961
  %v970 = vpop.permute.xlu0 %969
  %v974 = vunpack.c.l.b16 %v952
  %v975 = vunpack.c.l.b16 %v953
  %v976 = vpack.c.b16 %v975, %v974
  %vm977 = vcmask 687104
  %v979 = vsel %vm977, %v976, 0
  %vm981 = vcmask 1041408
  %v983 = vsel %vm981, %v959, 0
  %985 = vmatprep.subr.bf16.mxu0 0
  %986 = vmatpush1.bf16.msra.mxu0 %v954
  %987 = vmatprep.subr.bf16.mxu0 0
  %988 = vmatpush1.bf16.msra.mxu0 %v955
  %989 = vmatprep.subr.bf16.mxu0 0
  %990 = vmatpush1.bf16.msra.mxu0 %v956
  %991 = vmatprep.subr.bf16.mxu0 0
  %992 = vmatpush1.bf16.msra.mxu0 %v957
  %993 = vmatprep.subr.bf16.mxu0 0
  %994 = vmatpush1.bf16.msra.mxu0 %v958
  %995 = vmatprep.subr.bf16.mxu0 0
  %996 = vmatpush1.bf16.msra.mxu0 %v983
  %997 = vmatprep.subr.bf16.mxu0 0
  %998 = vmatpush1.bf16.msra.mxu0 0
  %999 = vmatprep.subr.bf16.mxu0 0
  %1000 = vmatpush1.bf16.msra.mxu0 0
  %1001 = vmatprep.subr.bf16.mxu0 0
  %1002 = vmatpush1.bf16.msra.mxu0 0
  %1003 = vmatprep.subr.bf16.mxu0 0
  %1004 = vmatpush1.bf16.msra.mxu0 0
  %1005 = vmatprep.subr.bf16.mxu0 0
  %1006 = vmatpush1.bf16.msra.mxu0 0
  %1007 = vmatprep.subr.bf16.mxu0 0
  %1008 = vmatpush1.bf16.msra.mxu0 0
  %1009 = vmatprep.subr.bf16.mxu0 0
  %1010 = vmatpush1.bf16.msra.mxu0 0
  %1011 = vmatprep.subr.bf16.mxu0 0
  %1012 = vmatpush1.bf16.msra.mxu0 0
  %1013 = vmatprep.subr.bf16.mxu0 0
  %1014 = vmatpush1.bf16.msra.mxu0 0
  %1015 = vmatprep.subr.bf16.mxu0 0
  %1016 = vmatpush1.bf16.msra.mxu0 0
  %1017 = vmatprep.mubr.bf16.mxu0 0
  %1018 = vmatmul.mubr.bf16.gmra.mrb[0].mxu0 %v979
  %v1019 = vpop.f32.mrb[0].mxu0
  %v1020 = vadd.f32 %v965, %v1019
  %v1021 = vpop.f32.mrb[0].mxu0
  %v1022 = vpop.f32.mrb[0].mxu0
  %v1023 = vadd.f32 %v970, %v1022
  %v1024 = vpop.f32.mrb[0].mxu0
  %1025 = vdwg.mxu0
  %vm1026 = vcmask 15360
  %1027 = vst.msk [vmem:[%s7] sm:$0xff] %vm1026, %v1020
  %vm1028 = vcmask 9216
  %1029 = vst.msk [vmem:[%s7 + $0x8] sm:$0x3] %vm1028, %v1023
  // Predicated region
  $region30: #{lenet5_forward.5} parent=0 // pred_check
    _
  $region31: #{lenet5_forward.5} parent=0 // pred_check_branch
    %1031 = sbr.rel (0) target = $region33
  $region32: #{lenet5_forward.5} parent=0 // pred_region
    _
  $region33: #{lenet5_forward.5} parent=0 // pred_fallthru
    _
  // Predicated region
  $region34: #{lenet5_forward.5} parent=0 // pred_check
    _
  $region35: #{lenet5_forward.5} parent=0 // pred_check_branch
    %1033 = sbr.rel (0) target = $region37
  $region36: #{lenet5_forward.5} parent=0 // pred_region
    _
  $region37: #{lenet5_forward.5} parent=0 // pred_fallthru
    _

</llo_original>
